<compile_context>
chip_gen: v7x
topology: tpu7x:2x2x1
jax: 0.10.0
libtpu: 0.0.40
codegen_flags: <defaults>
</compile_context>

<pallas_src>
import jax
import jax.numpy as jnp
from jax import lax
from jax.experimental import pallas as pl
from jax.experimental.pallas import tpu as pltpu

EPS = 1e-5  # PyTorch BatchNorm2d default


def _conv1_im2col_acc(x_ref, w1_ref, xpad_scr):
    """Stride-2 / pad-1 / 3x3 conv of an (NB, H, W, C0) NHWC block.

    Builds the 1-pixel halo in VMEM (zeroing only the ring the taps read) and
    accumulates nine small MXU dots instead of materializing an im2col
    matrix.  Returns the conv output as an (NB*H1*W1, C1) f32 value.
    """
    NB, H, W, C0 = x_ref.shape
    C1 = w1_ref.shape[1]
    H1, W1 = (H + 1) // 2, (W + 1) // 2
    HP, WP = xpad_scr.shape[1], xpad_scr.shape[2]
    M = NB * H1 * W1

    # Halo: zero only the pad cells the taps read, then one interior store.
    xpad_scr[:, 0:1, :, :] = jnp.zeros((NB, 1, WP, C0), jnp.float32)
    xpad_scr[:, :, 0:1, :] = jnp.zeros((NB, HP, 1, C0), jnp.float32)
    if HP > H + 1:   # only needed when H is odd
        xpad_scr[:, H + 1:HP, :, :] = jnp.zeros((NB, HP - (H + 1), WP, C0),
                                                jnp.float32)
    if WP > W + 1:   # only needed when W is odd
        xpad_scr[:, :, W + 1:WP, :] = jnp.zeros((NB, HP, WP - (W + 1), C0),
                                                jnp.float32)
    xpad_scr[:, 1:H + 1, 1:W + 1, :] = x_ref[...]

    acc = jnp.zeros((M, C1), jnp.float32)
    for kh in range(3):
        for kw in range(3):
            tap = xpad_scr[:, pl.ds(kh, H1, 2), pl.ds(kw, W1, 2), :]
            t = (kh * 3 + kw) * C0
            acc = acc + jnp.dot(tap.reshape(M, C0), w1_ref[t:t + C0, :],
                                preferred_element_type=jnp.float32)
    return acc


def _conv1_stats_kernel(x_ref, w1_ref, sum_ref, ssq_ref, xpad_scr):
    """Phase A: conv1 + fused single-pass BN partial statistics.

    Only the tiny (1, C1) partial sums leave the kernel; conv1 is recomputed
    in Phase B, so the conv1 activation never round-trips HBM.
    """
    z = _conv1_im2col_acc(x_ref, w1_ref, xpad_scr)          # (NB*H1*W1, C1)
    sum_ref[...] = jnp.sum(z, axis=0, keepdims=True)
    ssq_ref[...] = jnp.sum(z * z, axis=0, keepdims=True)


def _bn_relu_conv2_kernel(x_ref, w1_ref, scale_ref, shift_ref, w2_ref,
                          y2_ref, y1_ref, xpad_scr, ypad_scr):
    """Phase B: conv1 (recomputed) + BN-apply + ReLU + conv2."""
    NB, H1, W1, C1 = y1_ref.shape
    _, H2, W2, C2 = y2_ref.shape
    HP1, WP1 = ypad_scr.shape[1], ypad_scr.shape[2]
    M2 = NB * H2 * W2

    z = _conv1_im2col_acc(x_ref, w1_ref, xpad_scr)           # (NB*H1*W1, C1)
    y = jnp.maximum(z * scale_ref[...] + shift_ref[...], 0.0)  # BN + ReLU

    # Write the ReLU result once, into the conv2 halo slab; y1 comes from it.
    ypad_scr[:, 0:1, :, :] = jnp.zeros((NB, 1, WP1, C1), jnp.float32)
    ypad_scr[:, :, 0:1, :] = jnp.zeros((NB, HP1, 1, C1), jnp.float32)
    if HP1 > H1 + 1:
        ypad_scr[:, H1 + 1:HP1, :, :] = jnp.zeros((NB, HP1 - (H1 + 1), WP1, C1),
                                                  jnp.float32)
    if WP1 > W1 + 1:
        ypad_scr[:, :, W1 + 1:WP1, :] = jnp.zeros((NB, HP1, WP1 - (W1 + 1), C1),
                                                  jnp.float32)
    ypad_scr[:, 1:H1 + 1, 1:W1 + 1, :] = y.reshape(NB, H1, W1, C1)
    y1_ref[...] = ypad_scr[:, 1:H1 + 1, 1:W1 + 1, :]

    # conv2 as nine accumulating dots (K = C1 = 16 each).
    acc = jnp.zeros((M2, C2), jnp.float32)
    for kh in range(3):
        for kw in range(3):
            tap = ypad_scr[:, pl.ds(kh, H2, 2), pl.ds(kw, W2, 2), :]
            t = (kh * 3 + kw) * C1
            acc = acc + jnp.dot(tap.reshape(M2, C1), w2_ref[t:t + C1, :],
                                preferred_element_type=jnp.float32)
    y2_ref[...] = acc.reshape(NB, H2, W2, C2)


def _pick_batch_tile(n, h, w):
    """Largest batch tile NB (dividing n) whose per-step footprint fits a
    conservative VMEM budget (safe on v7x's 64 MiB; v5e/v6e have headroom)."""
    lane = 128  # worst-case lane padding of the small channel dims
    h1, w1 = (h + 1) // 2, (w + 1) // 2
    h2, w2 = (h1 + 1) // 2, (w1 + 1) // 2
    per_image = 4 * lane * (
        2 * h * w                                  # double-buffered input block
        + (2 * h1 + 1) * (2 * w1 + 1)              # conv1 halo scratch
        + (2 * h2 + 1) * (2 * w2 + 1)              # conv2 halo scratch
        + 3 * h1 * w1 + 2 * h2 * w2                # activations / accumulators
    )
    budget = 24 * 1024 * 1024
    nb = max(1, min(n, budget // max(per_image, 1)))
    while n % nb:
        nb -= 1
    return nb


def densenet_initial_layers(x_nchw, w1, gamma, beta, w2):
    """x_nchw: (N, 3, H, W). Returns (conv2_out, prev_scale_x) in NCHW."""
    N, C0, H, W = x_nchw.shape
    C1 = w1.shape[-1]
    C2 = w2.shape[-1]
    H1, W1 = (H + 1) // 2, (W + 1) // 2
    H2, W2 = (H1 + 1) // 2, (W1 + 1) // 2
    HP, WP = 2 * H1 + 1, 2 * W1 + 1      # conv1 halo extent actually read
    HP1, WP1 = 2 * H2 + 1, 2 * W2 + 1    # conv2 halo extent actually read

    NB = _pick_batch_tile(N, H, W)
    G = N // NB

    # Boundary layout change only (channels to the minor dim for MXU dots).
    x_nhwc = jnp.transpose(x_nchw, (0, 2, 3, 1)).astype(jnp.float32)
    w1_mat = w1.astype(jnp.float32).reshape(9 * C0, C1)   # (kh,kw,cin) x cout
    w2_mat = w2.astype(jnp.float32).reshape(9 * C1, C2)

    cparams = pltpu.CompilerParams(
        dimension_semantics=("parallel",),        # megacore-shard batch tiles
        vmem_limit_bytes=48 * 1024 * 1024,        # within v7x physical VMEM
    )

    # ---------------- Phase A: conv1 + BN partial statistics ----------------
    psum, pssq = pl.pallas_call(
        _conv1_stats_kernel,
        out_shape=(
            jax.ShapeDtypeStruct((G, 1, C1), jnp.float32),
            jax.ShapeDtypeStruct((G, 1, C1), jnp.float32),
        ),
        grid_spec=pltpu.PrefetchScalarGridSpec(
            num_scalar_prefetch=0,
            grid=(G,),
            in_specs=[
                pl.BlockSpec((NB, H, W, C0), lambda n: (n, 0, 0, 0)),
                pl.BlockSpec((9 * C0, C1), lambda n: (0, 0)),
            ],
            out_specs=(
                pl.BlockSpec((pl.Squeezed(), 1, C1), lambda n: (n, 0, 0)),
                pl.BlockSpec((pl.Squeezed(), 1, C1), lambda n: (n, 0, 0)),
            ),
            scratch_shapes=[pltpu.VMEM((NB, HP, WP, C0), jnp.float32)],
        ),
        compiler_params=cparams,
    )(x_nhwc, w1_mat)

    # -------- tiny JAX reduce: global BN statistics -> scale / shift --------
    count = jnp.float32(N * H1 * W1)
    mean = jnp.sum(psum[:, 0, :], axis=0) / count
    ex2 = jnp.sum(pssq[:, 0, :], axis=0) / count
    var = jnp.maximum(ex2 - mean * mean, 0.0)   # clamp: guard cancellation
    scale = gamma.astype(jnp.float32) * lax.rsqrt(var + EPS)
    shift = beta.astype(jnp.float32) - mean * scale

    # ---------------- Phase B: conv1 + BN + ReLU + conv2 ----------------
    y2, y1 = pl.pallas_call(
        _bn_relu_conv2_kernel,
        out_shape=(
            jax.ShapeDtypeStruct((N, H2, W2, C2), jnp.float32),
            jax.ShapeDtypeStruct((N, H1, W1, C1), jnp.float32),
        ),
        grid_spec=pltpu.PrefetchScalarGridSpec(
            num_scalar_prefetch=0,
            grid=(G,),
            in_specs=[
                pl.BlockSpec((NB, H, W, C0), lambda n: (n, 0, 0, 0)),
                pl.BlockSpec((9 * C0, C1), lambda n: (0, 0)),
                pl.BlockSpec((1, C1), lambda n: (0, 0)),
                pl.BlockSpec((1, C1), lambda n: (0, 0)),
                pl.BlockSpec((9 * C1, C2), lambda n: (0, 0)),
            ],
            out_specs=(
                pl.BlockSpec((NB, H2, W2, C2), lambda n: (n, 0, 0, 0)),
                pl.BlockSpec((NB, H1, W1, C1), lambda n: (n, 0, 0, 0)),
            ),
            scratch_shapes=[
                pltpu.VMEM((NB, HP, WP, C0), jnp.float32),
                pltpu.VMEM((NB, HP1, WP1, C1), jnp.float32),
            ],
        ),
        compiler_params=cparams,
    )(x_nhwc, w1_mat, scale.reshape(1, C1), shift.reshape(1, C1), w2_mat)

    # Back to PyTorch NCHW convention at the boundary.
    return jnp.transpose(y2, (0, 3, 1, 2)), jnp.transpose(y1, (0, 3, 1, 2))


def _reference_forward(x_nchw, w1, gamma, beta, w2):
    """Pure-JAX reference (matches the PyTorch module)."""
    w1_oihw = jnp.transpose(w1, (3, 2, 0, 1))
    y = lax.conv_general_dilated(
        x_nchw, w1_oihw, window_strides=(2, 2), padding=((1, 1), (1, 1)),
        dimension_numbers=("NCHW", "OIHW", "NCHW"))
    mean = y.mean(axis=(0, 2, 3), keepdims=True)
    var = ((y - mean) ** 2).mean(axis=(0, 2, 3), keepdims=True)
    y = (y - mean) * lax.rsqrt(var + EPS)
    y = y * gamma.reshape(1, -1, 1, 1) + beta.reshape(1, -1, 1, 1)
    y = jnp.maximum(y, 0.0)
    prev = y
    w2_oihw = jnp.transpose(w2, (3, 2, 0, 1))
    y2 = lax.conv_general_dilated(
        y, w2_oihw, window_strides=(2, 2), padding=((1, 1), (1, 1)),
        dimension_numbers=("NCHW", "OIHW", "NCHW"))
    return y2, prev


if __name__ == "__main__":
    growth_rate = 8
    c_next = 2 * growth_rate   # 16
    c_out = 4 * growth_rate    # 32

    key = jax.random.PRNGKey(0)
    k_x, k_w1, k_w2 = jax.random.split(key, 3)

    N, H, W = 2, 16, 16
    x = jax.random.normal(k_x, (N, 3, H, W), dtype=jnp.float32)

    # Kaiming-normal init (fan_in mode): std = sqrt(2 / (Cin * kh * kw)).
    std1 = (2.0 / (3 * 3 * 3)) ** 0.5
    std2 = (2.0 / (c_next * 3 * 3)) ** 0.5
    w1 = std1 * jax.random.normal(k_w1, (3, 3, 3, c_next), dtype=jnp.float32)
    w2 = std2 * jax.random.normal(k_w2, (3, 3, c_next, c_out), dtype=jnp.float32)
    gamma = jnp.ones((c_next,), jnp.float32)   # BatchNorm affine weight
    beta = jnp.zeros((c_next,), jnp.float32)   # BatchNorm affine bias

    y2, prev = jax.jit(densenet_initial_layers)(x, w1, gamma, beta, w2)
    jax.block_until_ready((y2, prev))

    y2_ref, prev_ref = _reference_forward(x, w1, gamma, beta, w2)
    assert y2.shape == (N, c_out, 4, 4) and prev.shape == (N, c_next, 8, 8)
    assert jnp.allclose(y2, y2_ref, atol=5e-4, rtol=5e-4)
    assert jnp.allclose(prev, prev_ref, atol=5e-4, rtol=5e-4)

    print("KERNEL_OK")
</pallas_src>

<mosaic_0001>
module attributes {stable_mosaic.version = 11 : i64} {
  func.func @_conv1_stats_kernel(%arg0: i32, %arg1: memref<2x16x16x3xf32, #tpu.memory_space<vmem>>, %arg2: memref<27x16xf32, #tpu.memory_space<vmem>>, %arg3: memref<1x1x16xf32, #tpu.memory_space<vmem>>, %arg4: memref<1x1x16xf32, #tpu.memory_space<vmem>>, %arg5: memref<2x17x17x3xf32, #tpu.memory_space<vmem>>) attributes {dimension_semantics = [#tpu.dimension_semantics<parallel>], iteration_bounds = array<i64: 1>, scalar_prefetch = 0 : i64, scratch_operands = 1 : i64, tpu.core_type = #tpu.core_type<tc>, window_params = [{transform_indices = @transform_0, window_bounds = array<i64: 2, 16, 16, 3>}, {pipeline_mode = #tpu.pipeline_mode<synchronous>, transform_indices = @transform_1, window_bounds = array<i64: 27, 16>}, {transform_indices = @transform_2, window_bounds = array<i64: 1, 1, 16>}, {transform_indices = @transform_3, window_bounds = array<i64: 1, 1, 16>}]} {
    %cst = arith.constant 0.000000e+00 : f32
    %0 = vector.broadcast %cst : f32 to vector<2x1x17x3xf32>
    %c0 = arith.constant 0 : index
    %c0_0 = arith.constant 0 : index
    %c0_1 = arith.constant 0 : index
    %c0_2 = arith.constant 0 : index
    %1 = vector.load %arg5[%c0, %c0_0, %c0_1, %c0_2] : memref<2x17x17x3xf32, #tpu.memory_space<vmem>>, vector<2x1x17x3xf32>
    tpu.vector_store %arg5[%c0, %c0_0, %c0_1, %c0_2], %0 {strides = array<i32>} : memref<2x17x17x3xf32, #tpu.memory_space<vmem>>, vector<2x1x17x3xf32>,
    %cst_3 = arith.constant 0.000000e+00 : f32
    %2 = vector.broadcast %cst_3 : f32 to vector<2x17x1x3xf32>
    %c0_4 = arith.constant 0 : index
    %c0_5 = arith.constant 0 : index
    %c0_6 = arith.constant 0 : index
    %c0_7 = arith.constant 0 : index
    %3 = vector.load %arg5[%c0_4, %c0_5, %c0_6, %c0_7] : memref<2x17x17x3xf32, #tpu.memory_space<vmem>>, vector<2x17x1x3xf32>
    tpu.vector_store %arg5[%c0_4, %c0_5, %c0_6, %c0_7], %2 {strides = array<i32>} : memref<2x17x17x3xf32, #tpu.memory_space<vmem>>, vector<2x17x1x3xf32>,
    %c0_8 = arith.constant 0 : index
    %c0_9 = arith.constant 0 : index
    %c0_10 = arith.constant 0 : index
    %c0_11 = arith.constant 0 : index
    %4 = vector.load %arg1[%c0_8, %c0_9, %c0_10, %c0_11] : memref<2x16x16x3xf32, #tpu.memory_space<vmem>>, vector<2x16x16x3xf32>
    %c0_12 = arith.constant 0 : index
    %c1 = arith.constant 1 : index
    %c1_13 = arith.constant 1 : index
    %c0_14 = arith.constant 0 : index
    %5 = vector.load %arg5[%c0_12, %c1, %c1_13, %c0_14] : memref<2x17x17x3xf32, #tpu.memory_space<vmem>>, vector<2x16x16x3xf32>
    tpu.vector_store %arg5[%c0_12, %c1, %c1_13, %c0_14], %4 {strides = array<i32>} : memref<2x17x17x3xf32, #tpu.memory_space<vmem>>, vector<2x16x16x3xf32>,
    %cst_15 = arith.constant 0.000000e+00 : f32
    %6 = vector.broadcast %cst_15 : f32 to vector<128x16xf32>
    %c0_16 = arith.constant 0 : index
    %c0_17 = arith.constant 0 : index
    %c0_18 = arith.constant 0 : index
    %c0_19 = arith.constant 0 : index
    %7 = tpu.strided_load %arg5[%c0_16, %c0_17, %c0_18, %c0_19] {strides = array<i32: 1, 2, 2, 1>} : memref<2x17x17x3xf32, #tpu.memory_space<vmem>>, vector<2x8x8x3xf32>
    %8 = vector.shape_cast %7 : vector<2x8x8x3xf32> to vector<128x3xf32>
    %c0_20 = arith.constant 0 : index
    %c0_21 = arith.constant 0 : index
    %9 = vector.load %arg2[%c0_20, %c0_21] : memref<27x16xf32, #tpu.memory_space<vmem>>, vector<3x16xf32>
    %cst_22 = arith.constant dense<0.000000e+00> : vector<128x16xf32>
    %10 = tpu.matmul %8, %9, %cst_22 {dimension_numbers = #tpu.dot_dimension_numbers<[1], [0], [0], [1], [0, 0, 1, 1], [], []>} : vector<128x3xf32>, vector<3x16xf32>, vector<128x16xf32> -> vector<128x16xf32>
    %11 = arith.addf %6, %10 : vector<128x16xf32>
    %c0_23 = arith.constant 0 : index
    %c0_24 = arith.constant 0 : index
    %c1_25 = arith.constant 1 : index
    %c0_26 = arith.constant 0 : index
    %12 = tpu.strided_load %arg5[%c0_23, %c0_24, %c1_25, %c0_26] {strides = array<i32: 1, 2, 2, 1>} : memref<2x17x17x3xf32, #tpu.memory_space<vmem>>, vector<2x8x8x3xf32>
    %13 = vector.shape_cast %12 : vector<2x8x8x3xf32> to vector<128x3xf32>
    %c3 = arith.constant 3 : index
    %c0_27 = arith.constant 0 : index
    %14 = vector.load %arg2[%c3, %c0_27] : memref<27x16xf32, #tpu.memory_space<vmem>>, vector<3x16xf32>
    %cst_28 = arith.constant dense<0.000000e+00> : vector<128x16xf32>
    %15 = tpu.matmul %13, %14, %cst_28 {dimension_numbers = #tpu.dot_dimension_numbers<[1], [0], [0], [1], [0, 0, 1, 1], [], []>} : vector<128x3xf32>, vector<3x16xf32>, vector<128x16xf32> -> vector<128x16xf32>
    %16 = arith.addf %11, %15 : vector<128x16xf32>
    %c0_29 = arith.constant 0 : index
    %c0_30 = arith.constant 0 : index
    %c2 = arith.constant 2 : index
    %c0_31 = arith.constant 0 : index
    %17 = tpu.strided_load %arg5[%c0_29, %c0_30, %c2, %c0_31] {strides = array<i32: 1, 2, 2, 1>} : memref<2x17x17x3xf32, #tpu.memory_space<vmem>>, vector<2x8x8x3xf32>
    %18 = vector.shape_cast %17 : vector<2x8x8x3xf32> to vector<128x3xf32>
    %c6 = arith.constant 6 : index
    %c0_32 = arith.constant 0 : index
    %19 = vector.load %arg2[%c6, %c0_32] : memref<27x16xf32, #tpu.memory_space<vmem>>, vector<3x16xf32>
    %cst_33 = arith.constant dense<0.000000e+00> : vector<128x16xf32>
    %20 = tpu.matmul %18, %19, %cst_33 {dimension_numbers = #tpu.dot_dimension_numbers<[1], [0], [0], [1], [0, 0, 1, 1], [], []>} : vector<128x3xf32>, vector<3x16xf32>, vector<128x16xf32> -> vector<128x16xf32>
    %21 = arith.addf %16, %20 : vector<128x16xf32>
    %c0_34 = arith.constant 0 : index
    %c1_35 = arith.constant 1 : index
    %c0_36 = arith.constant 0 : index
    %c0_37 = arith.constant 0 : index
    %22 = tpu.strided_load %arg5[%c0_34, %c1_35, %c0_36, %c0_37] {strides = array<i32: 1, 2, 2, 1>} : memref<2x17x17x3xf32, #tpu.memory_space<vmem>>, vector<2x8x8x3xf32>
    %23 = vector.shape_cast %22 : vector<2x8x8x3xf32> to vector<128x3xf32>
    %c9 = arith.constant 9 : index
    %c0_38 = arith.constant 0 : index
    %24 = vector.load %arg2[%c9, %c0_38] : memref<27x16xf32, #tpu.memory_space<vmem>>, vector<3x16xf32>
    %cst_39 = arith.constant dense<0.000000e+00> : vector<128x16xf32>
    %25 = tpu.matmul %23, %24, %cst_39 {dimension_numbers = #tpu.dot_dimension_numbers<[1], [0], [0], [1], [0, 0, 1, 1], [], []>} : vector<128x3xf32>, vector<3x16xf32>, vector<128x16xf32> -> vector<128x16xf32>
    %26 = arith.addf %21, %25 : vector<128x16xf32>
    %c0_40 = arith.constant 0 : index
    %c1_41 = arith.constant 1 : index
    %c1_42 = arith.constant 1 : index
    %c0_43 = arith.constant 0 : index
    %27 = tpu.strided_load %arg5[%c0_40, %c1_41, %c1_42, %c0_43] {strides = array<i32: 1, 2, 2, 1>} : memref<2x17x17x3xf32, #tpu.memory_space<vmem>>, vector<2x8x8x3xf32>
    %28 = vector.shape_cast %27 : vector<2x8x8x3xf32> to vector<128x3xf32>
    %c12 = arith.constant 12 : index
    %c0_44 = arith.constant 0 : index
    %29 = vector.load %arg2[%c12, %c0_44] : memref<27x16xf32, #tpu.memory_space<vmem>>, vector<3x16xf32>
    %cst_45 = arith.constant dense<0.000000e+00> : vector<128x16xf32>
    %30 = tpu.matmul %28, %29, %cst_45 {dimension_numbers = #tpu.dot_dimension_numbers<[1], [0], [0], [1], [0, 0, 1, 1], [], []>} : vector<128x3xf32>, vector<3x16xf32>, vector<128x16xf32> -> vector<128x16xf32>
    %31 = arith.addf %26, %30 : vector<128x16xf32>
    %c0_46 = arith.constant 0 : index
    %c1_47 = arith.constant 1 : index
    %c2_48 = arith.constant 2 : index
    %c0_49 = arith.constant 0 : index
    %32 = tpu.strided_load %arg5[%c0_46, %c1_47, %c2_48, %c0_49] {strides = array<i32: 1, 2, 2, 1>} : memref<2x17x17x3xf32, #tpu.memory_space<vmem>>, vector<2x8x8x3xf32>
    %33 = vector.shape_cast %32 : vector<2x8x8x3xf32> to vector<128x3xf32>
    %c15 = arith.constant 15 : index
    %c0_50 = arith.constant 0 : index
    %34 = vector.load %arg2[%c15, %c0_50] : memref<27x16xf32, #tpu.memory_space<vmem>>, vector<3x16xf32>
    %cst_51 = arith.constant dense<0.000000e+00> : vector<128x16xf32>
    %35 = tpu.matmul %33, %34, %cst_51 {dimension_numbers = #tpu.dot_dimension_numbers<[1], [0], [0], [1], [0, 0, 1, 1], [], []>} : vector<128x3xf32>, vector<3x16xf32>, vector<128x16xf32> -> vector<128x16xf32>
    %36 = arith.addf %31, %35 : vector<128x16xf32>
    %c0_52 = arith.constant 0 : index
    %c2_53 = arith.constant 2 : index
    %c0_54 = arith.constant 0 : index
    %c0_55 = arith.constant 0 : index
    %37 = tpu.strided_load %arg5[%c0_52, %c2_53, %c0_54, %c0_55] {strides = array<i32: 1, 2, 2, 1>} : memref<2x17x17x3xf32, #tpu.memory_space<vmem>>, vector<2x8x8x3xf32>
    %38 = vector.shape_cast %37 : vector<2x8x8x3xf32> to vector<128x3xf32>
    %c18 = arith.constant 18 : index
    %c0_56 = arith.constant 0 : index
    %39 = vector.load %arg2[%c18, %c0_56] : memref<27x16xf32, #tpu.memory_space<vmem>>, vector<3x16xf32>
    %cst_57 = arith.constant dense<0.000000e+00> : vector<128x16xf32>
    %40 = tpu.matmul %38, %39, %cst_57 {dimension_numbers = #tpu.dot_dimension_numbers<[1], [0], [0], [1], [0, 0, 1, 1], [], []>} : vector<128x3xf32>, vector<3x16xf32>, vector<128x16xf32> -> vector<128x16xf32>
    %41 = arith.addf %36, %40 : vector<128x16xf32>
    %c0_58 = arith.constant 0 : index
    %c2_59 = arith.constant 2 : index
    %c1_60 = arith.constant 1 : index
    %c0_61 = arith.constant 0 : index
    %42 = tpu.strided_load %arg5[%c0_58, %c2_59, %c1_60, %c0_61] {strides = array<i32: 1, 2, 2, 1>} : memref<2x17x17x3xf32, #tpu.memory_space<vmem>>, vector<2x8x8x3xf32>
    %43 = vector.shape_cast %42 : vector<2x8x8x3xf32> to vector<128x3xf32>
    %c21 = arith.constant 21 : index
    %c0_62 = arith.constant 0 : index
    %44 = vector.load %arg2[%c21, %c0_62] : memref<27x16xf32, #tpu.memory_space<vmem>>, vector<3x16xf32>
    %cst_63 = arith.constant dense<0.000000e+00> : vector<128x16xf32>
    %45 = tpu.matmul %43, %44, %cst_63 {dimension_numbers = #tpu.dot_dimension_numbers<[1], [0], [0], [1], [0, 0, 1, 1], [], []>} : vector<128x3xf32>, vector<3x16xf32>, vector<128x16xf32> -> vector<128x16xf32>
    %46 = arith.addf %41, %45 : vector<128x16xf32>
    %c0_64 = arith.constant 0 : index
    %c2_65 = arith.constant 2 : index
    %c2_66 = arith.constant 2 : index
    %c0_67 = arith.constant 0 : index
    %47 = tpu.strided_load %arg5[%c0_64, %c2_65, %c2_66, %c0_67] {strides = array<i32: 1, 2, 2, 1>} : memref<2x17x17x3xf32, #tpu.memory_space<vmem>>, vector<2x8x8x3xf32>
    %48 = vector.shape_cast %47 : vector<2x8x8x3xf32> to vector<128x3xf32>
    %c24 = arith.constant 24 : index
    %c0_68 = arith.constant 0 : index
    %49 = vector.load %arg2[%c24, %c0_68] : memref<27x16xf32, #tpu.memory_space<vmem>>, vector<3x16xf32>
    %cst_69 = arith.constant dense<0.000000e+00> : vector<128x16xf32>
    %50 = tpu.matmul %48, %49, %cst_69 {dimension_numbers = #tpu.dot_dimension_numbers<[1], [0], [0], [1], [0, 0, 1, 1], [], []>} : vector<128x3xf32>, vector<3x16xf32>, vector<128x16xf32> -> vector<128x16xf32>
    %51 = arith.addf %46, %50 : vector<128x16xf32>
    %cst_70 = arith.constant dense<0.000000e+00> : vector<16xf32>
    %52 = vector.multi_reduction <add>, %51, %cst_70 [0] : vector<128x16xf32> to vector<16xf32>
    %53 = vector.shape_cast %52 : vector<16xf32> to vector<1x16xf32>
    %c0_71 = arith.constant 0 : index
    %c0_72 = arith.constant 0 : index
    %c0_73 = arith.constant 0 : index
    %54 = vector.load %arg3[%c0_71, %c0_72, %c0_73] : memref<1x1x16xf32, #tpu.memory_space<vmem>>, vector<1x1x16xf32>
    %55 = vector.shape_cast %54 : vector<1x1x16xf32> to vector<1x16xf32>
    %56 = vector.shape_cast %53 : vector<1x16xf32> to vector<1x1x16xf32>
    tpu.vector_store %arg3[%c0_71, %c0_72, %c0_73], %56 {strides = array<i32>} : memref<1x1x16xf32, #tpu.memory_space<vmem>>, vector<1x1x16xf32>,
    %57 = arith.mulf %51, %51 : vector<128x16xf32>
    %cst_74 = arith.constant dense<0.000000e+00> : vector<16xf32>
    %58 = vector.multi_reduction <add>, %57, %cst_74 [0] : vector<128x16xf32> to vector<16xf32>
    %59 = vector.shape_cast %58 : vector<16xf32> to vector<1x16xf32>
    %c0_75 = arith.constant 0 : index
    %c0_76 = arith.constant 0 : index
    %c0_77 = arith.constant 0 : index
    %60 = vector.load %arg4[%c0_75, %c0_76, %c0_77] : memref<1x1x16xf32, #tpu.memory_space<vmem>>, vector<1x1x16xf32>
    %61 = vector.shape_cast %60 : vector<1x1x16xf32> to vector<1x16xf32>
    %62 = vector.shape_cast %59 : vector<1x16xf32> to vector<1x1x16xf32>
    tpu.vector_store %arg4[%c0_75, %c0_76, %c0_77], %62 {strides = array<i32>} : memref<1x1x16xf32, #tpu.memory_space<vmem>>, vector<1x1x16xf32>,
    return
  }
  func.func @transform_0(%arg0: i32) -> (i32, i32, i32, i32) {
    %c0_i32 = arith.constant 0 : i32
    %c0_i32_0 = arith.constant 0 : i32
    %c0_i32_1 = arith.constant 0 : i32
    %c0_i32_2 = arith.constant 0 : i32
    return %arg0, %c0_i32, %c0_i32_0, %c0_i32_1 : i32, i32, i32, i32
  }
  func.func @transform_1(%arg0: i32) -> (i32, i32) {
    %c0_i32 = arith.constant 0 : i32
    %c0_i32_0 = arith.constant 0 : i32
    %c0_i32_1 = arith.constant 0 : i32
    return %c0_i32, %c0_i32_0 : i32, i32
  }
  func.func @transform_2(%arg0: i32) -> (i32, i32, i32) {
    %c0_i32 = arith.constant 0 : i32
    %c0_i32_0 = arith.constant 0 : i32
    %c0_i32_1 = arith.constant 0 : i32
    return %arg0, %c0_i32, %c0_i32_0 : i32, i32, i32
  }
  func.func @transform_3(%arg0: i32) -> (i32, i32, i32) {
    %c0_i32 = arith.constant 0 : i32
    %c0_i32_0 = arith.constant 0 : i32
    %c0_i32_1 = arith.constant 0 : i32
    return %arg0, %c0_i32, %c0_i32_0 : i32, i32, i32
  }
}

module attributes {stable_mosaic.version = 11 : i64} {
  func.func @_bn_relu_conv2_kernel(%arg0: i32, %arg1: memref<2x16x16x3xf32, #tpu.memory_space<vmem>>, %arg2: memref<27x16xf32, #tpu.memory_space<vmem>>, %arg3: memref<1x16xf32, #tpu.memory_space<vmem>>, %arg4: memref<1x16xf32, #tpu.memory_space<vmem>>, %arg5: memref<144x32xf32, #tpu.memory_space<vmem>>, %arg6: memref<2x4x4x32xf32, #tpu.memory_space<vmem>>, %arg7: memref<2x8x8x16xf32, #tpu.memory_space<vmem>>, %arg8: memref<2x17x17x3xf32, #tpu.memory_space<vmem>>, %arg9: memref<2x9x9x16xf32, #tpu.memory_space<vmem>>) attributes {dimension_semantics = [#tpu.dimension_semantics<parallel>], iteration_bounds = array<i64: 1>, scalar_prefetch = 0 : i64, scratch_operands = 2 : i64, tpu.core_type = #tpu.core_type<tc>, window_params = [{transform_indices = @transform_0, window_bounds = array<i64: 2, 16, 16, 3>}, {pipeline_mode = #tpu.pipeline_mode<synchronous>, transform_indices = @transform_1, window_bounds = array<i64: 27, 16>}, {pipeline_mode = #tpu.pipeline_mode<synchronous>, transform_indices = @transform_2, window_bounds = array<i64: 1, 16>}, {pipeline_mode = #tpu.pipeline_mode<synchronous>, transform_indices = @transform_3, window_bounds = array<i64: 1, 16>}, {pipeline_mode = #tpu.pipeline_mode<synchronous>, transform_indices = @transform_4, window_bounds = array<i64: 144, 32>}, {transform_indices = @transform_5, window_bounds = array<i64: 2, 4, 4, 32>}, {transform_indices = @transform_6, window_bounds = array<i64: 2, 8, 8, 16>}]} {
    %cst = arith.constant 0.000000e+00 : f32
    %0 = vector.broadcast %cst : f32 to vector<2x1x17x3xf32>
    %c0 = arith.constant 0 : index
    %c0_0 = arith.constant 0 : index
    %c0_1 = arith.constant 0 : index
    %c0_2 = arith.constant 0 : index
    %1 = vector.load %arg8[%c0, %c0_0, %c0_1, %c0_2] : memref<2x17x17x3xf32, #tpu.memory_space<vmem>>, vector<2x1x17x3xf32>
    tpu.vector_store %arg8[%c0, %c0_0, %c0_1, %c0_2], %0 {strides = array<i32>} : memref<2x17x17x3xf32, #tpu.memory_space<vmem>>, vector<2x1x17x3xf32>,
    %cst_3 = arith.constant 0.000000e+00 : f32
    %2 = vector.broadcast %cst_3 : f32 to vector<2x17x1x3xf32>
    %c0_4 = arith.constant 0 : index
    %c0_5 = arith.constant 0 : index
    %c0_6 = arith.constant 0 : index
    %c0_7 = arith.constant 0 : index
    %3 = vector.load %arg8[%c0_4, %c0_5, %c0_6, %c0_7] : memref<2x17x17x3xf32, #tpu.memory_space<vmem>>, vector<2x17x1x3xf32>
    tpu.vector_store %arg8[%c0_4, %c0_5, %c0_6, %c0_7], %2 {strides = array<i32>} : memref<2x17x17x3xf32, #tpu.memory_space<vmem>>, vector<2x17x1x3xf32>,
    %c0_8 = arith.constant 0 : index
    %c0_9 = arith.constant 0 : index
    %c0_10 = arith.constant 0 : index
    %c0_11 = arith.constant 0 : index
    %4 = vector.load %arg1[%c0_8, %c0_9, %c0_10, %c0_11] : memref<2x16x16x3xf32, #tpu.memory_space<vmem>>, vector<2x16x16x3xf32>
    %c0_12 = arith.constant 0 : index
    %c1 = arith.constant 1 : index
    %c1_13 = arith.constant 1 : index
    %c0_14 = arith.constant 0 : index
    %5 = vector.load %arg8[%c0_12, %c1, %c1_13, %c0_14] : memref<2x17x17x3xf32, #tpu.memory_space<vmem>>, vector<2x16x16x3xf32>
    tpu.vector_store %arg8[%c0_12, %c1, %c1_13, %c0_14], %4 {strides = array<i32>} : memref<2x17x17x3xf32, #tpu.memory_space<vmem>>, vector<2x16x16x3xf32>,
    %cst_15 = arith.constant 0.000000e+00 : f32
    %6 = vector.broadcast %cst_15 : f32 to vector<128x16xf32>
    %c0_16 = arith.constant 0 : index
    %c0_17 = arith.constant 0 : index
    %c0_18 = arith.constant 0 : index
    %c0_19 = arith.constant 0 : index
    %7 = tpu.strided_load %arg8[%c0_16, %c0_17, %c0_18, %c0_19] {strides = array<i32: 1, 2, 2, 1>} : memref<2x17x17x3xf32, #tpu.memory_space<vmem>>, vector<2x8x8x3xf32>
    %8 = vector.shape_cast %7 : vector<2x8x8x3xf32> to vector<128x3xf32>
    %c0_20 = arith.constant 0 : index
    %c0_21 = arith.constant 0 : index
    %9 = vector.load %arg2[%c0_20, %c0_21] : memref<27x16xf32, #tpu.memory_space<vmem>>, vector<3x16xf32>
    %cst_22 = arith.constant dense<0.000000e+00> : vector<128x16xf32>
    %10 = tpu.matmul %8, %9, %cst_22 {dimension_numbers = #tpu.dot_dimension_numbers<[1], [0], [0], [1], [0, 0, 1, 1], [], []>} : vector<128x3xf32>, vector<3x16xf32>, vector<128x16xf32> -> vector<128x16xf32>
    %11 = arith.addf %6, %10 : vector<128x16xf32>
    %c0_23 = arith.constant 0 : index
    %c0_24 = arith.constant 0 : index
    %c1_25 = arith.constant 1 : index
    %c0_26 = arith.constant 0 : index
    %12 = tpu.strided_load %arg8[%c0_23, %c0_24, %c1_25, %c0_26] {strides = array<i32: 1, 2, 2, 1>} : memref<2x17x17x3xf32, #tpu.memory_space<vmem>>, vector<2x8x8x3xf32>
    %13 = vector.shape_cast %12 : vector<2x8x8x3xf32> to vector<128x3xf32>
    %c3 = arith.constant 3 : index
    %c0_27 = arith.constant 0 : index
    %14 = vector.load %arg2[%c3, %c0_27] : memref<27x16xf32, #tpu.memory_space<vmem>>, vector<3x16xf32>
    %cst_28 = arith.constant dense<0.000000e+00> : vector<128x16xf32>
    %15 = tpu.matmul %13, %14, %cst_28 {dimension_numbers = #tpu.dot_dimension_numbers<[1], [0], [0], [1], [0, 0, 1, 1], [], []>} : vector<128x3xf32>, vector<3x16xf32>, vector<128x16xf32> -> vector<128x16xf32>
    %16 = arith.addf %11, %15 : vector<128x16xf32>
    %c0_29 = arith.constant 0 : index
    %c0_30 = arith.constant 0 : index
    %c2 = arith.constant 2 : index
    %c0_31 = arith.constant 0 : index
    %17 = tpu.strided_load %arg8[%c0_29, %c0_30, %c2, %c0_31] {strides = array<i32: 1, 2, 2, 1>} : memref<2x17x17x3xf32, #tpu.memory_space<vmem>>, vector<2x8x8x3xf32>
    %18 = vector.shape_cast %17 : vector<2x8x8x3xf32> to vector<128x3xf32>
    %c6 = arith.constant 6 : index
    %c0_32 = arith.constant 0 : index
    %19 = vector.load %arg2[%c6, %c0_32] : memref<27x16xf32, #tpu.memory_space<vmem>>, vector<3x16xf32>
    %cst_33 = arith.constant dense<0.000000e+00> : vector<128x16xf32>
    %20 = tpu.matmul %18, %19, %cst_33 {dimension_numbers = #tpu.dot_dimension_numbers<[1], [0], [0], [1], [0, 0, 1, 1], [], []>} : vector<128x3xf32>, vector<3x16xf32>, vector<128x16xf32> -> vector<128x16xf32>
    %21 = arith.addf %16, %20 : vector<128x16xf32>
    %c0_34 = arith.constant 0 : index
    %c1_35 = arith.constant 1 : index
    %c0_36 = arith.constant 0 : index
    %c0_37 = arith.constant 0 : index
    %22 = tpu.strided_load %arg8[%c0_34, %c1_35, %c0_36, %c0_37] {strides = array<i32: 1, 2, 2, 1>} : memref<2x17x17x3xf32, #tpu.memory_space<vmem>>, vector<2x8x8x3xf32>
    %23 = vector.shape_cast %22 : vector<2x8x8x3xf32> to vector<128x3xf32>
    %c9 = arith.constant 9 : index
    %c0_38 = arith.constant 0 : index
    %24 = vector.load %arg2[%c9, %c0_38] : memref<27x16xf32, #tpu.memory_space<vmem>>, vector<3x16xf32>
    %cst_39 = arith.constant dense<0.000000e+00> : vector<128x16xf32>
    %25 = tpu.matmul %23, %24, %cst_39 {dimension_numbers = #tpu.dot_dimension_numbers<[1], [0], [0], [1], [0, 0, 1, 1], [], []>} : vector<128x3xf32>, vector<3x16xf32>, vector<128x16xf32> -> vector<128x16xf32>
    %26 = arith.addf %21, %25 : vector<128x16xf32>
    %c0_40 = arith.constant 0 : index
    %c1_41 = arith.constant 1 : index
    %c1_42 = arith.constant 1 : index
    %c0_43 = arith.constant 0 : index
    %27 = tpu.strided_load %arg8[%c0_40, %c1_41, %c1_42, %c0_43] {strides = array<i32: 1, 2, 2, 1>} : memref<2x17x17x3xf32, #tpu.memory_space<vmem>>, vector<2x8x8x3xf32>
    %28 = vector.shape_cast %27 : vector<2x8x8x3xf32> to vector<128x3xf32>
    %c12 = arith.constant 12 : index
    %c0_44 = arith.constant 0 : index
    %29 = vector.load %arg2[%c12, %c0_44] : memref<27x16xf32, #tpu.memory_space<vmem>>, vector<3x16xf32>
    %cst_45 = arith.constant dense<0.000000e+00> : vector<128x16xf32>
    %30 = tpu.matmul %28, %29, %cst_45 {dimension_numbers = #tpu.dot_dimension_numbers<[1], [0], [0], [1], [0, 0, 1, 1], [], []>} : vector<128x3xf32>, vector<3x16xf32>, vector<128x16xf32> -> vector<128x16xf32>
    %31 = arith.addf %26, %30 : vector<128x16xf32>
    %c0_46 = arith.constant 0 : index
    %c1_47 = arith.constant 1 : index
    %c2_48 = arith.constant 2 : index
    %c0_49 = arith.constant 0 : index
    %32 = tpu.strided_load %arg8[%c0_46, %c1_47, %c2_48, %c0_49] {strides = array<i32: 1, 2, 2, 1>} : memref<2x17x17x3xf32, #tpu.memory_space<vmem>>, vector<2x8x8x3xf32>
    %33 = vector.shape_cast %32 : vector<2x8x8x3xf32> to vector<128x3xf32>
    %c15 = arith.constant 15 : index
    %c0_50 = arith.constant 0 : index
    %34 = vector.load %arg2[%c15, %c0_50] : memref<27x16xf32, #tpu.memory_space<vmem>>, vector<3x16xf32>
    %cst_51 = arith.constant dense<0.000000e+00> : vector<128x16xf32>
    %35 = tpu.matmul %33, %34, %cst_51 {dimension_numbers = #tpu.dot_dimension_numbers<[1], [0], [0], [1], [0, 0, 1, 1], [], []>} : vector<128x3xf32>, vector<3x16xf32>, vector<128x16xf32> -> vector<128x16xf32>
    %36 = arith.addf %31, %35 : vector<128x16xf32>
    %c0_52 = arith.constant 0 : index
    %c2_53 = arith.constant 2 : index
    %c0_54 = arith.constant 0 : index
    %c0_55 = arith.constant 0 : index
    %37 = tpu.strided_load %arg8[%c0_52, %c2_53, %c0_54, %c0_55] {strides = array<i32: 1, 2, 2, 1>} : memref<2x17x17x3xf32, #tpu.memory_space<vmem>>, vector<2x8x8x3xf32>
    %38 = vector.shape_cast %37 : vector<2x8x8x3xf32> to vector<128x3xf32>
    %c18 = arith.constant 18 : index
    %c0_56 = arith.constant 0 : index
    %39 = vector.load %arg2[%c18, %c0_56] : memref<27x16xf32, #tpu.memory_space<vmem>>, vector<3x16xf32>
    %cst_57 = arith.constant dense<0.000000e+00> : vector<128x16xf32>
    %40 = tpu.matmul %38, %39, %cst_57 {dimension_numbers = #tpu.dot_dimension_numbers<[1], [0], [0], [1], [0, 0, 1, 1], [], []>} : vector<128x3xf32>, vector<3x16xf32>, vector<128x16xf32> -> vector<128x16xf32>
    %41 = arith.addf %36, %40 : vector<128x16xf32>
    %c0_58 = arith.constant 0 : index
    %c2_59 = arith.constant 2 : index
    %c1_60 = arith.constant 1 : index
    %c0_61 = arith.constant 0 : index
    %42 = tpu.strided_load %arg8[%c0_58, %c2_59, %c1_60, %c0_61] {strides = array<i32: 1, 2, 2, 1>} : memref<2x17x17x3xf32, #tpu.memory_space<vmem>>, vector<2x8x8x3xf32>
    %43 = vector.shape_cast %42 : vector<2x8x8x3xf32> to vector<128x3xf32>
    %c21 = arith.constant 21 : index
    %c0_62 = arith.constant 0 : index
    %44 = vector.load %arg2[%c21, %c0_62] : memref<27x16xf32, #tpu.memory_space<vmem>>, vector<3x16xf32>
    %cst_63 = arith.constant dense<0.000000e+00> : vector<128x16xf32>
    %45 = tpu.matmul %43, %44, %cst_63 {dimension_numbers = #tpu.dot_dimension_numbers<[1], [0], [0], [1], [0, 0, 1, 1], [], []>} : vector<128x3xf32>, vector<3x16xf32>, vector<128x16xf32> -> vector<128x16xf32>
    %46 = arith.addf %41, %45 : vector<128x16xf32>
    %c0_64 = arith.constant 0 : index
    %c2_65 = arith.constant 2 : index
    %c2_66 = arith.constant 2 : index
    %c0_67 = arith.constant 0 : index
    %47 = tpu.strided_load %arg8[%c0_64, %c2_65, %c2_66, %c0_67] {strides = array<i32: 1, 2, 2, 1>} : memref<2x17x17x3xf32, #tpu.memory_space<vmem>>, vector<2x8x8x3xf32>
    %48 = vector.shape_cast %47 : vector<2x8x8x3xf32> to vector<128x3xf32>
    %c24 = arith.constant 24 : index
    %c0_68 = arith.constant 0 : index
    %49 = vector.load %arg2[%c24, %c0_68] : memref<27x16xf32, #tpu.memory_space<vmem>>, vector<3x16xf32>
    %cst_69 = arith.constant dense<0.000000e+00> : vector<128x16xf32>
    %50 = tpu.matmul %48, %49, %cst_69 {dimension_numbers = #tpu.dot_dimension_numbers<[1], [0], [0], [1], [0, 0, 1, 1], [], []>} : vector<128x3xf32>, vector<3x16xf32>, vector<128x16xf32> -> vector<128x16xf32>
    %51 = arith.addf %46, %50 : vector<128x16xf32>
    %c0_70 = arith.constant 0 : index
    %c0_71 = arith.constant 0 : index
    %52 = vector.load %arg3[%c0_70, %c0_71] : memref<1x16xf32, #tpu.memory_space<vmem>>, vector<1x16xf32>
    %53 = vector.broadcast %52 : vector<1x16xf32> to vector<128x16xf32>
    %54 = arith.mulf %51, %53 : vector<128x16xf32>
    %c0_72 = arith.constant 0 : index
    %c0_73 = arith.constant 0 : index
    %55 = vector.load %arg4[%c0_72, %c0_73] : memref<1x16xf32, #tpu.memory_space<vmem>>, vector<1x16xf32>
    %56 = vector.broadcast %55 : vector<1x16xf32> to vector<128x16xf32>
    %57 = arith.addf %54, %56 : vector<128x16xf32>
    %cst_74 = arith.constant 0.000000e+00 : f32
    %58 = vector.broadcast %cst_74 : f32 to vector<128x16xf32>
    %59 = arith.maximumf %57, %58 : vector<128x16xf32>
    %cst_75 = arith.constant 0.000000e+00 : f32
    %60 = vector.broadcast %cst_75 : f32 to vector<2x1x9x16xf32>
    %c0_76 = arith.constant 0 : index
    %c0_77 = arith.constant 0 : index
    %c0_78 = arith.constant 0 : index
    %c0_79 = arith.constant 0 : index
    %61 = vector.load %arg9[%c0_76, %c0_77, %c0_78, %c0_79] : memref<2x9x9x16xf32, #tpu.memory_space<vmem>>, vector<2x1x9x16xf32>
    tpu.vector_store %arg9[%c0_76, %c0_77, %c0_78, %c0_79], %60 {strides = array<i32>} : memref<2x9x9x16xf32, #tpu.memory_space<vmem>>, vector<2x1x9x16xf32>,
    %cst_80 = arith.constant 0.000000e+00 : f32
    %62 = vector.broadcast %cst_80 : f32 to vector<2x9x1x16xf32>
    %c0_81 = arith.constant 0 : index
    %c0_82 = arith.constant 0 : index
    %c0_83 = arith.constant 0 : index
    %c0_84 = arith.constant 0 : index
    %63 = vector.load %arg9[%c0_81, %c0_82, %c0_83, %c0_84] : memref<2x9x9x16xf32, #tpu.memory_space<vmem>>, vector<2x9x1x16xf32>
    tpu.vector_store %arg9[%c0_81, %c0_82, %c0_83, %c0_84], %62 {strides = array<i32>} : memref<2x9x9x16xf32, #tpu.memory_space<vmem>>, vector<2x9x1x16xf32>,
    %64 = vector.shape_cast %59 : vector<128x16xf32> to vector<2x8x8x16xf32>
    %c0_85 = arith.constant 0 : index
    %c1_86 = arith.constant 1 : index
    %c1_87 = arith.constant 1 : index
    %c0_88 = arith.constant 0 : index
    %65 = vector.load %arg9[%c0_85, %c1_86, %c1_87, %c0_88] : memref<2x9x9x16xf32, #tpu.memory_space<vmem>>, vector<2x8x8x16xf32>
    tpu.vector_store %arg9[%c0_85, %c1_86, %c1_87, %c0_88], %64 {strides = array<i32>} : memref<2x9x9x16xf32, #tpu.memory_space<vmem>>, vector<2x8x8x16xf32>,
    %c0_89 = arith.constant 0 : index
    %c1_90 = arith.constant 1 : index
    %c1_91 = arith.constant 1 : index
    %c0_92 = arith.constant 0 : index
    %66 = vector.load %arg9[%c0_89, %c1_90, %c1_91, %c0_92] : memref<2x9x9x16xf32, #tpu.memory_space<vmem>>, vector<2x8x8x16xf32>
    %c0_93 = arith.constant 0 : index
    %c0_94 = arith.constant 0 : index
    %c0_95 = arith.constant 0 : index
    %c0_96 = arith.constant 0 : index
    %67 = vector.load %arg7[%c0_93, %c0_94, %c0_95, %c0_96] : memref<2x8x8x16xf32, #tpu.memory_space<vmem>>, vector<2x8x8x16xf32>
    tpu.vector_store %arg7[%c0_93, %c0_94, %c0_95, %c0_96], %66 {strides = array<i32>} : memref<2x8x8x16xf32, #tpu.memory_space<vmem>>, vector<2x8x8x16xf32>,
    %cst_97 = arith.constant 0.000000e+00 : f32
    %68 = vector.broadcast %cst_97 : f32 to vector<32x32xf32>
    %c0_98 = arith.constant 0 : index
    %c0_99 = arith.constant 0 : index
    %c0_100 = arith.constant 0 : index
    %c0_101 = arith.constant 0 : index
    %69 = tpu.strided_load %arg9[%c0_98, %c0_99, %c0_100, %c0_101] {strides = array<i32: 1, 2, 2, 1>} : memref<2x9x9x16xf32, #tpu.memory_space<vmem>>, vector<2x4x4x16xf32>
    %70 = vector.shape_cast %69 : vector<2x4x4x16xf32> to vector<32x16xf32>
    %c0_102 = arith.constant 0 : index
    %c0_103 = arith.constant 0 : index
    %71 = vector.load %arg5[%c0_102, %c0_103] : memref<144x32xf32, #tpu.memory_space<vmem>>, vector<16x32xf32>
    %cst_104 = arith.constant dense<0.000000e+00> : vector<32x32xf32>
    %72 = tpu.matmul %70, %71, %cst_104 {dimension_numbers = #tpu.dot_dimension_numbers<[1], [0], [0], [1], [0, 0, 1, 1], [], []>} : vector<32x16xf32>, vector<16x32xf32>, vector<32x32xf32> -> vector<32x32xf32>
    %73 = arith.addf %68, %72 : vector<32x32xf32>
    %c0_105 = arith.constant 0 : index
    %c0_106 = arith.constant 0 : index
    %c1_107 = arith.constant 1 : index
    %c0_108 = arith.constant 0 : index
    %74 = tpu.strided_load %arg9[%c0_105, %c0_106, %c1_107, %c0_108] {strides = array<i32: 1, 2, 2, 1>} : memref<2x9x9x16xf32, #tpu.memory_space<vmem>>, vector<2x4x4x16xf32>
    %75 = vector.shape_cast %74 : vector<2x4x4x16xf32> to vector<32x16xf32>
    %c16 = arith.constant 16 : index
    %c0_109 = arith.constant 0 : index
    %76 = vector.load %arg5[%c16, %c0_109] : memref<144x32xf32, #tpu.memory_space<vmem>>, vector<16x32xf32>
    %cst_110 = arith.constant dense<0.000000e+00> : vector<32x32xf32>
    %77 = tpu.matmul %75, %76, %cst_110 {dimension_numbers = #tpu.dot_dimension_numbers<[1], [0], [0], [1], [0, 0, 1, 1], [], []>} : vector<32x16xf32>, vector<16x32xf32>, vector<32x32xf32> -> vector<32x32xf32>
    %78 = arith.addf %73, %77 : vector<32x32xf32>
    %c0_111 = arith.constant 0 : index
    %c0_112 = arith.constant 0 : index
    %c2_113 = arith.constant 2 : index
    %c0_114 = arith.constant 0 : index
    %79 = tpu.strided_load %arg9[%c0_111, %c0_112, %c2_113, %c0_114] {strides = array<i32: 1, 2, 2, 1>} : memref<2x9x9x16xf32, #tpu.memory_space<vmem>>, vector<2x4x4x16xf32>
    %80 = vector.shape_cast %79 : vector<2x4x4x16xf32> to vector<32x16xf32>
    %c32 = arith.constant 32 : index
    %c0_115 = arith.constant 0 : index
    %81 = vector.load %arg5[%c32, %c0_115] : memref<144x32xf32, #tpu.memory_space<vmem>>, vector<16x32xf32>
    %cst_116 = arith.constant dense<0.000000e+00> : vector<32x32xf32>
    %82 = tpu.matmul %80, %81, %cst_116 {dimension_numbers = #tpu.dot_dimension_numbers<[1], [0], [0], [1], [0, 0, 1, 1], [], []>} : vector<32x16xf32>, vector<16x32xf32>, vector<32x32xf32> -> vector<32x32xf32>
    %83 = arith.addf %78, %82 : vector<32x32xf32>
    %c0_117 = arith.constant 0 : index
    %c1_118 = arith.constant 1 : index
    %c0_119 = arith.constant 0 : index
    %c0_120 = arith.constant 0 : index
    %84 = tpu.strided_load %arg9[%c0_117, %c1_118, %c0_119, %c0_120] {strides = array<i32: 1, 2, 2, 1>} : memref<2x9x9x16xf32, #tpu.memory_space<vmem>>, vector<2x4x4x16xf32>
    %85 = vector.shape_cast %84 : vector<2x4x4x16xf32> to vector<32x16xf32>
    %c48 = arith.constant 48 : index
    %c0_121 = arith.constant 0 : index
    %86 = vector.load %arg5[%c48, %c0_121] : memref<144x32xf32, #tpu.memory_space<vmem>>, vector<16x32xf32>
    %cst_122 = arith.constant dense<0.000000e+00> : vector<32x32xf32>
    %87 = tpu.matmul %85, %86, %cst_122 {dimension_numbers = #tpu.dot_dimension_numbers<[1], [0], [0], [1], [0, 0, 1, 1], [], []>} : vector<32x16xf32>, vector<16x32xf32>, vector<32x32xf32> -> vector<32x32xf32>
    %88 = arith.addf %83, %87 : vector<32x32xf32>
    %c0_123 = arith.constant 0 : index
    %c1_124 = arith.constant 1 : index
    %c1_125 = arith.constant 1 : index
    %c0_126 = arith.constant 0 : index
    %89 = tpu.strided_load %arg9[%c0_123, %c1_124, %c1_125, %c0_126] {strides = array<i32: 1, 2, 2, 1>} : memref<2x9x9x16xf32, #tpu.memory_space<vmem>>, vector<2x4x4x16xf32>
    %90 = vector.shape_cast %89 : vector<2x4x4x16xf32> to vector<32x16xf32>
    %c64 = arith.constant 64 : index
    %c0_127 = arith.constant 0 : index
    %91 = vector.load %arg5[%c64, %c0_127] : memref<144x32xf32, #tpu.memory_space<vmem>>, vector<16x32xf32>
    %cst_128 = arith.constant dense<0.000000e+00> : vector<32x32xf32>
    %92 = tpu.matmul %90, %91, %cst_128 {dimension_numbers = #tpu.dot_dimension_numbers<[1], [0], [0], [1], [0, 0, 1, 1], [], []>} : vector<32x16xf32>, vector<16x32xf32>, vector<32x32xf32> -> vector<32x32xf32>
    %93 = arith.addf %88, %92 : vector<32x32xf32>
    %c0_129 = arith.constant 0 : index
    %c1_130 = arith.constant 1 : index
    %c2_131 = arith.constant 2 : index
    %c0_132 = arith.constant 0 : index
    %94 = tpu.strided_load %arg9[%c0_129, %c1_130, %c2_131, %c0_132] {strides = array<i32: 1, 2, 2, 1>} : memref<2x9x9x16xf32, #tpu.memory_space<vmem>>, vector<2x4x4x16xf32>
    %95 = vector.shape_cast %94 : vector<2x4x4x16xf32> to vector<32x16xf32>
    %c80 = arith.constant 80 : index
    %c0_133 = arith.constant 0 : index
    %96 = vector.load %arg5[%c80, %c0_133] : memref<144x32xf32, #tpu.memory_space<vmem>>, vector<16x32xf32>
    %cst_134 = arith.constant dense<0.000000e+00> : vector<32x32xf32>
    %97 = tpu.matmul %95, %96, %cst_134 {dimension_numbers = #tpu.dot_dimension_numbers<[1], [0], [0], [1], [0, 0, 1, 1], [], []>} : vector<32x16xf32>, vector<16x32xf32>, vector<32x32xf32> -> vector<32x32xf32>
    %98 = arith.addf %93, %97 : vector<32x32xf32>
    %c0_135 = arith.constant 0 : index
    %c2_136 = arith.constant 2 : index
    %c0_137 = arith.constant 0 : index
    %c0_138 = arith.constant 0 : index
    %99 = tpu.strided_load %arg9[%c0_135, %c2_136, %c0_137, %c0_138] {strides = array<i32: 1, 2, 2, 1>} : memref<2x9x9x16xf32, #tpu.memory_space<vmem>>, vector<2x4x4x16xf32>
    %100 = vector.shape_cast %99 : vector<2x4x4x16xf32> to vector<32x16xf32>
    %c96 = arith.constant 96 : index
    %c0_139 = arith.constant 0 : index
    %101 = vector.load %arg5[%c96, %c0_139] : memref<144x32xf32, #tpu.memory_space<vmem>>, vector<16x32xf32>
    %cst_140 = arith.constant dense<0.000000e+00> : vector<32x32xf32>
    %102 = tpu.matmul %100, %101, %cst_140 {dimension_numbers = #tpu.dot_dimension_numbers<[1], [0], [0], [1], [0, 0, 1, 1], [], []>} : vector<32x16xf32>, vector<16x32xf32>, vector<32x32xf32> -> vector<32x32xf32>
    %103 = arith.addf %98, %102 : vector<32x32xf32>
    %c0_141 = arith.constant 0 : index
    %c2_142 = arith.constant 2 : index
    %c1_143 = arith.constant 1 : index
    %c0_144 = arith.constant 0 : index
    %104 = tpu.strided_load %arg9[%c0_141, %c2_142, %c1_143, %c0_144] {strides = array<i32: 1, 2, 2, 1>} : memref<2x9x9x16xf32, #tpu.memory_space<vmem>>, vector<2x4x4x16xf32>
    %105 = vector.shape_cast %104 : vector<2x4x4x16xf32> to vector<32x16xf32>
    %c112 = arith.constant 112 : index
    %c0_145 = arith.constant 0 : index
    %106 = vector.load %arg5[%c112, %c0_145] : memref<144x32xf32, #tpu.memory_space<vmem>>, vector<16x32xf32>
    %cst_146 = arith.constant dense<0.000000e+00> : vector<32x32xf32>
    %107 = tpu.matmul %105, %106, %cst_146 {dimension_numbers = #tpu.dot_dimension_numbers<[1], [0], [0], [1], [0, 0, 1, 1], [], []>} : vector<32x16xf32>, vector<16x32xf32>, vector<32x32xf32> -> vector<32x32xf32>
    %108 = arith.addf %103, %107 : vector<32x32xf32>
    %c0_147 = arith.constant 0 : index
    %c2_148 = arith.constant 2 : index
    %c2_149 = arith.constant 2 : index
    %c0_150 = arith.constant 0 : index
    %109 = tpu.strided_load %arg9[%c0_147, %c2_148, %c2_149, %c0_150] {strides = array<i32: 1, 2, 2, 1>} : memref<2x9x9x16xf32, #tpu.memory_space<vmem>>, vector<2x4x4x16xf32>
    %110 = vector.shape_cast %109 : vector<2x4x4x16xf32> to vector<32x16xf32>
    %c128 = arith.constant 128 : index
    %c0_151 = arith.constant 0 : index
    %111 = vector.load %arg5[%c128, %c0_151] : memref<144x32xf32, #tpu.memory_space<vmem>>, vector<16x32xf32>
    %cst_152 = arith.constant dense<0.000000e+00> : vector<32x32xf32>
    %112 = tpu.matmul %110, %111, %cst_152 {dimension_numbers = #tpu.dot_dimension_numbers<[1], [0], [0], [1], [0, 0, 1, 1], [], []>} : vector<32x16xf32>, vector<16x32xf32>, vector<32x32xf32> -> vector<32x32xf32>
    %113 = arith.addf %108, %112 : vector<32x32xf32>
    %114 = vector.shape_cast %113 : vector<32x32xf32> to vector<2x4x4x32xf32>
    %c0_153 = arith.constant 0 : index
    %c0_154 = arith.constant 0 : index
    %c0_155 = arith.constant 0 : index
    %c0_156 = arith.constant 0 : index
    %115 = vector.load %arg6[%c0_153, %c0_154, %c0_155, %c0_156] : memref<2x4x4x32xf32, #tpu.memory_space<vmem>>, vector<2x4x4x32xf32>
    tpu.vector_store %arg6[%c0_153, %c0_154, %c0_155, %c0_156], %114 {strides = array<i32>} : memref<2x4x4x32xf32, #tpu.memory_space<vmem>>, vector<2x4x4x32xf32>,
    return
  }
  func.func @transform_0(%arg0: i32) -> (i32, i32, i32, i32) {
    %c0_i32 = arith.constant 0 : i32
    %c0_i32_0 = arith.constant 0 : i32
    %c0_i32_1 = arith.constant 0 : i32
    %c0_i32_2 = arith.constant 0 : i32
    return %arg0, %c0_i32, %c0_i32_0, %c0_i32_1 : i32, i32, i32, i32
  }
  func.func @transform_1(%arg0: i32) -> (i32, i32) {
    %c0_i32 = arith.constant 0 : i32
    %c0_i32_0 = arith.constant 0 : i32
    %c0_i32_1 = arith.constant 0 : i32
    return %c0_i32, %c0_i32_0 : i32, i32
  }
  func.func @transform_2(%arg0: i32) -> (i32, i32) {
    %c0_i32 = arith.constant 0 : i32
    %c0_i32_0 = arith.constant 0 : i32
    %c0_i32_1 = arith.constant 0 : i32
    return %c0_i32, %c0_i32_0 : i32, i32
  }
  func.func @transform_3(%arg0: i32) -> (i32, i32) {
    %c0_i32 = arith.constant 0 : i32
    %c0_i32_0 = arith.constant 0 : i32
    %c0_i32_1 = arith.constant 0 : i32
    return %c0_i32, %c0_i32_0 : i32, i32
  }
  func.func @transform_4(%arg0: i32) -> (i32, i32) {
    %c0_i32 = arith.constant 0 : i32
    %c0_i32_0 = arith.constant 0 : i32
    %c0_i32_1 = arith.constant 0 : i32
    return %c0_i32, %c0_i32_0 : i32, i32
  }
  func.func @transform_5(%arg0: i32) -> (i32, i32, i32, i32) {
    %c0_i32 = arith.constant 0 : i32
    %c0_i32_0 = arith.constant 0 : i32
    %c0_i32_1 = arith.constant 0 : i32
    %c0_i32_2 = arith.constant 0 : i32
    return %arg0, %c0_i32, %c0_i32_0, %c0_i32_1 : i32, i32, i32, i32
  }
  func.func @transform_6(%arg0: i32) -> (i32, i32, i32, i32) {
    %c0_i32 = arith.constant 0 : i32
    %c0_i32_0 = arith.constant 0 : i32
    %c0_i32_1 = arith.constant 0 : i32
    %c0_i32_2 = arith.constant 0 : i32
    return %arg0, %c0_i32, %c0_i32_0, %c0_i32_1 : i32, i32, i32, i32
  }
}

</mosaic_0001>

<llo_original>
// kernel: densenet_initial_layers.2
$region0: #{densenet_initial_layers.2}
  #allocation0 [shape = 'u32[]', space=smem, size = 0x4, offset = 0x4, fixed_abs, tag = 'smem constant byte address 0x4 - core index']
  #allocation1 [shape = 'u32[144,128]{1,0:T(1,128)}', space=vmem, size = 0x12000, scoped, tag = 'internal scratch']
  #allocation2 [shape = 'f32[2,17,17,3]{3,2,1,0:T(8,128)}', space=vmem, size = 0x66000, scoped, tag = 'scratch operand']
  %s0 = inlined_call_operand.vmem [shape: f32[2,16,16,3], index: 0, kind: input, shape index: {}]
  %s1 = inlined_call_operand.vmem [shape: f32[27,16], index: 1, kind: input, shape index: {}]
  %s2 = inlined_call_operand.vmem [shape: f32[1,1,16], index: 2, kind: output, shape index: {0}]
  %s3 = inlined_call_operand.vmem [shape: f32[1,1,16], index: 3, kind: output, shape index: {1}]
  %4 = xla_tuple %s2, %s3
  %s5 = sld [smem:[#allocation0]]
  $region26: #{densenet_initial_layers.2} parent=0
    _
  %s7 = ssub.s32 1, %s5
  %s8 = scalar_select 0, %s7, %s5
  // Predicated region
  $region2: #{densenet_initial_layers.2} parent=0 // pred_check
    _
  $region3: #{densenet_initial_layers.2} parent=0 // pred_check_branch
    %10 = sbr.rel (0) target = $region5
  $region4: #{densenet_initial_layers.2} parent=0 // pred_region
    _
  $region5: #{densenet_initial_layers.2} parent=0 // pred_fallthru
    _
  // Predicated region
  $region6: #{densenet_initial_layers.2} parent=0 // pred_check
    _
  $region7: #{densenet_initial_layers.2} parent=0 // pred_check_branch
    %12 = sbr.rel (0) target = $region9
  $region8: #{densenet_initial_layers.2} parent=0 // pred_region
    _
  $region9: #{densenet_initial_layers.2} parent=0 // pred_fallthru
    _
  %vm13 = vcmask 23552
  %14 = vst.msk [vmem:[#allocation2] sm:$0xff] %vm13, 0.0
  %15 = vst.msk [vmem:[#allocation2 + $0x8] sm:$0xff] %vm13, 0.0
  %vm16 = vcmask 16384
  %17 = vst.msk [vmem:[#allocation2 + $0x10] sm:$0x1] %vm16, 0.0
  %18 = vst.msk [vmem:[#allocation2 + $0x198] sm:$0xff] %vm13, 0.0
  %19 = vst.msk [vmem:[#allocation2 + $0x1a0] sm:$0xff] %vm13, 0.0
  %20 = vst.msk [vmem:[#allocation2 + $0x1a8] sm:$0x1] %vm16, 0.0
  %21 = vst.msk [vmem:[#allocation2] sm:$0x1] %vm16, 0.0
  %22 = vst.msk [vmem:[#allocation2 + $0x18] sm:$0x1] %vm16, 0.0
  %23 = vst.msk [vmem:[#allocation2 + $0x30] sm:$0x1] %vm16, 0.0
  %24 = vst.msk [vmem:[#allocation2 + $0x48] sm:$0x1] %vm16, 0.0
  %25 = vst.msk [vmem:[#allocation2 + $0x60] sm:$0x1] %vm16, 0.0
  %26 = vst.msk [vmem:[#allocation2 + $0x78] sm:$0x1] %vm16, 0.0
  %27 = vst.msk [vmem:[#allocation2 + $0x90] sm:$0x1] %vm16, 0.0
  %28 = vst.msk [vmem:[#allocation2 + $0xa8] sm:$0x1] %vm16, 0.0
  %29 = vst.msk [vmem:[#allocation2 + $0xc0] sm:$0x1] %vm16, 0.0
  %30 = vst.msk [vmem:[#allocation2 + $0xd8] sm:$0x1] %vm16, 0.0
  %31 = vst.msk [vmem:[#allocation2 + $0xf0] sm:$0x1] %vm16, 0.0
  %32 = vst.msk [vmem:[#allocation2 + $0x108] sm:$0x1] %vm16, 0.0
  %33 = vst.msk [vmem:[#allocation2 + $0x120] sm:$0x1] %vm16, 0.0
  %34 = vst.msk [vmem:[#allocation2 + $0x138] sm:$0x1] %vm16, 0.0
  %35 = vst.msk [vmem:[#allocation2 + $0x150] sm:$0x1] %vm16, 0.0
  %36 = vst.msk [vmem:[#allocation2 + $0x168] sm:$0x1] %vm16, 0.0
  %37 = vst.msk [vmem:[#allocation2 + $0x180] sm:$0x1] %vm16, 0.0
  %38 = vst.msk [vmem:[#allocation2 + $0x198] sm:$0x1] %vm16, 0.0
  %39 = vst.msk [vmem:[#allocation2 + $0x1b0] sm:$0x1] %vm16, 0.0
  %40 = vst.msk [vmem:[#allocation2 + $0x1c8] sm:$0x1] %vm16, 0.0
  %41 = vst.msk [vmem:[#allocation2 + $0x1e0] sm:$0x1] %vm16, 0.0
  %42 = vst.msk [vmem:[#allocation2 + $0x1f8] sm:$0x1] %vm16, 0.0
  %43 = vst.msk [vmem:[#allocation2 + $0x210] sm:$0x1] %vm16, 0.0
  %44 = vst.msk [vmem:[#allocation2 + $0x228] sm:$0x1] %vm16, 0.0
  %45 = vst.msk [vmem:[#allocation2 + $0x240] sm:$0x1] %vm16, 0.0
  %46 = vst.msk [vmem:[#allocation2 + $0x258] sm:$0x1] %vm16, 0.0
  %47 = vst.msk [vmem:[#allocation2 + $0x270] sm:$0x1] %vm16, 0.0
  %48 = vst.msk [vmem:[#allocation2 + $0x288] sm:$0x1] %vm16, 0.0
  %49 = vst.msk [vmem:[#allocation2 + $0x2a0] sm:$0x1] %vm16, 0.0
  %50 = vst.msk [vmem:[#allocation2 + $0x2b8] sm:$0x1] %vm16, 0.0
  %51 = vst.msk [vmem:[#allocation2 + $0x2d0] sm:$0x1] %vm16, 0.0
  %52 = vst.msk [vmem:[#allocation2 + $0x2e8] sm:$0x1] %vm16, 0.0
  %53 = vst.msk [vmem:[#allocation2 + $0x300] sm:$0x1] %vm16, 0.0
  %54 = vst.msk [vmem:[#allocation2 + $0x318] sm:$0x1] %vm16, 0.0
  %v55 = vld [vmem:[%s0] sm:$0xff]
  %v56 = vld [vmem:[%s0 + $0x8] sm:$0xff]
  %v57 = vld [vmem:[%s0 + $0x10] sm:$0xff]
  %v58 = vld [vmem:[%s0 + $0x18] sm:$0xff]
  %v59 = vld [vmem:[%s0 + $0x20] sm:$0xff]
  %v60 = vld [vmem:[%s0 + $0x28] sm:$0xff]
  %v61 = vld [vmem:[%s0 + $0x30] sm:$0xff]
  %v62 = vld [vmem:[%s0 + $0x38] sm:$0xff]
  %v63 = vld [vmem:[%s0 + $0x40] sm:$0xff]
  %v64 = vld [vmem:[%s0 + $0x48] sm:$0xff]
  %v65 = vld [vmem:[%s0 + $0x50] sm:$0xff]
  %v66 = vld [vmem:[%s0 + $0x58] sm:$0xff]
  %v67 = vld [vmem:[%s0 + $0x60] sm:$0xff]
  %v68 = vld [vmem:[%s0 + $0x68] sm:$0xff]
  %v69 = vld [vmem:[%s0 + $0x70] sm:$0xff]
  %v70 = vld [vmem:[%s0 + $0x78] sm:$0xff]
  %v71 = vld [vmem:[%s0 + $0x80] sm:$0xff]
  %v72 = vld [vmem:[%s0 + $0x88] sm:$0xff]
  %v73 = vld [vmem:[%s0 + $0x90] sm:$0xff]
  %v74 = vld [vmem:[%s0 + $0x98] sm:$0xff]
  %v75 = vld [vmem:[%s0 + $0xa0] sm:$0xff]
  %v76 = vld [vmem:[%s0 + $0xa8] sm:$0xff]
  %v77 = vld [vmem:[%s0 + $0xb0] sm:$0xff]
  %v78 = vld [vmem:[%s0 + $0xb8] sm:$0xff]
  %v79 = vld [vmem:[%s0 + $0xc0] sm:$0xff]
  %v80 = vld [vmem:[%s0 + $0xc8] sm:$0xff]
  %v81 = vld [vmem:[%s0 + $0xd0] sm:$0xff]
  %v82 = vld [vmem:[%s0 + $0xd8] sm:$0xff]
  %v83 = vld [vmem:[%s0 + $0xe0] sm:$0xff]
  %v84 = vld [vmem:[%s0 + $0xe8] sm:$0xff]
  %v85 = vld [vmem:[%s0 + $0xf0] sm:$0xff]
  %v86 = vld [vmem:[%s0 + $0xf8] sm:$0xff]
  %v87 = vld [vmem:[%s0 + $0x100] sm:$0xff]
  %v88 = vld [vmem:[%s0 + $0x108] sm:$0xff]
  %v89 = vld [vmem:[%s0 + $0x110] sm:$0xff]
  %v90 = vld [vmem:[%s0 + $0x118] sm:$0xff]
  %v91 = vld [vmem:[%s0 + $0x120] sm:$0xff]
  %v92 = vld [vmem:[%s0 + $0x128] sm:$0xff]
  %v93 = vld [vmem:[%s0 + $0x130] sm:$0xff]
  %v94 = vld [vmem:[%s0 + $0x138] sm:$0xff]
  %v95 = vld [vmem:[%s0 + $0x140] sm:$0xff]
  %v96 = vld [vmem:[%s0 + $0x148] sm:$0xff]
  %v97 = vld [vmem:[%s0 + $0x150] sm:$0xff]
  %v98 = vld [vmem:[%s0 + $0x158] sm:$0xff]
  %v99 = vld [vmem:[%s0 + $0x160] sm:$0xff]
  %v100 = vld [vmem:[%s0 + $0x168] sm:$0xff]
  %v101 = vld [vmem:[%s0 + $0x170] sm:$0xff]
  %v102 = vld [vmem:[%s0 + $0x178] sm:$0xff]
  %v103 = vld [vmem:[%s0 + $0x180] sm:$0xff]
  %v104 = vld [vmem:[%s0 + $0x188] sm:$0xff]
  %v105 = vld [vmem:[%s0 + $0x190] sm:$0xff]
  %v106 = vld [vmem:[%s0 + $0x198] sm:$0xff]
  %v107 = vld [vmem:[%s0 + $0x1a0] sm:$0xff]
  %v108 = vld [vmem:[%s0 + $0x1a8] sm:$0xff]
  %v109 = vld [vmem:[%s0 + $0x1b0] sm:$0xff]
  %v110 = vld [vmem:[%s0 + $0x1b8] sm:$0xff]
  %v111 = vld [vmem:[%s0 + $0x1c0] sm:$0xff]
  %v112 = vld [vmem:[%s0 + $0x1c8] sm:$0xff]
  %v113 = vld [vmem:[%s0 + $0x1d0] sm:$0xff]
  %v114 = vld [vmem:[%s0 + $0x1d8] sm:$0xff]
  %v115 = vld [vmem:[%s0 + $0x1e0] sm:$0xff]
  %v116 = vld [vmem:[%s0 + $0x1e8] sm:$0xff]
  %v117 = vld [vmem:[%s0 + $0x1f0] sm:$0xff]
  %v118 = vld [vmem:[%s0 + $0x1f8] sm:$0xff]
  %s119 = scalar_lea.vmem [#allocation2], 24
  %120 = vst.msk [vmem:[%s119 + $0x1] sm:$0xff] %vm13, %v55
  %121 = vst.msk [vmem:[%s119 + $0x9] sm:$0xff] %vm13, %v56
  %122 = vst.msk [vmem:[%s119 + $0x19] sm:$0xff] %vm13, %v57
  %123 = vst.msk [vmem:[%s119 + $0x21] sm:$0xff] %vm13, %v58
  %124 = vst.msk [vmem:[%s119 + $0x31] sm:$0xff] %vm13, %v59
  %125 = vst.msk [vmem:[%s119 + $0x39] sm:$0xff] %vm13, %v60
  %126 = vst.msk [vmem:[%s119 + $0x49] sm:$0xff] %vm13, %v61
  %127 = vst.msk [vmem:[%s119 + $0x51] sm:$0xff] %vm13, %v62
  %128 = vst.msk [vmem:[%s119 + $0x61] sm:$0xff] %vm13, %v63
  %129 = vst.msk [vmem:[%s119 + $0x69] sm:$0xff] %vm13, %v64
  %130 = vst.msk [vmem:[%s119 + $0x79] sm:$0xff] %vm13, %v65
  %131 = vst.msk [vmem:[%s119 + $0x81] sm:$0xff] %vm13, %v66
  %132 = vst.msk [vmem:[%s119 + $0x91] sm:$0xff] %vm13, %v67
  %133 = vst.msk [vmem:[%s119 + $0x99] sm:$0xff] %vm13, %v68
  %134 = vst.msk [vmem:[%s119 + $0xa9] sm:$0xff] %vm13, %v69
  %135 = vst.msk [vmem:[%s119 + $0xb1] sm:$0xff] %vm13, %v70
  %136 = vst.msk [vmem:[%s119 + $0xc1] sm:$0xff] %vm13, %v71
  %137 = vst.msk [vmem:[%s119 + $0xc9] sm:$0xff] %vm13, %v72
  %138 = vst.msk [vmem:[%s119 + $0xd9] sm:$0xff] %vm13, %v73
  %139 = vst.msk [vmem:[%s119 + $0xe1] sm:$0xff] %vm13, %v74
  %140 = vst.msk [vmem:[%s119 + $0xf1] sm:$0xff] %vm13, %v75
  %141 = vst.msk [vmem:[%s119 + $0xf9] sm:$0xff] %vm13, %v76
  %142 = vst.msk [vmem:[%s119 + $0x109] sm:$0xff] %vm13, %v77
  %143 = vst.msk [vmem:[%s119 + $0x111] sm:$0xff] %vm13, %v78
  %144 = vst.msk [vmem:[%s119 + $0x121] sm:$0xff] %vm13, %v79
  %145 = vst.msk [vmem:[%s119 + $0x129] sm:$0xff] %vm13, %v80
  %146 = vst.msk [vmem:[%s119 + $0x139] sm:$0xff] %vm13, %v81
  %147 = vst.msk [vmem:[%s119 + $0x141] sm:$0xff] %vm13, %v82
  %148 = vst.msk [vmem:[%s119 + $0x151] sm:$0xff] %vm13, %v83
  %149 = vst.msk [vmem:[%s119 + $0x159] sm:$0xff] %vm13, %v84
  %150 = vst.msk [vmem:[%s119 + $0x169] sm:$0xff] %vm13, %v85
  %151 = vst.msk [vmem:[%s119 + $0x171] sm:$0xff] %vm13, %v86
  %152 = vst.msk [vmem:[%s119 + $0x199] sm:$0xff] %vm13, %v87
  %153 = vst.msk [vmem:[%s119 + $0x1a1] sm:$0xff] %vm13, %v88
  %154 = vst.msk [vmem:[%s119 + $0x1b1] sm:$0xff] %vm13, %v89
  %155 = vst.msk [vmem:[%s119 + $0x1b9] sm:$0xff] %vm13, %v90
  %156 = vst.msk [vmem:[%s119 + $0x1c9] sm:$0xff] %vm13, %v91
  %157 = vst.msk [vmem:[%s119 + $0x1d1] sm:$0xff] %vm13, %v92
  %158 = vst.msk [vmem:[%s119 + $0x1e1] sm:$0xff] %vm13, %v93
  %159 = vst.msk [vmem:[%s119 + $0x1e9] sm:$0xff] %vm13, %v94
  %160 = vst.msk [vmem:[%s119 + $0x1f9] sm:$0xff] %vm13, %v95
  %161 = vst.msk [vmem:[%s119 + $0x201] sm:$0xff] %vm13, %v96
  %162 = vst.msk [vmem:[%s119 + $0x211] sm:$0xff] %vm13, %v97
  %163 = vst.msk [vmem:[%s119 + $0x219] sm:$0xff] %vm13, %v98
  %164 = vst.msk [vmem:[%s119 + $0x229] sm:$0xff] %vm13, %v99
  %165 = vst.msk [vmem:[%s119 + $0x231] sm:$0xff] %vm13, %v100
  %166 = vst.msk [vmem:[%s119 + $0x241] sm:$0xff] %vm13, %v101
  %167 = vst.msk [vmem:[%s119 + $0x249] sm:$0xff] %vm13, %v102
  %168 = vst.msk [vmem:[%s119 + $0x259] sm:$0xff] %vm13, %v103
  %169 = vst.msk [vmem:[%s119 + $0x261] sm:$0xff] %vm13, %v104
  %170 = vst.msk [vmem:[%s119 + $0x271] sm:$0xff] %vm13, %v105
  %171 = vst.msk [vmem:[%s119 + $0x279] sm:$0xff] %vm13, %v106
  %172 = vst.msk [vmem:[%s119 + $0x289] sm:$0xff] %vm13, %v107
  %173 = vst.msk [vmem:[%s119 + $0x291] sm:$0xff] %vm13, %v108
  %174 = vst.msk [vmem:[%s119 + $0x2a1] sm:$0xff] %vm13, %v109
  %175 = vst.msk [vmem:[%s119 + $0x2a9] sm:$0xff] %vm13, %v110
  %176 = vst.msk [vmem:[%s119 + $0x2b9] sm:$0xff] %vm13, %v111
  %177 = vst.msk [vmem:[%s119 + $0x2c1] sm:$0xff] %vm13, %v112
  %178 = vst.msk [vmem:[%s119 + $0x2d1] sm:$0xff] %vm13, %v113
  %179 = vst.msk [vmem:[%s119 + $0x2d9] sm:$0xff] %vm13, %v114
  %180 = vst.msk [vmem:[%s119 + $0x2e9] sm:$0xff] %vm13, %v115
  %181 = vst.msk [vmem:[%s119 + $0x2f1] sm:$0xff] %vm13, %v116
  %182 = vst.msk [vmem:[%s119 + $0x301] sm:$0xff] %vm13, %v117
  %183 = vst.msk [vmem:[%s119 + $0x309] sm:$0xff] %vm13, %v118
  %v184 = vld [vmem:[#allocation2] ss:$2 sm:$0xff]
  %s185 = scalar_lea.vmem [#allocation2], 48
  %v186 = vld [vmem:[%s185] ss:$2 sm:$0xff]
  %s187 = scalar_lea.vmem [#allocation2], 96
  %v188 = vld [vmem:[%s187] ss:$2 sm:$0xff]
  %s189 = scalar_lea.vmem [#allocation2], 144
  %v190 = vld [vmem:[%s189] ss:$2 sm:$0xff]
  %s191 = scalar_lea.vmem [#allocation2], 192
  %v192 = vld [vmem:[%s191] ss:$2 sm:$0xff]
  %s193 = scalar_lea.vmem [#allocation2], 240
  %v194 = vld [vmem:[%s193] ss:$2 sm:$0xff]
  %s195 = scalar_lea.vmem [#allocation2], 288
  %v196 = vld [vmem:[%s195] ss:$2 sm:$0xff]
  %s197 = scalar_lea.vmem [#allocation2], 336
  %v198 = vld [vmem:[%s197] ss:$2 sm:$0xff]
  %s199 = scalar_lea.vmem [#allocation2], 408
  %v200 = vld [vmem:[%s199] ss:$2 sm:$0xff]
  %s201 = scalar_lea.vmem [#allocation2], 456
  %v202 = vld [vmem:[%s201] ss:$2 sm:$0xff]
  %s203 = scalar_lea.vmem [#allocation2], 504
  %v204 = vld [vmem:[%s203] ss:$2 sm:$0xff]
  %s205 = scalar_lea.vmem [#allocation2], 552
  %v206 = vld [vmem:[%s205] ss:$2 sm:$0xff]
  %s207 = scalar_lea.vmem [#allocation2], 600
  %v208 = vld [vmem:[%s207] ss:$2 sm:$0xff]
  %s209 = scalar_lea.vmem [#allocation2], 648
  %v210 = vld [vmem:[%s209] ss:$2 sm:$0xff]
  %s211 = scalar_lea.vmem [#allocation2], 696
  %v212 = vld [vmem:[%s211] ss:$2 sm:$0xff]
  %s213 = scalar_lea.vmem [#allocation2], 744
  %v214 = vld [vmem:[%s213] ss:$2 sm:$0xff]
  %v215 = vld [vmem:[%s1] sm:$0x7]
  %s216 = scalar_lea.vmem [#allocation2], 1
  %v217 = vld [vmem:[%s216] ss:$2 sm:$0xff]
  %s218 = scalar_lea.vmem [#allocation2], 49
  %v219 = vld [vmem:[%s218] ss:$2 sm:$0xff]
  %s220 = scalar_lea.vmem [#allocation2], 97
  %v221 = vld [vmem:[%s220] ss:$2 sm:$0xff]
  %s222 = scalar_lea.vmem [#allocation2], 145
  %v223 = vld [vmem:[%s222] ss:$2 sm:$0xff]
  %s224 = scalar_lea.vmem [#allocation2], 193
  %v225 = vld [vmem:[%s224] ss:$2 sm:$0xff]
  %s226 = scalar_lea.vmem [#allocation2], 241
  %v227 = vld [vmem:[%s226] ss:$2 sm:$0xff]
  %s228 = scalar_lea.vmem [#allocation2], 289
  %v229 = vld [vmem:[%s228] ss:$2 sm:$0xff]
  %s230 = scalar_lea.vmem [#allocation2], 337
  %v231 = vld [vmem:[%s230] ss:$2 sm:$0xff]
  %s232 = scalar_lea.vmem [#allocation2], 409
  %v233 = vld [vmem:[%s232] ss:$2 sm:$0xff]
  %s234 = scalar_lea.vmem [#allocation2], 457
  %v235 = vld [vmem:[%s234] ss:$2 sm:$0xff]
  %s236 = scalar_lea.vmem [#allocation2], 505
  %v237 = vld [vmem:[%s236] ss:$2 sm:$0xff]
  %s238 = scalar_lea.vmem [#allocation2], 553
  %v239 = vld [vmem:[%s238] ss:$2 sm:$0xff]
  %s240 = scalar_lea.vmem [#allocation2], 601
  %v241 = vld [vmem:[%s240] ss:$2 sm:$0xff]
  %s242 = scalar_lea.vmem [#allocation2], 649
  %v243 = vld [vmem:[%s242] ss:$2 sm:$0xff]
  %s244 = scalar_lea.vmem [#allocation2], 697
  %v245 = vld [vmem:[%s244] ss:$2 sm:$0xff]
  %s246 = scalar_lea.vmem [#allocation2], 745
  %v247 = vld [vmem:[%s246] ss:$2 sm:$0xff]
  %v248 = vld [vmem:[%s1 + $0x3] sm:$0x7]
  %v250 = vsel %vm13, %v217, 0
  %v253 = vsel %vm13, %v219, 0
  %v256 = vsel %vm13, %v221, 0
  %v259 = vsel %vm13, %v223, 0
  %v262 = vsel %vm13, %v225, 0
  %v265 = vsel %vm13, %v227, 0
  %v268 = vsel %vm13, %v229, 0
  %v271 = vsel %vm13, %v231, 0
  %v274 = vsel %vm13, %v233, 0
  %v277 = vsel %vm13, %v235, 0
  %v280 = vsel %vm13, %v237, 0
  %v283 = vsel %vm13, %v239, 0
  %v286 = vsel %vm13, %v241, 0
  %v289 = vsel %vm13, %v243, 0
  %v292 = vsel %vm13, %v245, 0
  %v295 = vsel %vm13, %v247, 0
  %vm297 = vcmask 1042432
  %v299 = vsel %vm297, %v248, 0
  %301 = vmatprep.subr.mxu0 0.0
  %302 = vmatpush1.msra.mxu0 %v299
  %303 = vmatprep.subr.mxu0 0.0
  %304 = vmatpush1.msra.mxu0 0.0
  %305 = vmatprep.subr.mxu0 0.0
  %306 = vmatpush1.msra.mxu0 0.0
  %307 = vmatprep.subr.mxu0 0.0
  %308 = vmatpush1.msra.mxu0 0.0
  %309 = vmatprep.subr.mxu0 0.0
  %310 = vmatpush1.msra.mxu0 0.0
  %311 = vmatprep.subr.mxu0 0.0
  %312 = vmatpush1.msra.mxu0 0.0
  %313 = vmatprep.subr.mxu0 0.0
  %314 = vmatpush1.msra.mxu0 0.0
  %315 = vmatprep.subr.mxu0 0.0
  %316 = vmatpush1.msra.mxu0 0.0
  %317 = vmatprep.subr.mxu0 0.0
  %318 = vmatpush1.msra.mxu0 0.0
  %319 = vmatprep.subr.mxu0 0.0
  %320 = vmatpush1.msra.mxu0 0.0
  %321 = vmatprep.subr.mxu0 0.0
  %322 = vmatpush1.msra.mxu0 0.0
  %323 = vmatprep.subr.mxu0 0.0
  %324 = vmatpush1.msra.mxu0 0.0
  %325 = vmatprep.subr.mxu0 0.0
  %326 = vmatpush1.msra.mxu0 0.0
  %327 = vmatprep.subr.mxu0 0.0
  %328 = vmatpush1.msra.mxu0 0.0
  %329 = vmatprep.subr.mxu0 0.0
  %330 = vmatpush1.msra.mxu0 0.0
  %331 = vmatprep.subr.mxu0 0.0
  %332 = vmatpush1.msra.mxu0 0.0
  %333 = vmatprep.subr.mxu0 0.0
  %334 = vmatpush1.msra.mxu0 0.0
  %335 = vmatprep.subr.mxu0 0.0
  %336 = vmatpush1.msra.mxu0 0.0
  %337 = vmatprep.subr.mxu0 0.0
  %338 = vmatpush1.msra.mxu0 0.0
  %339 = vmatprep.subr.mxu0 0.0
  %340 = vmatpush1.msra.mxu0 0.0
  %341 = vmatprep.subr.mxu0 0.0
  %342 = vmatpush1.msra.mxu0 0.0
  %343 = vmatprep.subr.mxu0 0.0
  %344 = vmatpush1.msra.mxu0 0.0
  %345 = vmatprep.subr.mxu0 0.0
  %346 = vmatpush1.msra.mxu0 0.0
  %347 = vmatprep.subr.mxu0 0.0
  %348 = vmatpush1.msra.mxu0 0.0
  %349 = vmatprep.subr.mxu0 0.0
  %350 = vmatpush1.msra.mxu0 0.0
  %351 = vmatprep.subr.mxu0 0.0
  %352 = vmatpush1.msra.mxu0 0.0
  %353 = vmatprep.subr.mxu0 0.0
  %354 = vmatpush1.msra.mxu0 0.0
  %355 = vmatprep.subr.mxu0 0.0
  %356 = vmatpush1.msra.mxu0 0.0
  %357 = vmatprep.subr.mxu0 0.0
  %358 = vmatpush1.msra.mxu0 0.0
  %359 = vmatprep.subr.mxu0 0.0
  %360 = vmatpush1.msra.mxu0 0.0
  %361 = vmatprep.subr.mxu0 0.0
  %362 = vmatpush1.msra.mxu0 0.0
  %363 = vmatprep.subr.mxu0 0.0
  %364 = vmatpush1.msra.mxu0 0.0
  %365 = vmatprep.mubr.f32.mxu0 0.0
  %366 = vmatmul.mubr.f32.gmra.mrb[0].mxu0 %v250
  %v367 = vpop.f32.mrb[0].mxu0
  %v368 = vadd.f32 0.0, %v367
  %v369 = vpop.f32.mrb[0].mxu0
  %370 = vmatprep.mubr.f32.mxu0 0.0
  %371 = vmatmul.mubr.f32.gmra.mrb[0].mxu0 %v253
  %v372 = vpop.f32.mrb[0].mxu0
  %v373 = vadd.f32 0.0, %v372
  %v374 = vpop.f32.mrb[0].mxu0
  %375 = vmatprep.mubr.f32.mxu0 0.0
  %376 = vmatmul.mubr.f32.gmra.mrb[0].mxu0 %v256
  %v377 = vpop.f32.mrb[0].mxu0
  %v378 = vadd.f32 0.0, %v377
  %v379 = vpop.f32.mrb[0].mxu0
  %380 = vmatprep.mubr.f32.mxu0 0.0
  %381 = vmatmul.mubr.f32.gmra.mrb[0].mxu0 %v259
  %v382 = vpop.f32.mrb[0].mxu0
  %v383 = vadd.f32 0.0, %v382
  %v384 = vpop.f32.mrb[0].mxu0
  %385 = vmatprep.mubr.f32.mxu0 0.0
  %386 = vmatmul.mubr.f32.gmra.mrb[0].mxu0 %v262
  %v387 = vpop.f32.mrb[0].mxu0
  %v388 = vadd.f32 0.0, %v387
  %v389 = vpop.f32.mrb[0].mxu0
  %390 = vmatprep.mubr.f32.mxu0 0.0
  %391 = vmatmul.mubr.f32.gmra.mrb[0].mxu0 %v265
  %v392 = vpop.f32.mrb[0].mxu0
  %v393 = vadd.f32 0.0, %v392
  %v394 = vpop.f32.mrb[0].mxu0
  %395 = vmatprep.mubr.f32.mxu0 0.0
  %396 = vmatmul.mubr.f32.gmra.mrb[0].mxu0 %v268
  %v397 = vpop.f32.mrb[0].mxu0
  %v398 = vadd.f32 0.0, %v397
  %v399 = vpop.f32.mrb[0].mxu0
  %400 = vmatprep.mubr.f32.mxu0 0.0
  %401 = vmatmul.mubr.f32.gmra.mrb[0].mxu0 %v271
  %v402 = vpop.f32.mrb[0].mxu0
  %v403 = vadd.f32 0.0, %v402
  %v404 = vpop.f32.mrb[0].mxu0
  %405 = vmatprep.mubr.f32.mxu0 0.0
  %406 = vmatmul.mubr.f32.gmra.mrb[0].mxu0 %v274
  %v407 = vpop.f32.mrb[0].mxu0
  %v408 = vadd.f32 0.0, %v407
  %v409 = vpop.f32.mrb[0].mxu0
  %410 = vmatprep.mubr.f32.mxu0 0.0
  %411 = vmatmul.mubr.f32.gmra.mrb[0].mxu0 %v277
  %v412 = vpop.f32.mrb[0].mxu0
  %v413 = vadd.f32 0.0, %v412
  %v414 = vpop.f32.mrb[0].mxu0
  %415 = vmatprep.mubr.f32.mxu0 0.0
  %416 = vmatmul.mubr.f32.gmra.mrb[0].mxu0 %v280
  %v417 = vpop.f32.mrb[0].mxu0
  %v418 = vadd.f32 0.0, %v417
  %v419 = vpop.f32.mrb[0].mxu0
  %420 = vmatprep.mubr.f32.mxu0 0.0
  %421 = vmatmul.mubr.f32.gmra.mrb[0].mxu0 %v283
  %v422 = vpop.f32.mrb[0].mxu0
  %v423 = vadd.f32 0.0, %v422
  %v424 = vpop.f32.mrb[0].mxu0
  %425 = vmatprep.mubr.f32.mxu0 0.0
  %426 = vmatmul.mubr.f32.gmra.mrb[0].mxu0 %v286
  %v427 = vpop.f32.mrb[0].mxu0
  %v428 = vadd.f32 0.0, %v427
  %v429 = vpop.f32.mrb[0].mxu0
  %430 = vmatprep.mubr.f32.mxu0 0.0
  %431 = vmatmul.mubr.f32.gmra.mrb[0].mxu0 %v289
  %v432 = vpop.f32.mrb[0].mxu0
  %v433 = vadd.f32 0.0, %v432
  %v434 = vpop.f32.mrb[0].mxu0
  %435 = vmatprep.mubr.f32.mxu0 0.0
  %436 = vmatmul.mubr.f32.gmra.mrb[0].mxu0 %v292
  %v437 = vpop.f32.mrb[0].mxu0
  %v438 = vadd.f32 0.0, %v437
  %v439 = vpop.f32.mrb[0].mxu0
  %440 = vmatprep.mubr.f32.mxu0 0.0
  %441 = vmatmul.mubr.f32.gmra.mrb[0].mxu0 %v295
  %v442 = vpop.f32.mrb[0].mxu0
  %v443 = vadd.f32 0.0, %v442
  %v444 = vpop.f32.mrb[0].mxu0
  %445 = vdwg.mxu0
  %v447 = vsel %vm13, %v184, 0
  %v450 = vsel %vm13, %v186, 0
  %v453 = vsel %vm13, %v188, 0
  %v456 = vsel %vm13, %v190, 0
  %v459 = vsel %vm13, %v192, 0
  %v462 = vsel %vm13, %v194, 0
  %v465 = vsel %vm13, %v196, 0
  %v468 = vsel %vm13, %v198, 0
  %v471 = vsel %vm13, %v200, 0
  %v474 = vsel %vm13, %v202, 0
  %v477 = vsel %vm13, %v204, 0
  %v480 = vsel %vm13, %v206, 0
  %v483 = vsel %vm13, %v208, 0
  %v486 = vsel %vm13, %v210, 0
  %v489 = vsel %vm13, %v212, 0
  %v492 = vsel %vm13, %v214, 0
  %v495 = vsel %vm297, %v215, 0
  %497 = vmatprep.subr.mxu0 0.0
  %498 = vmatpush1.msra.mxu0 %v495
  %499 = vmatprep.subr.mxu0 0.0
  %500 = vmatpush1.msra.mxu0 0.0
  %501 = vmatprep.subr.mxu0 0.0
  %502 = vmatpush1.msra.mxu0 0.0
  %503 = vmatprep.subr.mxu0 0.0
  %504 = vmatpush1.msra.mxu0 0.0
  %505 = vmatprep.subr.mxu0 0.0
  %506 = vmatpush1.msra.mxu0 0.0
  %507 = vmatprep.subr.mxu0 0.0
  %508 = vmatpush1.msra.mxu0 0.0
  %509 = vmatprep.subr.mxu0 0.0
  %510 = vmatpush1.msra.mxu0 0.0
  %511 = vmatprep.subr.mxu0 0.0
  %512 = vmatpush1.msra.mxu0 0.0
  %513 = vmatprep.subr.mxu0 0.0
  %514 = vmatpush1.msra.mxu0 0.0
  %515 = vmatprep.subr.mxu0 0.0
  %516 = vmatpush1.msra.mxu0 0.0
  %517 = vmatprep.subr.mxu0 0.0
  %518 = vmatpush1.msra.mxu0 0.0
  %519 = vmatprep.subr.mxu0 0.0
  %520 = vmatpush1.msra.mxu0 0.0
  %521 = vmatprep.subr.mxu0 0.0
  %522 = vmatpush1.msra.mxu0 0.0
  %523 = vmatprep.subr.mxu0 0.0
  %524 = vmatpush1.msra.mxu0 0.0
  %525 = vmatprep.subr.mxu0 0.0
  %526 = vmatpush1.msra.mxu0 0.0
  %527 = vmatprep.subr.mxu0 0.0
  %528 = vmatpush1.msra.mxu0 0.0
  %529 = vmatprep.subr.mxu0 0.0
  %530 = vmatpush1.msra.mxu0 0.0
  %531 = vmatprep.subr.mxu0 0.0
  %532 = vmatpush1.msra.mxu0 0.0
  %533 = vmatprep.subr.mxu0 0.0
  %534 = vmatpush1.msra.mxu0 0.0
  %535 = vmatprep.subr.mxu0 0.0
  %536 = vmatpush1.msra.mxu0 0.0
  %537 = vmatprep.subr.mxu0 0.0
  %538 = vmatpush1.msra.mxu0 0.0
  %539 = vmatprep.subr.mxu0 0.0
  %540 = vmatpush1.msra.mxu0 0.0
  %541 = vmatprep.subr.mxu0 0.0
  %542 = vmatpush1.msra.mxu0 0.0
  %543 = vmatprep.subr.mxu0 0.0
  %544 = vmatpush1.msra.mxu0 0.0
  %545 = vmatprep.subr.mxu0 0.0
  %546 = vmatpush1.msra.mxu0 0.0
  %547 = vmatprep.subr.mxu0 0.0
  %548 = vmatpush1.msra.mxu0 0.0
  %549 = vmatprep.subr.mxu0 0.0
  %550 = vmatpush1.msra.mxu0 0.0
  %551 = vmatprep.subr.mxu0 0.0
  %552 = vmatpush1.msra.mxu0 0.0
  %553 = vmatprep.subr.mxu0 0.0
  %554 = vmatpush1.msra.mxu0 0.0
  %555 = vmatprep.subr.mxu0 0.0
  %556 = vmatpush1.msra.mxu0 0.0
  %557 = vmatprep.subr.mxu0 0.0
  %558 = vmatpush1.msra.mxu0 0.0
  %559 = vmatprep.subr.mxu0 0.0
  %560 = vmatpush1.msra.mxu0 0.0
  %561 = vmatprep.mubr.f32.mxu0 0.0
  %562 = vmatmul.mubr.f32.gmra.mrb[0].mxu0 %v447
  %v563 = vpop.f32.mrb[0].mxu0
  %v564 = vadd.f32 %v368, %v563
  %v565 = vpop.f32.mrb[0].mxu0
  %566 = vmatprep.mubr.f32.mxu0 0.0
  %567 = vmatmul.mubr.f32.gmra.mrb[0].mxu0 %v450
  %v568 = vpop.f32.mrb[0].mxu0
  %v569 = vadd.f32 %v373, %v568
  %v570 = vpop.f32.mrb[0].mxu0
  %571 = vmatprep.mubr.f32.mxu0 0.0
  %572 = vmatmul.mubr.f32.gmra.mrb[0].mxu0 %v453
  %v573 = vpop.f32.mrb[0].mxu0
  %v574 = vadd.f32 %v378, %v573
  %v575 = vpop.f32.mrb[0].mxu0
  %576 = vmatprep.mubr.f32.mxu0 0.0
  %577 = vmatmul.mubr.f32.gmra.mrb[0].mxu0 %v456
  %v578 = vpop.f32.mrb[0].mxu0
  %v579 = vadd.f32 %v383, %v578
  %v580 = vpop.f32.mrb[0].mxu0
  %581 = vmatprep.mubr.f32.mxu0 0.0
  %582 = vmatmul.mubr.f32.gmra.mrb[0].mxu0 %v459
  %v583 = vpop.f32.mrb[0].mxu0
  %v584 = vadd.f32 %v388, %v583
  %v585 = vpop.f32.mrb[0].mxu0
  %586 = vmatprep.mubr.f32.mxu0 0.0
  %587 = vmatmul.mubr.f32.gmra.mrb[0].mxu0 %v462
  %v588 = vpop.f32.mrb[0].mxu0
  %v589 = vadd.f32 %v393, %v588
  %v590 = vpop.f32.mrb[0].mxu0
  %591 = vmatprep.mubr.f32.mxu0 0.0
  %592 = vmatmul.mubr.f32.gmra.mrb[0].mxu0 %v465
  %v593 = vpop.f32.mrb[0].mxu0
  %v594 = vadd.f32 %v398, %v593
  %v595 = vpop.f32.mrb[0].mxu0
  %596 = vmatprep.mubr.f32.mxu0 0.0
  %597 = vmatmul.mubr.f32.gmra.mrb[0].mxu0 %v468
  %v598 = vpop.f32.mrb[0].mxu0
  %v599 = vadd.f32 %v403, %v598
  %v600 = vpop.f32.mrb[0].mxu0
  %601 = vmatprep.mubr.f32.mxu0 0.0
  %602 = vmatmul.mubr.f32.gmra.mrb[0].mxu0 %v471
  %v603 = vpop.f32.mrb[0].mxu0
  %v604 = vadd.f32 %v408, %v603
  %v605 = vpop.f32.mrb[0].mxu0
  %606 = vmatprep.mubr.f32.mxu0 0.0
  %607 = vmatmul.mubr.f32.gmra.mrb[0].mxu0 %v474
  %v608 = vpop.f32.mrb[0].mxu0
  %v609 = vadd.f32 %v413, %v608
  %v610 = vpop.f32.mrb[0].mxu0
  %611 = vmatprep.mubr.f32.mxu0 0.0
  %612 = vmatmul.mubr.f32.gmra.mrb[0].mxu0 %v477
  %v613 = vpop.f32.mrb[0].mxu0
  %v614 = vadd.f32 %v418, %v613
  %v615 = vpop.f32.mrb[0].mxu0
  %616 = vmatprep.mubr.f32.mxu0 0.0
  %617 = vmatmul.mubr.f32.gmra.mrb[0].mxu0 %v480
  %v618 = vpop.f32.mrb[0].mxu0
  %v619 = vadd.f32 %v423, %v618
  %v620 = vpop.f32.mrb[0].mxu0
  %621 = vmatprep.mubr.f32.mxu0 0.0
  %622 = vmatmul.mubr.f32.gmra.mrb[0].mxu0 %v483
  %v623 = vpop.f32.mrb[0].mxu0
  %v624 = vadd.f32 %v428, %v623
  %v625 = vpop.f32.mrb[0].mxu0
  %626 = vmatprep.mubr.f32.mxu0 0.0
  %627 = vmatmul.mubr.f32.gmra.mrb[0].mxu0 %v486
  %v628 = vpop.f32.mrb[0].mxu0
  %v629 = vadd.f32 %v433, %v628
  %v630 = vpop.f32.mrb[0].mxu0
  %631 = vmatprep.mubr.f32.mxu0 0.0
  %632 = vmatmul.mubr.f32.gmra.mrb[0].mxu0 %v489
  %v633 = vpop.f32.mrb[0].mxu0
  %v634 = vadd.f32 %v438, %v633
  %v635 = vpop.f32.mrb[0].mxu0
  %636 = vmatprep.mubr.f32.mxu0 0.0
  %637 = vmatmul.mubr.f32.gmra.mrb[0].mxu0 %v492
  %v638 = vpop.f32.mrb[0].mxu0
  %v639 = vadd.f32 %v443, %v638
  %v640 = vpop.f32.mrb[0].mxu0
  %641 = vdwg.mxu0
  %s642 = scalar_lea.vmem [#allocation2], 2
  %v643 = vld [vmem:[%s642] ss:$2 sm:$0xff]
  %s644 = scalar_lea.vmem [#allocation2], 50
  %v645 = vld [vmem:[%s644] ss:$2 sm:$0xff]
  %s646 = scalar_lea.vmem [#allocation2], 98
  %v647 = vld [vmem:[%s646] ss:$2 sm:$0xff]
  %s648 = scalar_lea.vmem [#allocation2], 146
  %v649 = vld [vmem:[%s648] ss:$2 sm:$0xff]
  %s650 = scalar_lea.vmem [#allocation2], 194
  %v651 = vld [vmem:[%s650] ss:$2 sm:$0xff]
  %s652 = scalar_lea.vmem [#allocation2], 242
  %v653 = vld [vmem:[%s652] ss:$2 sm:$0xff]
  %s654 = scalar_lea.vmem [#allocation2], 290
  %v655 = vld [vmem:[%s654] ss:$2 sm:$0xff]
  %s656 = scalar_lea.vmem [#allocation2], 338
  %v657 = vld [vmem:[%s656] ss:$2 sm:$0xff]
  %s658 = scalar_lea.vmem [#allocation2], 410
  %v659 = vld [vmem:[%s658] ss:$2 sm:$0xff]
  %s660 = scalar_lea.vmem [#allocation2], 458
  %v661 = vld [vmem:[%s660] ss:$2 sm:$0xff]
  %s662 = scalar_lea.vmem [#allocation2], 506
  %v663 = vld [vmem:[%s662] ss:$2 sm:$0xff]
  %s664 = scalar_lea.vmem [#allocation2], 554
  %v665 = vld [vmem:[%s664] ss:$2 sm:$0xff]
  %s666 = scalar_lea.vmem [#allocation2], 602
  %v667 = vld [vmem:[%s666] ss:$2 sm:$0xff]
  %s668 = scalar_lea.vmem [#allocation2], 650
  %v669 = vld [vmem:[%s668] ss:$2 sm:$0xff]
  %s670 = scalar_lea.vmem [#allocation2], 698
  %v671 = vld [vmem:[%s670] ss:$2 sm:$0xff]
  %s672 = scalar_lea.vmem [#allocation2], 746
  %v673 = vld [vmem:[%s672] ss:$2 sm:$0xff]
  %v674 = vld [vmem:[%s1 + $0x6] sm:$0x7]
  %v676 = vsel %vm13, %v643, 0
  %v679 = vsel %vm13, %v645, 0
  %v682 = vsel %vm13, %v647, 0
  %v685 = vsel %vm13, %v649, 0
  %v688 = vsel %vm13, %v651, 0
  %v691 = vsel %vm13, %v653, 0
  %v694 = vsel %vm13, %v655, 0
  %v697 = vsel %vm13, %v657, 0
  %v700 = vsel %vm13, %v659, 0
  %v703 = vsel %vm13, %v661, 0
  %v706 = vsel %vm13, %v663, 0
  %v709 = vsel %vm13, %v665, 0
  %v712 = vsel %vm13, %v667, 0
  %v715 = vsel %vm13, %v669, 0
  %v718 = vsel %vm13, %v671, 0
  %v721 = vsel %vm13, %v673, 0
  %v724 = vsel %vm297, %v674, 0
  %726 = vmatprep.subr.mxu0 0.0
  %727 = vmatpush1.msra.mxu0 %v724
  %728 = vmatprep.subr.mxu0 0.0
  %729 = vmatpush1.msra.mxu0 0.0
  %730 = vmatprep.subr.mxu0 0.0
  %731 = vmatpush1.msra.mxu0 0.0
  %732 = vmatprep.subr.mxu0 0.0
  %733 = vmatpush1.msra.mxu0 0.0
  %734 = vmatprep.subr.mxu0 0.0
  %735 = vmatpush1.msra.mxu0 0.0
  %736 = vmatprep.subr.mxu0 0.0
  %737 = vmatpush1.msra.mxu0 0.0
  %738 = vmatprep.subr.mxu0 0.0
  %739 = vmatpush1.msra.mxu0 0.0
  %740 = vmatprep.subr.mxu0 0.0
  %741 = vmatpush1.msra.mxu0 0.0
  %742 = vmatprep.subr.mxu0 0.0
  %743 = vmatpush1.msra.mxu0 0.0
  %744 = vmatprep.subr.mxu0 0.0
  %745 = vmatpush1.msra.mxu0 0.0
  %746 = vmatprep.subr.mxu0 0.0
  %747 = vmatpush1.msra.mxu0 0.0
  %748 = vmatprep.subr.mxu0 0.0
  %749 = vmatpush1.msra.mxu0 0.0
  %750 = vmatprep.subr.mxu0 0.0
  %751 = vmatpush1.msra.mxu0 0.0
  %752 = vmatprep.subr.mxu0 0.0
  %753 = vmatpush1.msra.mxu0 0.0
  %754 = vmatprep.subr.mxu0 0.0
  %755 = vmatpush1.msra.mxu0 0.0
  %756 = vmatprep.subr.mxu0 0.0
  %757 = vmatpush1.msra.mxu0 0.0
  %758 = vmatprep.subr.mxu0 0.0
  %759 = vmatpush1.msra.mxu0 0.0
  %760 = vmatprep.subr.mxu0 0.0
  %761 = vmatpush1.msra.mxu0 0.0
  %762 = vmatprep.subr.mxu0 0.0
  %763 = vmatpush1.msra.mxu0 0.0
  %764 = vmatprep.subr.mxu0 0.0
  %765 = vmatpush1.msra.mxu0 0.0
  %766 = vmatprep.subr.mxu0 0.0
  %767 = vmatpush1.msra.mxu0 0.0
  %768 = vmatprep.subr.mxu0 0.0
  %769 = vmatpush1.msra.mxu0 0.0
  %770 = vmatprep.subr.mxu0 0.0
  %771 = vmatpush1.msra.mxu0 0.0
  %772 = vmatprep.subr.mxu0 0.0
  %773 = vmatpush1.msra.mxu0 0.0
  %774 = vmatprep.subr.mxu0 0.0
  %775 = vmatpush1.msra.mxu0 0.0
  %776 = vmatprep.subr.mxu0 0.0
  %777 = vmatpush1.msra.mxu0 0.0
  %778 = vmatprep.subr.mxu0 0.0
  %779 = vmatpush1.msra.mxu0 0.0
  %780 = vmatprep.subr.mxu0 0.0
  %781 = vmatpush1.msra.mxu0 0.0
  %782 = vmatprep.subr.mxu0 0.0
  %783 = vmatpush1.msra.mxu0 0.0
  %784 = vmatprep.subr.mxu0 0.0
  %785 = vmatpush1.msra.mxu0 0.0
  %786 = vmatprep.subr.mxu0 0.0
  %787 = vmatpush1.msra.mxu0 0.0
  %788 = vmatprep.subr.mxu0 0.0
  %789 = vmatpush1.msra.mxu0 0.0
  %790 = vmatprep.mubr.f32.mxu0 0.0
  %791 = vmatmul.mubr.f32.gmra.mrb[0].mxu0 %v676
  %v792 = vpop.f32.mrb[0].mxu0
  %v793 = vadd.f32 0.0, %v792
  %v794 = vpop.f32.mrb[0].mxu0
  %795 = vmatprep.mubr.f32.mxu0 0.0
  %796 = vmatmul.mubr.f32.gmra.mrb[0].mxu0 %v679
  %v797 = vpop.f32.mrb[0].mxu0
  %v798 = vadd.f32 0.0, %v797
  %v799 = vpop.f32.mrb[0].mxu0
  %800 = vmatprep.mubr.f32.mxu0 0.0
  %801 = vmatmul.mubr.f32.gmra.mrb[0].mxu0 %v682
  %v802 = vpop.f32.mrb[0].mxu0
  %v803 = vadd.f32 0.0, %v802
  %v804 = vpop.f32.mrb[0].mxu0
  %805 = vmatprep.mubr.f32.mxu0 0.0
  %806 = vmatmul.mubr.f32.gmra.mrb[0].mxu0 %v685
  %v807 = vpop.f32.mrb[0].mxu0
  %v808 = vadd.f32 0.0, %v807
  %v809 = vpop.f32.mrb[0].mxu0
  %810 = vmatprep.mubr.f32.mxu0 0.0
  %811 = vmatmul.mubr.f32.gmra.mrb[0].mxu0 %v688
  %v812 = vpop.f32.mrb[0].mxu0
  %v813 = vadd.f32 0.0, %v812
  %v814 = vpop.f32.mrb[0].mxu0
  %815 = vmatprep.mubr.f32.mxu0 0.0
  %816 = vmatmul.mubr.f32.gmra.mrb[0].mxu0 %v691
  %v817 = vpop.f32.mrb[0].mxu0
  %v818 = vadd.f32 0.0, %v817
  %v819 = vpop.f32.mrb[0].mxu0
  %820 = vmatprep.mubr.f32.mxu0 0.0
  %821 = vmatmul.mubr.f32.gmra.mrb[0].mxu0 %v694
  %v822 = vpop.f32.mrb[0].mxu0
  %v823 = vadd.f32 0.0, %v822
  %v824 = vpop.f32.mrb[0].mxu0
  %825 = vmatprep.mubr.f32.mxu0 0.0
  %826 = vmatmul.mubr.f32.gmra.mrb[0].mxu0 %v697
  %v827 = vpop.f32.mrb[0].mxu0
  %v828 = vadd.f32 0.0, %v827
  %v829 = vpop.f32.mrb[0].mxu0
  %830 = vmatprep.mubr.f32.mxu0 0.0
  %831 = vmatmul.mubr.f32.gmra.mrb[0].mxu0 %v700
  %v832 = vpop.f32.mrb[0].mxu0
  %v833 = vadd.f32 0.0, %v832
  %v834 = vpop.f32.mrb[0].mxu0
  %835 = vmatprep.mubr.f32.mxu0 0.0
  %836 = vmatmul.mubr.f32.gmra.mrb[0].mxu0 %v703
  %v837 = vpop.f32.mrb[0].mxu0
  %v838 = vadd.f32 0.0, %v837
  %v839 = vpop.f32.mrb[0].mxu0
  %840 = vmatprep.mubr.f32.mxu0 0.0
  %841 = vmatmul.mubr.f32.gmra.mrb[0].mxu0 %v706
  %v842 = vpop.f32.mrb[0].mxu0
  %v843 = vadd.f32 0.0, %v842
  %v844 = vpop.f32.mrb[0].mxu0
  %845 = vmatprep.mubr.f32.mxu0 0.0
  %846 = vmatmul.mubr.f32.gmra.mrb[0].mxu0 %v709
  %v847 = vpop.f32.mrb[0].mxu0
  %v848 = vadd.f32 0.0, %v847
  %v849 = vpop.f32.mrb[0].mxu0
  %850 = vmatprep.mubr.f32.mxu0 0.0
  %851 = vmatmul.mubr.f32.gmra.mrb[0].mxu0 %v712
  %v852 = vpop.f32.mrb[0].mxu0
  %v853 = vadd.f32 0.0, %v852
  %v854 = vpop.f32.mrb[0].mxu0
  %855 = vmatprep.mubr.f32.mxu0 0.0
  %856 = vmatmul.mubr.f32.gmra.mrb[0].mxu0 %v715
  %v857 = vpop.f32.mrb[0].mxu0
  %v858 = vadd.f32 0.0, %v857
  %v859 = vpop.f32.mrb[0].mxu0
  %860 = vmatprep.mubr.f32.mxu0 0.0
  %861 = vmatmul.mubr.f32.gmra.mrb[0].mxu0 %v718
  %v862 = vpop.f32.mrb[0].mxu0
  %v863 = vadd.f32 0.0, %v862
  %v864 = vpop.f32.mrb[0].mxu0
  %865 = vmatprep.mubr.f32.mxu0 0.0
  %866 = vmatmul.mubr.f32.gmra.mrb[0].mxu0 %v721
  %v867 = vpop.f32.mrb[0].mxu0
  %v868 = vadd.f32 0.0, %v867
  %v869 = vpop.f32.mrb[0].mxu0
  %870 = vdwg.mxu0
  %v871 = vadd.f32 %v564, %v793
  %v872 = vadd.f32 %v569, %v798
  %v873 = vadd.f32 %v574, %v803
  %v874 = vadd.f32 %v579, %v808
  %v875 = vadd.f32 %v584, %v813
  %v876 = vadd.f32 %v589, %v818
  %v877 = vadd.f32 %v594, %v823
  %v878 = vadd.f32 %v599, %v828
  %v879 = vadd.f32 %v604, %v833
  %v880 = vadd.f32 %v609, %v838
  %v881 = vadd.f32 %v614, %v843
  %v882 = vadd.f32 %v619, %v848
  %v883 = vadd.f32 %v624, %v853
  %v884 = vadd.f32 %v629, %v858
  %v885 = vadd.f32 %v634, %v863
  %v886 = vadd.f32 %v639, %v868
  %v887 = vld [vmem:[%s119] ss:$2 sm:$0xff]
  %s888 = scalar_lea.vmem %s119, 48 [#allocation2]
  %v889 = vld [vmem:[%s888] ss:$2 sm:$0xff]
  %s890 = scalar_lea.vmem %s119, 96 [#allocation2]
  %v891 = vld [vmem:[%s890] ss:$2 sm:$0xff]
  %s892 = scalar_lea.vmem %s119, 144 [#allocation2]
  %v893 = vld [vmem:[%s892] ss:$2 sm:$0xff]
  %s894 = scalar_lea.vmem %s119, 192 [#allocation2]
  %v895 = vld [vmem:[%s894] ss:$2 sm:$0xff]
  %s896 = scalar_lea.vmem %s119, 240 [#allocation2]
  %v897 = vld [vmem:[%s896] ss:$2 sm:$0xff]
  %s898 = scalar_lea.vmem %s119, 288 [#allocation2]
  %v899 = vld [vmem:[%s898] ss:$2 sm:$0xff]
  %s900 = scalar_lea.vmem %s119, 336 [#allocation2]
  %v901 = vld [vmem:[%s900] ss:$2 sm:$0xff]
  %s902 = scalar_lea.vmem %s119, 408 [#allocation2]
  %v903 = vld [vmem:[%s902] ss:$2 sm:$0xff]
  %s904 = scalar_lea.vmem %s119, 456 [#allocation2]
  %v905 = vld [vmem:[%s904] ss:$2 sm:$0xff]
  %s906 = scalar_lea.vmem %s119, 504 [#allocation2]
  %v907 = vld [vmem:[%s906] ss:$2 sm:$0xff]
  %s908 = scalar_lea.vmem %s119, 552 [#allocation2]
  %v909 = vld [vmem:[%s908] ss:$2 sm:$0xff]
  %s910 = scalar_lea.vmem %s119, 600 [#allocation2]
  %v911 = vld [vmem:[%s910] ss:$2 sm:$0xff]
  %s912 = scalar_lea.vmem %s119, 648 [#allocation2]
  %v913 = vld [vmem:[%s912] ss:$2 sm:$0xff]
  %s914 = scalar_lea.vmem %s119, 696 [#allocation2]
  %v915 = vld [vmem:[%s914] ss:$2 sm:$0xff]
  %s916 = scalar_lea.vmem %s119, 744 [#allocation2]
  %v917 = vld [vmem:[%s916] ss:$2 sm:$0xff]
  %v918 = vld [vmem:[%s1 + $0x9] sm:$0x7]
  %v920 = vsel %vm13, %v887, 0
  %v923 = vsel %vm13, %v889, 0
  %v926 = vsel %vm13, %v891, 0
  %v929 = vsel %vm13, %v893, 0
  %v932 = vsel %vm13, %v895, 0
  %v935 = vsel %vm13, %v897, 0
  %v938 = vsel %vm13, %v899, 0
  %v941 = vsel %vm13, %v901, 0
  %v944 = vsel %vm13, %v903, 0
  %v947 = vsel %vm13, %v905, 0
  %v950 = vsel %vm13, %v907, 0
  %v953 = vsel %vm13, %v909, 0
  %v956 = vsel %vm13, %v911, 0
  %v959 = vsel %vm13, %v913, 0
  %v962 = vsel %vm13, %v915, 0
  %v965 = vsel %vm13, %v917, 0
  %v968 = vsel %vm297, %v918, 0
  %970 = vmatprep.subr.mxu0 0.0
  %971 = vmatpush1.msra.mxu0 %v968
  %972 = vmatprep.subr.mxu0 0.0
  %973 = vmatpush1.msra.mxu0 0.0
  %974 = vmatprep.subr.mxu0 0.0
  %975 = vmatpush1.msra.mxu0 0.0
  %976 = vmatprep.subr.mxu0 0.0
  %977 = vmatpush1.msra.mxu0 0.0
  %978 = vmatprep.subr.mxu0 0.0
  %979 = vmatpush1.msra.mxu0 0.0
  %980 = vmatprep.subr.mxu0 0.0
  %981 = vmatpush1.msra.mxu0 0.0
  %982 = vmatprep.subr.mxu0 0.0
  %983 = vmatpush1.msra.mxu0 0.0
  %984 = vmatprep.subr.mxu0 0.0
  %985 = vmatpush1.msra.mxu0 0.0
  %986 = vmatprep.subr.mxu0 0.0
  %987 = vmatpush1.msra.mxu0 0.0
  %988 = vmatprep.subr.mxu0 0.0
  %989 = vmatpush1.msra.mxu0 0.0
  %990 = vmatprep.subr.mxu0 0.0
  %991 = vmatpush1.msra.mxu0 0.0
  %992 = vmatprep.subr.mxu0 0.0
  %993 = vmatpush1.msra.mxu0 0.0
  %994 = vmatprep.subr.mxu0 0.0
  %995 = vmatpush1.msra.mxu0 0.0
  %996 = vmatprep.subr.mxu0 0.0
  %997 = vmatpush1.msra.mxu0 0.0
  %998 = vmatprep.subr.mxu0 0.0
  %999 = vmatpush1.msra.mxu0 0.0
  %1000 = vmatprep.subr.mxu0 0.0
  %1001 = vmatpush1.msra.mxu0 0.0
  %1002 = vmatprep.subr.mxu0 0.0
  %1003 = vmatpush1.msra.mxu0 0.0
  %1004 = vmatprep.subr.mxu0 0.0
  %1005 = vmatpush1.msra.mxu0 0.0
  %1006 = vmatprep.subr.mxu0 0.0
  %1007 = vmatpush1.msra.mxu0 0.0
  %1008 = vmatprep.subr.mxu0 0.0
  %1009 = vmatpush1.msra.mxu0 0.0
  %1010 = vmatprep.subr.mxu0 0.0
  %1011 = vmatpush1.msra.mxu0 0.0
  %1012 = vmatprep.subr.mxu0 0.0
  %1013 = vmatpush1.msra.mxu0 0.0
  %1014 = vmatprep.subr.mxu0 0.0
  %1015 = vmatpush1.msra.mxu0 0.0
  %1016 = vmatprep.subr.mxu0 0.0
  %1017 = vmatpush1.msra.mxu0 0.0
  %1018 = vmatprep.subr.mxu0 0.0
  %1019 = vmatpush1.msra.mxu0 0.0
  %1020 = vmatprep.subr.mxu0 0.0
  %1021 = vmatpush1.msra.mxu0 0.0
  %1022 = vmatprep.subr.mxu0 0.0
  %1023 = vmatpush1.msra.mxu0 0.0
  %1024 = vmatprep.subr.mxu0 0.0
  %1025 = vmatpush1.msra.mxu0 0.0
  %1026 = vmatprep.subr.mxu0 0.0
  %1027 = vmatpush1.msra.mxu0 0.0
  %1028 = vmatprep.subr.mxu0 0.0
  %1029 = vmatpush1.msra.mxu0 0.0
  %1030 = vmatprep.subr.mxu0 0.0
  %1031 = vmatpush1.msra.mxu0 0.0
  %1032 = vmatprep.subr.mxu0 0.0
  %1033 = vmatpush1.msra.mxu0 0.0
  %1034 = vmatprep.mubr.f32.mxu0 0.0
  %1035 = vmatmul.mubr.f32.gmra.mrb[0].mxu0 %v920
  %v1036 = vpop.f32.mrb[0].mxu0
  %v1037 = vadd.f32 0.0, %v1036
  %v1038 = vpop.f32.mrb[0].mxu0
  %1039 = vmatprep.mubr.f32.mxu0 0.0
  %1040 = vmatmul.mubr.f32.gmra.mrb[0].mxu0 %v923
  %v1041 = vpop.f32.mrb[0].mxu0
  %v1042 = vadd.f32 0.0, %v1041
  %v1043 = vpop.f32.mrb[0].mxu0
  %1044 = vmatprep.mubr.f32.mxu0 0.0
  %1045 = vmatmul.mubr.f32.gmra.mrb[0].mxu0 %v926
  %v1046 = vpop.f32.mrb[0].mxu0
  %v1047 = vadd.f32 0.0, %v1046
  %v1048 = vpop.f32.mrb[0].mxu0
  %1049 = vmatprep.mubr.f32.mxu0 0.0
  %1050 = vmatmul.mubr.f32.gmra.mrb[0].mxu0 %v929
  %v1051 = vpop.f32.mrb[0].mxu0
  %v1052 = vadd.f32 0.0, %v1051
  %v1053 = vpop.f32.mrb[0].mxu0
  %1054 = vmatprep.mubr.f32.mxu0 0.0
  %1055 = vmatmul.mubr.f32.gmra.mrb[0].mxu0 %v932
  %v1056 = vpop.f32.mrb[0].mxu0
  %v1057 = vadd.f32 0.0, %v1056
  %v1058 = vpop.f32.mrb[0].mxu0
  %1059 = vmatprep.mubr.f32.mxu0 0.0
  %1060 = vmatmul.mubr.f32.gmra.mrb[0].mxu0 %v935
  %v1061 = vpop.f32.mrb[0].mxu0
  %v1062 = vadd.f32 0.0, %v1061
  %v1063 = vpop.f32.mrb[0].mxu0
  %1064 = vmatprep.mubr.f32.mxu0 0.0
  %1065 = vmatmul.mubr.f32.gmra.mrb[0].mxu0 %v938
  %v1066 = vpop.f32.mrb[0].mxu0
  %v1067 = vadd.f32 0.0, %v1066
  %v1068 = vpop.f32.mrb[0].mxu0
  %1069 = vmatprep.mubr.f32.mxu0 0.0
  %1070 = vmatmul.mubr.f32.gmra.mrb[0].mxu0 %v941
  %v1071 = vpop.f32.mrb[0].mxu0
  %v1072 = vadd.f32 0.0, %v1071
  %v1073 = vpop.f32.mrb[0].mxu0
  %1074 = vmatprep.mubr.f32.mxu0 0.0
  %1075 = vmatmul.mubr.f32.gmra.mrb[0].mxu0 %v944
  %v1076 = vpop.f32.mrb[0].mxu0
  %v1077 = vadd.f32 0.0, %v1076
  %v1078 = vpop.f32.mrb[0].mxu0
  %1079 = vmatprep.mubr.f32.mxu0 0.0
  %1080 = vmatmul.mubr.f32.gmra.mrb[0].mxu0 %v947
  %v1081 = vpop.f32.mrb[0].mxu0
  %v1082 = vadd.f32 0.0, %v1081
  %v1083 = vpop.f32.mrb[0].mxu0
  %1084 = vmatprep.mubr.f32.mxu0 0.0
  %1085 = vmatmul.mubr.f32.gmra.mrb[0].mxu0 %v950
  %v1086 = vpop.f32.mrb[0].mxu0
  %v1087 = vadd.f32 0.0, %v1086
  %v1088 = vpop.f32.mrb[0].mxu0
  %1089 = vmatprep.mubr.f32.mxu0 0.0
  %1090 = vmatmul.mubr.f32.gmra.mrb[0].mxu0 %v953
  %v1091 = vpop.f32.mrb[0].mxu0
  %v1092 = vadd.f32 0.0, %v1091
  %v1093 = vpop.f32.mrb[0].mxu0
  %1094 = vmatprep.mubr.f32.mxu0 0.0
  %1095 = vmatmul.mubr.f32.gmra.mrb[0].mxu0 %v956
  %v1096 = vpop.f32.mrb[0].mxu0
  %v1097 = vadd.f32 0.0, %v1096
  %v1098 = vpop.f32.mrb[0].mxu0
  %1099 = vmatprep.mubr.f32.mxu0 0.0
  %1100 = vmatmul.mubr.f32.gmra.mrb[0].mxu0 %v959
  %v1101 = vpop.f32.mrb[0].mxu0
  %v1102 = vadd.f32 0.0, %v1101
  %v1103 = vpop.f32.mrb[0].mxu0
  %1104 = vmatprep.mubr.f32.mxu0 0.0
  %1105 = vmatmul.mubr.f32.gmra.mrb[0].mxu0 %v962
  %v1106 = vpop.f32.mrb[0].mxu0
  %v1107 = vadd.f32 0.0, %v1106
  %v1108 = vpop.f32.mrb[0].mxu0
  %1109 = vmatprep.mubr.f32.mxu0 0.0
  %1110 = vmatmul.mubr.f32.gmra.mrb[0].mxu0 %v965
  %v1111 = vpop.f32.mrb[0].mxu0
  %v1112 = vadd.f32 0.0, %v1111
  %v1113 = vpop.f32.mrb[0].mxu0
  %1114 = vdwg.mxu0
  %v1115 = vadd.f32 %v871, %v1037
  %v1116 = vadd.f32 %v872, %v1042
  %v1117 = vadd.f32 %v873, %v1047
  %v1118 = vadd.f32 %v874, %v1052
  %v1119 = vadd.f32 %v875, %v1057
  %v1120 = vadd.f32 %v876, %v1062
  %v1121 = vadd.f32 %v877, %v1067
  %v1122 = vadd.f32 %v878, %v1072
  %v1123 = vadd.f32 %v879, %v1077
  %v1124 = vadd.f32 %v880, %v1082
  %v1125 = vadd.f32 %v881, %v1087
  %v1126 = vadd.f32 %v882, %v1092
  %v1127 = vadd.f32 %v883, %v1097
  %v1128 = vadd.f32 %v884, %v1102
  %v1129 = vadd.f32 %v885, %v1107
  %v1130 = vadd.f32 %v886, %v1112
  %s1131 = scalar_lea.vmem %s119, 1 [#allocation2]
  %v1132 = vld [vmem:[%s1131] ss:$2 sm:$0xff]
  %s1133 = scalar_lea.vmem %s119, 49 [#allocation2]
  %v1134 = vld [vmem:[%s1133] ss:$2 sm:$0xff]
  %s1135 = scalar_lea.vmem %s119, 97 [#allocation2]
  %v1136 = vld [vmem:[%s1135] ss:$2 sm:$0xff]
  %s1137 = scalar_lea.vmem %s119, 145 [#allocation2]
  %v1138 = vld [vmem:[%s1137] ss:$2 sm:$0xff]
  %s1139 = scalar_lea.vmem %s119, 193 [#allocation2]
  %v1140 = vld [vmem:[%s1139] ss:$2 sm:$0xff]
  %s1141 = scalar_lea.vmem %s119, 241 [#allocation2]
  %v1142 = vld [vmem:[%s1141] ss:$2 sm:$0xff]
  %s1143 = scalar_lea.vmem %s119, 289 [#allocation2]
  %v1144 = vld [vmem:[%s1143] ss:$2 sm:$0xff]
  %s1145 = scalar_lea.vmem %s119, 337 [#allocation2]
  %v1146 = vld [vmem:[%s1145] ss:$2 sm:$0xff]
  %s1147 = scalar_lea.vmem %s119, 409 [#allocation2]
  %v1148 = vld [vmem:[%s1147] ss:$2 sm:$0xff]
  %s1149 = scalar_lea.vmem %s119, 457 [#allocation2]
  %v1150 = vld [vmem:[%s1149] ss:$2 sm:$0xff]
  %s1151 = scalar_lea.vmem %s119, 505 [#allocation2]
  %v1152 = vld [vmem:[%s1151] ss:$2 sm:$0xff]
  %s1153 = scalar_lea.vmem %s119, 553 [#allocation2]
  %v1154 = vld [vmem:[%s1153] ss:$2 sm:$0xff]
  %s1155 = scalar_lea.vmem %s119, 601 [#allocation2]
  %v1156 = vld [vmem:[%s1155] ss:$2 sm:$0xff]
  %s1157 = scalar_lea.vmem %s119, 649 [#allocation2]
  %v1158 = vld [vmem:[%s1157] ss:$2 sm:$0xff]
  %s1159 = scalar_lea.vmem %s119, 697 [#allocation2]
  %v1160 = vld [vmem:[%s1159] ss:$2 sm:$0xff]
  %s1161 = scalar_lea.vmem %s119, 745 [#allocation2]
  %v1162 = vld [vmem:[%s1161] ss:$2 sm:$0xff]
  %v1163 = vld [vmem:[%s1 + $0xc] sm:$0x7]
  %v1165 = vsel %vm13, %v1132, 0
  %v1168 = vsel %vm13, %v1134, 0
  %v1171 = vsel %vm13, %v1136, 0
  %v1174 = vsel %vm13, %v1138, 0
  %v1177 = vsel %vm13, %v1140, 0
  %v1180 = vsel %vm13, %v1142, 0
  %v1183 = vsel %vm13, %v1144, 0
  %v1186 = vsel %vm13, %v1146, 0
  %v1189 = vsel %vm13, %v1148, 0
  %v1192 = vsel %vm13, %v1150, 0
  %v1195 = vsel %vm13, %v1152, 0
  %v1198 = vsel %vm13, %v1154, 0
  %v1201 = vsel %vm13, %v1156, 0
  %v1204 = vsel %vm13, %v1158, 0
  %v1207 = vsel %vm13, %v1160, 0
  %v1210 = vsel %vm13, %v1162, 0
  %v1213 = vsel %vm297, %v1163, 0
  %1215 = vmatprep.subr.mxu0 0.0
  %1216 = vmatpush1.msra.mxu0 %v1213
  %1217 = vmatprep.subr.mxu0 0.0
  %1218 = vmatpush1.msra.mxu0 0.0
  %1219 = vmatprep.subr.mxu0 0.0
  %1220 = vmatpush1.msra.mxu0 0.0
  %1221 = vmatprep.subr.mxu0 0.0
  %1222 = vmatpush1.msra.mxu0 0.0
  %1223 = vmatprep.subr.mxu0 0.0
  %1224 = vmatpush1.msra.mxu0 0.0
  %1225 = vmatprep.subr.mxu0 0.0
  %1226 = vmatpush1.msra.mxu0 0.0
  %1227 = vmatprep.subr.mxu0 0.0
  %1228 = vmatpush1.msra.mxu0 0.0
  %1229 = vmatprep.subr.mxu0 0.0
  %1230 = vmatpush1.msra.mxu0 0.0
  %1231 = vmatprep.subr.mxu0 0.0
  %1232 = vmatpush1.msra.mxu0 0.0
  %1233 = vmatprep.subr.mxu0 0.0
  %1234 = vmatpush1.msra.mxu0 0.0
  %1235 = vmatprep.subr.mxu0 0.0
  %1236 = vmatpush1.msra.mxu0 0.0
  %1237 = vmatprep.subr.mxu0 0.0
  %1238 = vmatpush1.msra.mxu0 0.0
  %1239 = vmatprep.subr.mxu0 0.0
  %1240 = vmatpush1.msra.mxu0 0.0
  %1241 = vmatprep.subr.mxu0 0.0
  %1242 = vmatpush1.msra.mxu0 0.0
  %1243 = vmatprep.subr.mxu0 0.0
  %1244 = vmatpush1.msra.mxu0 0.0
  %1245 = vmatprep.subr.mxu0 0.0
  %1246 = vmatpush1.msra.mxu0 0.0
  %1247 = vmatprep.subr.mxu0 0.0
  %1248 = vmatpush1.msra.mxu0 0.0
  %1249 = vmatprep.subr.mxu0 0.0
  %1250 = vmatpush1.msra.mxu0 0.0
  %1251 = vmatprep.subr.mxu0 0.0
  %1252 = vmatpush1.msra.mxu0 0.0
  %1253 = vmatprep.subr.mxu0 0.0
  %1254 = vmatpush1.msra.mxu0 0.0
  %1255 = vmatprep.subr.mxu0 0.0
  %1256 = vmatpush1.msra.mxu0 0.0
  %1257 = vmatprep.subr.mxu0 0.0
  %1258 = vmatpush1.msra.mxu0 0.0
  %1259 = vmatprep.subr.mxu0 0.0
  %1260 = vmatpush1.msra.mxu0 0.0
  %1261 = vmatprep.subr.mxu0 0.0
  %1262 = vmatpush1.msra.mxu0 0.0
  %1263 = vmatprep.subr.mxu0 0.0
  %1264 = vmatpush1.msra.mxu0 0.0
  %1265 = vmatprep.subr.mxu0 0.0
  %1266 = vmatpush1.msra.mxu0 0.0
  %1267 = vmatprep.subr.mxu0 0.0
  %1268 = vmatpush1.msra.mxu0 0.0
  %1269 = vmatprep.subr.mxu0 0.0
  %1270 = vmatpush1.msra.mxu0 0.0
  %1271 = vmatprep.subr.mxu0 0.0
  %1272 = vmatpush1.msra.mxu0 0.0
  %1273 = vmatprep.subr.mxu0 0.0
  %1274 = vmatpush1.msra.mxu0 0.0
  %1275 = vmatprep.subr.mxu0 0.0
  %1276 = vmatpush1.msra.mxu0 0.0
  %1277 = vmatprep.subr.mxu0 0.0
  %1278 = vmatpush1.msra.mxu0 0.0
  %1279 = vmatprep.mubr.f32.mxu0 0.0
  %1280 = vmatmul.mubr.f32.gmra.mrb[0].mxu0 %v1165
  %v1281 = vpop.f32.mrb[0].mxu0
  %v1282 = vadd.f32 0.0, %v1281
  %v1283 = vpop.f32.mrb[0].mxu0
  %1284 = vmatprep.mubr.f32.mxu0 0.0
  %1285 = vmatmul.mubr.f32.gmra.mrb[0].mxu0 %v1168
  %v1286 = vpop.f32.mrb[0].mxu0
  %v1287 = vadd.f32 0.0, %v1286
  %v1288 = vpop.f32.mrb[0].mxu0
  %1289 = vmatprep.mubr.f32.mxu0 0.0
  %1290 = vmatmul.mubr.f32.gmra.mrb[0].mxu0 %v1171
  %v1291 = vpop.f32.mrb[0].mxu0
  %v1292 = vadd.f32 0.0, %v1291
  %v1293 = vpop.f32.mrb[0].mxu0
  %1294 = vmatprep.mubr.f32.mxu0 0.0
  %1295 = vmatmul.mubr.f32.gmra.mrb[0].mxu0 %v1174
  %v1296 = vpop.f32.mrb[0].mxu0
  %v1297 = vadd.f32 0.0, %v1296
  %v1298 = vpop.f32.mrb[0].mxu0
  %1299 = vmatprep.mubr.f32.mxu0 0.0
  %1300 = vmatmul.mubr.f32.gmra.mrb[0].mxu0 %v1177
  %v1301 = vpop.f32.mrb[0].mxu0
  %v1302 = vadd.f32 0.0, %v1301
  %v1303 = vpop.f32.mrb[0].mxu0
  %1304 = vmatprep.mubr.f32.mxu0 0.0
  %1305 = vmatmul.mubr.f32.gmra.mrb[0].mxu0 %v1180
  %v1306 = vpop.f32.mrb[0].mxu0
  %v1307 = vadd.f32 0.0, %v1306
  %v1308 = vpop.f32.mrb[0].mxu0
  %1309 = vmatprep.mubr.f32.mxu0 0.0
  %1310 = vmatmul.mubr.f32.gmra.mrb[0].mxu0 %v1183
  %v1311 = vpop.f32.mrb[0].mxu0
  %v1312 = vadd.f32 0.0, %v1311
  %v1313 = vpop.f32.mrb[0].mxu0
  %1314 = vmatprep.mubr.f32.mxu0 0.0
  %1315 = vmatmul.mubr.f32.gmra.mrb[0].mxu0 %v1186
  %v1316 = vpop.f32.mrb[0].mxu0
  %v1317 = vadd.f32 0.0, %v1316
  %v1318 = vpop.f32.mrb[0].mxu0
  %1319 = vmatprep.mubr.f32.mxu0 0.0
  %1320 = vmatmul.mubr.f32.gmra.mrb[0].mxu0 %v1189
  %v1321 = vpop.f32.mrb[0].mxu0
  %v1322 = vadd.f32 0.0, %v1321
  %v1323 = vpop.f32.mrb[0].mxu0
  %1324 = vmatprep.mubr.f32.mxu0 0.0
  %1325 = vmatmul.mubr.f32.gmra.mrb[0].mxu0 %v1192
  %v1326 = vpop.f32.mrb[0].mxu0
  %v1327 = vadd.f32 0.0, %v1326
  %v1328 = vpop.f32.mrb[0].mxu0
  %1329 = vmatprep.mubr.f32.mxu0 0.0
  %1330 = vmatmul.mubr.f32.gmra.mrb[0].mxu0 %v1195
  %v1331 = vpop.f32.mrb[0].mxu0
  %v1332 = vadd.f32 0.0, %v1331
  %v1333 = vpop.f32.mrb[0].mxu0
  %1334 = vmatprep.mubr.f32.mxu0 0.0
  %1335 = vmatmul.mubr.f32.gmra.mrb[0].mxu0 %v1198
  %v1336 = vpop.f32.mrb[0].mxu0
  %v1337 = vadd.f32 0.0, %v1336
  %v1338 = vpop.f32.mrb[0].mxu0
  %1339 = vmatprep.mubr.f32.mxu0 0.0
  %1340 = vmatmul.mubr.f32.gmra.mrb[0].mxu0 %v1201
  %v1341 = vpop.f32.mrb[0].mxu0
  %v1342 = vadd.f32 0.0, %v1341
  %v1343 = vpop.f32.mrb[0].mxu0
  %1344 = vmatprep.mubr.f32.mxu0 0.0
  %1345 = vmatmul.mubr.f32.gmra.mrb[0].mxu0 %v1204
  %v1346 = vpop.f32.mrb[0].mxu0
  %v1347 = vadd.f32 0.0, %v1346
  %v1348 = vpop.f32.mrb[0].mxu0
  %1349 = vmatprep.mubr.f32.mxu0 0.0
  %1350 = vmatmul.mubr.f32.gmra.mrb[0].mxu0 %v1207
  %v1351 = vpop.f32.mrb[0].mxu0
  %v1352 = vadd.f32 0.0, %v1351
  %v1353 = vpop.f32.mrb[0].mxu0
  %1354 = vmatprep.mubr.f32.mxu0 0.0
  %1355 = vmatmul.mubr.f32.gmra.mrb[0].mxu0 %v1210
  %v1356 = vpop.f32.mrb[0].mxu0
  %v1357 = vadd.f32 0.0, %v1356
  %v1358 = vpop.f32.mrb[0].mxu0
  %1359 = vdwg.mxu0
  %v1360 = vadd.f32 %v1115, %v1282
  %v1361 = vadd.f32 %v1116, %v1287
  %v1362 = vadd.f32 %v1117, %v1292
  %v1363 = vadd.f32 %v1118, %v1297
  %v1364 = vadd.f32 %v1119, %v1302
  %v1365 = vadd.f32 %v1120, %v1307
  %v1366 = vadd.f32 %v1121, %v1312
  %v1367 = vadd.f32 %v1122, %v1317
  %v1368 = vadd.f32 %v1123, %v1322
  %v1369 = vadd.f32 %v1124, %v1327
  %v1370 = vadd.f32 %v1125, %v1332
  %v1371 = vadd.f32 %v1126, %v1337
  %v1372 = vadd.f32 %v1127, %v1342
  %v1373 = vadd.f32 %v1128, %v1347
  %v1374 = vadd.f32 %v1129, %v1352
  %v1375 = vadd.f32 %v1130, %v1357
  %s1376 = scalar_lea.vmem %s119, 2 [#allocation2]
  %v1377 = vld [vmem:[%s1376] ss:$2 sm:$0xff]
  %s1378 = scalar_lea.vmem %s119, 50 [#allocation2]
  %v1379 = vld [vmem:[%s1378] ss:$2 sm:$0xff]
  %s1380 = scalar_lea.vmem %s119, 98 [#allocation2]
  %v1381 = vld [vmem:[%s1380] ss:$2 sm:$0xff]
  %s1382 = scalar_lea.vmem %s119, 146 [#allocation2]
  %v1383 = vld [vmem:[%s1382] ss:$2 sm:$0xff]
  %s1384 = scalar_lea.vmem %s119, 194 [#allocation2]
  %v1385 = vld [vmem:[%s1384] ss:$2 sm:$0xff]
  %s1386 = scalar_lea.vmem %s119, 242 [#allocation2]
  %v1387 = vld [vmem:[%s1386] ss:$2 sm:$0xff]
  %s1388 = scalar_lea.vmem %s119, 290 [#allocation2]
  %v1389 = vld [vmem:[%s1388] ss:$2 sm:$0xff]
  %s1390 = scalar_lea.vmem %s119, 338 [#allocation2]
  %v1391 = vld [vmem:[%s1390] ss:$2 sm:$0xff]
  %s1392 = scalar_lea.vmem %s119, 410 [#allocation2]
  %v1393 = vld [vmem:[%s1392] ss:$2 sm:$0xff]
  %s1394 = scalar_lea.vmem %s119, 458 [#allocation2]
  %v1395 = vld [vmem:[%s1394] ss:$2 sm:$0xff]
  %s1396 = scalar_lea.vmem %s119, 506 [#allocation2]
  %v1397 = vld [vmem:[%s1396] ss:$2 sm:$0xff]
  %s1398 = scalar_lea.vmem %s119, 554 [#allocation2]
  %v1399 = vld [vmem:[%s1398] ss:$2 sm:$0xff]
  %s1400 = scalar_lea.vmem %s119, 602 [#allocation2]
  %v1401 = vld [vmem:[%s1400] ss:$2 sm:$0xff]
  %s1402 = scalar_lea.vmem %s119, 650 [#allocation2]
  %v1403 = vld [vmem:[%s1402] ss:$2 sm:$0xff]
  %s1404 = scalar_lea.vmem %s119, 698 [#allocation2]
  %v1405 = vld [vmem:[%s1404] ss:$2 sm:$0xff]
  %s1406 = scalar_lea.vmem %s119, 746 [#allocation2]
  %v1407 = vld [vmem:[%s1406] ss:$2 sm:$0xff]
  %v1408 = vld [vmem:[%s1 + $0xf] sm:$0x7]
  %v1410 = vsel %vm13, %v1377, 0
  %v1413 = vsel %vm13, %v1379, 0
  %v1416 = vsel %vm13, %v1381, 0
  %v1419 = vsel %vm13, %v1383, 0
  %v1422 = vsel %vm13, %v1385, 0
  %v1425 = vsel %vm13, %v1387, 0
  %v1428 = vsel %vm13, %v1389, 0
  %v1431 = vsel %vm13, %v1391, 0
  %v1434 = vsel %vm13, %v1393, 0
  %v1437 = vsel %vm13, %v1395, 0
  %v1440 = vsel %vm13, %v1397, 0
  %v1443 = vsel %vm13, %v1399, 0
  %v1446 = vsel %vm13, %v1401, 0
  %v1449 = vsel %vm13, %v1403, 0
  %v1452 = vsel %vm13, %v1405, 0
  %v1455 = vsel %vm13, %v1407, 0
  %v1458 = vsel %vm297, %v1408, 0
  %1460 = vmatprep.subr.mxu0 0.0
  %1461 = vmatpush1.msra.mxu0 %v1458
  %1462 = vmatprep.subr.mxu0 0.0
  %1463 = vmatpush1.msra.mxu0 0.0
  %1464 = vmatprep.subr.mxu0 0.0
  %1465 = vmatpush1.msra.mxu0 0.0
  %1466 = vmatprep.subr.mxu0 0.0
  %1467 = vmatpush1.msra.mxu0 0.0
  %1468 = vmatprep.subr.mxu0 0.0
  %1469 = vmatpush1.msra.mxu0 0.0
  %1470 = vmatprep.subr.mxu0 0.0
  %1471 = vmatpush1.msra.mxu0 0.0
  %1472 = vmatprep.subr.mxu0 0.0
  %1473 = vmatpush1.msra.mxu0 0.0
  %1474 = vmatprep.subr.mxu0 0.0
  %1475 = vmatpush1.msra.mxu0 0.0
  %1476 = vmatprep.subr.mxu0 0.0
  %1477 = vmatpush1.msra.mxu0 0.0
  %1478 = vmatprep.subr.mxu0 0.0
  %1479 = vmatpush1.msra.mxu0 0.0
  %1480 = vmatprep.subr.mxu0 0.0
  %1481 = vmatpush1.msra.mxu0 0.0
  %1482 = vmatprep.subr.mxu0 0.0
  %1483 = vmatpush1.msra.mxu0 0.0
  %1484 = vmatprep.subr.mxu0 0.0
  %1485 = vmatpush1.msra.mxu0 0.0
  %1486 = vmatprep.subr.mxu0 0.0
  %1487 = vmatpush1.msra.mxu0 0.0
  %1488 = vmatprep.subr.mxu0 0.0
  %1489 = vmatpush1.msra.mxu0 0.0
  %1490 = vmatprep.subr.mxu0 0.0
  %1491 = vmatpush1.msra.mxu0 0.0
  %1492 = vmatprep.subr.mxu0 0.0
  %1493 = vmatpush1.msra.mxu0 0.0
  %1494 = vmatprep.subr.mxu0 0.0
  %1495 = vmatpush1.msra.mxu0 0.0
  %1496 = vmatprep.subr.mxu0 0.0
  %1497 = vmatpush1.msra.mxu0 0.0
  %1498 = vmatprep.subr.mxu0 0.0
  %1499 = vmatpush1.msra.mxu0 0.0
  %1500 = vmatprep.subr.mxu0 0.0
  %1501 = vmatpush1.msra.mxu0 0.0
  %1502 = vmatprep.subr.mxu0 0.0
  %1503 = vmatpush1.msra.mxu0 0.0
  %1504 = vmatprep.subr.mxu0 0.0
  %1505 = vmatpush1.msra.mxu0 0.0
  %1506 = vmatprep.subr.mxu0 0.0
  %1507 = vmatpush1.msra.mxu0 0.0
  %1508 = vmatprep.subr.mxu0 0.0
  %1509 = vmatpush1.msra.mxu0 0.0
  %1510 = vmatprep.subr.mxu0 0.0
  %1511 = vmatpush1.msra.mxu0 0.0
  %1512 = vmatprep.subr.mxu0 0.0
  %1513 = vmatpush1.msra.mxu0 0.0
  %1514 = vmatprep.subr.mxu0 0.0
  %1515 = vmatpush1.msra.mxu0 0.0
  %1516 = vmatprep.subr.mxu0 0.0
  %1517 = vmatpush1.msra.mxu0 0.0
  %1518 = vmatprep.subr.mxu0 0.0
  %1519 = vmatpush1.msra.mxu0 0.0
  %1520 = vmatprep.subr.mxu0 0.0
  %1521 = vmatpush1.msra.mxu0 0.0
  %1522 = vmatprep.subr.mxu0 0.0
  %1523 = vmatpush1.msra.mxu0 0.0
  %1524 = vmatprep.mubr.f32.mxu0 0.0
  %1525 = vmatmul.mubr.f32.gmra.mrb[0].mxu0 %v1410
  %v1526 = vpop.f32.mrb[0].mxu0
  %v1527 = vadd.f32 0.0, %v1526
  %v1528 = vpop.f32.mrb[0].mxu0
  %1529 = vmatprep.mubr.f32.mxu0 0.0
  %1530 = vmatmul.mubr.f32.gmra.mrb[0].mxu0 %v1413
  %v1531 = vpop.f32.mrb[0].mxu0
  %v1532 = vadd.f32 0.0, %v1531
  %v1533 = vpop.f32.mrb[0].mxu0
  %1534 = vmatprep.mubr.f32.mxu0 0.0
  %1535 = vmatmul.mubr.f32.gmra.mrb[0].mxu0 %v1416
  %v1536 = vpop.f32.mrb[0].mxu0
  %v1537 = vadd.f32 0.0, %v1536
  %v1538 = vpop.f32.mrb[0].mxu0
  %1539 = vmatprep.mubr.f32.mxu0 0.0
  %1540 = vmatmul.mubr.f32.gmra.mrb[0].mxu0 %v1419
  %v1541 = vpop.f32.mrb[0].mxu0
  %v1542 = vadd.f32 0.0, %v1541
  %v1543 = vpop.f32.mrb[0].mxu0
  %1544 = vmatprep.mubr.f32.mxu0 0.0
  %1545 = vmatmul.mubr.f32.gmra.mrb[0].mxu0 %v1422
  %v1546 = vpop.f32.mrb[0].mxu0
  %v1547 = vadd.f32 0.0, %v1546
  %v1548 = vpop.f32.mrb[0].mxu0
  %1549 = vmatprep.mubr.f32.mxu0 0.0
  %1550 = vmatmul.mubr.f32.gmra.mrb[0].mxu0 %v1425
  %v1551 = vpop.f32.mrb[0].mxu0
  %v1552 = vadd.f32 0.0, %v1551
  %v1553 = vpop.f32.mrb[0].mxu0
  %1554 = vmatprep.mubr.f32.mxu0 0.0
  %1555 = vmatmul.mubr.f32.gmra.mrb[0].mxu0 %v1428
  %v1556 = vpop.f32.mrb[0].mxu0
  %v1557 = vadd.f32 0.0, %v1556
  %v1558 = vpop.f32.mrb[0].mxu0
  %1559 = vmatprep.mubr.f32.mxu0 0.0
  %1560 = vmatmul.mubr.f32.gmra.mrb[0].mxu0 %v1431
  %v1561 = vpop.f32.mrb[0].mxu0
  %v1562 = vadd.f32 0.0, %v1561
  %v1563 = vpop.f32.mrb[0].mxu0
  %1564 = vmatprep.mubr.f32.mxu0 0.0
  %1565 = vmatmul.mubr.f32.gmra.mrb[0].mxu0 %v1434
  %v1566 = vpop.f32.mrb[0].mxu0
  %v1567 = vadd.f32 0.0, %v1566
  %v1568 = vpop.f32.mrb[0].mxu0
  %1569 = vmatprep.mubr.f32.mxu0 0.0
  %1570 = vmatmul.mubr.f32.gmra.mrb[0].mxu0 %v1437
  %v1571 = vpop.f32.mrb[0].mxu0
  %v1572 = vadd.f32 0.0, %v1571
  %v1573 = vpop.f32.mrb[0].mxu0
  %1574 = vmatprep.mubr.f32.mxu0 0.0
  %1575 = vmatmul.mubr.f32.gmra.mrb[0].mxu0 %v1440
  %v1576 = vpop.f32.mrb[0].mxu0
  %v1577 = vadd.f32 0.0, %v1576
  %v1578 = vpop.f32.mrb[0].mxu0
  %1579 = vmatprep.mubr.f32.mxu0 0.0
  %1580 = vmatmul.mubr.f32.gmra.mrb[0].mxu0 %v1443
  %v1581 = vpop.f32.mrb[0].mxu0
  %v1582 = vadd.f32 0.0, %v1581
  %v1583 = vpop.f32.mrb[0].mxu0
  %1584 = vmatprep.mubr.f32.mxu0 0.0
  %1585 = vmatmul.mubr.f32.gmra.mrb[0].mxu0 %v1446
  %v1586 = vpop.f32.mrb[0].mxu0
  %v1587 = vadd.f32 0.0, %v1586
  %v1588 = vpop.f32.mrb[0].mxu0
  %1589 = vmatprep.mubr.f32.mxu0 0.0
  %1590 = vmatmul.mubr.f32.gmra.mrb[0].mxu0 %v1449
  %v1591 = vpop.f32.mrb[0].mxu0
  %v1592 = vadd.f32 0.0, %v1591
  %v1593 = vpop.f32.mrb[0].mxu0
  %1594 = vmatprep.mubr.f32.mxu0 0.0
  %1595 = vmatmul.mubr.f32.gmra.mrb[0].mxu0 %v1452
  %v1596 = vpop.f32.mrb[0].mxu0
  %v1597 = vadd.f32 0.0, %v1596
  %v1598 = vpop.f32.mrb[0].mxu0
  %1599 = vmatprep.mubr.f32.mxu0 0.0
  %1600 = vmatmul.mubr.f32.gmra.mrb[0].mxu0 %v1455
  %v1601 = vpop.f32.mrb[0].mxu0
  %v1602 = vadd.f32 0.0, %v1601
  %v1603 = vpop.f32.mrb[0].mxu0
  %1604 = vdwg.mxu0
  %v1605 = vadd.f32 %v1360, %v1527
  %v1606 = vadd.f32 %v1361, %v1532
  %v1607 = vadd.f32 %v1362, %v1537
  %v1608 = vadd.f32 %v1363, %v1542
  %v1609 = vadd.f32 %v1364, %v1547
  %v1610 = vadd.f32 %v1365, %v1552
  %v1611 = vadd.f32 %v1366, %v1557
  %v1612 = vadd.f32 %v1367, %v1562
  %v1613 = vadd.f32 %v1368, %v1567
  %v1614 = vadd.f32 %v1369, %v1572
  %v1615 = vadd.f32 %v1370, %v1577
  %v1616 = vadd.f32 %v1371, %v1582
  %v1617 = vadd.f32 %v1372, %v1587
  %v1618 = vadd.f32 %v1373, %v1592
  %v1619 = vadd.f32 %v1374, %v1597
  %v1620 = vadd.f32 %v1375, %v1602
  %s1621 = scalar_lea.vmem [#allocation2], 48
  %v1622 = vld [vmem:[%s1621] ss:$2 sm:$0xff]
  %s1623 = scalar_lea.vmem %s1621, 48 [#allocation2]
  %v1624 = vld [vmem:[%s1623] ss:$2 sm:$0xff]
  %s1625 = scalar_lea.vmem %s1621, 96 [#allocation2]
  %v1626 = vld [vmem:[%s1625] ss:$2 sm:$0xff]
  %s1627 = scalar_lea.vmem %s1621, 144 [#allocation2]
  %v1628 = vld [vmem:[%s1627] ss:$2 sm:$0xff]
  %s1629 = scalar_lea.vmem %s1621, 192 [#allocation2]
  %v1630 = vld [vmem:[%s1629] ss:$2 sm:$0xff]
  %s1631 = scalar_lea.vmem %s1621, 240 [#allocation2]
  %v1632 = vld [vmem:[%s1631] ss:$2 sm:$0xff]
  %s1633 = scalar_lea.vmem %s1621, 288 [#allocation2]
  %v1634 = vld [vmem:[%s1633] ss:$2 sm:$0xff]
  %s1635 = scalar_lea.vmem %s1621, 336 [#allocation2]
  %v1636 = vld [vmem:[%s1635] ss:$2 sm:$0xff]
  %s1637 = scalar_lea.vmem %s1621, 408 [#allocation2]
  %v1638 = vld [vmem:[%s1637] ss:$2 sm:$0xff]
  %s1639 = scalar_lea.vmem %s1621, 456 [#allocation2]
  %v1640 = vld [vmem:[%s1639] ss:$2 sm:$0xff]
  %s1641 = scalar_lea.vmem %s1621, 504 [#allocation2]
  %v1642 = vld [vmem:[%s1641] ss:$2 sm:$0xff]
  %s1643 = scalar_lea.vmem %s1621, 552 [#allocation2]
  %v1644 = vld [vmem:[%s1643] ss:$2 sm:$0xff]
  %s1645 = scalar_lea.vmem %s1621, 600 [#allocation2]
  %v1646 = vld [vmem:[%s1645] ss:$2 sm:$0xff]
  %s1647 = scalar_lea.vmem %s1621, 648 [#allocation2]
  %v1648 = vld [vmem:[%s1647] ss:$2 sm:$0xff]
  %s1649 = scalar_lea.vmem %s1621, 696 [#allocation2]
  %v1650 = vld [vmem:[%s1649] ss:$2 sm:$0xff]
  %s1651 = scalar_lea.vmem %s1621, 744 [#allocation2]
  %v1652 = vld [vmem:[%s1651] ss:$2 sm:$0xff]
  %v1653 = vld [vmem:[%s1 + $0x12] sm:$0x7]
  %v1655 = vsel %vm13, %v1622, 0
  %v1658 = vsel %vm13, %v1624, 0
  %v1661 = vsel %vm13, %v1626, 0
  %v1664 = vsel %vm13, %v1628, 0
  %v1667 = vsel %vm13, %v1630, 0
  %v1670 = vsel %vm13, %v1632, 0
  %v1673 = vsel %vm13, %v1634, 0
  %v1676 = vsel %vm13, %v1636, 0
  %v1679 = vsel %vm13, %v1638, 0
  %v1682 = vsel %vm13, %v1640, 0
  %v1685 = vsel %vm13, %v1642, 0
  %v1688 = vsel %vm13, %v1644, 0
  %v1691 = vsel %vm13, %v1646, 0
  %v1694 = vsel %vm13, %v1648, 0
  %v1697 = vsel %vm13, %v1650, 0
  %v1700 = vsel %vm13, %v1652, 0
  %v1703 = vsel %vm297, %v1653, 0
  %1705 = vmatprep.subr.mxu0 0.0
  %1706 = vmatpush1.msra.mxu0 %v1703
  %1707 = vmatprep.subr.mxu0 0.0
  %1708 = vmatpush1.msra.mxu0 0.0
  %1709 = vmatprep.subr.mxu0 0.0
  %1710 = vmatpush1.msra.mxu0 0.0
  %1711 = vmatprep.subr.mxu0 0.0
  %1712 = vmatpush1.msra.mxu0 0.0
  %1713 = vmatprep.subr.mxu0 0.0
  %1714 = vmatpush1.msra.mxu0 0.0
  %1715 = vmatprep.subr.mxu0 0.0
  %1716 = vmatpush1.msra.mxu0 0.0
  %1717 = vmatprep.subr.mxu0 0.0
  %1718 = vmatpush1.msra.mxu0 0.0
  %1719 = vmatprep.subr.mxu0 0.0
  %1720 = vmatpush1.msra.mxu0 0.0
  %1721 = vmatprep.subr.mxu0 0.0
  %1722 = vmatpush1.msra.mxu0 0.0
  %1723 = vmatprep.subr.mxu0 0.0
  %1724 = vmatpush1.msra.mxu0 0.0
  %1725 = vmatprep.subr.mxu0 0.0
  %1726 = vmatpush1.msra.mxu0 0.0
  %1727 = vmatprep.subr.mxu0 0.0
  %1728 = vmatpush1.msra.mxu0 0.0
  %1729 = vmatprep.subr.mxu0 0.0
  %1730 = vmatpush1.msra.mxu0 0.0
  %1731 = vmatprep.subr.mxu0 0.0
  %1732 = vmatpush1.msra.mxu0 0.0
  %1733 = vmatprep.subr.mxu0 0.0
  %1734 = vmatpush1.msra.mxu0 0.0
  %1735 = vmatprep.subr.mxu0 0.0
  %1736 = vmatpush1.msra.mxu0 0.0
  %1737 = vmatprep.subr.mxu0 0.0
  %1738 = vmatpush1.msra.mxu0 0.0
  %1739 = vmatprep.subr.mxu0 0.0
  %1740 = vmatpush1.msra.mxu0 0.0
  %1741 = vmatprep.subr.mxu0 0.0
  %1742 = vmatpush1.msra.mxu0 0.0
  %1743 = vmatprep.subr.mxu0 0.0
  %1744 = vmatpush1.msra.mxu0 0.0
  %1745 = vmatprep.subr.mxu0 0.0
  %1746 = vmatpush1.msra.mxu0 0.0
  %1747 = vmatprep.subr.mxu0 0.0
  %1748 = vmatpush1.msra.mxu0 0.0
  %1749 = vmatprep.subr.mxu0 0.0
  %1750 = vmatpush1.msra.mxu0 0.0
  %1751 = vmatprep.subr.mxu0 0.0
  %1752 = vmatpush1.msra.mxu0 0.0
  %1753 = vmatprep.subr.mxu0 0.0
  %1754 = vmatpush1.msra.mxu0 0.0
  %1755 = vmatprep.subr.mxu0 0.0
  %1756 = vmatpush1.msra.mxu0 0.0
  %1757 = vmatprep.subr.mxu0 0.0
  %1758 = vmatpush1.msra.mxu0 0.0
  %1759 = vmatprep.subr.mxu0 0.0
  %1760 = vmatpush1.msra.mxu0 0.0
  %1761 = vmatprep.subr.mxu0 0.0
  %1762 = vmatpush1.msra.mxu0 0.0
  %1763 = vmatprep.subr.mxu0 0.0
  %1764 = vmatpush1.msra.mxu0 0.0
  %1765 = vmatprep.subr.mxu0 0.0
  %1766 = vmatpush1.msra.mxu0 0.0
  %1767 = vmatprep.subr.mxu0 0.0
  %1768 = vmatpush1.msra.mxu0 0.0
  %1769 = vmatprep.mubr.f32.mxu0 0.0
  %1770 = vmatmul.mubr.f32.gmra.mrb[0].mxu0 %v1655
  %v1771 = vpop.f32.mrb[0].mxu0
  %v1772 = vadd.f32 0.0, %v1771
  %v1773 = vpop.f32.mrb[0].mxu0
  %1774 = vmatprep.mubr.f32.mxu0 0.0
  %1775 = vmatmul.mubr.f32.gmra.mrb[0].mxu0 %v1658
  %v1776 = vpop.f32.mrb[0].mxu0
  %v1777 = vadd.f32 0.0, %v1776
  %v1778 = vpop.f32.mrb[0].mxu0
  %1779 = vmatprep.mubr.f32.mxu0 0.0
  %1780 = vmatmul.mubr.f32.gmra.mrb[0].mxu0 %v1661
  %v1781 = vpop.f32.mrb[0].mxu0
  %v1782 = vadd.f32 0.0, %v1781
  %v1783 = vpop.f32.mrb[0].mxu0
  %1784 = vmatprep.mubr.f32.mxu0 0.0
  %1785 = vmatmul.mubr.f32.gmra.mrb[0].mxu0 %v1664
  %v1786 = vpop.f32.mrb[0].mxu0
  %v1787 = vadd.f32 0.0, %v1786
  %v1788 = vpop.f32.mrb[0].mxu0
  %1789 = vmatprep.mubr.f32.mxu0 0.0
  %1790 = vmatmul.mubr.f32.gmra.mrb[0].mxu0 %v1667
  %v1791 = vpop.f32.mrb[0].mxu0
  %v1792 = vadd.f32 0.0, %v1791
  %v1793 = vpop.f32.mrb[0].mxu0
  %1794 = vmatprep.mubr.f32.mxu0 0.0
  %1795 = vmatmul.mubr.f32.gmra.mrb[0].mxu0 %v1670
  %v1796 = vpop.f32.mrb[0].mxu0
  %v1797 = vadd.f32 0.0, %v1796
  %v1798 = vpop.f32.mrb[0].mxu0
  %1799 = vmatprep.mubr.f32.mxu0 0.0
  %1800 = vmatmul.mubr.f32.gmra.mrb[0].mxu0 %v1673
  %v1801 = vpop.f32.mrb[0].mxu0
  %v1802 = vadd.f32 0.0, %v1801
  %v1803 = vpop.f32.mrb[0].mxu0
  %1804 = vmatprep.mubr.f32.mxu0 0.0
  %1805 = vmatmul.mubr.f32.gmra.mrb[0].mxu0 %v1676
  %v1806 = vpop.f32.mrb[0].mxu0
  %v1807 = vadd.f32 0.0, %v1806
  %v1808 = vpop.f32.mrb[0].mxu0
  %1809 = vmatprep.mubr.f32.mxu0 0.0
  %1810 = vmatmul.mubr.f32.gmra.mrb[0].mxu0 %v1679
  %v1811 = vpop.f32.mrb[0].mxu0
  %v1812 = vadd.f32 0.0, %v1811
  %v1813 = vpop.f32.mrb[0].mxu0
  %1814 = vmatprep.mubr.f32.mxu0 0.0
  %1815 = vmatmul.mubr.f32.gmra.mrb[0].mxu0 %v1682
  %v1816 = vpop.f32.mrb[0].mxu0
  %v1817 = vadd.f32 0.0, %v1816
  %v1818 = vpop.f32.mrb[0].mxu0
  %1819 = vmatprep.mubr.f32.mxu0 0.0
  %1820 = vmatmul.mubr.f32.gmra.mrb[0].mxu0 %v1685
  %v1821 = vpop.f32.mrb[0].mxu0
  %v1822 = vadd.f32 0.0, %v1821
  %v1823 = vpop.f32.mrb[0].mxu0
  %1824 = vmatprep.mubr.f32.mxu0 0.0
  %1825 = vmatmul.mubr.f32.gmra.mrb[0].mxu0 %v1688
  %v1826 = vpop.f32.mrb[0].mxu0
  %v1827 = vadd.f32 0.0, %v1826
  %v1828 = vpop.f32.mrb[0].mxu0
  %1829 = vmatprep.mubr.f32.mxu0 0.0
  %1830 = vmatmul.mubr.f32.gmra.mrb[0].mxu0 %v1691
  %v1831 = vpop.f32.mrb[0].mxu0
  %v1832 = vadd.f32 0.0, %v1831
  %v1833 = vpop.f32.mrb[0].mxu0
  %1834 = vmatprep.mubr.f32.mxu0 0.0
  %1835 = vmatmul.mubr.f32.gmra.mrb[0].mxu0 %v1694
  %v1836 = vpop.f32.mrb[0].mxu0
  %v1837 = vadd.f32 0.0, %v1836
  %v1838 = vpop.f32.mrb[0].mxu0
  %1839 = vmatprep.mubr.f32.mxu0 0.0
  %1840 = vmatmul.mubr.f32.gmra.mrb[0].mxu0 %v1697
  %v1841 = vpop.f32.mrb[0].mxu0
  %v1842 = vadd.f32 0.0, %v1841
  %v1843 = vpop.f32.mrb[0].mxu0
  %1844 = vmatprep.mubr.f32.mxu0 0.0
  %1845 = vmatmul.mubr.f32.gmra.mrb[0].mxu0 %v1700
  %v1846 = vpop.f32.mrb[0].mxu0
  %v1847 = vadd.f32 0.0, %v1846
  %v1848 = vpop.f32.mrb[0].mxu0
  %1849 = vdwg.mxu0
  %v1850 = vadd.f32 %v1605, %v1772
  %v1851 = vadd.f32 %v1606, %v1777
  %v1852 = vadd.f32 %v1607, %v1782
  %v1853 = vadd.f32 %v1608, %v1787
  %v1854 = vadd.f32 %v1609, %v1792
  %v1855 = vadd.f32 %v1610, %v1797
  %v1856 = vadd.f32 %v1611, %v1802
  %v1857 = vadd.f32 %v1612, %v1807
  %v1858 = vadd.f32 %v1613, %v1812
  %v1859 = vadd.f32 %v1614, %v1817
  %v1860 = vadd.f32 %v1615, %v1822
  %v1861 = vadd.f32 %v1616, %v1827
  %v1862 = vadd.f32 %v1617, %v1832
  %v1863 = vadd.f32 %v1618, %v1837
  %v1864 = vadd.f32 %v1619, %v1842
  %v1865 = vadd.f32 %v1620, %v1847
  %s1866 = scalar_lea.vmem %s1621, 1 [#allocation2]
  %v1867 = vld [vmem:[%s1866] ss:$2 sm:$0xff]
  %s1868 = scalar_lea.vmem %s1621, 49 [#allocation2]
  %v1869 = vld [vmem:[%s1868] ss:$2 sm:$0xff]
  %s1870 = scalar_lea.vmem %s1621, 97 [#allocation2]
  %v1871 = vld [vmem:[%s1870] ss:$2 sm:$0xff]
  %s1872 = scalar_lea.vmem %s1621, 145 [#allocation2]
  %v1873 = vld [vmem:[%s1872] ss:$2 sm:$0xff]
  %s1874 = scalar_lea.vmem %s1621, 193 [#allocation2]
  %v1875 = vld [vmem:[%s1874] ss:$2 sm:$0xff]
  %s1876 = scalar_lea.vmem %s1621, 241 [#allocation2]
  %v1877 = vld [vmem:[%s1876] ss:$2 sm:$0xff]
  %s1878 = scalar_lea.vmem %s1621, 289 [#allocation2]
  %v1879 = vld [vmem:[%s1878] ss:$2 sm:$0xff]
  %s1880 = scalar_lea.vmem %s1621, 337 [#allocation2]
  %v1881 = vld [vmem:[%s1880] ss:$2 sm:$0xff]
  %s1882 = scalar_lea.vmem %s1621, 409 [#allocation2]
  %v1883 = vld [vmem:[%s1882] ss:$2 sm:$0xff]
  %s1884 = scalar_lea.vmem %s1621, 457 [#allocation2]
  %v1885 = vld [vmem:[%s1884] ss:$2 sm:$0xff]
  %s1886 = scalar_lea.vmem %s1621, 505 [#allocation2]
  %v1887 = vld [vmem:[%s1886] ss:$2 sm:$0xff]
  %s1888 = scalar_lea.vmem %s1621, 553 [#allocation2]
  %v1889 = vld [vmem:[%s1888] ss:$2 sm:$0xff]
  %s1890 = scalar_lea.vmem %s1621, 601 [#allocation2]
  %v1891 = vld [vmem:[%s1890] ss:$2 sm:$0xff]
  %s1892 = scalar_lea.vmem %s1621, 649 [#allocation2]
  %v1893 = vld [vmem:[%s1892] ss:$2 sm:$0xff]
  %s1894 = scalar_lea.vmem %s1621, 697 [#allocation2]
  %v1895 = vld [vmem:[%s1894] ss:$2 sm:$0xff]
  %s1896 = scalar_lea.vmem %s1621, 745 [#allocation2]
  %v1897 = vld [vmem:[%s1896] ss:$2 sm:$0xff]
  %v1898 = vld [vmem:[%s1 + $0x15] sm:$0x7]
  %v1900 = vsel %vm13, %v1867, 0
  %v1903 = vsel %vm13, %v1869, 0
  %v1906 = vsel %vm13, %v1871, 0
  %v1909 = vsel %vm13, %v1873, 0
  %v1912 = vsel %vm13, %v1875, 0
  %v1915 = vsel %vm13, %v1877, 0
  %v1918 = vsel %vm13, %v1879, 0
  %v1921 = vsel %vm13, %v1881, 0
  %v1924 = vsel %vm13, %v1883, 0
  %v1927 = vsel %vm13, %v1885, 0
  %v1930 = vsel %vm13, %v1887, 0
  %v1933 = vsel %vm13, %v1889, 0
  %v1936 = vsel %vm13, %v1891, 0
  %v1939 = vsel %vm13, %v1893, 0
  %v1942 = vsel %vm13, %v1895, 0
  %v1945 = vsel %vm13, %v1897, 0
  %v1948 = vsel %vm297, %v1898, 0
  %1950 = vmatprep.subr.mxu0 0.0
  %1951 = vmatpush1.msra.mxu0 %v1948
  %1952 = vmatprep.subr.mxu0 0.0
  %1953 = vmatpush1.msra.mxu0 0.0
  %1954 = vmatprep.subr.mxu0 0.0
  %1955 = vmatpush1.msra.mxu0 0.0
  %1956 = vmatprep.subr.mxu0 0.0
  %1957 = vmatpush1.msra.mxu0 0.0
  %1958 = vmatprep.subr.mxu0 0.0
  %1959 = vmatpush1.msra.mxu0 0.0
  %1960 = vmatprep.subr.mxu0 0.0
  %1961 = vmatpush1.msra.mxu0 0.0
  %1962 = vmatprep.subr.mxu0 0.0
  %1963 = vmatpush1.msra.mxu0 0.0
  %1964 = vmatprep.subr.mxu0 0.0
  %1965 = vmatpush1.msra.mxu0 0.0
  %1966 = vmatprep.subr.mxu0 0.0
  %1967 = vmatpush1.msra.mxu0 0.0
  %1968 = vmatprep.subr.mxu0 0.0
  %1969 = vmatpush1.msra.mxu0 0.0
  %1970 = vmatprep.subr.mxu0 0.0
  %1971 = vmatpush1.msra.mxu0 0.0
  %1972 = vmatprep.subr.mxu0 0.0
  %1973 = vmatpush1.msra.mxu0 0.0
  %1974 = vmatprep.subr.mxu0 0.0
  %1975 = vmatpush1.msra.mxu0 0.0
  %1976 = vmatprep.subr.mxu0 0.0
  %1977 = vmatpush1.msra.mxu0 0.0
  %1978 = vmatprep.subr.mxu0 0.0
  %1979 = vmatpush1.msra.mxu0 0.0
  %1980 = vmatprep.subr.mxu0 0.0
  %1981 = vmatpush1.msra.mxu0 0.0
  %1982 = vmatprep.subr.mxu0 0.0
  %1983 = vmatpush1.msra.mxu0 0.0
  %1984 = vmatprep.subr.mxu0 0.0
  %1985 = vmatpush1.msra.mxu0 0.0
  %1986 = vmatprep.subr.mxu0 0.0
  %1987 = vmatpush1.msra.mxu0 0.0
  %1988 = vmatprep.subr.mxu0 0.0
  %1989 = vmatpush1.msra.mxu0 0.0
  %1990 = vmatprep.subr.mxu0 0.0
  %1991 = vmatpush1.msra.mxu0 0.0
  %1992 = vmatprep.subr.mxu0 0.0
  %1993 = vmatpush1.msra.mxu0 0.0
  %1994 = vmatprep.subr.mxu0 0.0
  %1995 = vmatpush1.msra.mxu0 0.0
  %1996 = vmatprep.subr.mxu0 0.0
  %1997 = vmatpush1.msra.mxu0 0.0
  %1998 = vmatprep.subr.mxu0 0.0
  %1999 = vmatpush1.msra.mxu0 0.0
  %2000 = vmatprep.subr.mxu0 0.0
  %2001 = vmatpush1.msra.mxu0 0.0
  %2002 = vmatprep.subr.mxu0 0.0
  %2003 = vmatpush1.msra.mxu0 0.0
  %2004 = vmatprep.subr.mxu0 0.0
  %2005 = vmatpush1.msra.mxu0 0.0
  %2006 = vmatprep.subr.mxu0 0.0
  %2007 = vmatpush1.msra.mxu0 0.0
  %2008 = vmatprep.subr.mxu0 0.0
  %2009 = vmatpush1.msra.mxu0 0.0
  %2010 = vmatprep.subr.mxu0 0.0
  %2011 = vmatpush1.msra.mxu0 0.0
  %2012 = vmatprep.subr.mxu0 0.0
  %2013 = vmatpush1.msra.mxu0 0.0
  %2014 = vmatprep.mubr.f32.mxu0 0.0
  %2015 = vmatmul.mubr.f32.gmra.mrb[0].mxu0 %v1900
  %v2016 = vpop.f32.mrb[0].mxu0
  %v2017 = vadd.f32 0.0, %v2016
  %v2018 = vpop.f32.mrb[0].mxu0
  %2019 = vmatprep.mubr.f32.mxu0 0.0
  %2020 = vmatmul.mubr.f32.gmra.mrb[0].mxu0 %v1903
  %v2021 = vpop.f32.mrb[0].mxu0
  %v2022 = vadd.f32 0.0, %v2021
  %v2023 = vpop.f32.mrb[0].mxu0
  %2024 = vmatprep.mubr.f32.mxu0 0.0
  %2025 = vmatmul.mubr.f32.gmra.mrb[0].mxu0 %v1906
  %v2026 = vpop.f32.mrb[0].mxu0
  %v2027 = vadd.f32 0.0, %v2026
  %v2028 = vpop.f32.mrb[0].mxu0
  %2029 = vmatprep.mubr.f32.mxu0 0.0
  %2030 = vmatmul.mubr.f32.gmra.mrb[0].mxu0 %v1909
  %v2031 = vpop.f32.mrb[0].mxu0
  %v2032 = vadd.f32 0.0, %v2031
  %v2033 = vpop.f32.mrb[0].mxu0
  %2034 = vmatprep.mubr.f32.mxu0 0.0
  %2035 = vmatmul.mubr.f32.gmra.mrb[0].mxu0 %v1912
  %v2036 = vpop.f32.mrb[0].mxu0
  %v2037 = vadd.f32 0.0, %v2036
  %v2038 = vpop.f32.mrb[0].mxu0
  %2039 = vmatprep.mubr.f32.mxu0 0.0
  %2040 = vmatmul.mubr.f32.gmra.mrb[0].mxu0 %v1915
  %v2041 = vpop.f32.mrb[0].mxu0
  %v2042 = vadd.f32 0.0, %v2041
  %v2043 = vpop.f32.mrb[0].mxu0
  %2044 = vmatprep.mubr.f32.mxu0 0.0
  %2045 = vmatmul.mubr.f32.gmra.mrb[0].mxu0 %v1918
  %v2046 = vpop.f32.mrb[0].mxu0
  %v2047 = vadd.f32 0.0, %v2046
  %v2048 = vpop.f32.mrb[0].mxu0
  %2049 = vmatprep.mubr.f32.mxu0 0.0
  %2050 = vmatmul.mubr.f32.gmra.mrb[0].mxu0 %v1921
  %v2051 = vpop.f32.mrb[0].mxu0
  %v2052 = vadd.f32 0.0, %v2051
  %v2053 = vpop.f32.mrb[0].mxu0
  %2054 = vmatprep.mubr.f32.mxu0 0.0
  %2055 = vmatmul.mubr.f32.gmra.mrb[0].mxu0 %v1924
  %v2056 = vpop.f32.mrb[0].mxu0
  %v2057 = vadd.f32 0.0, %v2056
  %v2058 = vpop.f32.mrb[0].mxu0
  %2059 = vmatprep.mubr.f32.mxu0 0.0
  %2060 = vmatmul.mubr.f32.gmra.mrb[0].mxu0 %v1927
  %v2061 = vpop.f32.mrb[0].mxu0
  %v2062 = vadd.f32 0.0, %v2061
  %v2063 = vpop.f32.mrb[0].mxu0
  %2064 = vmatprep.mubr.f32.mxu0 0.0
  %2065 = vmatmul.mubr.f32.gmra.mrb[0].mxu0 %v1930
  %v2066 = vpop.f32.mrb[0].mxu0
  %v2067 = vadd.f32 0.0, %v2066
  %v2068 = vpop.f32.mrb[0].mxu0
  %2069 = vmatprep.mubr.f32.mxu0 0.0
  %2070 = vmatmul.mubr.f32.gmra.mrb[0].mxu0 %v1933
  %v2071 = vpop.f32.mrb[0].mxu0
  %v2072 = vadd.f32 0.0, %v2071
  %v2073 = vpop.f32.mrb[0].mxu0
  %2074 = vmatprep.mubr.f32.mxu0 0.0
  %2075 = vmatmul.mubr.f32.gmra.mrb[0].mxu0 %v1936
  %v2076 = vpop.f32.mrb[0].mxu0
  %v2077 = vadd.f32 0.0, %v2076
  %v2078 = vpop.f32.mrb[0].mxu0
  %2079 = vmatprep.mubr.f32.mxu0 0.0
  %2080 = vmatmul.mubr.f32.gmra.mrb[0].mxu0 %v1939
  %v2081 = vpop.f32.mrb[0].mxu0
  %v2082 = vadd.f32 0.0, %v2081
  %v2083 = vpop.f32.mrb[0].mxu0
  %2084 = vmatprep.mubr.f32.mxu0 0.0
  %2085 = vmatmul.mubr.f32.gmra.mrb[0].mxu0 %v1942
  %v2086 = vpop.f32.mrb[0].mxu0
  %v2087 = vadd.f32 0.0, %v2086
  %v2088 = vpop.f32.mrb[0].mxu0
  %2089 = vmatprep.mubr.f32.mxu0 0.0
  %2090 = vmatmul.mubr.f32.gmra.mrb[0].mxu0 %v1945
  %v2091 = vpop.f32.mrb[0].mxu0
  %v2092 = vadd.f32 0.0, %v2091
  %v2093 = vpop.f32.mrb[0].mxu0
  %2094 = vdwg.mxu0
  %v2095 = vadd.f32 %v1850, %v2017
  %v2096 = vadd.f32 %v1851, %v2022
  %v2097 = vadd.f32 %v1852, %v2027
  %v2098 = vadd.f32 %v1853, %v2032
  %v2099 = vadd.f32 %v1854, %v2037
  %v2100 = vadd.f32 %v1855, %v2042
  %v2101 = vadd.f32 %v1856, %v2047
  %v2102 = vadd.f32 %v1857, %v2052
  %v2103 = vadd.f32 %v1858, %v2057
  %v2104 = vadd.f32 %v1859, %v2062
  %v2105 = vadd.f32 %v1860, %v2067
  %v2106 = vadd.f32 %v1861, %v2072
  %v2107 = vadd.f32 %v1862, %v2077
  %v2108 = vadd.f32 %v1863, %v2082
  %v2109 = vadd.f32 %v1864, %v2087
  %v2110 = vadd.f32 %v1865, %v2092
  %s2111 = scalar_lea.vmem %s1621, 2 [#allocation2]
  %v2112 = vld [vmem:[%s2111] ss:$2 sm:$0xff]
  %s2113 = scalar_lea.vmem %s1621, 50 [#allocation2]
  %v2114 = vld [vmem:[%s2113] ss:$2 sm:$0xff]
  %s2115 = scalar_lea.vmem %s1621, 98 [#allocation2]
  %v2116 = vld [vmem:[%s2115] ss:$2 sm:$0xff]
  %s2117 = scalar_lea.vmem %s1621, 146 [#allocation2]
  %v2118 = vld [vmem:[%s2117] ss:$2 sm:$0xff]
  %s2119 = scalar_lea.vmem %s1621, 194 [#allocation2]
  %v2120 = vld [vmem:[%s2119] ss:$2 sm:$0xff]
  %s2121 = scalar_lea.vmem %s1621, 242 [#allocation2]
  %v2122 = vld [vmem:[%s2121] ss:$2 sm:$0xff]
  %s2123 = scalar_lea.vmem %s1621, 290 [#allocation2]
  %v2124 = vld [vmem:[%s2123] ss:$2 sm:$0xff]
  %s2125 = scalar_lea.vmem %s1621, 338 [#allocation2]
  %v2126 = vld [vmem:[%s2125] ss:$2 sm:$0xff]
  %s2127 = scalar_lea.vmem %s1621, 410 [#allocation2]
  %v2128 = vld [vmem:[%s2127] ss:$2 sm:$0xff]
  %s2129 = scalar_lea.vmem %s1621, 458 [#allocation2]
  %v2130 = vld [vmem:[%s2129] ss:$2 sm:$0xff]
  %s2131 = scalar_lea.vmem %s1621, 506 [#allocation2]
  %v2132 = vld [vmem:[%s2131] ss:$2 sm:$0xff]
  %s2133 = scalar_lea.vmem %s1621, 554 [#allocation2]
  %v2134 = vld [vmem:[%s2133] ss:$2 sm:$0xff]
  %s2135 = scalar_lea.vmem %s1621, 602 [#allocation2]
  %v2136 = vld [vmem:[%s2135] ss:$2 sm:$0xff]
  %s2137 = scalar_lea.vmem %s1621, 650 [#allocation2]
  %v2138 = vld [vmem:[%s2137] ss:$2 sm:$0xff]
  %s2139 = scalar_lea.vmem %s1621, 698 [#allocation2]
  %v2140 = vld [vmem:[%s2139] ss:$2 sm:$0xff]
  %s2141 = scalar_lea.vmem %s1621, 746 [#allocation2]
  %v2142 = vld [vmem:[%s2141] ss:$2 sm:$0xff]
  %v2143 = vld [vmem:[%s1 + $0x18] sm:$0x7]
  %v2145 = vsel %vm13, %v2112, 0
  %v2148 = vsel %vm13, %v2114, 0
  %v2151 = vsel %vm13, %v2116, 0
  %v2154 = vsel %vm13, %v2118, 0
  %v2157 = vsel %vm13, %v2120, 0
  %v2160 = vsel %vm13, %v2122, 0
  %v2163 = vsel %vm13, %v2124, 0
  %v2166 = vsel %vm13, %v2126, 0
  %v2169 = vsel %vm13, %v2128, 0
  %v2172 = vsel %vm13, %v2130, 0
  %v2175 = vsel %vm13, %v2132, 0
  %v2178 = vsel %vm13, %v2134, 0
  %v2181 = vsel %vm13, %v2136, 0
  %v2184 = vsel %vm13, %v2138, 0
  %v2187 = vsel %vm13, %v2140, 0
  %v2190 = vsel %vm13, %v2142, 0
  %v2193 = vsel %vm297, %v2143, 0
  %2195 = vmatprep.subr.mxu0 0.0
  %2196 = vmatpush1.msra.mxu0 %v2193
  %2197 = vmatprep.subr.mxu0 0.0
  %2198 = vmatpush1.msra.mxu0 0.0
  %2199 = vmatprep.subr.mxu0 0.0
  %2200 = vmatpush1.msra.mxu0 0.0
  %2201 = vmatprep.subr.mxu0 0.0
  %2202 = vmatpush1.msra.mxu0 0.0
  %2203 = vmatprep.subr.mxu0 0.0
  %2204 = vmatpush1.msra.mxu0 0.0
  %2205 = vmatprep.subr.mxu0 0.0
  %2206 = vmatpush1.msra.mxu0 0.0
  %2207 = vmatprep.subr.mxu0 0.0
  %2208 = vmatpush1.msra.mxu0 0.0
  %2209 = vmatprep.subr.mxu0 0.0
  %2210 = vmatpush1.msra.mxu0 0.0
  %2211 = vmatprep.subr.mxu0 0.0
  %2212 = vmatpush1.msra.mxu0 0.0
  %2213 = vmatprep.subr.mxu0 0.0
  %2214 = vmatpush1.msra.mxu0 0.0
  %2215 = vmatprep.subr.mxu0 0.0
  %2216 = vmatpush1.msra.mxu0 0.0
  %2217 = vmatprep.subr.mxu0 0.0
  %2218 = vmatpush1.msra.mxu0 0.0
  %2219 = vmatprep.subr.mxu0 0.0
  %2220 = vmatpush1.msra.mxu0 0.0
  %2221 = vmatprep.subr.mxu0 0.0
  %2222 = vmatpush1.msra.mxu0 0.0
  %2223 = vmatprep.subr.mxu0 0.0
  %2224 = vmatpush1.msra.mxu0 0.0
  %2225 = vmatprep.subr.mxu0 0.0
  %2226 = vmatpush1.msra.mxu0 0.0
  %2227 = vmatprep.subr.mxu0 0.0
  %2228 = vmatpush1.msra.mxu0 0.0
  %2229 = vmatprep.subr.mxu0 0.0
  %2230 = vmatpush1.msra.mxu0 0.0
  %2231 = vmatprep.subr.mxu0 0.0
  %2232 = vmatpush1.msra.mxu0 0.0
  %2233 = vmatprep.subr.mxu0 0.0
  %2234 = vmatpush1.msra.mxu0 0.0
  %2235 = vmatprep.subr.mxu0 0.0
  %2236 = vmatpush1.msra.mxu0 0.0
  %2237 = vmatprep.subr.mxu0 0.0
  %2238 = vmatpush1.msra.mxu0 0.0
  %2239 = vmatprep.subr.mxu0 0.0
  %2240 = vmatpush1.msra.mxu0 0.0
  %2241 = vmatprep.subr.mxu0 0.0
  %2242 = vmatpush1.msra.mxu0 0.0
  %2243 = vmatprep.subr.mxu0 0.0
  %2244 = vmatpush1.msra.mxu0 0.0
  %2245 = vmatprep.subr.mxu0 0.0
  %2246 = vmatpush1.msra.mxu0 0.0
  %2247 = vmatprep.subr.mxu0 0.0
  %2248 = vmatpush1.msra.mxu0 0.0
  %2249 = vmatprep.subr.mxu0 0.0
  %2250 = vmatpush1.msra.mxu0 0.0
  %2251 = vmatprep.subr.mxu0 0.0
  %2252 = vmatpush1.msra.mxu0 0.0
  %2253 = vmatprep.subr.mxu0 0.0
  %2254 = vmatpush1.msra.mxu0 0.0
  %2255 = vmatprep.subr.mxu0 0.0
  %2256 = vmatpush1.msra.mxu0 0.0
  %2257 = vmatprep.subr.mxu0 0.0
  %2258 = vmatpush1.msra.mxu0 0.0
  %2259 = vmatprep.mubr.f32.mxu0 0.0
  %2260 = vmatmul.mubr.f32.gmra.mrb[0].mxu0 %v2145
  %v2261 = vpop.f32.mrb[0].mxu0
  %v2262 = vadd.f32 0.0, %v2261
  %v2263 = vpop.f32.mrb[0].mxu0
  %2264 = vmatprep.mubr.f32.mxu0 0.0
  %2265 = vmatmul.mubr.f32.gmra.mrb[0].mxu0 %v2148
  %v2266 = vpop.f32.mrb[0].mxu0
  %v2267 = vadd.f32 0.0, %v2266
  %v2268 = vpop.f32.mrb[0].mxu0
  %2269 = vmatprep.mubr.f32.mxu0 0.0
  %2270 = vmatmul.mubr.f32.gmra.mrb[0].mxu0 %v2151
  %v2271 = vpop.f32.mrb[0].mxu0
  %v2272 = vadd.f32 0.0, %v2271
  %v2273 = vpop.f32.mrb[0].mxu0
  %2274 = vmatprep.mubr.f32.mxu0 0.0
  %2275 = vmatmul.mubr.f32.gmra.mrb[0].mxu0 %v2154
  %v2276 = vpop.f32.mrb[0].mxu0
  %v2277 = vadd.f32 0.0, %v2276
  %v2278 = vpop.f32.mrb[0].mxu0
  %2279 = vmatprep.mubr.f32.mxu0 0.0
  %2280 = vmatmul.mubr.f32.gmra.mrb[0].mxu0 %v2157
  %v2281 = vpop.f32.mrb[0].mxu0
  %v2282 = vadd.f32 0.0, %v2281
  %v2283 = vpop.f32.mrb[0].mxu0
  %2284 = vmatprep.mubr.f32.mxu0 0.0
  %2285 = vmatmul.mubr.f32.gmra.mrb[0].mxu0 %v2160
  %v2286 = vpop.f32.mrb[0].mxu0
  %v2287 = vadd.f32 0.0, %v2286
  %v2288 = vpop.f32.mrb[0].mxu0
  %2289 = vmatprep.mubr.f32.mxu0 0.0
  %2290 = vmatmul.mubr.f32.gmra.mrb[0].mxu0 %v2163
  %v2291 = vpop.f32.mrb[0].mxu0
  %v2292 = vadd.f32 0.0, %v2291
  %v2293 = vpop.f32.mrb[0].mxu0
  %2294 = vmatprep.mubr.f32.mxu0 0.0
  %2295 = vmatmul.mubr.f32.gmra.mrb[0].mxu0 %v2166
  %v2296 = vpop.f32.mrb[0].mxu0
  %v2297 = vadd.f32 0.0, %v2296
  %v2298 = vpop.f32.mrb[0].mxu0
  %2299 = vmatprep.mubr.f32.mxu0 0.0
  %2300 = vmatmul.mubr.f32.gmra.mrb[0].mxu0 %v2169
  %v2301 = vpop.f32.mrb[0].mxu0
  %v2302 = vadd.f32 0.0, %v2301
  %v2303 = vpop.f32.mrb[0].mxu0
  %2304 = vmatprep.mubr.f32.mxu0 0.0
  %2305 = vmatmul.mubr.f32.gmra.mrb[0].mxu0 %v2172
  %v2306 = vpop.f32.mrb[0].mxu0
  %v2307 = vadd.f32 0.0, %v2306
  %v2308 = vpop.f32.mrb[0].mxu0
  %2309 = vmatprep.mubr.f32.mxu0 0.0
  %2310 = vmatmul.mubr.f32.gmra.mrb[0].mxu0 %v2175
  %v2311 = vpop.f32.mrb[0].mxu0
  %v2312 = vadd.f32 0.0, %v2311
  %v2313 = vpop.f32.mrb[0].mxu0
  %2314 = vmatprep.mubr.f32.mxu0 0.0
  %2315 = vmatmul.mubr.f32.gmra.mrb[0].mxu0 %v2178
  %v2316 = vpop.f32.mrb[0].mxu0
  %v2317 = vadd.f32 0.0, %v2316
  %v2318 = vpop.f32.mrb[0].mxu0
  %2319 = vmatprep.mubr.f32.mxu0 0.0
  %2320 = vmatmul.mubr.f32.gmra.mrb[0].mxu0 %v2181
  %v2321 = vpop.f32.mrb[0].mxu0
  %v2322 = vadd.f32 0.0, %v2321
  %v2323 = vpop.f32.mrb[0].mxu0
  %2324 = vmatprep.mubr.f32.mxu0 0.0
  %2325 = vmatmul.mubr.f32.gmra.mrb[0].mxu0 %v2184
  %v2326 = vpop.f32.mrb[0].mxu0
  %v2327 = vadd.f32 0.0, %v2326
  %v2328 = vpop.f32.mrb[0].mxu0
  %2329 = vmatprep.mubr.f32.mxu0 0.0
  %2330 = vmatmul.mubr.f32.gmra.mrb[0].mxu0 %v2187
  %v2331 = vpop.f32.mrb[0].mxu0
  %v2332 = vadd.f32 0.0, %v2331
  %v2333 = vpop.f32.mrb[0].mxu0
  %2334 = vmatprep.mubr.f32.mxu0 0.0
  %2335 = vmatmul.mubr.f32.gmra.mrb[0].mxu0 %v2190
  %v2336 = vpop.f32.mrb[0].mxu0
  %v2337 = vadd.f32 0.0, %v2336
  %v2338 = vpop.f32.mrb[0].mxu0
  %2339 = vdwg.mxu0
  %v2340 = vadd.f32 %v2095, %v2262
  %v2341 = vadd.f32 %v2096, %v2267
  %v2342 = vadd.f32 %v2097, %v2272
  %v2343 = vadd.f32 %v2098, %v2277
  %v2344 = vadd.f32 %v2099, %v2282
  %v2345 = vadd.f32 %v2100, %v2287
  %v2346 = vadd.f32 %v2101, %v2292
  %v2347 = vadd.f32 %v2102, %v2297
  %v2348 = vadd.f32 %v2103, %v2302
  %v2349 = vadd.f32 %v2104, %v2307
  %v2350 = vadd.f32 %v2105, %v2312
  %v2351 = vadd.f32 %v2106, %v2317
  %v2352 = vadd.f32 %v2107, %v2322
  %v2353 = vadd.f32 %v2108, %v2327
  %v2354 = vadd.f32 %v2109, %v2332
  %v2355 = vadd.f32 %v2110, %v2337
  %vm2356 = vcmask 130048
  %v2357 = vsel %vm2356, %v2340, 0.0
  %v2358 = vsel %vm2356, %v2341, 0.0
  %v2359 = vadd.f32 %v2357, %v2358
  %v2360 = vsel %vm2356, %v2342, 0.0
  %v2361 = vadd.f32 %v2359, %v2360
  %v2362 = vsel %vm2356, %v2343, 0.0
  %v2363 = vadd.f32 %v2361, %v2362
  %v2364 = vsel %vm2356, %v2344, 0.0
  %v2365 = vadd.f32 %v2363, %v2364
  %v2366 = vsel %vm2356, %v2345, 0.0
  %v2367 = vadd.f32 %v2365, %v2366
  %v2368 = vsel %vm2356, %v2346, 0.0
  %v2369 = vadd.f32 %v2367, %v2368
  %v2370 = vsel %vm2356, %v2347, 0.0
  %v2371 = vadd.f32 %v2369, %v2370
  %v2372 = vsel %vm2356, %v2348, 0.0
  %v2373 = vadd.f32 %v2371, %v2372
  %v2374 = vsel %vm2356, %v2349, 0.0
  %v2375 = vadd.f32 %v2373, %v2374
  %v2376 = vsel %vm2356, %v2350, 0.0
  %v2377 = vadd.f32 %v2375, %v2376
  %v2378 = vsel %vm2356, %v2351, 0.0
  %v2379 = vadd.f32 %v2377, %v2378
  %v2380 = vsel %vm2356, %v2352, 0.0
  %v2381 = vadd.f32 %v2379, %v2380
  %v2382 = vsel %vm2356, %v2353, 0.0
  %v2383 = vadd.f32 %v2381, %v2382
  %v2384 = vsel %vm2356, %v2354, 0.0
  %v2385 = vadd.f32 %v2383, %v2384
  %v2386 = vsel %vm2356, %v2355, 0.0
  %v2387 = vadd.f32 %v2385, %v2386
  %v2388 = vrot.slane %v2387, 4
  %v2389 = vadd.f32 %v2387, %v2388
  %v2390 = vrot.slane %v2389, 2
  %v2391 = vadd.f32 %v2389, %v2390
  %v2392 = vrot.slane %v2391, 1
  %v2393 = vadd.f32 %v2391, %v2392
  %vm2394 = vcmask 122880
  %2395 = vst.msk [vmem:[%s2] sm:$0x1] %vm2394, %v2393
  %v2396 = vmul.f32 %v2340, %v2340
  %v2397 = vmul.f32 %v2341, %v2341
  %v2398 = vmul.f32 %v2342, %v2342
  %v2399 = vmul.f32 %v2343, %v2343
  %v2400 = vmul.f32 %v2344, %v2344
  %v2401 = vmul.f32 %v2345, %v2345
  %v2402 = vmul.f32 %v2346, %v2346
  %v2403 = vmul.f32 %v2347, %v2347
  %v2404 = vmul.f32 %v2348, %v2348
  %v2405 = vmul.f32 %v2349, %v2349
  %v2406 = vmul.f32 %v2350, %v2350
  %v2407 = vmul.f32 %v2351, %v2351
  %v2408 = vmul.f32 %v2352, %v2352
  %v2409 = vmul.f32 %v2353, %v2353
  %v2410 = vmul.f32 %v2354, %v2354
  %v2411 = vmul.f32 %v2355, %v2355
  %v2412 = vsel %vm2356, %v2396, 0.0
  %v2413 = vsel %vm2356, %v2397, 0.0
  %v2414 = vadd.f32 %v2412, %v2413
  %v2415 = vsel %vm2356, %v2398, 0.0
  %v2416 = vadd.f32 %v2414, %v2415
  %v2417 = vsel %vm2356, %v2399, 0.0
  %v2418 = vadd.f32 %v2416, %v2417
  %v2419 = vsel %vm2356, %v2400, 0.0
  %v2420 = vadd.f32 %v2418, %v2419
  %v2421 = vsel %vm2356, %v2401, 0.0
  %v2422 = vadd.f32 %v2420, %v2421
  %v2423 = vsel %vm2356, %v2402, 0.0
  %v2424 = vadd.f32 %v2422, %v2423
  %v2425 = vsel %vm2356, %v2403, 0.0
  %v2426 = vadd.f32 %v2424, %v2425
  %v2427 = vsel %vm2356, %v2404, 0.0
  %v2428 = vadd.f32 %v2426, %v2427
  %v2429 = vsel %vm2356, %v2405, 0.0
  %v2430 = vadd.f32 %v2428, %v2429
  %v2431 = vsel %vm2356, %v2406, 0.0
  %v2432 = vadd.f32 %v2430, %v2431
  %v2433 = vsel %vm2356, %v2407, 0.0
  %v2434 = vadd.f32 %v2432, %v2433
  %v2435 = vsel %vm2356, %v2408, 0.0
  %v2436 = vadd.f32 %v2434, %v2435
  %v2437 = vsel %vm2356, %v2409, 0.0
  %v2438 = vadd.f32 %v2436, %v2437
  %v2439 = vsel %vm2356, %v2410, 0.0
  %v2440 = vadd.f32 %v2438, %v2439
  %v2441 = vsel %vm2356, %v2411, 0.0
  %v2442 = vadd.f32 %v2440, %v2441
  %v2443 = vrot.slane %v2442, 4
  %v2444 = vadd.f32 %v2442, %v2443
  %v2445 = vrot.slane %v2444, 2
  %v2446 = vadd.f32 %v2444, %v2445
  %v2447 = vrot.slane %v2446, 1
  %v2448 = vadd.f32 %v2446, %v2447
  %2449 = vst.msk [vmem:[%s3] sm:$0x1] %vm2394, %v2448
  // Predicated region
  $region10: #{densenet_initial_layers.2} parent=0 // pred_check
    _
  $region11: #{densenet_initial_layers.2} parent=0 // pred_check_branch
    %2451 = sbr.rel (0) target = $region13
  $region12: #{densenet_initial_layers.2} parent=0 // pred_region
    _
  $region13: #{densenet_initial_layers.2} parent=0 // pred_fallthru
    _
  // Predicated region
  $region14: #{densenet_initial_layers.2} parent=0 // pred_check
    _
  $region15: #{densenet_initial_layers.2} parent=0 // pred_check_branch
    %2453 = sbr.rel (0) target = $region17
  $region16: #{densenet_initial_layers.2} parent=0 // pred_region
    _
  $region17: #{densenet_initial_layers.2} parent=0 // pred_fallthru
    _
  // Predicated region
  $region18: #{densenet_initial_layers.2} parent=0 // pred_check
    _
  $region19: #{densenet_initial_layers.2} parent=0 // pred_check_branch
    %2455 = sbr.rel (0) target = $region21
  $region20: #{densenet_initial_layers.2} parent=0 // pred_region
    _
  $region21: #{densenet_initial_layers.2} parent=0 // pred_fallthru
    _
  // Predicated region
  $region22: #{densenet_initial_layers.2} parent=0 // pred_check
    _
  $region23: #{densenet_initial_layers.2} parent=0 // pred_check_branch
    %2457 = sbr.rel (0) target = $region25
  $region24: #{densenet_initial_layers.2} parent=0 // pred_region
    _
  $region25: #{densenet_initial_layers.2} parent=0 // pred_fallthru
    _

// kernel: densenet_initial_layers.3
$region0: #{densenet_initial_layers.3}
  #allocation0 [shape = 'u32[]', space=smem, size = 0x4, offset = 0x4, fixed_abs, tag = 'smem constant byte address 0x4 - core index']
  #allocation1 [shape = 'u32[144,128]{1,0:T(1,128)}', space=vmem, size = 0x12000, scoped, tag = 'internal scratch']
  #allocation2 [shape = 'f32[2,17,17,3]{3,2,1,0:T(8,128)}', space=vmem, size = 0x66000, scoped, tag = 'scratch operand']
  #allocation3 [shape = 'f32[2,9,9,16]{3,2,1,0:T(8,128)}', space=vmem, size = 0x24000, scoped, tag = 'scratch operand']
  %s0 = inlined_call_operand.vmem [shape: f32[2,16,16,3], index: 0, kind: input, shape index: {}]
  %s1 = inlined_call_operand.vmem [shape: f32[27,16], index: 1, kind: input, shape index: {}]
  %s2 = inlined_call_operand.vmem [shape: f32[1,16], index: 2, kind: input, shape index: {}]
  %s3 = inlined_call_operand.vmem [shape: f32[1,16], index: 3, kind: input, shape index: {}]
  %s4 = inlined_call_operand.vmem [shape: f32[144,32], index: 4, kind: input, shape index: {}]
  %s5 = inlined_call_operand.hbm [shape: f32[2,4,4,32], index: 5, kind: output, shape index: {0}]
  %s6 = inlined_call_operand.hbm [shape: f32[2,8,8,16], index: 6, kind: output, shape index: {1}]
  %7 = xla_tuple %s5, %s6
  %s8 = sld [smem:[#allocation0]]
  $region38: #{densenet_initial_layers.3} parent=0
    _
  %s10 = ssub.s32 1, %s8
  %s11 = scalar_select 0, %s10, %s8
  $region1: #{densenet_initial_layers.3} parent=0
    #allocation4 [shape = 'u8[16384]{0}', space=vmem, size = 0x4000, scoped, tag = 'output window, operand 0, single buffered']
    #allocation5 [shape = 's32[1]{0}', space=sflag, size = 0x4, scoped, tag = 'scoped memory for densenet_initial_layers.3']
    #allocation6 [shape = 'u8[65536]{0}', space=vmem, size = 0x10000, scoped, tag = 'output window, operand 1, single buffered']
    #allocation7 [shape = 's32[1]{0}', space=sflag, size = 0x4, scoped, tag = 'scoped memory for densenet_initial_layers.3']
    %12 = vsyncpa [#allocation5], 0
    %13 = vsyncpa [#allocation7], 0
    // Predicated region
    $region2: #{densenet_initial_layers.3} parent=1 // pred_check
      _
    $region3: #{densenet_initial_layers.3} parent=1 // pred_check_branch
      %15 = sbr.rel (0) target = $region5
    $region4: #{densenet_initial_layers.3} parent=1 // pred_region
      _
    $region5: #{densenet_initial_layers.3} parent=1 // pred_fallthru
      _
    // Predicated region
    $region6: #{densenet_initial_layers.3} parent=1 // pred_check
      _
    $region7: #{densenet_initial_layers.3} parent=1 // pred_check_branch
      %17 = sbr.rel (0) target = $region9
    $region8: #{densenet_initial_layers.3} parent=1 // pred_region
      _
    $region9: #{densenet_initial_layers.3} parent=1 // pred_fallthru
      _
    // Predicated region
    $region10: #{densenet_initial_layers.3} parent=1 // pred_check
      _
    $region11: #{densenet_initial_layers.3} parent=1 // pred_check_branch
      %19 = sbr.rel (0) target = $region13
    $region12: #{densenet_initial_layers.3} parent=1 // pred_region
      _
    $region13: #{densenet_initial_layers.3} parent=1 // pred_fallthru
      _
    // Predicated region
    $region14: #{densenet_initial_layers.3} parent=1 // pred_check
      _
    $region15: #{densenet_initial_layers.3} parent=1 // pred_check_branch
      %21 = sbr.rel (0) target = $region17
    $region16: #{densenet_initial_layers.3} parent=1 // pred_region
      _
    $region17: #{densenet_initial_layers.3} parent=1 // pred_fallthru
      _
    // Predicated region
    $region18: #{densenet_initial_layers.3} parent=1 // pred_check
      _
    $region19: #{densenet_initial_layers.3} parent=1 // pred_check_branch
      %23 = sbr.rel (0) target = $region21
    $region20: #{densenet_initial_layers.3} parent=1 // pred_region
      _
    $region21: #{densenet_initial_layers.3} parent=1 // pred_fallthru
      _
    %vm24 = vcmask 23552
    %25 = vst.msk [vmem:[#allocation2] sm:$0xff] %vm24, 0.0
    %26 = vst.msk [vmem:[#allocation2 + $0x8] sm:$0xff] %vm24, 0.0
    %vm27 = vcmask 16384
    %28 = vst.msk [vmem:[#allocation2 + $0x10] sm:$0x1] %vm27, 0.0
    %29 = vst.msk [vmem:[#allocation2 + $0x198] sm:$0xff] %vm24, 0.0
    %30 = vst.msk [vmem:[#allocation2 + $0x1a0] sm:$0xff] %vm24, 0.0
    %31 = vst.msk [vmem:[#allocation2 + $0x1a8] sm:$0x1] %vm27, 0.0
    %32 = vst.msk [vmem:[#allocation2] sm:$0x1] %vm27, 0.0
    %33 = vst.msk [vmem:[#allocation2 + $0x18] sm:$0x1] %vm27, 0.0
    %34 = vst.msk [vmem:[#allocation2 + $0x30] sm:$0x1] %vm27, 0.0
    %35 = vst.msk [vmem:[#allocation2 + $0x48] sm:$0x1] %vm27, 0.0
    %36 = vst.msk [vmem:[#allocation2 + $0x60] sm:$0x1] %vm27, 0.0
    %37 = vst.msk [vmem:[#allocation2 + $0x78] sm:$0x1] %vm27, 0.0
    %38 = vst.msk [vmem:[#allocation2 + $0x90] sm:$0x1] %vm27, 0.0
    %39 = vst.msk [vmem:[#allocation2 + $0xa8] sm:$0x1] %vm27, 0.0
    %40 = vst.msk [vmem:[#allocation2 + $0xc0] sm:$0x1] %vm27, 0.0
    %41 = vst.msk [vmem:[#allocation2 + $0xd8] sm:$0x1] %vm27, 0.0
    %42 = vst.msk [vmem:[#allocation2 + $0xf0] sm:$0x1] %vm27, 0.0
    %43 = vst.msk [vmem:[#allocation2 + $0x108] sm:$0x1] %vm27, 0.0
    %44 = vst.msk [vmem:[#allocation2 + $0x120] sm:$0x1] %vm27, 0.0
    %45 = vst.msk [vmem:[#allocation2 + $0x138] sm:$0x1] %vm27, 0.0
    %46 = vst.msk [vmem:[#allocation2 + $0x150] sm:$0x1] %vm27, 0.0
    %47 = vst.msk [vmem:[#allocation2 + $0x168] sm:$0x1] %vm27, 0.0
    %48 = vst.msk [vmem:[#allocation2 + $0x180] sm:$0x1] %vm27, 0.0
    %49 = vst.msk [vmem:[#allocation2 + $0x198] sm:$0x1] %vm27, 0.0
    %50 = vst.msk [vmem:[#allocation2 + $0x1b0] sm:$0x1] %vm27, 0.0
    %51 = vst.msk [vmem:[#allocation2 + $0x1c8] sm:$0x1] %vm27, 0.0
    %52 = vst.msk [vmem:[#allocation2 + $0x1e0] sm:$0x1] %vm27, 0.0
    %53 = vst.msk [vmem:[#allocation2 + $0x1f8] sm:$0x1] %vm27, 0.0
    %54 = vst.msk [vmem:[#allocation2 + $0x210] sm:$0x1] %vm27, 0.0
    %55 = vst.msk [vmem:[#allocation2 + $0x228] sm:$0x1] %vm27, 0.0
    %56 = vst.msk [vmem:[#allocation2 + $0x240] sm:$0x1] %vm27, 0.0
    %57 = vst.msk [vmem:[#allocation2 + $0x258] sm:$0x1] %vm27, 0.0
    %58 = vst.msk [vmem:[#allocation2 + $0x270] sm:$0x1] %vm27, 0.0
    %59 = vst.msk [vmem:[#allocation2 + $0x288] sm:$0x1] %vm27, 0.0
    %60 = vst.msk [vmem:[#allocation2 + $0x2a0] sm:$0x1] %vm27, 0.0
    %61 = vst.msk [vmem:[#allocation2 + $0x2b8] sm:$0x1] %vm27, 0.0
    %62 = vst.msk [vmem:[#allocation2 + $0x2d0] sm:$0x1] %vm27, 0.0
    %63 = vst.msk [vmem:[#allocation2 + $0x2e8] sm:$0x1] %vm27, 0.0
    %64 = vst.msk [vmem:[#allocation2 + $0x300] sm:$0x1] %vm27, 0.0
    %65 = vst.msk [vmem:[#allocation2 + $0x318] sm:$0x1] %vm27, 0.0
    %v66 = vld [vmem:[%s0] sm:$0xff]
    %v67 = vld [vmem:[%s0 + $0x8] sm:$0xff]
    %v68 = vld [vmem:[%s0 + $0x10] sm:$0xff]
    %v69 = vld [vmem:[%s0 + $0x18] sm:$0xff]
    %v70 = vld [vmem:[%s0 + $0x20] sm:$0xff]
    %v71 = vld [vmem:[%s0 + $0x28] sm:$0xff]
    %v72 = vld [vmem:[%s0 + $0x30] sm:$0xff]
    %v73 = vld [vmem:[%s0 + $0x38] sm:$0xff]
    %v74 = vld [vmem:[%s0 + $0x40] sm:$0xff]
    %v75 = vld [vmem:[%s0 + $0x48] sm:$0xff]
    %v76 = vld [vmem:[%s0 + $0x50] sm:$0xff]
    %v77 = vld [vmem:[%s0 + $0x58] sm:$0xff]
    %v78 = vld [vmem:[%s0 + $0x60] sm:$0xff]
    %v79 = vld [vmem:[%s0 + $0x68] sm:$0xff]
    %v80 = vld [vmem:[%s0 + $0x70] sm:$0xff]
    %v81 = vld [vmem:[%s0 + $0x78] sm:$0xff]
    %v82 = vld [vmem:[%s0 + $0x80] sm:$0xff]
    %v83 = vld [vmem:[%s0 + $0x88] sm:$0xff]
    %v84 = vld [vmem:[%s0 + $0x90] sm:$0xff]
    %v85 = vld [vmem:[%s0 + $0x98] sm:$0xff]
    %v86 = vld [vmem:[%s0 + $0xa0] sm:$0xff]
    %v87 = vld [vmem:[%s0 + $0xa8] sm:$0xff]
    %v88 = vld [vmem:[%s0 + $0xb0] sm:$0xff]
    %v89 = vld [vmem:[%s0 + $0xb8] sm:$0xff]
    %v90 = vld [vmem:[%s0 + $0xc0] sm:$0xff]
    %v91 = vld [vmem:[%s0 + $0xc8] sm:$0xff]
    %v92 = vld [vmem:[%s0 + $0xd0] sm:$0xff]
    %v93 = vld [vmem:[%s0 + $0xd8] sm:$0xff]
    %v94 = vld [vmem:[%s0 + $0xe0] sm:$0xff]
    %v95 = vld [vmem:[%s0 + $0xe8] sm:$0xff]
    %v96 = vld [vmem:[%s0 + $0xf0] sm:$0xff]
    %v97 = vld [vmem:[%s0 + $0xf8] sm:$0xff]
    %v98 = vld [vmem:[%s0 + $0x100] sm:$0xff]
    %v99 = vld [vmem:[%s0 + $0x108] sm:$0xff]
    %v100 = vld [vmem:[%s0 + $0x110] sm:$0xff]
    %v101 = vld [vmem:[%s0 + $0x118] sm:$0xff]
    %v102 = vld [vmem:[%s0 + $0x120] sm:$0xff]
    %v103 = vld [vmem:[%s0 + $0x128] sm:$0xff]
    %v104 = vld [vmem:[%s0 + $0x130] sm:$0xff]
    %v105 = vld [vmem:[%s0 + $0x138] sm:$0xff]
    %v106 = vld [vmem:[%s0 + $0x140] sm:$0xff]
    %v107 = vld [vmem:[%s0 + $0x148] sm:$0xff]
    %v108 = vld [vmem:[%s0 + $0x150] sm:$0xff]
    %v109 = vld [vmem:[%s0 + $0x158] sm:$0xff]
    %v110 = vld [vmem:[%s0 + $0x160] sm:$0xff]
    %v111 = vld [vmem:[%s0 + $0x168] sm:$0xff]
    %v112 = vld [vmem:[%s0 + $0x170] sm:$0xff]
    %v113 = vld [vmem:[%s0 + $0x178] sm:$0xff]
    %v114 = vld [vmem:[%s0 + $0x180] sm:$0xff]
    %v115 = vld [vmem:[%s0 + $0x188] sm:$0xff]
    %v116 = vld [vmem:[%s0 + $0x190] sm:$0xff]
    %v117 = vld [vmem:[%s0 + $0x198] sm:$0xff]
    %v118 = vld [vmem:[%s0 + $0x1a0] sm:$0xff]
    %v119 = vld [vmem:[%s0 + $0x1a8] sm:$0xff]
    %v120 = vld [vmem:[%s0 + $0x1b0] sm:$0xff]
    %v121 = vld [vmem:[%s0 + $0x1b8] sm:$0xff]
    %v122 = vld [vmem:[%s0 + $0x1c0] sm:$0xff]
    %v123 = vld [vmem:[%s0 + $0x1c8] sm:$0xff]
    %v124 = vld [vmem:[%s0 + $0x1d0] sm:$0xff]
    %v125 = vld [vmem:[%s0 + $0x1d8] sm:$0xff]
    %v126 = vld [vmem:[%s0 + $0x1e0] sm:$0xff]
    %v127 = vld [vmem:[%s0 + $0x1e8] sm:$0xff]
    %v128 = vld [vmem:[%s0 + $0x1f0] sm:$0xff]
    %v129 = vld [vmem:[%s0 + $0x1f8] sm:$0xff]
    %s130 = scalar_lea.vmem [#allocation2], 24
    %131 = vst.msk [vmem:[%s130 + $0x1] sm:$0xff] %vm24, %v66
    %132 = vst.msk [vmem:[%s130 + $0x9] sm:$0xff] %vm24, %v67
    %133 = vst.msk [vmem:[%s130 + $0x19] sm:$0xff] %vm24, %v68
    %134 = vst.msk [vmem:[%s130 + $0x21] sm:$0xff] %vm24, %v69
    %135 = vst.msk [vmem:[%s130 + $0x31] sm:$0xff] %vm24, %v70
    %136 = vst.msk [vmem:[%s130 + $0x39] sm:$0xff] %vm24, %v71
    %137 = vst.msk [vmem:[%s130 + $0x49] sm:$0xff] %vm24, %v72
    %138 = vst.msk [vmem:[%s130 + $0x51] sm:$0xff] %vm24, %v73
    %139 = vst.msk [vmem:[%s130 + $0x61] sm:$0xff] %vm24, %v74
    %140 = vst.msk [vmem:[%s130 + $0x69] sm:$0xff] %vm24, %v75
    %141 = vst.msk [vmem:[%s130 + $0x79] sm:$0xff] %vm24, %v76
    %142 = vst.msk [vmem:[%s130 + $0x81] sm:$0xff] %vm24, %v77
    %143 = vst.msk [vmem:[%s130 + $0x91] sm:$0xff] %vm24, %v78
    %144 = vst.msk [vmem:[%s130 + $0x99] sm:$0xff] %vm24, %v79
    %145 = vst.msk [vmem:[%s130 + $0xa9] sm:$0xff] %vm24, %v80
    %146 = vst.msk [vmem:[%s130 + $0xb1] sm:$0xff] %vm24, %v81
    %147 = vst.msk [vmem:[%s130 + $0xc1] sm:$0xff] %vm24, %v82
    %148 = vst.msk [vmem:[%s130 + $0xc9] sm:$0xff] %vm24, %v83
    %149 = vst.msk [vmem:[%s130 + $0xd9] sm:$0xff] %vm24, %v84
    %150 = vst.msk [vmem:[%s130 + $0xe1] sm:$0xff] %vm24, %v85
    %151 = vst.msk [vmem:[%s130 + $0xf1] sm:$0xff] %vm24, %v86
    %152 = vst.msk [vmem:[%s130 + $0xf9] sm:$0xff] %vm24, %v87
    %153 = vst.msk [vmem:[%s130 + $0x109] sm:$0xff] %vm24, %v88
    %154 = vst.msk [vmem:[%s130 + $0x111] sm:$0xff] %vm24, %v89
    %155 = vst.msk [vmem:[%s130 + $0x121] sm:$0xff] %vm24, %v90
    %156 = vst.msk [vmem:[%s130 + $0x129] sm:$0xff] %vm24, %v91
    %157 = vst.msk [vmem:[%s130 + $0x139] sm:$0xff] %vm24, %v92
    %158 = vst.msk [vmem:[%s130 + $0x141] sm:$0xff] %vm24, %v93
    %159 = vst.msk [vmem:[%s130 + $0x151] sm:$0xff] %vm24, %v94
    %160 = vst.msk [vmem:[%s130 + $0x159] sm:$0xff] %vm24, %v95
    %161 = vst.msk [vmem:[%s130 + $0x169] sm:$0xff] %vm24, %v96
    %162 = vst.msk [vmem:[%s130 + $0x171] sm:$0xff] %vm24, %v97
    %163 = vst.msk [vmem:[%s130 + $0x199] sm:$0xff] %vm24, %v98
    %164 = vst.msk [vmem:[%s130 + $0x1a1] sm:$0xff] %vm24, %v99
    %165 = vst.msk [vmem:[%s130 + $0x1b1] sm:$0xff] %vm24, %v100
    %166 = vst.msk [vmem:[%s130 + $0x1b9] sm:$0xff] %vm24, %v101
    %167 = vst.msk [vmem:[%s130 + $0x1c9] sm:$0xff] %vm24, %v102
    %168 = vst.msk [vmem:[%s130 + $0x1d1] sm:$0xff] %vm24, %v103
    %169 = vst.msk [vmem:[%s130 + $0x1e1] sm:$0xff] %vm24, %v104
    %170 = vst.msk [vmem:[%s130 + $0x1e9] sm:$0xff] %vm24, %v105
    %171 = vst.msk [vmem:[%s130 + $0x1f9] sm:$0xff] %vm24, %v106
    %172 = vst.msk [vmem:[%s130 + $0x201] sm:$0xff] %vm24, %v107
    %173 = vst.msk [vmem:[%s130 + $0x211] sm:$0xff] %vm24, %v108
    %174 = vst.msk [vmem:[%s130 + $0x219] sm:$0xff] %vm24, %v109
    %175 = vst.msk [vmem:[%s130 + $0x229] sm:$0xff] %vm24, %v110
    %176 = vst.msk [vmem:[%s130 + $0x231] sm:$0xff] %vm24, %v111
    %177 = vst.msk [vmem:[%s130 + $0x241] sm:$0xff] %vm24, %v112
    %178 = vst.msk [vmem:[%s130 + $0x249] sm:$0xff] %vm24, %v113
    %179 = vst.msk [vmem:[%s130 + $0x259] sm:$0xff] %vm24, %v114
    %180 = vst.msk [vmem:[%s130 + $0x261] sm:$0xff] %vm24, %v115
    %181 = vst.msk [vmem:[%s130 + $0x271] sm:$0xff] %vm24, %v116
    %182 = vst.msk [vmem:[%s130 + $0x279] sm:$0xff] %vm24, %v117
    %183 = vst.msk [vmem:[%s130 + $0x289] sm:$0xff] %vm24, %v118
    %184 = vst.msk [vmem:[%s130 + $0x291] sm:$0xff] %vm24, %v119
    %185 = vst.msk [vmem:[%s130 + $0x2a1] sm:$0xff] %vm24, %v120
    %186 = vst.msk [vmem:[%s130 + $0x2a9] sm:$0xff] %vm24, %v121
    %187 = vst.msk [vmem:[%s130 + $0x2b9] sm:$0xff] %vm24, %v122
    %188 = vst.msk [vmem:[%s130 + $0x2c1] sm:$0xff] %vm24, %v123
    %189 = vst.msk [vmem:[%s130 + $0x2d1] sm:$0xff] %vm24, %v124
    %190 = vst.msk [vmem:[%s130 + $0x2d9] sm:$0xff] %vm24, %v125
    %191 = vst.msk [vmem:[%s130 + $0x2e9] sm:$0xff] %vm24, %v126
    %192 = vst.msk [vmem:[%s130 + $0x2f1] sm:$0xff] %vm24, %v127
    %193 = vst.msk [vmem:[%s130 + $0x301] sm:$0xff] %vm24, %v128
    %194 = vst.msk [vmem:[%s130 + $0x309] sm:$0xff] %vm24, %v129
    %v195 = vld [vmem:[#allocation2] ss:$2 sm:$0xff]
    %s196 = scalar_lea.vmem [#allocation2], 48
    %v197 = vld [vmem:[%s196] ss:$2 sm:$0xff]
    %s198 = scalar_lea.vmem [#allocation2], 96
    %v199 = vld [vmem:[%s198] ss:$2 sm:$0xff]
    %s200 = scalar_lea.vmem [#allocation2], 144
    %v201 = vld [vmem:[%s200] ss:$2 sm:$0xff]
    %s202 = scalar_lea.vmem [#allocation2], 192
    %v203 = vld [vmem:[%s202] ss:$2 sm:$0xff]
    %s204 = scalar_lea.vmem [#allocation2], 240
    %v205 = vld [vmem:[%s204] ss:$2 sm:$0xff]
    %s206 = scalar_lea.vmem [#allocation2], 288
    %v207 = vld [vmem:[%s206] ss:$2 sm:$0xff]
    %s208 = scalar_lea.vmem [#allocation2], 336
    %v209 = vld [vmem:[%s208] ss:$2 sm:$0xff]
    %s210 = scalar_lea.vmem [#allocation2], 408
    %v211 = vld [vmem:[%s210] ss:$2 sm:$0xff]
    %s212 = scalar_lea.vmem [#allocation2], 456
    %v213 = vld [vmem:[%s212] ss:$2 sm:$0xff]
    %s214 = scalar_lea.vmem [#allocation2], 504
    %v215 = vld [vmem:[%s214] ss:$2 sm:$0xff]
    %s216 = scalar_lea.vmem [#allocation2], 552
    %v217 = vld [vmem:[%s216] ss:$2 sm:$0xff]
    %s218 = scalar_lea.vmem [#allocation2], 600
    %v219 = vld [vmem:[%s218] ss:$2 sm:$0xff]
    %s220 = scalar_lea.vmem [#allocation2], 648
    %v221 = vld [vmem:[%s220] ss:$2 sm:$0xff]
    %s222 = scalar_lea.vmem [#allocation2], 696
    %v223 = vld [vmem:[%s222] ss:$2 sm:$0xff]
    %s224 = scalar_lea.vmem [#allocation2], 744
    %v225 = vld [vmem:[%s224] ss:$2 sm:$0xff]
    %v226 = vld [vmem:[%s1] sm:$0x7]
    %s227 = scalar_lea.vmem [#allocation2], 1
    %v228 = vld [vmem:[%s227] ss:$2 sm:$0xff]
    %s229 = scalar_lea.vmem [#allocation2], 49
    %v230 = vld [vmem:[%s229] ss:$2 sm:$0xff]
    %s231 = scalar_lea.vmem [#allocation2], 97
    %v232 = vld [vmem:[%s231] ss:$2 sm:$0xff]
    %s233 = scalar_lea.vmem [#allocation2], 145
    %v234 = vld [vmem:[%s233] ss:$2 sm:$0xff]
    %s235 = scalar_lea.vmem [#allocation2], 193
    %v236 = vld [vmem:[%s235] ss:$2 sm:$0xff]
    %s237 = scalar_lea.vmem [#allocation2], 241
    %v238 = vld [vmem:[%s237] ss:$2 sm:$0xff]
    %s239 = scalar_lea.vmem [#allocation2], 289
    %v240 = vld [vmem:[%s239] ss:$2 sm:$0xff]
    %s241 = scalar_lea.vmem [#allocation2], 337
    %v242 = vld [vmem:[%s241] ss:$2 sm:$0xff]
    %s243 = scalar_lea.vmem [#allocation2], 409
    %v244 = vld [vmem:[%s243] ss:$2 sm:$0xff]
    %s245 = scalar_lea.vmem [#allocation2], 457
    %v246 = vld [vmem:[%s245] ss:$2 sm:$0xff]
    %s247 = scalar_lea.vmem [#allocation2], 505
    %v248 = vld [vmem:[%s247] ss:$2 sm:$0xff]
    %s249 = scalar_lea.vmem [#allocation2], 553
    %v250 = vld [vmem:[%s249] ss:$2 sm:$0xff]
    %s251 = scalar_lea.vmem [#allocation2], 601
    %v252 = vld [vmem:[%s251] ss:$2 sm:$0xff]
    %s253 = scalar_lea.vmem [#allocation2], 649
    %v254 = vld [vmem:[%s253] ss:$2 sm:$0xff]
    %s255 = scalar_lea.vmem [#allocation2], 697
    %v256 = vld [vmem:[%s255] ss:$2 sm:$0xff]
    %s257 = scalar_lea.vmem [#allocation2], 745
    %v258 = vld [vmem:[%s257] ss:$2 sm:$0xff]
    %v259 = vld [vmem:[%s1 + $0x3] sm:$0x7]
    %v261 = vsel %vm24, %v228, 0
    %v264 = vsel %vm24, %v230, 0
    %v267 = vsel %vm24, %v232, 0
    %v270 = vsel %vm24, %v234, 0
    %v273 = vsel %vm24, %v236, 0
    %v276 = vsel %vm24, %v238, 0
    %v279 = vsel %vm24, %v240, 0
    %v282 = vsel %vm24, %v242, 0
    %v285 = vsel %vm24, %v244, 0
    %v288 = vsel %vm24, %v246, 0
    %v291 = vsel %vm24, %v248, 0
    %v294 = vsel %vm24, %v250, 0
    %v297 = vsel %vm24, %v252, 0
    %v300 = vsel %vm24, %v254, 0
    %v303 = vsel %vm24, %v256, 0
    %v306 = vsel %vm24, %v258, 0
    %vm308 = vcmask 1042432
    %v310 = vsel %vm308, %v259, 0
    %312 = vmatprep.subr.mxu0 0.0
    %313 = vmatpush1.msra.mxu0 %v310
    %314 = vmatprep.subr.mxu0 0.0
    %315 = vmatpush1.msra.mxu0 0.0
    %316 = vmatprep.subr.mxu0 0.0
    %317 = vmatpush1.msra.mxu0 0.0
    %318 = vmatprep.subr.mxu0 0.0
    %319 = vmatpush1.msra.mxu0 0.0
    %320 = vmatprep.subr.mxu0 0.0
    %321 = vmatpush1.msra.mxu0 0.0
    %322 = vmatprep.subr.mxu0 0.0
    %323 = vmatpush1.msra.mxu0 0.0
    %324 = vmatprep.subr.mxu0 0.0
    %325 = vmatpush1.msra.mxu0 0.0
    %326 = vmatprep.subr.mxu0 0.0
    %327 = vmatpush1.msra.mxu0 0.0
    %328 = vmatprep.subr.mxu0 0.0
    %329 = vmatpush1.msra.mxu0 0.0
    %330 = vmatprep.subr.mxu0 0.0
    %331 = vmatpush1.msra.mxu0 0.0
    %332 = vmatprep.subr.mxu0 0.0
    %333 = vmatpush1.msra.mxu0 0.0
    %334 = vmatprep.subr.mxu0 0.0
    %335 = vmatpush1.msra.mxu0 0.0
    %336 = vmatprep.subr.mxu0 0.0
    %337 = vmatpush1.msra.mxu0 0.0
    %338 = vmatprep.subr.mxu0 0.0
    %339 = vmatpush1.msra.mxu0 0.0
    %340 = vmatprep.subr.mxu0 0.0
    %341 = vmatpush1.msra.mxu0 0.0
    %342 = vmatprep.subr.mxu0 0.0
    %343 = vmatpush1.msra.mxu0 0.0
    %344 = vmatprep.subr.mxu0 0.0
    %345 = vmatpush1.msra.mxu0 0.0
    %346 = vmatprep.subr.mxu0 0.0
    %347 = vmatpush1.msra.mxu0 0.0
    %348 = vmatprep.subr.mxu0 0.0
    %349 = vmatpush1.msra.mxu0 0.0
    %350 = vmatprep.subr.mxu0 0.0
    %351 = vmatpush1.msra.mxu0 0.0
    %352 = vmatprep.subr.mxu0 0.0
    %353 = vmatpush1.msra.mxu0 0.0
    %354 = vmatprep.subr.mxu0 0.0
    %355 = vmatpush1.msra.mxu0 0.0
    %356 = vmatprep.subr.mxu0 0.0
    %357 = vmatpush1.msra.mxu0 0.0
    %358 = vmatprep.subr.mxu0 0.0
    %359 = vmatpush1.msra.mxu0 0.0
    %360 = vmatprep.subr.mxu0 0.0
    %361 = vmatpush1.msra.mxu0 0.0
    %362 = vmatprep.subr.mxu0 0.0
    %363 = vmatpush1.msra.mxu0 0.0
    %364 = vmatprep.subr.mxu0 0.0
    %365 = vmatpush1.msra.mxu0 0.0
    %366 = vmatprep.subr.mxu0 0.0
    %367 = vmatpush1.msra.mxu0 0.0
    %368 = vmatprep.subr.mxu0 0.0
    %369 = vmatpush1.msra.mxu0 0.0
    %370 = vmatprep.subr.mxu0 0.0
    %371 = vmatpush1.msra.mxu0 0.0
    %372 = vmatprep.subr.mxu0 0.0
    %373 = vmatpush1.msra.mxu0 0.0
    %374 = vmatprep.subr.mxu0 0.0
    %375 = vmatpush1.msra.mxu0 0.0
    %376 = vmatprep.mubr.f32.mxu0 0.0
    %377 = vmatmul.mubr.f32.gmra.mrb[0].mxu0 %v261
    %v378 = vpop.f32.mrb[0].mxu0
    %v379 = vadd.f32 0.0, %v378
    %v380 = vpop.f32.mrb[0].mxu0
    %381 = vmatprep.mubr.f32.mxu0 0.0
    %382 = vmatmul.mubr.f32.gmra.mrb[0].mxu0 %v264
    %v383 = vpop.f32.mrb[0].mxu0
    %v384 = vadd.f32 0.0, %v383
    %v385 = vpop.f32.mrb[0].mxu0
    %386 = vmatprep.mubr.f32.mxu0 0.0
    %387 = vmatmul.mubr.f32.gmra.mrb[0].mxu0 %v267
    %v388 = vpop.f32.mrb[0].mxu0
    %v389 = vadd.f32 0.0, %v388
    %v390 = vpop.f32.mrb[0].mxu0
    %391 = vmatprep.mubr.f32.mxu0 0.0
    %392 = vmatmul.mubr.f32.gmra.mrb[0].mxu0 %v270
    %v393 = vpop.f32.mrb[0].mxu0
    %v394 = vadd.f32 0.0, %v393
    %v395 = vpop.f32.mrb[0].mxu0
    %396 = vmatprep.mubr.f32.mxu0 0.0
    %397 = vmatmul.mubr.f32.gmra.mrb[0].mxu0 %v273
    %v398 = vpop.f32.mrb[0].mxu0
    %v399 = vadd.f32 0.0, %v398
    %v400 = vpop.f32.mrb[0].mxu0
    %401 = vmatprep.mubr.f32.mxu0 0.0
    %402 = vmatmul.mubr.f32.gmra.mrb[0].mxu0 %v276
    %v403 = vpop.f32.mrb[0].mxu0
    %v404 = vadd.f32 0.0, %v403
    %v405 = vpop.f32.mrb[0].mxu0
    %406 = vmatprep.mubr.f32.mxu0 0.0
    %407 = vmatmul.mubr.f32.gmra.mrb[0].mxu0 %v279
    %v408 = vpop.f32.mrb[0].mxu0
    %v409 = vadd.f32 0.0, %v408
    %v410 = vpop.f32.mrb[0].mxu0
    %411 = vmatprep.mubr.f32.mxu0 0.0
    %412 = vmatmul.mubr.f32.gmra.mrb[0].mxu0 %v282
    %v413 = vpop.f32.mrb[0].mxu0
    %v414 = vadd.f32 0.0, %v413
    %v415 = vpop.f32.mrb[0].mxu0
    %416 = vmatprep.mubr.f32.mxu0 0.0
    %417 = vmatmul.mubr.f32.gmra.mrb[0].mxu0 %v285
    %v418 = vpop.f32.mrb[0].mxu0
    %v419 = vadd.f32 0.0, %v418
    %v420 = vpop.f32.mrb[0].mxu0
    %421 = vmatprep.mubr.f32.mxu0 0.0
    %422 = vmatmul.mubr.f32.gmra.mrb[0].mxu0 %v288
    %v423 = vpop.f32.mrb[0].mxu0
    %v424 = vadd.f32 0.0, %v423
    %v425 = vpop.f32.mrb[0].mxu0
    %426 = vmatprep.mubr.f32.mxu0 0.0
    %427 = vmatmul.mubr.f32.gmra.mrb[0].mxu0 %v291
    %v428 = vpop.f32.mrb[0].mxu0
    %v429 = vadd.f32 0.0, %v428
    %v430 = vpop.f32.mrb[0].mxu0
    %431 = vmatprep.mubr.f32.mxu0 0.0
    %432 = vmatmul.mubr.f32.gmra.mrb[0].mxu0 %v294
    %v433 = vpop.f32.mrb[0].mxu0
    %v434 = vadd.f32 0.0, %v433
    %v435 = vpop.f32.mrb[0].mxu0
    %436 = vmatprep.mubr.f32.mxu0 0.0
    %437 = vmatmul.mubr.f32.gmra.mrb[0].mxu0 %v297
    %v438 = vpop.f32.mrb[0].mxu0
    %v439 = vadd.f32 0.0, %v438
    %v440 = vpop.f32.mrb[0].mxu0
    %441 = vmatprep.mubr.f32.mxu0 0.0
    %442 = vmatmul.mubr.f32.gmra.mrb[0].mxu0 %v300
    %v443 = vpop.f32.mrb[0].mxu0
    %v444 = vadd.f32 0.0, %v443
    %v445 = vpop.f32.mrb[0].mxu0
    %446 = vmatprep.mubr.f32.mxu0 0.0
    %447 = vmatmul.mubr.f32.gmra.mrb[0].mxu0 %v303
    %v448 = vpop.f32.mrb[0].mxu0
    %v449 = vadd.f32 0.0, %v448
    %v450 = vpop.f32.mrb[0].mxu0
    %451 = vmatprep.mubr.f32.mxu0 0.0
    %452 = vmatmul.mubr.f32.gmra.mrb[0].mxu0 %v306
    %v453 = vpop.f32.mrb[0].mxu0
    %v454 = vadd.f32 0.0, %v453
    %v455 = vpop.f32.mrb[0].mxu0
    %456 = vdwg.mxu0
    %v458 = vsel %vm24, %v195, 0
    %v461 = vsel %vm24, %v197, 0
    %v464 = vsel %vm24, %v199, 0
    %v467 = vsel %vm24, %v201, 0
    %v470 = vsel %vm24, %v203, 0
    %v473 = vsel %vm24, %v205, 0
    %v476 = vsel %vm24, %v207, 0
    %v479 = vsel %vm24, %v209, 0
    %v482 = vsel %vm24, %v211, 0
    %v485 = vsel %vm24, %v213, 0
    %v488 = vsel %vm24, %v215, 0
    %v491 = vsel %vm24, %v217, 0
    %v494 = vsel %vm24, %v219, 0
    %v497 = vsel %vm24, %v221, 0
    %v500 = vsel %vm24, %v223, 0
    %v503 = vsel %vm24, %v225, 0
    %v506 = vsel %vm308, %v226, 0
    %508 = vmatprep.subr.mxu0 0.0
    %509 = vmatpush1.msra.mxu0 %v506
    %510 = vmatprep.subr.mxu0 0.0
    %511 = vmatpush1.msra.mxu0 0.0
    %512 = vmatprep.subr.mxu0 0.0
    %513 = vmatpush1.msra.mxu0 0.0
    %514 = vmatprep.subr.mxu0 0.0
    %515 = vmatpush1.msra.mxu0 0.0
    %516 = vmatprep.subr.mxu0 0.0
    %517 = vmatpush1.msra.mxu0 0.0
    %518 = vmatprep.subr.mxu0 0.0
    %519 = vmatpush1.msra.mxu0 0.0
    %520 = vmatprep.subr.mxu0 0.0
    %521 = vmatpush1.msra.mxu0 0.0
    %522 = vmatprep.subr.mxu0 0.0
    %523 = vmatpush1.msra.mxu0 0.0
    %524 = vmatprep.subr.mxu0 0.0
    %525 = vmatpush1.msra.mxu0 0.0
    %526 = vmatprep.subr.mxu0 0.0
    %527 = vmatpush1.msra.mxu0 0.0
    %528 = vmatprep.subr.mxu0 0.0
    %529 = vmatpush1.msra.mxu0 0.0
    %530 = vmatprep.subr.mxu0 0.0
    %531 = vmatpush1.msra.mxu0 0.0
    %532 = vmatprep.subr.mxu0 0.0
    %533 = vmatpush1.msra.mxu0 0.0
    %534 = vmatprep.subr.mxu0 0.0
    %535 = vmatpush1.msra.mxu0 0.0
    %536 = vmatprep.subr.mxu0 0.0
    %537 = vmatpush1.msra.mxu0 0.0
    %538 = vmatprep.subr.mxu0 0.0
    %539 = vmatpush1.msra.mxu0 0.0
    %540 = vmatprep.subr.mxu0 0.0
    %541 = vmatpush1.msra.mxu0 0.0
    %542 = vmatprep.subr.mxu0 0.0
    %543 = vmatpush1.msra.mxu0 0.0
    %544 = vmatprep.subr.mxu0 0.0
    %545 = vmatpush1.msra.mxu0 0.0
    %546 = vmatprep.subr.mxu0 0.0
    %547 = vmatpush1.msra.mxu0 0.0
    %548 = vmatprep.subr.mxu0 0.0
    %549 = vmatpush1.msra.mxu0 0.0
    %550 = vmatprep.subr.mxu0 0.0
    %551 = vmatpush1.msra.mxu0 0.0
    %552 = vmatprep.subr.mxu0 0.0
    %553 = vmatpush1.msra.mxu0 0.0
    %554 = vmatprep.subr.mxu0 0.0
    %555 = vmatpush1.msra.mxu0 0.0
    %556 = vmatprep.subr.mxu0 0.0
    %557 = vmatpush1.msra.mxu0 0.0
    %558 = vmatprep.subr.mxu0 0.0
    %559 = vmatpush1.msra.mxu0 0.0
    %560 = vmatprep.subr.mxu0 0.0
    %561 = vmatpush1.msra.mxu0 0.0
    %562 = vmatprep.subr.mxu0 0.0
    %563 = vmatpush1.msra.mxu0 0.0
    %564 = vmatprep.subr.mxu0 0.0
    %565 = vmatpush1.msra.mxu0 0.0
    %566 = vmatprep.subr.mxu0 0.0
    %567 = vmatpush1.msra.mxu0 0.0
    %568 = vmatprep.subr.mxu0 0.0
    %569 = vmatpush1.msra.mxu0 0.0
    %570 = vmatprep.subr.mxu0 0.0
    %571 = vmatpush1.msra.mxu0 0.0
    %572 = vmatprep.mubr.f32.mxu0 0.0
    %573 = vmatmul.mubr.f32.gmra.mrb[0].mxu0 %v458
    %v574 = vpop.f32.mrb[0].mxu0
    %v575 = vadd.f32 %v379, %v574
    %v576 = vpop.f32.mrb[0].mxu0
    %577 = vmatprep.mubr.f32.mxu0 0.0
    %578 = vmatmul.mubr.f32.gmra.mrb[0].mxu0 %v461
    %v579 = vpop.f32.mrb[0].mxu0
    %v580 = vadd.f32 %v384, %v579
    %v581 = vpop.f32.mrb[0].mxu0
    %582 = vmatprep.mubr.f32.mxu0 0.0
    %583 = vmatmul.mubr.f32.gmra.mrb[0].mxu0 %v464
    %v584 = vpop.f32.mrb[0].mxu0
    %v585 = vadd.f32 %v389, %v584
    %v586 = vpop.f32.mrb[0].mxu0
    %587 = vmatprep.mubr.f32.mxu0 0.0
    %588 = vmatmul.mubr.f32.gmra.mrb[0].mxu0 %v467
    %v589 = vpop.f32.mrb[0].mxu0
    %v590 = vadd.f32 %v394, %v589
    %v591 = vpop.f32.mrb[0].mxu0
    %592 = vmatprep.mubr.f32.mxu0 0.0
    %593 = vmatmul.mubr.f32.gmra.mrb[0].mxu0 %v470
    %v594 = vpop.f32.mrb[0].mxu0
    %v595 = vadd.f32 %v399, %v594
    %v596 = vpop.f32.mrb[0].mxu0
    %597 = vmatprep.mubr.f32.mxu0 0.0
    %598 = vmatmul.mubr.f32.gmra.mrb[0].mxu0 %v473
    %v599 = vpop.f32.mrb[0].mxu0
    %v600 = vadd.f32 %v404, %v599
    %v601 = vpop.f32.mrb[0].mxu0
    %602 = vmatprep.mubr.f32.mxu0 0.0
    %603 = vmatmul.mubr.f32.gmra.mrb[0].mxu0 %v476
    %v604 = vpop.f32.mrb[0].mxu0
    %v605 = vadd.f32 %v409, %v604
    %v606 = vpop.f32.mrb[0].mxu0
    %607 = vmatprep.mubr.f32.mxu0 0.0
    %608 = vmatmul.mubr.f32.gmra.mrb[0].mxu0 %v479
    %v609 = vpop.f32.mrb[0].mxu0
    %v610 = vadd.f32 %v414, %v609
    %v611 = vpop.f32.mrb[0].mxu0
    %612 = vmatprep.mubr.f32.mxu0 0.0
    %613 = vmatmul.mubr.f32.gmra.mrb[0].mxu0 %v482
    %v614 = vpop.f32.mrb[0].mxu0
    %v615 = vadd.f32 %v419, %v614
    %v616 = vpop.f32.mrb[0].mxu0
    %617 = vmatprep.mubr.f32.mxu0 0.0
    %618 = vmatmul.mubr.f32.gmra.mrb[0].mxu0 %v485
    %v619 = vpop.f32.mrb[0].mxu0
    %v620 = vadd.f32 %v424, %v619
    %v621 = vpop.f32.mrb[0].mxu0
    %622 = vmatprep.mubr.f32.mxu0 0.0
    %623 = vmatmul.mubr.f32.gmra.mrb[0].mxu0 %v488
    %v624 = vpop.f32.mrb[0].mxu0
    %v625 = vadd.f32 %v429, %v624
    %v626 = vpop.f32.mrb[0].mxu0
    %627 = vmatprep.mubr.f32.mxu0 0.0
    %628 = vmatmul.mubr.f32.gmra.mrb[0].mxu0 %v491
    %v629 = vpop.f32.mrb[0].mxu0
    %v630 = vadd.f32 %v434, %v629
    %v631 = vpop.f32.mrb[0].mxu0
    %632 = vmatprep.mubr.f32.mxu0 0.0
    %633 = vmatmul.mubr.f32.gmra.mrb[0].mxu0 %v494
    %v634 = vpop.f32.mrb[0].mxu0
    %v635 = vadd.f32 %v439, %v634
    %v636 = vpop.f32.mrb[0].mxu0
    %637 = vmatprep.mubr.f32.mxu0 0.0
    %638 = vmatmul.mubr.f32.gmra.mrb[0].mxu0 %v497
    %v639 = vpop.f32.mrb[0].mxu0
    %v640 = vadd.f32 %v444, %v639
    %v641 = vpop.f32.mrb[0].mxu0
    %642 = vmatprep.mubr.f32.mxu0 0.0
    %643 = vmatmul.mubr.f32.gmra.mrb[0].mxu0 %v500
    %v644 = vpop.f32.mrb[0].mxu0
    %v645 = vadd.f32 %v449, %v644
    %v646 = vpop.f32.mrb[0].mxu0
    %647 = vmatprep.mubr.f32.mxu0 0.0
    %648 = vmatmul.mubr.f32.gmra.mrb[0].mxu0 %v503
    %v649 = vpop.f32.mrb[0].mxu0
    %v650 = vadd.f32 %v454, %v649
    %v651 = vpop.f32.mrb[0].mxu0
    %652 = vdwg.mxu0
    %s653 = scalar_lea.vmem [#allocation2], 2
    %v654 = vld [vmem:[%s653] ss:$2 sm:$0xff]
    %s655 = scalar_lea.vmem [#allocation2], 50
    %v656 = vld [vmem:[%s655] ss:$2 sm:$0xff]
    %s657 = scalar_lea.vmem [#allocation2], 98
    %v658 = vld [vmem:[%s657] ss:$2 sm:$0xff]
    %s659 = scalar_lea.vmem [#allocation2], 146
    %v660 = vld [vmem:[%s659] ss:$2 sm:$0xff]
    %s661 = scalar_lea.vmem [#allocation2], 194
    %v662 = vld [vmem:[%s661] ss:$2 sm:$0xff]
    %s663 = scalar_lea.vmem [#allocation2], 242
    %v664 = vld [vmem:[%s663] ss:$2 sm:$0xff]
    %s665 = scalar_lea.vmem [#allocation2], 290
    %v666 = vld [vmem:[%s665] ss:$2 sm:$0xff]
    %s667 = scalar_lea.vmem [#allocation2], 338
    %v668 = vld [vmem:[%s667] ss:$2 sm:$0xff]
    %s669 = scalar_lea.vmem [#allocation2], 410
    %v670 = vld [vmem:[%s669] ss:$2 sm:$0xff]
    %s671 = scalar_lea.vmem [#allocation2], 458
    %v672 = vld [vmem:[%s671] ss:$2 sm:$0xff]
    %s673 = scalar_lea.vmem [#allocation2], 506
    %v674 = vld [vmem:[%s673] ss:$2 sm:$0xff]
    %s675 = scalar_lea.vmem [#allocation2], 554
    %v676 = vld [vmem:[%s675] ss:$2 sm:$0xff]
    %s677 = scalar_lea.vmem [#allocation2], 602
    %v678 = vld [vmem:[%s677] ss:$2 sm:$0xff]
    %s679 = scalar_lea.vmem [#allocation2], 650
    %v680 = vld [vmem:[%s679] ss:$2 sm:$0xff]
    %s681 = scalar_lea.vmem [#allocation2], 698
    %v682 = vld [vmem:[%s681] ss:$2 sm:$0xff]
    %s683 = scalar_lea.vmem [#allocation2], 746
    %v684 = vld [vmem:[%s683] ss:$2 sm:$0xff]
    %v685 = vld [vmem:[%s1 + $0x6] sm:$0x7]
    %v687 = vsel %vm24, %v654, 0
    %v690 = vsel %vm24, %v656, 0
    %v693 = vsel %vm24, %v658, 0
    %v696 = vsel %vm24, %v660, 0
    %v699 = vsel %vm24, %v662, 0
    %v702 = vsel %vm24, %v664, 0
    %v705 = vsel %vm24, %v666, 0
    %v708 = vsel %vm24, %v668, 0
    %v711 = vsel %vm24, %v670, 0
    %v714 = vsel %vm24, %v672, 0
    %v717 = vsel %vm24, %v674, 0
    %v720 = vsel %vm24, %v676, 0
    %v723 = vsel %vm24, %v678, 0
    %v726 = vsel %vm24, %v680, 0
    %v729 = vsel %vm24, %v682, 0
    %v732 = vsel %vm24, %v684, 0
    %v735 = vsel %vm308, %v685, 0
    %737 = vmatprep.subr.mxu0 0.0
    %738 = vmatpush1.msra.mxu0 %v735
    %739 = vmatprep.subr.mxu0 0.0
    %740 = vmatpush1.msra.mxu0 0.0
    %741 = vmatprep.subr.mxu0 0.0
    %742 = vmatpush1.msra.mxu0 0.0
    %743 = vmatprep.subr.mxu0 0.0
    %744 = vmatpush1.msra.mxu0 0.0
    %745 = vmatprep.subr.mxu0 0.0
    %746 = vmatpush1.msra.mxu0 0.0
    %747 = vmatprep.subr.mxu0 0.0
    %748 = vmatpush1.msra.mxu0 0.0
    %749 = vmatprep.subr.mxu0 0.0
    %750 = vmatpush1.msra.mxu0 0.0
    %751 = vmatprep.subr.mxu0 0.0
    %752 = vmatpush1.msra.mxu0 0.0
    %753 = vmatprep.subr.mxu0 0.0
    %754 = vmatpush1.msra.mxu0 0.0
    %755 = vmatprep.subr.mxu0 0.0
    %756 = vmatpush1.msra.mxu0 0.0
    %757 = vmatprep.subr.mxu0 0.0
    %758 = vmatpush1.msra.mxu0 0.0
    %759 = vmatprep.subr.mxu0 0.0
    %760 = vmatpush1.msra.mxu0 0.0
    %761 = vmatprep.subr.mxu0 0.0
    %762 = vmatpush1.msra.mxu0 0.0
    %763 = vmatprep.subr.mxu0 0.0
    %764 = vmatpush1.msra.mxu0 0.0
    %765 = vmatprep.subr.mxu0 0.0
    %766 = vmatpush1.msra.mxu0 0.0
    %767 = vmatprep.subr.mxu0 0.0
    %768 = vmatpush1.msra.mxu0 0.0
    %769 = vmatprep.subr.mxu0 0.0
    %770 = vmatpush1.msra.mxu0 0.0
    %771 = vmatprep.subr.mxu0 0.0
    %772 = vmatpush1.msra.mxu0 0.0
    %773 = vmatprep.subr.mxu0 0.0
    %774 = vmatpush1.msra.mxu0 0.0
    %775 = vmatprep.subr.mxu0 0.0
    %776 = vmatpush1.msra.mxu0 0.0
    %777 = vmatprep.subr.mxu0 0.0
    %778 = vmatpush1.msra.mxu0 0.0
    %779 = vmatprep.subr.mxu0 0.0
    %780 = vmatpush1.msra.mxu0 0.0
    %781 = vmatprep.subr.mxu0 0.0
    %782 = vmatpush1.msra.mxu0 0.0
    %783 = vmatprep.subr.mxu0 0.0
    %784 = vmatpush1.msra.mxu0 0.0
    %785 = vmatprep.subr.mxu0 0.0
    %786 = vmatpush1.msra.mxu0 0.0
    %787 = vmatprep.subr.mxu0 0.0
    %788 = vmatpush1.msra.mxu0 0.0
    %789 = vmatprep.subr.mxu0 0.0
    %790 = vmatpush1.msra.mxu0 0.0
    %791 = vmatprep.subr.mxu0 0.0
    %792 = vmatpush1.msra.mxu0 0.0
    %793 = vmatprep.subr.mxu0 0.0
    %794 = vmatpush1.msra.mxu0 0.0
    %795 = vmatprep.subr.mxu0 0.0
    %796 = vmatpush1.msra.mxu0 0.0
    %797 = vmatprep.subr.mxu0 0.0
    %798 = vmatpush1.msra.mxu0 0.0
    %799 = vmatprep.subr.mxu0 0.0
    %800 = vmatpush1.msra.mxu0 0.0
    %801 = vmatprep.mubr.f32.mxu0 0.0
    %802 = vmatmul.mubr.f32.gmra.mrb[0].mxu0 %v687
    %v803 = vpop.f32.mrb[0].mxu0
    %v804 = vadd.f32 0.0, %v803
    %v805 = vpop.f32.mrb[0].mxu0
    %806 = vmatprep.mubr.f32.mxu0 0.0
    %807 = vmatmul.mubr.f32.gmra.mrb[0].mxu0 %v690
    %v808 = vpop.f32.mrb[0].mxu0
    %v809 = vadd.f32 0.0, %v808
    %v810 = vpop.f32.mrb[0].mxu0
    %811 = vmatprep.mubr.f32.mxu0 0.0
    %812 = vmatmul.mubr.f32.gmra.mrb[0].mxu0 %v693
    %v813 = vpop.f32.mrb[0].mxu0
    %v814 = vadd.f32 0.0, %v813
    %v815 = vpop.f32.mrb[0].mxu0
    %816 = vmatprep.mubr.f32.mxu0 0.0
    %817 = vmatmul.mubr.f32.gmra.mrb[0].mxu0 %v696
    %v818 = vpop.f32.mrb[0].mxu0
    %v819 = vadd.f32 0.0, %v818
    %v820 = vpop.f32.mrb[0].mxu0
    %821 = vmatprep.mubr.f32.mxu0 0.0
    %822 = vmatmul.mubr.f32.gmra.mrb[0].mxu0 %v699
    %v823 = vpop.f32.mrb[0].mxu0
    %v824 = vadd.f32 0.0, %v823
    %v825 = vpop.f32.mrb[0].mxu0
    %826 = vmatprep.mubr.f32.mxu0 0.0
    %827 = vmatmul.mubr.f32.gmra.mrb[0].mxu0 %v702
    %v828 = vpop.f32.mrb[0].mxu0
    %v829 = vadd.f32 0.0, %v828
    %v830 = vpop.f32.mrb[0].mxu0
    %831 = vmatprep.mubr.f32.mxu0 0.0
    %832 = vmatmul.mubr.f32.gmra.mrb[0].mxu0 %v705
    %v833 = vpop.f32.mrb[0].mxu0
    %v834 = vadd.f32 0.0, %v833
    %v835 = vpop.f32.mrb[0].mxu0
    %836 = vmatprep.mubr.f32.mxu0 0.0
    %837 = vmatmul.mubr.f32.gmra.mrb[0].mxu0 %v708
    %v838 = vpop.f32.mrb[0].mxu0
    %v839 = vadd.f32 0.0, %v838
    %v840 = vpop.f32.mrb[0].mxu0
    %841 = vmatprep.mubr.f32.mxu0 0.0
    %842 = vmatmul.mubr.f32.gmra.mrb[0].mxu0 %v711
    %v843 = vpop.f32.mrb[0].mxu0
    %v844 = vadd.f32 0.0, %v843
    %v845 = vpop.f32.mrb[0].mxu0
    %846 = vmatprep.mubr.f32.mxu0 0.0
    %847 = vmatmul.mubr.f32.gmra.mrb[0].mxu0 %v714
    %v848 = vpop.f32.mrb[0].mxu0
    %v849 = vadd.f32 0.0, %v848
    %v850 = vpop.f32.mrb[0].mxu0
    %851 = vmatprep.mubr.f32.mxu0 0.0
    %852 = vmatmul.mubr.f32.gmra.mrb[0].mxu0 %v717
    %v853 = vpop.f32.mrb[0].mxu0
    %v854 = vadd.f32 0.0, %v853
    %v855 = vpop.f32.mrb[0].mxu0
    %856 = vmatprep.mubr.f32.mxu0 0.0
    %857 = vmatmul.mubr.f32.gmra.mrb[0].mxu0 %v720
    %v858 = vpop.f32.mrb[0].mxu0
    %v859 = vadd.f32 0.0, %v858
    %v860 = vpop.f32.mrb[0].mxu0
    %861 = vmatprep.mubr.f32.mxu0 0.0
    %862 = vmatmul.mubr.f32.gmra.mrb[0].mxu0 %v723
    %v863 = vpop.f32.mrb[0].mxu0
    %v864 = vadd.f32 0.0, %v863
    %v865 = vpop.f32.mrb[0].mxu0
    %866 = vmatprep.mubr.f32.mxu0 0.0
    %867 = vmatmul.mubr.f32.gmra.mrb[0].mxu0 %v726
    %v868 = vpop.f32.mrb[0].mxu0
    %v869 = vadd.f32 0.0, %v868
    %v870 = vpop.f32.mrb[0].mxu0
    %871 = vmatprep.mubr.f32.mxu0 0.0
    %872 = vmatmul.mubr.f32.gmra.mrb[0].mxu0 %v729
    %v873 = vpop.f32.mrb[0].mxu0
    %v874 = vadd.f32 0.0, %v873
    %v875 = vpop.f32.mrb[0].mxu0
    %876 = vmatprep.mubr.f32.mxu0 0.0
    %877 = vmatmul.mubr.f32.gmra.mrb[0].mxu0 %v732
    %v878 = vpop.f32.mrb[0].mxu0
    %v879 = vadd.f32 0.0, %v878
    %v880 = vpop.f32.mrb[0].mxu0
    %881 = vdwg.mxu0
    %v882 = vadd.f32 %v575, %v804
    %v883 = vadd.f32 %v580, %v809
    %v884 = vadd.f32 %v585, %v814
    %v885 = vadd.f32 %v590, %v819
    %v886 = vadd.f32 %v595, %v824
    %v887 = vadd.f32 %v600, %v829
    %v888 = vadd.f32 %v605, %v834
    %v889 = vadd.f32 %v610, %v839
    %v890 = vadd.f32 %v615, %v844
    %v891 = vadd.f32 %v620, %v849
    %v892 = vadd.f32 %v625, %v854
    %v893 = vadd.f32 %v630, %v859
    %v894 = vadd.f32 %v635, %v864
    %v895 = vadd.f32 %v640, %v869
    %v896 = vadd.f32 %v645, %v874
    %v897 = vadd.f32 %v650, %v879
    %v898 = vld [vmem:[%s130] ss:$2 sm:$0xff]
    %s899 = scalar_lea.vmem %s130, 48 [#allocation2]
    %v900 = vld [vmem:[%s899] ss:$2 sm:$0xff]
    %s901 = scalar_lea.vmem %s130, 96 [#allocation2]
    %v902 = vld [vmem:[%s901] ss:$2 sm:$0xff]
    %s903 = scalar_lea.vmem %s130, 144 [#allocation2]
    %v904 = vld [vmem:[%s903] ss:$2 sm:$0xff]
    %s905 = scalar_lea.vmem %s130, 192 [#allocation2]
    %v906 = vld [vmem:[%s905] ss:$2 sm:$0xff]
    %s907 = scalar_lea.vmem %s130, 240 [#allocation2]
    %v908 = vld [vmem:[%s907] ss:$2 sm:$0xff]
    %s909 = scalar_lea.vmem %s130, 288 [#allocation2]
    %v910 = vld [vmem:[%s909] ss:$2 sm:$0xff]
    %s911 = scalar_lea.vmem %s130, 336 [#allocation2]
    %v912 = vld [vmem:[%s911] ss:$2 sm:$0xff]
    %s913 = scalar_lea.vmem %s130, 408 [#allocation2]
    %v914 = vld [vmem:[%s913] ss:$2 sm:$0xff]
    %s915 = scalar_lea.vmem %s130, 456 [#allocation2]
    %v916 = vld [vmem:[%s915] ss:$2 sm:$0xff]
    %s917 = scalar_lea.vmem %s130, 504 [#allocation2]
    %v918 = vld [vmem:[%s917] ss:$2 sm:$0xff]
    %s919 = scalar_lea.vmem %s130, 552 [#allocation2]
    %v920 = vld [vmem:[%s919] ss:$2 sm:$0xff]
    %s921 = scalar_lea.vmem %s130, 600 [#allocation2]
    %v922 = vld [vmem:[%s921] ss:$2 sm:$0xff]
    %s923 = scalar_lea.vmem %s130, 648 [#allocation2]
    %v924 = vld [vmem:[%s923] ss:$2 sm:$0xff]
    %s925 = scalar_lea.vmem %s130, 696 [#allocation2]
    %v926 = vld [vmem:[%s925] ss:$2 sm:$0xff]
    %s927 = scalar_lea.vmem %s130, 744 [#allocation2]
    %v928 = vld [vmem:[%s927] ss:$2 sm:$0xff]
    %v929 = vld [vmem:[%s1 + $0x9] sm:$0x7]
    %v931 = vsel %vm24, %v898, 0
    %v934 = vsel %vm24, %v900, 0
    %v937 = vsel %vm24, %v902, 0
    %v940 = vsel %vm24, %v904, 0
    %v943 = vsel %vm24, %v906, 0
    %v946 = vsel %vm24, %v908, 0
    %v949 = vsel %vm24, %v910, 0
    %v952 = vsel %vm24, %v912, 0
    %v955 = vsel %vm24, %v914, 0
    %v958 = vsel %vm24, %v916, 0
    %v961 = vsel %vm24, %v918, 0
    %v964 = vsel %vm24, %v920, 0
    %v967 = vsel %vm24, %v922, 0
    %v970 = vsel %vm24, %v924, 0
    %v973 = vsel %vm24, %v926, 0
    %v976 = vsel %vm24, %v928, 0
    %v979 = vsel %vm308, %v929, 0
    %981 = vmatprep.subr.mxu0 0.0
    %982 = vmatpush1.msra.mxu0 %v979
    %983 = vmatprep.subr.mxu0 0.0
    %984 = vmatpush1.msra.mxu0 0.0
    %985 = vmatprep.subr.mxu0 0.0
    %986 = vmatpush1.msra.mxu0 0.0
    %987 = vmatprep.subr.mxu0 0.0
    %988 = vmatpush1.msra.mxu0 0.0
    %989 = vmatprep.subr.mxu0 0.0
    %990 = vmatpush1.msra.mxu0 0.0
    %991 = vmatprep.subr.mxu0 0.0
    %992 = vmatpush1.msra.mxu0 0.0
    %993 = vmatprep.subr.mxu0 0.0
    %994 = vmatpush1.msra.mxu0 0.0
    %995 = vmatprep.subr.mxu0 0.0
    %996 = vmatpush1.msra.mxu0 0.0
    %997 = vmatprep.subr.mxu0 0.0
    %998 = vmatpush1.msra.mxu0 0.0
    %999 = vmatprep.subr.mxu0 0.0
    %1000 = vmatpush1.msra.mxu0 0.0
    %1001 = vmatprep.subr.mxu0 0.0
    %1002 = vmatpush1.msra.mxu0 0.0
    %1003 = vmatprep.subr.mxu0 0.0
    %1004 = vmatpush1.msra.mxu0 0.0
    %1005 = vmatprep.subr.mxu0 0.0
    %1006 = vmatpush1.msra.mxu0 0.0
    %1007 = vmatprep.subr.mxu0 0.0
    %1008 = vmatpush1.msra.mxu0 0.0
    %1009 = vmatprep.subr.mxu0 0.0
    %1010 = vmatpush1.msra.mxu0 0.0
    %1011 = vmatprep.subr.mxu0 0.0
    %1012 = vmatpush1.msra.mxu0 0.0
    %1013 = vmatprep.subr.mxu0 0.0
    %1014 = vmatpush1.msra.mxu0 0.0
    %1015 = vmatprep.subr.mxu0 0.0
    %1016 = vmatpush1.msra.mxu0 0.0
    %1017 = vmatprep.subr.mxu0 0.0
    %1018 = vmatpush1.msra.mxu0 0.0
    %1019 = vmatprep.subr.mxu0 0.0
    %1020 = vmatpush1.msra.mxu0 0.0
    %1021 = vmatprep.subr.mxu0 0.0
    %1022 = vmatpush1.msra.mxu0 0.0
    %1023 = vmatprep.subr.mxu0 0.0
    %1024 = vmatpush1.msra.mxu0 0.0
    %1025 = vmatprep.subr.mxu0 0.0
    %1026 = vmatpush1.msra.mxu0 0.0
    %1027 = vmatprep.subr.mxu0 0.0
    %1028 = vmatpush1.msra.mxu0 0.0
    %1029 = vmatprep.subr.mxu0 0.0
    %1030 = vmatpush1.msra.mxu0 0.0
    %1031 = vmatprep.subr.mxu0 0.0
    %1032 = vmatpush1.msra.mxu0 0.0
    %1033 = vmatprep.subr.mxu0 0.0
    %1034 = vmatpush1.msra.mxu0 0.0
    %1035 = vmatprep.subr.mxu0 0.0
    %1036 = vmatpush1.msra.mxu0 0.0
    %1037 = vmatprep.subr.mxu0 0.0
    %1038 = vmatpush1.msra.mxu0 0.0
    %1039 = vmatprep.subr.mxu0 0.0
    %1040 = vmatpush1.msra.mxu0 0.0
    %1041 = vmatprep.subr.mxu0 0.0
    %1042 = vmatpush1.msra.mxu0 0.0
    %1043 = vmatprep.subr.mxu0 0.0
    %1044 = vmatpush1.msra.mxu0 0.0
    %1045 = vmatprep.mubr.f32.mxu0 0.0
    %1046 = vmatmul.mubr.f32.gmra.mrb[0].mxu0 %v931
    %v1047 = vpop.f32.mrb[0].mxu0
    %v1048 = vadd.f32 0.0, %v1047
    %v1049 = vpop.f32.mrb[0].mxu0
    %1050 = vmatprep.mubr.f32.mxu0 0.0
    %1051 = vmatmul.mubr.f32.gmra.mrb[0].mxu0 %v934
    %v1052 = vpop.f32.mrb[0].mxu0
    %v1053 = vadd.f32 0.0, %v1052
    %v1054 = vpop.f32.mrb[0].mxu0
    %1055 = vmatprep.mubr.f32.mxu0 0.0
    %1056 = vmatmul.mubr.f32.gmra.mrb[0].mxu0 %v937
    %v1057 = vpop.f32.mrb[0].mxu0
    %v1058 = vadd.f32 0.0, %v1057
    %v1059 = vpop.f32.mrb[0].mxu0
    %1060 = vmatprep.mubr.f32.mxu0 0.0
    %1061 = vmatmul.mubr.f32.gmra.mrb[0].mxu0 %v940
    %v1062 = vpop.f32.mrb[0].mxu0
    %v1063 = vadd.f32 0.0, %v1062
    %v1064 = vpop.f32.mrb[0].mxu0
    %1065 = vmatprep.mubr.f32.mxu0 0.0
    %1066 = vmatmul.mubr.f32.gmra.mrb[0].mxu0 %v943
    %v1067 = vpop.f32.mrb[0].mxu0
    %v1068 = vadd.f32 0.0, %v1067
    %v1069 = vpop.f32.mrb[0].mxu0
    %1070 = vmatprep.mubr.f32.mxu0 0.0
    %1071 = vmatmul.mubr.f32.gmra.mrb[0].mxu0 %v946
    %v1072 = vpop.f32.mrb[0].mxu0
    %v1073 = vadd.f32 0.0, %v1072
    %v1074 = vpop.f32.mrb[0].mxu0
    %1075 = vmatprep.mubr.f32.mxu0 0.0
    %1076 = vmatmul.mubr.f32.gmra.mrb[0].mxu0 %v949
    %v1077 = vpop.f32.mrb[0].mxu0
    %v1078 = vadd.f32 0.0, %v1077
    %v1079 = vpop.f32.mrb[0].mxu0
    %1080 = vmatprep.mubr.f32.mxu0 0.0
    %1081 = vmatmul.mubr.f32.gmra.mrb[0].mxu0 %v952
    %v1082 = vpop.f32.mrb[0].mxu0
    %v1083 = vadd.f32 0.0, %v1082
    %v1084 = vpop.f32.mrb[0].mxu0
    %1085 = vmatprep.mubr.f32.mxu0 0.0
    %1086 = vmatmul.mubr.f32.gmra.mrb[0].mxu0 %v955
    %v1087 = vpop.f32.mrb[0].mxu0
    %v1088 = vadd.f32 0.0, %v1087
    %v1089 = vpop.f32.mrb[0].mxu0
    %1090 = vmatprep.mubr.f32.mxu0 0.0
    %1091 = vmatmul.mubr.f32.gmra.mrb[0].mxu0 %v958
    %v1092 = vpop.f32.mrb[0].mxu0
    %v1093 = vadd.f32 0.0, %v1092
    %v1094 = vpop.f32.mrb[0].mxu0
    %1095 = vmatprep.mubr.f32.mxu0 0.0
    %1096 = vmatmul.mubr.f32.gmra.mrb[0].mxu0 %v961
    %v1097 = vpop.f32.mrb[0].mxu0
    %v1098 = vadd.f32 0.0, %v1097
    %v1099 = vpop.f32.mrb[0].mxu0
    %1100 = vmatprep.mubr.f32.mxu0 0.0
    %1101 = vmatmul.mubr.f32.gmra.mrb[0].mxu0 %v964
    %v1102 = vpop.f32.mrb[0].mxu0
    %v1103 = vadd.f32 0.0, %v1102
    %v1104 = vpop.f32.mrb[0].mxu0
    %1105 = vmatprep.mubr.f32.mxu0 0.0
    %1106 = vmatmul.mubr.f32.gmra.mrb[0].mxu0 %v967
    %v1107 = vpop.f32.mrb[0].mxu0
    %v1108 = vadd.f32 0.0, %v1107
    %v1109 = vpop.f32.mrb[0].mxu0
    %1110 = vmatprep.mubr.f32.mxu0 0.0
    %1111 = vmatmul.mubr.f32.gmra.mrb[0].mxu0 %v970
    %v1112 = vpop.f32.mrb[0].mxu0
    %v1113 = vadd.f32 0.0, %v1112
    %v1114 = vpop.f32.mrb[0].mxu0
    %1115 = vmatprep.mubr.f32.mxu0 0.0
    %1116 = vmatmul.mubr.f32.gmra.mrb[0].mxu0 %v973
    %v1117 = vpop.f32.mrb[0].mxu0
    %v1118 = vadd.f32 0.0, %v1117
    %v1119 = vpop.f32.mrb[0].mxu0
    %1120 = vmatprep.mubr.f32.mxu0 0.0
    %1121 = vmatmul.mubr.f32.gmra.mrb[0].mxu0 %v976
    %v1122 = vpop.f32.mrb[0].mxu0
    %v1123 = vadd.f32 0.0, %v1122
    %v1124 = vpop.f32.mrb[0].mxu0
    %1125 = vdwg.mxu0
    %v1126 = vadd.f32 %v882, %v1048
    %v1127 = vadd.f32 %v883, %v1053
    %v1128 = vadd.f32 %v884, %v1058
    %v1129 = vadd.f32 %v885, %v1063
    %v1130 = vadd.f32 %v886, %v1068
    %v1131 = vadd.f32 %v887, %v1073
    %v1132 = vadd.f32 %v888, %v1078
    %v1133 = vadd.f32 %v889, %v1083
    %v1134 = vadd.f32 %v890, %v1088
    %v1135 = vadd.f32 %v891, %v1093
    %v1136 = vadd.f32 %v892, %v1098
    %v1137 = vadd.f32 %v893, %v1103
    %v1138 = vadd.f32 %v894, %v1108
    %v1139 = vadd.f32 %v895, %v1113
    %v1140 = vadd.f32 %v896, %v1118
    %v1141 = vadd.f32 %v897, %v1123
    %s1142 = scalar_lea.vmem %s130, 1 [#allocation2]
    %v1143 = vld [vmem:[%s1142] ss:$2 sm:$0xff]
    %s1144 = scalar_lea.vmem %s130, 49 [#allocation2]
    %v1145 = vld [vmem:[%s1144] ss:$2 sm:$0xff]
    %s1146 = scalar_lea.vmem %s130, 97 [#allocation2]
    %v1147 = vld [vmem:[%s1146] ss:$2 sm:$0xff]
    %s1148 = scalar_lea.vmem %s130, 145 [#allocation2]
    %v1149 = vld [vmem:[%s1148] ss:$2 sm:$0xff]
    %s1150 = scalar_lea.vmem %s130, 193 [#allocation2]
    %v1151 = vld [vmem:[%s1150] ss:$2 sm:$0xff]
    %s1152 = scalar_lea.vmem %s130, 241 [#allocation2]
    %v1153 = vld [vmem:[%s1152] ss:$2 sm:$0xff]
    %s1154 = scalar_lea.vmem %s130, 289 [#allocation2]
    %v1155 = vld [vmem:[%s1154] ss:$2 sm:$0xff]
    %s1156 = scalar_lea.vmem %s130, 337 [#allocation2]
    %v1157 = vld [vmem:[%s1156] ss:$2 sm:$0xff]
    %s1158 = scalar_lea.vmem %s130, 409 [#allocation2]
    %v1159 = vld [vmem:[%s1158] ss:$2 sm:$0xff]
    %s1160 = scalar_lea.vmem %s130, 457 [#allocation2]
    %v1161 = vld [vmem:[%s1160] ss:$2 sm:$0xff]
    %s1162 = scalar_lea.vmem %s130, 505 [#allocation2]
    %v1163 = vld [vmem:[%s1162] ss:$2 sm:$0xff]
    %s1164 = scalar_lea.vmem %s130, 553 [#allocation2]
    %v1165 = vld [vmem:[%s1164] ss:$2 sm:$0xff]
    %s1166 = scalar_lea.vmem %s130, 601 [#allocation2]
    %v1167 = vld [vmem:[%s1166] ss:$2 sm:$0xff]
    %s1168 = scalar_lea.vmem %s130, 649 [#allocation2]
    %v1169 = vld [vmem:[%s1168] ss:$2 sm:$0xff]
    %s1170 = scalar_lea.vmem %s130, 697 [#allocation2]
    %v1171 = vld [vmem:[%s1170] ss:$2 sm:$0xff]
    %s1172 = scalar_lea.vmem %s130, 745 [#allocation2]
    %v1173 = vld [vmem:[%s1172] ss:$2 sm:$0xff]
    %v1174 = vld [vmem:[%s1 + $0xc] sm:$0x7]
    %v1176 = vsel %vm24, %v1143, 0
    %v1179 = vsel %vm24, %v1145, 0
    %v1182 = vsel %vm24, %v1147, 0
    %v1185 = vsel %vm24, %v1149, 0
    %v1188 = vsel %vm24, %v1151, 0
    %v1191 = vsel %vm24, %v1153, 0
    %v1194 = vsel %vm24, %v1155, 0
    %v1197 = vsel %vm24, %v1157, 0
    %v1200 = vsel %vm24, %v1159, 0
    %v1203 = vsel %vm24, %v1161, 0
    %v1206 = vsel %vm24, %v1163, 0
    %v1209 = vsel %vm24, %v1165, 0
    %v1212 = vsel %vm24, %v1167, 0
    %v1215 = vsel %vm24, %v1169, 0
    %v1218 = vsel %vm24, %v1171, 0
    %v1221 = vsel %vm24, %v1173, 0
    %v1224 = vsel %vm308, %v1174, 0
    %1226 = vmatprep.subr.mxu0 0.0
    %1227 = vmatpush1.msra.mxu0 %v1224
    %1228 = vmatprep.subr.mxu0 0.0
    %1229 = vmatpush1.msra.mxu0 0.0
    %1230 = vmatprep.subr.mxu0 0.0
    %1231 = vmatpush1.msra.mxu0 0.0
    %1232 = vmatprep.subr.mxu0 0.0
    %1233 = vmatpush1.msra.mxu0 0.0
    %1234 = vmatprep.subr.mxu0 0.0
    %1235 = vmatpush1.msra.mxu0 0.0
    %1236 = vmatprep.subr.mxu0 0.0
    %1237 = vmatpush1.msra.mxu0 0.0
    %1238 = vmatprep.subr.mxu0 0.0
    %1239 = vmatpush1.msra.mxu0 0.0
    %1240 = vmatprep.subr.mxu0 0.0
    %1241 = vmatpush1.msra.mxu0 0.0
    %1242 = vmatprep.subr.mxu0 0.0
    %1243 = vmatpush1.msra.mxu0 0.0
    %1244 = vmatprep.subr.mxu0 0.0
    %1245 = vmatpush1.msra.mxu0 0.0
    %1246 = vmatprep.subr.mxu0 0.0
    %1247 = vmatpush1.msra.mxu0 0.0
    %1248 = vmatprep.subr.mxu0 0.0
    %1249 = vmatpush1.msra.mxu0 0.0
    %1250 = vmatprep.subr.mxu0 0.0
    %1251 = vmatpush1.msra.mxu0 0.0
    %1252 = vmatprep.subr.mxu0 0.0
    %1253 = vmatpush1.msra.mxu0 0.0
    %1254 = vmatprep.subr.mxu0 0.0
    %1255 = vmatpush1.msra.mxu0 0.0
    %1256 = vmatprep.subr.mxu0 0.0
    %1257 = vmatpush1.msra.mxu0 0.0
    %1258 = vmatprep.subr.mxu0 0.0
    %1259 = vmatpush1.msra.mxu0 0.0
    %1260 = vmatprep.subr.mxu0 0.0
    %1261 = vmatpush1.msra.mxu0 0.0
    %1262 = vmatprep.subr.mxu0 0.0
    %1263 = vmatpush1.msra.mxu0 0.0
    %1264 = vmatprep.subr.mxu0 0.0
    %1265 = vmatpush1.msra.mxu0 0.0
    %1266 = vmatprep.subr.mxu0 0.0
    %1267 = vmatpush1.msra.mxu0 0.0
    %1268 = vmatprep.subr.mxu0 0.0
    %1269 = vmatpush1.msra.mxu0 0.0
    %1270 = vmatprep.subr.mxu0 0.0
    %1271 = vmatpush1.msra.mxu0 0.0
    %1272 = vmatprep.subr.mxu0 0.0
    %1273 = vmatpush1.msra.mxu0 0.0
    %1274 = vmatprep.subr.mxu0 0.0
    %1275 = vmatpush1.msra.mxu0 0.0
    %1276 = vmatprep.subr.mxu0 0.0
    %1277 = vmatpush1.msra.mxu0 0.0
    %1278 = vmatprep.subr.mxu0 0.0
    %1279 = vmatpush1.msra.mxu0 0.0
    %1280 = vmatprep.subr.mxu0 0.0
    %1281 = vmatpush1.msra.mxu0 0.0
    %1282 = vmatprep.subr.mxu0 0.0
    %1283 = vmatpush1.msra.mxu0 0.0
    %1284 = vmatprep.subr.mxu0 0.0
    %1285 = vmatpush1.msra.mxu0 0.0
    %1286 = vmatprep.subr.mxu0 0.0
    %1287 = vmatpush1.msra.mxu0 0.0
    %1288 = vmatprep.subr.mxu0 0.0
    %1289 = vmatpush1.msra.mxu0 0.0
    %1290 = vmatprep.mubr.f32.mxu0 0.0
    %1291 = vmatmul.mubr.f32.gmra.mrb[0].mxu0 %v1176
    %v1292 = vpop.f32.mrb[0].mxu0
    %v1293 = vadd.f32 0.0, %v1292
    %v1294 = vpop.f32.mrb[0].mxu0
    %1295 = vmatprep.mubr.f32.mxu0 0.0
    %1296 = vmatmul.mubr.f32.gmra.mrb[0].mxu0 %v1179
    %v1297 = vpop.f32.mrb[0].mxu0
    %v1298 = vadd.f32 0.0, %v1297
    %v1299 = vpop.f32.mrb[0].mxu0
    %1300 = vmatprep.mubr.f32.mxu0 0.0
    %1301 = vmatmul.mubr.f32.gmra.mrb[0].mxu0 %v1182
    %v1302 = vpop.f32.mrb[0].mxu0
    %v1303 = vadd.f32 0.0, %v1302
    %v1304 = vpop.f32.mrb[0].mxu0
    %1305 = vmatprep.mubr.f32.mxu0 0.0
    %1306 = vmatmul.mubr.f32.gmra.mrb[0].mxu0 %v1185
    %v1307 = vpop.f32.mrb[0].mxu0
    %v1308 = vadd.f32 0.0, %v1307
    %v1309 = vpop.f32.mrb[0].mxu0
    %1310 = vmatprep.mubr.f32.mxu0 0.0
    %1311 = vmatmul.mubr.f32.gmra.mrb[0].mxu0 %v1188
    %v1312 = vpop.f32.mrb[0].mxu0
    %v1313 = vadd.f32 0.0, %v1312
    %v1314 = vpop.f32.mrb[0].mxu0
    %1315 = vmatprep.mubr.f32.mxu0 0.0
    %1316 = vmatmul.mubr.f32.gmra.mrb[0].mxu0 %v1191
    %v1317 = vpop.f32.mrb[0].mxu0
    %v1318 = vadd.f32 0.0, %v1317
    %v1319 = vpop.f32.mrb[0].mxu0
    %1320 = vmatprep.mubr.f32.mxu0 0.0
    %1321 = vmatmul.mubr.f32.gmra.mrb[0].mxu0 %v1194
    %v1322 = vpop.f32.mrb[0].mxu0
    %v1323 = vadd.f32 0.0, %v1322
    %v1324 = vpop.f32.mrb[0].mxu0
    %1325 = vmatprep.mubr.f32.mxu0 0.0
    %1326 = vmatmul.mubr.f32.gmra.mrb[0].mxu0 %v1197
    %v1327 = vpop.f32.mrb[0].mxu0
    %v1328 = vadd.f32 0.0, %v1327
    %v1329 = vpop.f32.mrb[0].mxu0
    %1330 = vmatprep.mubr.f32.mxu0 0.0
    %1331 = vmatmul.mubr.f32.gmra.mrb[0].mxu0 %v1200
    %v1332 = vpop.f32.mrb[0].mxu0
    %v1333 = vadd.f32 0.0, %v1332
    %v1334 = vpop.f32.mrb[0].mxu0
    %1335 = vmatprep.mubr.f32.mxu0 0.0
    %1336 = vmatmul.mubr.f32.gmra.mrb[0].mxu0 %v1203
    %v1337 = vpop.f32.mrb[0].mxu0
    %v1338 = vadd.f32 0.0, %v1337
    %v1339 = vpop.f32.mrb[0].mxu0
    %1340 = vmatprep.mubr.f32.mxu0 0.0
    %1341 = vmatmul.mubr.f32.gmra.mrb[0].mxu0 %v1206
    %v1342 = vpop.f32.mrb[0].mxu0
    %v1343 = vadd.f32 0.0, %v1342
    %v1344 = vpop.f32.mrb[0].mxu0
    %1345 = vmatprep.mubr.f32.mxu0 0.0
    %1346 = vmatmul.mubr.f32.gmra.mrb[0].mxu0 %v1209
    %v1347 = vpop.f32.mrb[0].mxu0
    %v1348 = vadd.f32 0.0, %v1347
    %v1349 = vpop.f32.mrb[0].mxu0
    %1350 = vmatprep.mubr.f32.mxu0 0.0
    %1351 = vmatmul.mubr.f32.gmra.mrb[0].mxu0 %v1212
    %v1352 = vpop.f32.mrb[0].mxu0
    %v1353 = vadd.f32 0.0, %v1352
    %v1354 = vpop.f32.mrb[0].mxu0
    %1355 = vmatprep.mubr.f32.mxu0 0.0
    %1356 = vmatmul.mubr.f32.gmra.mrb[0].mxu0 %v1215
    %v1357 = vpop.f32.mrb[0].mxu0
    %v1358 = vadd.f32 0.0, %v1357
    %v1359 = vpop.f32.mrb[0].mxu0
    %1360 = vmatprep.mubr.f32.mxu0 0.0
    %1361 = vmatmul.mubr.f32.gmra.mrb[0].mxu0 %v1218
    %v1362 = vpop.f32.mrb[0].mxu0
    %v1363 = vadd.f32 0.0, %v1362
    %v1364 = vpop.f32.mrb[0].mxu0
    %1365 = vmatprep.mubr.f32.mxu0 0.0
    %1366 = vmatmul.mubr.f32.gmra.mrb[0].mxu0 %v1221
    %v1367 = vpop.f32.mrb[0].mxu0
    %v1368 = vadd.f32 0.0, %v1367
    %v1369 = vpop.f32.mrb[0].mxu0
    %1370 = vdwg.mxu0
    %v1371 = vadd.f32 %v1126, %v1293
    %v1372 = vadd.f32 %v1127, %v1298
    %v1373 = vadd.f32 %v1128, %v1303
    %v1374 = vadd.f32 %v1129, %v1308
    %v1375 = vadd.f32 %v1130, %v1313
    %v1376 = vadd.f32 %v1131, %v1318
    %v1377 = vadd.f32 %v1132, %v1323
    %v1378 = vadd.f32 %v1133, %v1328
    %v1379 = vadd.f32 %v1134, %v1333
    %v1380 = vadd.f32 %v1135, %v1338
    %v1381 = vadd.f32 %v1136, %v1343
    %v1382 = vadd.f32 %v1137, %v1348
    %v1383 = vadd.f32 %v1138, %v1353
    %v1384 = vadd.f32 %v1139, %v1358
    %v1385 = vadd.f32 %v1140, %v1363
    %v1386 = vadd.f32 %v1141, %v1368
    %s1387 = scalar_lea.vmem %s130, 2 [#allocation2]
    %v1388 = vld [vmem:[%s1387] ss:$2 sm:$0xff]
    %s1389 = scalar_lea.vmem %s130, 50 [#allocation2]
    %v1390 = vld [vmem:[%s1389] ss:$2 sm:$0xff]
    %s1391 = scalar_lea.vmem %s130, 98 [#allocation2]
    %v1392 = vld [vmem:[%s1391] ss:$2 sm:$0xff]
    %s1393 = scalar_lea.vmem %s130, 146 [#allocation2]
    %v1394 = vld [vmem:[%s1393] ss:$2 sm:$0xff]
    %s1395 = scalar_lea.vmem %s130, 194 [#allocation2]
    %v1396 = vld [vmem:[%s1395] ss:$2 sm:$0xff]
    %s1397 = scalar_lea.vmem %s130, 242 [#allocation2]
    %v1398 = vld [vmem:[%s1397] ss:$2 sm:$0xff]
    %s1399 = scalar_lea.vmem %s130, 290 [#allocation2]
    %v1400 = vld [vmem:[%s1399] ss:$2 sm:$0xff]
    %s1401 = scalar_lea.vmem %s130, 338 [#allocation2]
    %v1402 = vld [vmem:[%s1401] ss:$2 sm:$0xff]
    %s1403 = scalar_lea.vmem %s130, 410 [#allocation2]
    %v1404 = vld [vmem:[%s1403] ss:$2 sm:$0xff]
    %s1405 = scalar_lea.vmem %s130, 458 [#allocation2]
    %v1406 = vld [vmem:[%s1405] ss:$2 sm:$0xff]
    %s1407 = scalar_lea.vmem %s130, 506 [#allocation2]
    %v1408 = vld [vmem:[%s1407] ss:$2 sm:$0xff]
    %s1409 = scalar_lea.vmem %s130, 554 [#allocation2]
    %v1410 = vld [vmem:[%s1409] ss:$2 sm:$0xff]
    %s1411 = scalar_lea.vmem %s130, 602 [#allocation2]
    %v1412 = vld [vmem:[%s1411] ss:$2 sm:$0xff]
    %s1413 = scalar_lea.vmem %s130, 650 [#allocation2]
    %v1414 = vld [vmem:[%s1413] ss:$2 sm:$0xff]
    %s1415 = scalar_lea.vmem %s130, 698 [#allocation2]
    %v1416 = vld [vmem:[%s1415] ss:$2 sm:$0xff]
    %s1417 = scalar_lea.vmem %s130, 746 [#allocation2]
    %v1418 = vld [vmem:[%s1417] ss:$2 sm:$0xff]
    %v1419 = vld [vmem:[%s1 + $0xf] sm:$0x7]
    %v1421 = vsel %vm24, %v1388, 0
    %v1424 = vsel %vm24, %v1390, 0
    %v1427 = vsel %vm24, %v1392, 0
    %v1430 = vsel %vm24, %v1394, 0
    %v1433 = vsel %vm24, %v1396, 0
    %v1436 = vsel %vm24, %v1398, 0
    %v1439 = vsel %vm24, %v1400, 0
    %v1442 = vsel %vm24, %v1402, 0
    %v1445 = vsel %vm24, %v1404, 0
    %v1448 = vsel %vm24, %v1406, 0
    %v1451 = vsel %vm24, %v1408, 0
    %v1454 = vsel %vm24, %v1410, 0
    %v1457 = vsel %vm24, %v1412, 0
    %v1460 = vsel %vm24, %v1414, 0
    %v1463 = vsel %vm24, %v1416, 0
    %v1466 = vsel %vm24, %v1418, 0
    %v1469 = vsel %vm308, %v1419, 0
    %1471 = vmatprep.subr.mxu0 0.0
    %1472 = vmatpush1.msra.mxu0 %v1469
    %1473 = vmatprep.subr.mxu0 0.0
    %1474 = vmatpush1.msra.mxu0 0.0
    %1475 = vmatprep.subr.mxu0 0.0
    %1476 = vmatpush1.msra.mxu0 0.0
    %1477 = vmatprep.subr.mxu0 0.0
    %1478 = vmatpush1.msra.mxu0 0.0
    %1479 = vmatprep.subr.mxu0 0.0
    %1480 = vmatpush1.msra.mxu0 0.0
    %1481 = vmatprep.subr.mxu0 0.0
    %1482 = vmatpush1.msra.mxu0 0.0
    %1483 = vmatprep.subr.mxu0 0.0
    %1484 = vmatpush1.msra.mxu0 0.0
    %1485 = vmatprep.subr.mxu0 0.0
    %1486 = vmatpush1.msra.mxu0 0.0
    %1487 = vmatprep.subr.mxu0 0.0
    %1488 = vmatpush1.msra.mxu0 0.0
    %1489 = vmatprep.subr.mxu0 0.0
    %1490 = vmatpush1.msra.mxu0 0.0
    %1491 = vmatprep.subr.mxu0 0.0
    %1492 = vmatpush1.msra.mxu0 0.0
    %1493 = vmatprep.subr.mxu0 0.0
    %1494 = vmatpush1.msra.mxu0 0.0
    %1495 = vmatprep.subr.mxu0 0.0
    %1496 = vmatpush1.msra.mxu0 0.0
    %1497 = vmatprep.subr.mxu0 0.0
    %1498 = vmatpush1.msra.mxu0 0.0
    %1499 = vmatprep.subr.mxu0 0.0
    %1500 = vmatpush1.msra.mxu0 0.0
    %1501 = vmatprep.subr.mxu0 0.0
    %1502 = vmatpush1.msra.mxu0 0.0
    %1503 = vmatprep.subr.mxu0 0.0
    %1504 = vmatpush1.msra.mxu0 0.0
    %1505 = vmatprep.subr.mxu0 0.0
    %1506 = vmatpush1.msra.mxu0 0.0
    %1507 = vmatprep.subr.mxu0 0.0
    %1508 = vmatpush1.msra.mxu0 0.0
    %1509 = vmatprep.subr.mxu0 0.0
    %1510 = vmatpush1.msra.mxu0 0.0
    %1511 = vmatprep.subr.mxu0 0.0
    %1512 = vmatpush1.msra.mxu0 0.0
    %1513 = vmatprep.subr.mxu0 0.0
    %1514 = vmatpush1.msra.mxu0 0.0
    %1515 = vmatprep.subr.mxu0 0.0
    %1516 = vmatpush1.msra.mxu0 0.0
    %1517 = vmatprep.subr.mxu0 0.0
    %1518 = vmatpush1.msra.mxu0 0.0
    %1519 = vmatprep.subr.mxu0 0.0
    %1520 = vmatpush1.msra.mxu0 0.0
    %1521 = vmatprep.subr.mxu0 0.0
    %1522 = vmatpush1.msra.mxu0 0.0
    %1523 = vmatprep.subr.mxu0 0.0
    %1524 = vmatpush1.msra.mxu0 0.0
    %1525 = vmatprep.subr.mxu0 0.0
    %1526 = vmatpush1.msra.mxu0 0.0
    %1527 = vmatprep.subr.mxu0 0.0
    %1528 = vmatpush1.msra.mxu0 0.0
    %1529 = vmatprep.subr.mxu0 0.0
    %1530 = vmatpush1.msra.mxu0 0.0
    %1531 = vmatprep.subr.mxu0 0.0
    %1532 = vmatpush1.msra.mxu0 0.0
    %1533 = vmatprep.subr.mxu0 0.0
    %1534 = vmatpush1.msra.mxu0 0.0
    %1535 = vmatprep.mubr.f32.mxu0 0.0
    %1536 = vmatmul.mubr.f32.gmra.mrb[0].mxu0 %v1421
    %v1537 = vpop.f32.mrb[0].mxu0
    %v1538 = vadd.f32 0.0, %v1537
    %v1539 = vpop.f32.mrb[0].mxu0
    %1540 = vmatprep.mubr.f32.mxu0 0.0
    %1541 = vmatmul.mubr.f32.gmra.mrb[0].mxu0 %v1424
    %v1542 = vpop.f32.mrb[0].mxu0
    %v1543 = vadd.f32 0.0, %v1542
    %v1544 = vpop.f32.mrb[0].mxu0
    %1545 = vmatprep.mubr.f32.mxu0 0.0
    %1546 = vmatmul.mubr.f32.gmra.mrb[0].mxu0 %v1427
    %v1547 = vpop.f32.mrb[0].mxu0
    %v1548 = vadd.f32 0.0, %v1547
    %v1549 = vpop.f32.mrb[0].mxu0
    %1550 = vmatprep.mubr.f32.mxu0 0.0
    %1551 = vmatmul.mubr.f32.gmra.mrb[0].mxu0 %v1430
    %v1552 = vpop.f32.mrb[0].mxu0
    %v1553 = vadd.f32 0.0, %v1552
    %v1554 = vpop.f32.mrb[0].mxu0
    %1555 = vmatprep.mubr.f32.mxu0 0.0
    %1556 = vmatmul.mubr.f32.gmra.mrb[0].mxu0 %v1433
    %v1557 = vpop.f32.mrb[0].mxu0
    %v1558 = vadd.f32 0.0, %v1557
    %v1559 = vpop.f32.mrb[0].mxu0
    %1560 = vmatprep.mubr.f32.mxu0 0.0
    %1561 = vmatmul.mubr.f32.gmra.mrb[0].mxu0 %v1436
    %v1562 = vpop.f32.mrb[0].mxu0
    %v1563 = vadd.f32 0.0, %v1562
    %v1564 = vpop.f32.mrb[0].mxu0
    %1565 = vmatprep.mubr.f32.mxu0 0.0
    %1566 = vmatmul.mubr.f32.gmra.mrb[0].mxu0 %v1439
    %v1567 = vpop.f32.mrb[0].mxu0
    %v1568 = vadd.f32 0.0, %v1567
    %v1569 = vpop.f32.mrb[0].mxu0
    %1570 = vmatprep.mubr.f32.mxu0 0.0
    %1571 = vmatmul.mubr.f32.gmra.mrb[0].mxu0 %v1442
    %v1572 = vpop.f32.mrb[0].mxu0
    %v1573 = vadd.f32 0.0, %v1572
    %v1574 = vpop.f32.mrb[0].mxu0
    %1575 = vmatprep.mubr.f32.mxu0 0.0
    %1576 = vmatmul.mubr.f32.gmra.mrb[0].mxu0 %v1445
    %v1577 = vpop.f32.mrb[0].mxu0
    %v1578 = vadd.f32 0.0, %v1577
    %v1579 = vpop.f32.mrb[0].mxu0
    %1580 = vmatprep.mubr.f32.mxu0 0.0
    %1581 = vmatmul.mubr.f32.gmra.mrb[0].mxu0 %v1448
    %v1582 = vpop.f32.mrb[0].mxu0
    %v1583 = vadd.f32 0.0, %v1582
    %v1584 = vpop.f32.mrb[0].mxu0
    %1585 = vmatprep.mubr.f32.mxu0 0.0
    %1586 = vmatmul.mubr.f32.gmra.mrb[0].mxu0 %v1451
    %v1587 = vpop.f32.mrb[0].mxu0
    %v1588 = vadd.f32 0.0, %v1587
    %v1589 = vpop.f32.mrb[0].mxu0
    %1590 = vmatprep.mubr.f32.mxu0 0.0
    %1591 = vmatmul.mubr.f32.gmra.mrb[0].mxu0 %v1454
    %v1592 = vpop.f32.mrb[0].mxu0
    %v1593 = vadd.f32 0.0, %v1592
    %v1594 = vpop.f32.mrb[0].mxu0
    %1595 = vmatprep.mubr.f32.mxu0 0.0
    %1596 = vmatmul.mubr.f32.gmra.mrb[0].mxu0 %v1457
    %v1597 = vpop.f32.mrb[0].mxu0
    %v1598 = vadd.f32 0.0, %v1597
    %v1599 = vpop.f32.mrb[0].mxu0
    %1600 = vmatprep.mubr.f32.mxu0 0.0
    %1601 = vmatmul.mubr.f32.gmra.mrb[0].mxu0 %v1460
    %v1602 = vpop.f32.mrb[0].mxu0
    %v1603 = vadd.f32 0.0, %v1602
    %v1604 = vpop.f32.mrb[0].mxu0
    %1605 = vmatprep.mubr.f32.mxu0 0.0
    %1606 = vmatmul.mubr.f32.gmra.mrb[0].mxu0 %v1463
    %v1607 = vpop.f32.mrb[0].mxu0
    %v1608 = vadd.f32 0.0, %v1607
    %v1609 = vpop.f32.mrb[0].mxu0
    %1610 = vmatprep.mubr.f32.mxu0 0.0
    %1611 = vmatmul.mubr.f32.gmra.mrb[0].mxu0 %v1466
    %v1612 = vpop.f32.mrb[0].mxu0
    %v1613 = vadd.f32 0.0, %v1612
    %v1614 = vpop.f32.mrb[0].mxu0
    %1615 = vdwg.mxu0
    %v1616 = vadd.f32 %v1371, %v1538
    %v1617 = vadd.f32 %v1372, %v1543
    %v1618 = vadd.f32 %v1373, %v1548
    %v1619 = vadd.f32 %v1374, %v1553
    %v1620 = vadd.f32 %v1375, %v1558
    %v1621 = vadd.f32 %v1376, %v1563
    %v1622 = vadd.f32 %v1377, %v1568
    %v1623 = vadd.f32 %v1378, %v1573
    %v1624 = vadd.f32 %v1379, %v1578
    %v1625 = vadd.f32 %v1380, %v1583
    %v1626 = vadd.f32 %v1381, %v1588
    %v1627 = vadd.f32 %v1382, %v1593
    %v1628 = vadd.f32 %v1383, %v1598
    %v1629 = vadd.f32 %v1384, %v1603
    %v1630 = vadd.f32 %v1385, %v1608
    %v1631 = vadd.f32 %v1386, %v1613
    %s1632 = scalar_lea.vmem [#allocation2], 48
    %v1633 = vld [vmem:[%s1632] ss:$2 sm:$0xff]
    %s1634 = scalar_lea.vmem %s1632, 48 [#allocation2]
    %v1635 = vld [vmem:[%s1634] ss:$2 sm:$0xff]
    %s1636 = scalar_lea.vmem %s1632, 96 [#allocation2]
    %v1637 = vld [vmem:[%s1636] ss:$2 sm:$0xff]
    %s1638 = scalar_lea.vmem %s1632, 144 [#allocation2]
    %v1639 = vld [vmem:[%s1638] ss:$2 sm:$0xff]
    %s1640 = scalar_lea.vmem %s1632, 192 [#allocation2]
    %v1641 = vld [vmem:[%s1640] ss:$2 sm:$0xff]
    %s1642 = scalar_lea.vmem %s1632, 240 [#allocation2]
    %v1643 = vld [vmem:[%s1642] ss:$2 sm:$0xff]
    %s1644 = scalar_lea.vmem %s1632, 288 [#allocation2]
    %v1645 = vld [vmem:[%s1644] ss:$2 sm:$0xff]
    %s1646 = scalar_lea.vmem %s1632, 336 [#allocation2]
    %v1647 = vld [vmem:[%s1646] ss:$2 sm:$0xff]
    %s1648 = scalar_lea.vmem %s1632, 408 [#allocation2]
    %v1649 = vld [vmem:[%s1648] ss:$2 sm:$0xff]
    %s1650 = scalar_lea.vmem %s1632, 456 [#allocation2]
    %v1651 = vld [vmem:[%s1650] ss:$2 sm:$0xff]
    %s1652 = scalar_lea.vmem %s1632, 504 [#allocation2]
    %v1653 = vld [vmem:[%s1652] ss:$2 sm:$0xff]
    %s1654 = scalar_lea.vmem %s1632, 552 [#allocation2]
    %v1655 = vld [vmem:[%s1654] ss:$2 sm:$0xff]
    %s1656 = scalar_lea.vmem %s1632, 600 [#allocation2]
    %v1657 = vld [vmem:[%s1656] ss:$2 sm:$0xff]
    %s1658 = scalar_lea.vmem %s1632, 648 [#allocation2]
    %v1659 = vld [vmem:[%s1658] ss:$2 sm:$0xff]
    %s1660 = scalar_lea.vmem %s1632, 696 [#allocation2]
    %v1661 = vld [vmem:[%s1660] ss:$2 sm:$0xff]
    %s1662 = scalar_lea.vmem %s1632, 744 [#allocation2]
    %v1663 = vld [vmem:[%s1662] ss:$2 sm:$0xff]
    %v1664 = vld [vmem:[%s1 + $0x12] sm:$0x7]
    %v1666 = vsel %vm24, %v1633, 0
    %v1669 = vsel %vm24, %v1635, 0
    %v1672 = vsel %vm24, %v1637, 0
    %v1675 = vsel %vm24, %v1639, 0
    %v1678 = vsel %vm24, %v1641, 0
    %v1681 = vsel %vm24, %v1643, 0
    %v1684 = vsel %vm24, %v1645, 0
    %v1687 = vsel %vm24, %v1647, 0
    %v1690 = vsel %vm24, %v1649, 0
    %v1693 = vsel %vm24, %v1651, 0
    %v1696 = vsel %vm24, %v1653, 0
    %v1699 = vsel %vm24, %v1655, 0
    %v1702 = vsel %vm24, %v1657, 0
    %v1705 = vsel %vm24, %v1659, 0
    %v1708 = vsel %vm24, %v1661, 0
    %v1711 = vsel %vm24, %v1663, 0
    %v1714 = vsel %vm308, %v1664, 0
    %1716 = vmatprep.subr.mxu0 0.0
    %1717 = vmatpush1.msra.mxu0 %v1714
    %1718 = vmatprep.subr.mxu0 0.0
    %1719 = vmatpush1.msra.mxu0 0.0
    %1720 = vmatprep.subr.mxu0 0.0
    %1721 = vmatpush1.msra.mxu0 0.0
    %1722 = vmatprep.subr.mxu0 0.0
    %1723 = vmatpush1.msra.mxu0 0.0
    %1724 = vmatprep.subr.mxu0 0.0
    %1725 = vmatpush1.msra.mxu0 0.0
    %1726 = vmatprep.subr.mxu0 0.0
    %1727 = vmatpush1.msra.mxu0 0.0
    %1728 = vmatprep.subr.mxu0 0.0
    %1729 = vmatpush1.msra.mxu0 0.0
    %1730 = vmatprep.subr.mxu0 0.0
    %1731 = vmatpush1.msra.mxu0 0.0
    %1732 = vmatprep.subr.mxu0 0.0
    %1733 = vmatpush1.msra.mxu0 0.0
    %1734 = vmatprep.subr.mxu0 0.0
    %1735 = vmatpush1.msra.mxu0 0.0
    %1736 = vmatprep.subr.mxu0 0.0
    %1737 = vmatpush1.msra.mxu0 0.0
    %1738 = vmatprep.subr.mxu0 0.0
    %1739 = vmatpush1.msra.mxu0 0.0
    %1740 = vmatprep.subr.mxu0 0.0
    %1741 = vmatpush1.msra.mxu0 0.0
    %1742 = vmatprep.subr.mxu0 0.0
    %1743 = vmatpush1.msra.mxu0 0.0
    %1744 = vmatprep.subr.mxu0 0.0
    %1745 = vmatpush1.msra.mxu0 0.0
    %1746 = vmatprep.subr.mxu0 0.0
    %1747 = vmatpush1.msra.mxu0 0.0
    %1748 = vmatprep.subr.mxu0 0.0
    %1749 = vmatpush1.msra.mxu0 0.0
    %1750 = vmatprep.subr.mxu0 0.0
    %1751 = vmatpush1.msra.mxu0 0.0
    %1752 = vmatprep.subr.mxu0 0.0
    %1753 = vmatpush1.msra.mxu0 0.0
    %1754 = vmatprep.subr.mxu0 0.0
    %1755 = vmatpush1.msra.mxu0 0.0
    %1756 = vmatprep.subr.mxu0 0.0
    %1757 = vmatpush1.msra.mxu0 0.0
    %1758 = vmatprep.subr.mxu0 0.0
    %1759 = vmatpush1.msra.mxu0 0.0
    %1760 = vmatprep.subr.mxu0 0.0
    %1761 = vmatpush1.msra.mxu0 0.0
    %1762 = vmatprep.subr.mxu0 0.0
    %1763 = vmatpush1.msra.mxu0 0.0
    %1764 = vmatprep.subr.mxu0 0.0
    %1765 = vmatpush1.msra.mxu0 0.0
    %1766 = vmatprep.subr.mxu0 0.0
    %1767 = vmatpush1.msra.mxu0 0.0
    %1768 = vmatprep.subr.mxu0 0.0
    %1769 = vmatpush1.msra.mxu0 0.0
    %1770 = vmatprep.subr.mxu0 0.0
    %1771 = vmatpush1.msra.mxu0 0.0
    %1772 = vmatprep.subr.mxu0 0.0
    %1773 = vmatpush1.msra.mxu0 0.0
    %1774 = vmatprep.subr.mxu0 0.0
    %1775 = vmatpush1.msra.mxu0 0.0
    %1776 = vmatprep.subr.mxu0 0.0
    %1777 = vmatpush1.msra.mxu0 0.0
    %1778 = vmatprep.subr.mxu0 0.0
    %1779 = vmatpush1.msra.mxu0 0.0
    %1780 = vmatprep.mubr.f32.mxu0 0.0
    %1781 = vmatmul.mubr.f32.gmra.mrb[0].mxu0 %v1666
    %v1782 = vpop.f32.mrb[0].mxu0
    %v1783 = vadd.f32 0.0, %v1782
    %v1784 = vpop.f32.mrb[0].mxu0
    %1785 = vmatprep.mubr.f32.mxu0 0.0
    %1786 = vmatmul.mubr.f32.gmra.mrb[0].mxu0 %v1669
    %v1787 = vpop.f32.mrb[0].mxu0
    %v1788 = vadd.f32 0.0, %v1787
    %v1789 = vpop.f32.mrb[0].mxu0
    %1790 = vmatprep.mubr.f32.mxu0 0.0
    %1791 = vmatmul.mubr.f32.gmra.mrb[0].mxu0 %v1672
    %v1792 = vpop.f32.mrb[0].mxu0
    %v1793 = vadd.f32 0.0, %v1792
    %v1794 = vpop.f32.mrb[0].mxu0
    %1795 = vmatprep.mubr.f32.mxu0 0.0
    %1796 = vmatmul.mubr.f32.gmra.mrb[0].mxu0 %v1675
    %v1797 = vpop.f32.mrb[0].mxu0
    %v1798 = vadd.f32 0.0, %v1797
    %v1799 = vpop.f32.mrb[0].mxu0
    %1800 = vmatprep.mubr.f32.mxu0 0.0
    %1801 = vmatmul.mubr.f32.gmra.mrb[0].mxu0 %v1678
    %v1802 = vpop.f32.mrb[0].mxu0
    %v1803 = vadd.f32 0.0, %v1802
    %v1804 = vpop.f32.mrb[0].mxu0
    %1805 = vmatprep.mubr.f32.mxu0 0.0
    %1806 = vmatmul.mubr.f32.gmra.mrb[0].mxu0 %v1681
    %v1807 = vpop.f32.mrb[0].mxu0
    %v1808 = vadd.f32 0.0, %v1807
    %v1809 = vpop.f32.mrb[0].mxu0
    %1810 = vmatprep.mubr.f32.mxu0 0.0
    %1811 = vmatmul.mubr.f32.gmra.mrb[0].mxu0 %v1684
    %v1812 = vpop.f32.mrb[0].mxu0
    %v1813 = vadd.f32 0.0, %v1812
    %v1814 = vpop.f32.mrb[0].mxu0
    %1815 = vmatprep.mubr.f32.mxu0 0.0
    %1816 = vmatmul.mubr.f32.gmra.mrb[0].mxu0 %v1687
    %v1817 = vpop.f32.mrb[0].mxu0
    %v1818 = vadd.f32 0.0, %v1817
    %v1819 = vpop.f32.mrb[0].mxu0
    %1820 = vmatprep.mubr.f32.mxu0 0.0
    %1821 = vmatmul.mubr.f32.gmra.mrb[0].mxu0 %v1690
    %v1822 = vpop.f32.mrb[0].mxu0
    %v1823 = vadd.f32 0.0, %v1822
    %v1824 = vpop.f32.mrb[0].mxu0
    %1825 = vmatprep.mubr.f32.mxu0 0.0
    %1826 = vmatmul.mubr.f32.gmra.mrb[0].mxu0 %v1693
    %v1827 = vpop.f32.mrb[0].mxu0
    %v1828 = vadd.f32 0.0, %v1827
    %v1829 = vpop.f32.mrb[0].mxu0
    %1830 = vmatprep.mubr.f32.mxu0 0.0
    %1831 = vmatmul.mubr.f32.gmra.mrb[0].mxu0 %v1696
    %v1832 = vpop.f32.mrb[0].mxu0
    %v1833 = vadd.f32 0.0, %v1832
    %v1834 = vpop.f32.mrb[0].mxu0
    %1835 = vmatprep.mubr.f32.mxu0 0.0
    %1836 = vmatmul.mubr.f32.gmra.mrb[0].mxu0 %v1699
    %v1837 = vpop.f32.mrb[0].mxu0
    %v1838 = vadd.f32 0.0, %v1837
    %v1839 = vpop.f32.mrb[0].mxu0
    %1840 = vmatprep.mubr.f32.mxu0 0.0
    %1841 = vmatmul.mubr.f32.gmra.mrb[0].mxu0 %v1702
    %v1842 = vpop.f32.mrb[0].mxu0
    %v1843 = vadd.f32 0.0, %v1842
    %v1844 = vpop.f32.mrb[0].mxu0
    %1845 = vmatprep.mubr.f32.mxu0 0.0
    %1846 = vmatmul.mubr.f32.gmra.mrb[0].mxu0 %v1705
    %v1847 = vpop.f32.mrb[0].mxu0
    %v1848 = vadd.f32 0.0, %v1847
    %v1849 = vpop.f32.mrb[0].mxu0
    %1850 = vmatprep.mubr.f32.mxu0 0.0
    %1851 = vmatmul.mubr.f32.gmra.mrb[0].mxu0 %v1708
    %v1852 = vpop.f32.mrb[0].mxu0
    %v1853 = vadd.f32 0.0, %v1852
    %v1854 = vpop.f32.mrb[0].mxu0
    %1855 = vmatprep.mubr.f32.mxu0 0.0
    %1856 = vmatmul.mubr.f32.gmra.mrb[0].mxu0 %v1711
    %v1857 = vpop.f32.mrb[0].mxu0
    %v1858 = vadd.f32 0.0, %v1857
    %v1859 = vpop.f32.mrb[0].mxu0
    %1860 = vdwg.mxu0
    %v1861 = vadd.f32 %v1616, %v1783
    %v1862 = vadd.f32 %v1617, %v1788
    %v1863 = vadd.f32 %v1618, %v1793
    %v1864 = vadd.f32 %v1619, %v1798
    %v1865 = vadd.f32 %v1620, %v1803
    %v1866 = vadd.f32 %v1621, %v1808
    %v1867 = vadd.f32 %v1622, %v1813
    %v1868 = vadd.f32 %v1623, %v1818
    %v1869 = vadd.f32 %v1624, %v1823
    %v1870 = vadd.f32 %v1625, %v1828
    %v1871 = vadd.f32 %v1626, %v1833
    %v1872 = vadd.f32 %v1627, %v1838
    %v1873 = vadd.f32 %v1628, %v1843
    %v1874 = vadd.f32 %v1629, %v1848
    %v1875 = vadd.f32 %v1630, %v1853
    %v1876 = vadd.f32 %v1631, %v1858
    %s1877 = scalar_lea.vmem %s1632, 1 [#allocation2]
    %v1878 = vld [vmem:[%s1877] ss:$2 sm:$0xff]
    %s1879 = scalar_lea.vmem %s1632, 49 [#allocation2]
    %v1880 = vld [vmem:[%s1879] ss:$2 sm:$0xff]
    %s1881 = scalar_lea.vmem %s1632, 97 [#allocation2]
    %v1882 = vld [vmem:[%s1881] ss:$2 sm:$0xff]
    %s1883 = scalar_lea.vmem %s1632, 145 [#allocation2]
    %v1884 = vld [vmem:[%s1883] ss:$2 sm:$0xff]
    %s1885 = scalar_lea.vmem %s1632, 193 [#allocation2]
    %v1886 = vld [vmem:[%s1885] ss:$2 sm:$0xff]
    %s1887 = scalar_lea.vmem %s1632, 241 [#allocation2]
    %v1888 = vld [vmem:[%s1887] ss:$2 sm:$0xff]
    %s1889 = scalar_lea.vmem %s1632, 289 [#allocation2]
    %v1890 = vld [vmem:[%s1889] ss:$2 sm:$0xff]
    %s1891 = scalar_lea.vmem %s1632, 337 [#allocation2]
    %v1892 = vld [vmem:[%s1891] ss:$2 sm:$0xff]
    %s1893 = scalar_lea.vmem %s1632, 409 [#allocation2]
    %v1894 = vld [vmem:[%s1893] ss:$2 sm:$0xff]
    %s1895 = scalar_lea.vmem %s1632, 457 [#allocation2]
    %v1896 = vld [vmem:[%s1895] ss:$2 sm:$0xff]
    %s1897 = scalar_lea.vmem %s1632, 505 [#allocation2]
    %v1898 = vld [vmem:[%s1897] ss:$2 sm:$0xff]
    %s1899 = scalar_lea.vmem %s1632, 553 [#allocation2]
    %v1900 = vld [vmem:[%s1899] ss:$2 sm:$0xff]
    %s1901 = scalar_lea.vmem %s1632, 601 [#allocation2]
    %v1902 = vld [vmem:[%s1901] ss:$2 sm:$0xff]
    %s1903 = scalar_lea.vmem %s1632, 649 [#allocation2]
    %v1904 = vld [vmem:[%s1903] ss:$2 sm:$0xff]
    %s1905 = scalar_lea.vmem %s1632, 697 [#allocation2]
    %v1906 = vld [vmem:[%s1905] ss:$2 sm:$0xff]
    %s1907 = scalar_lea.vmem %s1632, 745 [#allocation2]
    %v1908 = vld [vmem:[%s1907] ss:$2 sm:$0xff]
    %v1909 = vld [vmem:[%s1 + $0x15] sm:$0x7]
    %v1911 = vsel %vm24, %v1878, 0
    %v1914 = vsel %vm24, %v1880, 0
    %v1917 = vsel %vm24, %v1882, 0
    %v1920 = vsel %vm24, %v1884, 0
    %v1923 = vsel %vm24, %v1886, 0
    %v1926 = vsel %vm24, %v1888, 0
    %v1929 = vsel %vm24, %v1890, 0
    %v1932 = vsel %vm24, %v1892, 0
    %v1935 = vsel %vm24, %v1894, 0
    %v1938 = vsel %vm24, %v1896, 0
    %v1941 = vsel %vm24, %v1898, 0
    %v1944 = vsel %vm24, %v1900, 0
    %v1947 = vsel %vm24, %v1902, 0
    %v1950 = vsel %vm24, %v1904, 0
    %v1953 = vsel %vm24, %v1906, 0
    %v1956 = vsel %vm24, %v1908, 0
    %v1959 = vsel %vm308, %v1909, 0
    %1961 = vmatprep.subr.mxu0 0.0
    %1962 = vmatpush1.msra.mxu0 %v1959
    %1963 = vmatprep.subr.mxu0 0.0
    %1964 = vmatpush1.msra.mxu0 0.0
    %1965 = vmatprep.subr.mxu0 0.0
    %1966 = vmatpush1.msra.mxu0 0.0
    %1967 = vmatprep.subr.mxu0 0.0
    %1968 = vmatpush1.msra.mxu0 0.0
    %1969 = vmatprep.subr.mxu0 0.0
    %1970 = vmatpush1.msra.mxu0 0.0
    %1971 = vmatprep.subr.mxu0 0.0
    %1972 = vmatpush1.msra.mxu0 0.0
    %1973 = vmatprep.subr.mxu0 0.0
    %1974 = vmatpush1.msra.mxu0 0.0
    %1975 = vmatprep.subr.mxu0 0.0
    %1976 = vmatpush1.msra.mxu0 0.0
    %1977 = vmatprep.subr.mxu0 0.0
    %1978 = vmatpush1.msra.mxu0 0.0
    %1979 = vmatprep.subr.mxu0 0.0
    %1980 = vmatpush1.msra.mxu0 0.0
    %1981 = vmatprep.subr.mxu0 0.0
    %1982 = vmatpush1.msra.mxu0 0.0
    %1983 = vmatprep.subr.mxu0 0.0
    %1984 = vmatpush1.msra.mxu0 0.0
    %1985 = vmatprep.subr.mxu0 0.0
    %1986 = vmatpush1.msra.mxu0 0.0
    %1987 = vmatprep.subr.mxu0 0.0
    %1988 = vmatpush1.msra.mxu0 0.0
    %1989 = vmatprep.subr.mxu0 0.0
    %1990 = vmatpush1.msra.mxu0 0.0
    %1991 = vmatprep.subr.mxu0 0.0
    %1992 = vmatpush1.msra.mxu0 0.0
    %1993 = vmatprep.subr.mxu0 0.0
    %1994 = vmatpush1.msra.mxu0 0.0
    %1995 = vmatprep.subr.mxu0 0.0
    %1996 = vmatpush1.msra.mxu0 0.0
    %1997 = vmatprep.subr.mxu0 0.0
    %1998 = vmatpush1.msra.mxu0 0.0
    %1999 = vmatprep.subr.mxu0 0.0
    %2000 = vmatpush1.msra.mxu0 0.0
    %2001 = vmatprep.subr.mxu0 0.0
    %2002 = vmatpush1.msra.mxu0 0.0
    %2003 = vmatprep.subr.mxu0 0.0
    %2004 = vmatpush1.msra.mxu0 0.0
    %2005 = vmatprep.subr.mxu0 0.0
    %2006 = vmatpush1.msra.mxu0 0.0
    %2007 = vmatprep.subr.mxu0 0.0
    %2008 = vmatpush1.msra.mxu0 0.0
    %2009 = vmatprep.subr.mxu0 0.0
    %2010 = vmatpush1.msra.mxu0 0.0
    %2011 = vmatprep.subr.mxu0 0.0
    %2012 = vmatpush1.msra.mxu0 0.0
    %2013 = vmatprep.subr.mxu0 0.0
    %2014 = vmatpush1.msra.mxu0 0.0
    %2015 = vmatprep.subr.mxu0 0.0
    %2016 = vmatpush1.msra.mxu0 0.0
    %2017 = vmatprep.subr.mxu0 0.0
    %2018 = vmatpush1.msra.mxu0 0.0
    %2019 = vmatprep.subr.mxu0 0.0
    %2020 = vmatpush1.msra.mxu0 0.0
    %2021 = vmatprep.subr.mxu0 0.0
    %2022 = vmatpush1.msra.mxu0 0.0
    %2023 = vmatprep.subr.mxu0 0.0
    %2024 = vmatpush1.msra.mxu0 0.0
    %2025 = vmatprep.mubr.f32.mxu0 0.0
    %2026 = vmatmul.mubr.f32.gmra.mrb[0].mxu0 %v1911
    %v2027 = vpop.f32.mrb[0].mxu0
    %v2028 = vadd.f32 0.0, %v2027
    %v2029 = vpop.f32.mrb[0].mxu0
    %2030 = vmatprep.mubr.f32.mxu0 0.0
    %2031 = vmatmul.mubr.f32.gmra.mrb[0].mxu0 %v1914
    %v2032 = vpop.f32.mrb[0].mxu0
    %v2033 = vadd.f32 0.0, %v2032
    %v2034 = vpop.f32.mrb[0].mxu0
    %2035 = vmatprep.mubr.f32.mxu0 0.0
    %2036 = vmatmul.mubr.f32.gmra.mrb[0].mxu0 %v1917
    %v2037 = vpop.f32.mrb[0].mxu0
    %v2038 = vadd.f32 0.0, %v2037
    %v2039 = vpop.f32.mrb[0].mxu0
    %2040 = vmatprep.mubr.f32.mxu0 0.0
    %2041 = vmatmul.mubr.f32.gmra.mrb[0].mxu0 %v1920
    %v2042 = vpop.f32.mrb[0].mxu0
    %v2043 = vadd.f32 0.0, %v2042
    %v2044 = vpop.f32.mrb[0].mxu0
    %2045 = vmatprep.mubr.f32.mxu0 0.0
    %2046 = vmatmul.mubr.f32.gmra.mrb[0].mxu0 %v1923
    %v2047 = vpop.f32.mrb[0].mxu0
    %v2048 = vadd.f32 0.0, %v2047
    %v2049 = vpop.f32.mrb[0].mxu0
    %2050 = vmatprep.mubr.f32.mxu0 0.0
    %2051 = vmatmul.mubr.f32.gmra.mrb[0].mxu0 %v1926
    %v2052 = vpop.f32.mrb[0].mxu0
    %v2053 = vadd.f32 0.0, %v2052
    %v2054 = vpop.f32.mrb[0].mxu0
    %2055 = vmatprep.mubr.f32.mxu0 0.0
    %2056 = vmatmul.mubr.f32.gmra.mrb[0].mxu0 %v1929
    %v2057 = vpop.f32.mrb[0].mxu0
    %v2058 = vadd.f32 0.0, %v2057
    %v2059 = vpop.f32.mrb[0].mxu0
    %2060 = vmatprep.mubr.f32.mxu0 0.0
    %2061 = vmatmul.mubr.f32.gmra.mrb[0].mxu0 %v1932
    %v2062 = vpop.f32.mrb[0].mxu0
    %v2063 = vadd.f32 0.0, %v2062
    %v2064 = vpop.f32.mrb[0].mxu0
    %2065 = vmatprep.mubr.f32.mxu0 0.0
    %2066 = vmatmul.mubr.f32.gmra.mrb[0].mxu0 %v1935
    %v2067 = vpop.f32.mrb[0].mxu0
    %v2068 = vadd.f32 0.0, %v2067
    %v2069 = vpop.f32.mrb[0].mxu0
    %2070 = vmatprep.mubr.f32.mxu0 0.0
    %2071 = vmatmul.mubr.f32.gmra.mrb[0].mxu0 %v1938
    %v2072 = vpop.f32.mrb[0].mxu0
    %v2073 = vadd.f32 0.0, %v2072
    %v2074 = vpop.f32.mrb[0].mxu0
    %2075 = vmatprep.mubr.f32.mxu0 0.0
    %2076 = vmatmul.mubr.f32.gmra.mrb[0].mxu0 %v1941
    %v2077 = vpop.f32.mrb[0].mxu0
    %v2078 = vadd.f32 0.0, %v2077
    %v2079 = vpop.f32.mrb[0].mxu0
    %2080 = vmatprep.mubr.f32.mxu0 0.0
    %2081 = vmatmul.mubr.f32.gmra.mrb[0].mxu0 %v1944
    %v2082 = vpop.f32.mrb[0].mxu0
    %v2083 = vadd.f32 0.0, %v2082
    %v2084 = vpop.f32.mrb[0].mxu0
    %2085 = vmatprep.mubr.f32.mxu0 0.0
    %2086 = vmatmul.mubr.f32.gmra.mrb[0].mxu0 %v1947
    %v2087 = vpop.f32.mrb[0].mxu0
    %v2088 = vadd.f32 0.0, %v2087
    %v2089 = vpop.f32.mrb[0].mxu0
    %2090 = vmatprep.mubr.f32.mxu0 0.0
    %2091 = vmatmul.mubr.f32.gmra.mrb[0].mxu0 %v1950
    %v2092 = vpop.f32.mrb[0].mxu0
    %v2093 = vadd.f32 0.0, %v2092
    %v2094 = vpop.f32.mrb[0].mxu0
    %2095 = vmatprep.mubr.f32.mxu0 0.0
    %2096 = vmatmul.mubr.f32.gmra.mrb[0].mxu0 %v1953
    %v2097 = vpop.f32.mrb[0].mxu0
    %v2098 = vadd.f32 0.0, %v2097
    %v2099 = vpop.f32.mrb[0].mxu0
    %2100 = vmatprep.mubr.f32.mxu0 0.0
    %2101 = vmatmul.mubr.f32.gmra.mrb[0].mxu0 %v1956
    %v2102 = vpop.f32.mrb[0].mxu0
    %v2103 = vadd.f32 0.0, %v2102
    %v2104 = vpop.f32.mrb[0].mxu0
    %2105 = vdwg.mxu0
    %v2106 = vadd.f32 %v1861, %v2028
    %v2107 = vadd.f32 %v1862, %v2033
    %v2108 = vadd.f32 %v1863, %v2038
    %v2109 = vadd.f32 %v1864, %v2043
    %v2110 = vadd.f32 %v1865, %v2048
    %v2111 = vadd.f32 %v1866, %v2053
    %v2112 = vadd.f32 %v1867, %v2058
    %v2113 = vadd.f32 %v1868, %v2063
    %v2114 = vadd.f32 %v1869, %v2068
    %v2115 = vadd.f32 %v1870, %v2073
    %v2116 = vadd.f32 %v1871, %v2078
    %v2117 = vadd.f32 %v1872, %v2083
    %v2118 = vadd.f32 %v1873, %v2088
    %v2119 = vadd.f32 %v1874, %v2093
    %v2120 = vadd.f32 %v1875, %v2098
    %v2121 = vadd.f32 %v1876, %v2103
    %s2122 = scalar_lea.vmem %s1632, 2 [#allocation2]
    %v2123 = vld [vmem:[%s2122] ss:$2 sm:$0xff]
    %s2124 = scalar_lea.vmem %s1632, 50 [#allocation2]
    %v2125 = vld [vmem:[%s2124] ss:$2 sm:$0xff]
    %s2126 = scalar_lea.vmem %s1632, 98 [#allocation2]
    %v2127 = vld [vmem:[%s2126] ss:$2 sm:$0xff]
    %s2128 = scalar_lea.vmem %s1632, 146 [#allocation2]
    %v2129 = vld [vmem:[%s2128] ss:$2 sm:$0xff]
    %s2130 = scalar_lea.vmem %s1632, 194 [#allocation2]
    %v2131 = vld [vmem:[%s2130] ss:$2 sm:$0xff]
    %s2132 = scalar_lea.vmem %s1632, 242 [#allocation2]
    %v2133 = vld [vmem:[%s2132] ss:$2 sm:$0xff]
    %s2134 = scalar_lea.vmem %s1632, 290 [#allocation2]
    %v2135 = vld [vmem:[%s2134] ss:$2 sm:$0xff]
    %s2136 = scalar_lea.vmem %s1632, 338 [#allocation2]
    %v2137 = vld [vmem:[%s2136] ss:$2 sm:$0xff]
    %s2138 = scalar_lea.vmem %s1632, 410 [#allocation2]
    %v2139 = vld [vmem:[%s2138] ss:$2 sm:$0xff]
    %s2140 = scalar_lea.vmem %s1632, 458 [#allocation2]
    %v2141 = vld [vmem:[%s2140] ss:$2 sm:$0xff]
    %s2142 = scalar_lea.vmem %s1632, 506 [#allocation2]
    %v2143 = vld [vmem:[%s2142] ss:$2 sm:$0xff]
    %s2144 = scalar_lea.vmem %s1632, 554 [#allocation2]
    %v2145 = vld [vmem:[%s2144] ss:$2 sm:$0xff]
    %s2146 = scalar_lea.vmem %s1632, 602 [#allocation2]
    %v2147 = vld [vmem:[%s2146] ss:$2 sm:$0xff]
    %s2148 = scalar_lea.vmem %s1632, 650 [#allocation2]
    %v2149 = vld [vmem:[%s2148] ss:$2 sm:$0xff]
    %s2150 = scalar_lea.vmem %s1632, 698 [#allocation2]
    %v2151 = vld [vmem:[%s2150] ss:$2 sm:$0xff]
    %s2152 = scalar_lea.vmem %s1632, 746 [#allocation2]
    %v2153 = vld [vmem:[%s2152] ss:$2 sm:$0xff]
    %v2154 = vld [vmem:[%s1 + $0x18] sm:$0x7]
    %v2156 = vsel %vm24, %v2123, 0
    %v2159 = vsel %vm24, %v2125, 0
    %v2162 = vsel %vm24, %v2127, 0
    %v2165 = vsel %vm24, %v2129, 0
    %v2168 = vsel %vm24, %v2131, 0
    %v2171 = vsel %vm24, %v2133, 0
    %v2174 = vsel %vm24, %v2135, 0
    %v2177 = vsel %vm24, %v2137, 0
    %v2180 = vsel %vm24, %v2139, 0
    %v2183 = vsel %vm24, %v2141, 0
    %v2186 = vsel %vm24, %v2143, 0
    %v2189 = vsel %vm24, %v2145, 0
    %v2192 = vsel %vm24, %v2147, 0
    %v2195 = vsel %vm24, %v2149, 0
    %v2198 = vsel %vm24, %v2151, 0
    %v2201 = vsel %vm24, %v2153, 0
    %v2204 = vsel %vm308, %v2154, 0
    %2206 = vmatprep.subr.mxu0 0.0
    %2207 = vmatpush1.msra.mxu0 %v2204
    %2208 = vmatprep.subr.mxu0 0.0
    %2209 = vmatpush1.msra.mxu0 0.0
    %2210 = vmatprep.subr.mxu0 0.0
    %2211 = vmatpush1.msra.mxu0 0.0
    %2212 = vmatprep.subr.mxu0 0.0
    %2213 = vmatpush1.msra.mxu0 0.0
    %2214 = vmatprep.subr.mxu0 0.0
    %2215 = vmatpush1.msra.mxu0 0.0
    %2216 = vmatprep.subr.mxu0 0.0
    %2217 = vmatpush1.msra.mxu0 0.0
    %2218 = vmatprep.subr.mxu0 0.0
    %2219 = vmatpush1.msra.mxu0 0.0
    %2220 = vmatprep.subr.mxu0 0.0
    %2221 = vmatpush1.msra.mxu0 0.0
    %2222 = vmatprep.subr.mxu0 0.0
    %2223 = vmatpush1.msra.mxu0 0.0
    %2224 = vmatprep.subr.mxu0 0.0
    %2225 = vmatpush1.msra.mxu0 0.0
    %2226 = vmatprep.subr.mxu0 0.0
    %2227 = vmatpush1.msra.mxu0 0.0
    %2228 = vmatprep.subr.mxu0 0.0
    %2229 = vmatpush1.msra.mxu0 0.0
    %2230 = vmatprep.subr.mxu0 0.0
    %2231 = vmatpush1.msra.mxu0 0.0
    %2232 = vmatprep.subr.mxu0 0.0
    %2233 = vmatpush1.msra.mxu0 0.0
    %2234 = vmatprep.subr.mxu0 0.0
    %2235 = vmatpush1.msra.mxu0 0.0
    %2236 = vmatprep.subr.mxu0 0.0
    %2237 = vmatpush1.msra.mxu0 0.0
    %2238 = vmatprep.subr.mxu0 0.0
    %2239 = vmatpush1.msra.mxu0 0.0
    %2240 = vmatprep.subr.mxu0 0.0
    %2241 = vmatpush1.msra.mxu0 0.0
    %2242 = vmatprep.subr.mxu0 0.0
    %2243 = vmatpush1.msra.mxu0 0.0
    %2244 = vmatprep.subr.mxu0 0.0
    %2245 = vmatpush1.msra.mxu0 0.0
    %2246 = vmatprep.subr.mxu0 0.0
    %2247 = vmatpush1.msra.mxu0 0.0
    %2248 = vmatprep.subr.mxu0 0.0
    %2249 = vmatpush1.msra.mxu0 0.0
    %2250 = vmatprep.subr.mxu0 0.0
    %2251 = vmatpush1.msra.mxu0 0.0
    %2252 = vmatprep.subr.mxu0 0.0
    %2253 = vmatpush1.msra.mxu0 0.0
    %2254 = vmatprep.subr.mxu0 0.0
    %2255 = vmatpush1.msra.mxu0 0.0
    %2256 = vmatprep.subr.mxu0 0.0
    %2257 = vmatpush1.msra.mxu0 0.0
    %2258 = vmatprep.subr.mxu0 0.0
    %2259 = vmatpush1.msra.mxu0 0.0
    %2260 = vmatprep.subr.mxu0 0.0
    %2261 = vmatpush1.msra.mxu0 0.0
    %2262 = vmatprep.subr.mxu0 0.0
    %2263 = vmatpush1.msra.mxu0 0.0
    %2264 = vmatprep.subr.mxu0 0.0
    %2265 = vmatpush1.msra.mxu0 0.0
    %2266 = vmatprep.subr.mxu0 0.0
    %2267 = vmatpush1.msra.mxu0 0.0
    %2268 = vmatprep.subr.mxu0 0.0
    %2269 = vmatpush1.msra.mxu0 0.0
    %2270 = vmatprep.mubr.f32.mxu0 0.0
    %2271 = vmatmul.mubr.f32.gmra.mrb[0].mxu0 %v2156
    %v2272 = vpop.f32.mrb[0].mxu0
    %v2273 = vadd.f32 0.0, %v2272
    %v2274 = vpop.f32.mrb[0].mxu0
    %2275 = vmatprep.mubr.f32.mxu0 0.0
    %2276 = vmatmul.mubr.f32.gmra.mrb[0].mxu0 %v2159
    %v2277 = vpop.f32.mrb[0].mxu0
    %v2278 = vadd.f32 0.0, %v2277
    %v2279 = vpop.f32.mrb[0].mxu0
    %2280 = vmatprep.mubr.f32.mxu0 0.0
    %2281 = vmatmul.mubr.f32.gmra.mrb[0].mxu0 %v2162
    %v2282 = vpop.f32.mrb[0].mxu0
    %v2283 = vadd.f32 0.0, %v2282
    %v2284 = vpop.f32.mrb[0].mxu0
    %2285 = vmatprep.mubr.f32.mxu0 0.0
    %2286 = vmatmul.mubr.f32.gmra.mrb[0].mxu0 %v2165
    %v2287 = vpop.f32.mrb[0].mxu0
    %v2288 = vadd.f32 0.0, %v2287
    %v2289 = vpop.f32.mrb[0].mxu0
    %2290 = vmatprep.mubr.f32.mxu0 0.0
    %2291 = vmatmul.mubr.f32.gmra.mrb[0].mxu0 %v2168
    %v2292 = vpop.f32.mrb[0].mxu0
    %v2293 = vadd.f32 0.0, %v2292
    %v2294 = vpop.f32.mrb[0].mxu0
    %2295 = vmatprep.mubr.f32.mxu0 0.0
    %2296 = vmatmul.mubr.f32.gmra.mrb[0].mxu0 %v2171
    %v2297 = vpop.f32.mrb[0].mxu0
    %v2298 = vadd.f32 0.0, %v2297
    %v2299 = vpop.f32.mrb[0].mxu0
    %2300 = vmatprep.mubr.f32.mxu0 0.0
    %2301 = vmatmul.mubr.f32.gmra.mrb[0].mxu0 %v2174
    %v2302 = vpop.f32.mrb[0].mxu0
    %v2303 = vadd.f32 0.0, %v2302
    %v2304 = vpop.f32.mrb[0].mxu0
    %2305 = vmatprep.mubr.f32.mxu0 0.0
    %2306 = vmatmul.mubr.f32.gmra.mrb[0].mxu0 %v2177
    %v2307 = vpop.f32.mrb[0].mxu0
    %v2308 = vadd.f32 0.0, %v2307
    %v2309 = vpop.f32.mrb[0].mxu0
    %2310 = vmatprep.mubr.f32.mxu0 0.0
    %2311 = vmatmul.mubr.f32.gmra.mrb[0].mxu0 %v2180
    %v2312 = vpop.f32.mrb[0].mxu0
    %v2313 = vadd.f32 0.0, %v2312
    %v2314 = vpop.f32.mrb[0].mxu0
    %2315 = vmatprep.mubr.f32.mxu0 0.0
    %2316 = vmatmul.mubr.f32.gmra.mrb[0].mxu0 %v2183
    %v2317 = vpop.f32.mrb[0].mxu0
    %v2318 = vadd.f32 0.0, %v2317
    %v2319 = vpop.f32.mrb[0].mxu0
    %2320 = vmatprep.mubr.f32.mxu0 0.0
    %2321 = vmatmul.mubr.f32.gmra.mrb[0].mxu0 %v2186
    %v2322 = vpop.f32.mrb[0].mxu0
    %v2323 = vadd.f32 0.0, %v2322
    %v2324 = vpop.f32.mrb[0].mxu0
    %2325 = vmatprep.mubr.f32.mxu0 0.0
    %2326 = vmatmul.mubr.f32.gmra.mrb[0].mxu0 %v2189
    %v2327 = vpop.f32.mrb[0].mxu0
    %v2328 = vadd.f32 0.0, %v2327
    %v2329 = vpop.f32.mrb[0].mxu0
    %2330 = vmatprep.mubr.f32.mxu0 0.0
    %2331 = vmatmul.mubr.f32.gmra.mrb[0].mxu0 %v2192
    %v2332 = vpop.f32.mrb[0].mxu0
    %v2333 = vadd.f32 0.0, %v2332
    %v2334 = vpop.f32.mrb[0].mxu0
    %2335 = vmatprep.mubr.f32.mxu0 0.0
    %2336 = vmatmul.mubr.f32.gmra.mrb[0].mxu0 %v2195
    %v2337 = vpop.f32.mrb[0].mxu0
    %v2338 = vadd.f32 0.0, %v2337
    %v2339 = vpop.f32.mrb[0].mxu0
    %2340 = vmatprep.mubr.f32.mxu0 0.0
    %2341 = vmatmul.mubr.f32.gmra.mrb[0].mxu0 %v2198
    %v2342 = vpop.f32.mrb[0].mxu0
    %v2343 = vadd.f32 0.0, %v2342
    %v2344 = vpop.f32.mrb[0].mxu0
    %2345 = vmatprep.mubr.f32.mxu0 0.0
    %2346 = vmatmul.mubr.f32.gmra.mrb[0].mxu0 %v2201
    %v2347 = vpop.f32.mrb[0].mxu0
    %v2348 = vadd.f32 0.0, %v2347
    %v2349 = vpop.f32.mrb[0].mxu0
    %2350 = vdwg.mxu0
    %v2351 = vadd.f32 %v2106, %v2273
    %v2352 = vadd.f32 %v2107, %v2278
    %v2353 = vadd.f32 %v2108, %v2283
    %v2354 = vadd.f32 %v2109, %v2288
    %v2355 = vadd.f32 %v2110, %v2293
    %v2356 = vadd.f32 %v2111, %v2298
    %v2357 = vadd.f32 %v2112, %v2303
    %v2358 = vadd.f32 %v2113, %v2308
    %v2359 = vadd.f32 %v2114, %v2313
    %v2360 = vadd.f32 %v2115, %v2318
    %v2361 = vadd.f32 %v2116, %v2323
    %v2362 = vadd.f32 %v2117, %v2328
    %v2363 = vadd.f32 %v2118, %v2333
    %v2364 = vadd.f32 %v2119, %v2338
    %v2365 = vadd.f32 %v2120, %v2343
    %v2366 = vadd.f32 %v2121, %v2348
    %v2367 = vld [vmem:[%s2] sm:$0x1]
    %v2369 = vlaneseq
    %v2370 = vshrl.u32 %v2369, 7
    %v2371 = vsub.s32 0, %v2370
    %v2372 = vrot.slane %v2367, %v2371
    %v2374 = vmul.f32 %v2351, %v2372
    %v2375 = vmul.f32 %v2352, %v2372
    %v2376 = vmul.f32 %v2353, %v2372
    %v2377 = vmul.f32 %v2354, %v2372
    %v2378 = vmul.f32 %v2355, %v2372
    %v2379 = vmul.f32 %v2356, %v2372
    %v2380 = vmul.f32 %v2357, %v2372
    %v2381 = vmul.f32 %v2358, %v2372
    %v2382 = vmul.f32 %v2359, %v2372
    %v2383 = vmul.f32 %v2360, %v2372
    %v2384 = vmul.f32 %v2361, %v2372
    %v2385 = vmul.f32 %v2362, %v2372
    %v2386 = vmul.f32 %v2363, %v2372
    %v2387 = vmul.f32 %v2364, %v2372
    %v2388 = vmul.f32 %v2365, %v2372
    %v2389 = vmul.f32 %v2366, %v2372
    %v2390 = vld [vmem:[%s3] sm:$0x1]
    %v2392 = vlaneseq
    %v2393 = vshrl.u32 %v2392, 7
    %v2394 = vsub.s32 0, %v2393
    %v2395 = vrot.slane %v2390, %v2394
    %v2397 = vadd.f32 %v2374, %v2395
    %v2398 = vadd.f32 %v2375, %v2395
    %v2399 = vadd.f32 %v2376, %v2395
    %v2400 = vadd.f32 %v2377, %v2395
    %v2401 = vadd.f32 %v2378, %v2395
    %v2402 = vadd.f32 %v2379, %v2395
    %v2403 = vadd.f32 %v2380, %v2395
    %v2404 = vadd.f32 %v2381, %v2395
    %v2405 = vadd.f32 %v2382, %v2395
    %v2406 = vadd.f32 %v2383, %v2395
    %v2407 = vadd.f32 %v2384, %v2395
    %v2408 = vadd.f32 %v2385, %v2395
    %v2409 = vadd.f32 %v2386, %v2395
    %v2410 = vadd.f32 %v2387, %v2395
    %v2411 = vadd.f32 %v2388, %v2395
    %v2412 = vadd.f32 %v2389, %v2395
    %v2413 = vmax.f32 %v2397, 0.0
    %v2414 = vmax.f32 %v2398, 0.0
    %v2415 = vmax.f32 %v2399, 0.0
    %v2416 = vmax.f32 %v2400, 0.0
    %v2417 = vmax.f32 %v2401, 0.0
    %v2418 = vmax.f32 %v2402, 0.0
    %v2419 = vmax.f32 %v2403, 0.0
    %v2420 = vmax.f32 %v2404, 0.0
    %v2421 = vmax.f32 %v2405, 0.0
    %v2422 = vmax.f32 %v2406, 0.0
    %v2423 = vmax.f32 %v2407, 0.0
    %v2424 = vmax.f32 %v2408, 0.0
    %v2425 = vmax.f32 %v2409, 0.0
    %v2426 = vmax.f32 %v2410, 0.0
    %v2427 = vmax.f32 %v2411, 0.0
    %v2428 = vmax.f32 %v2412, 0.0
    %vm2429 = vcmask 130048
    %2430 = vst.msk [vmem:[#allocation3] sm:$0xff] %vm2429, 0.0
    %vm2431 = vcmask 122880
    %2432 = vst.msk [vmem:[#allocation3 + $0x8] sm:$0x1] %vm2431, 0.0
    %2433 = vst.msk [vmem:[#allocation3 + $0x90] sm:$0xff] %vm2429, 0.0
    %2434 = vst.msk [vmem:[#allocation3 + $0x98] sm:$0x1] %vm2431, 0.0
    %2435 = vst.msk [vmem:[#allocation3] sm:$0x1] %vm2431, 0.0
    %2436 = vst.msk [vmem:[#allocation3 + $0x10] sm:$0x1] %vm2431, 0.0
    %2437 = vst.msk [vmem:[#allocation3 + $0x20] sm:$0x1] %vm2431, 0.0
    %2438 = vst.msk [vmem:[#allocation3 + $0x30] sm:$0x1] %vm2431, 0.0
    %2439 = vst.msk [vmem:[#allocation3 + $0x40] sm:$0x1] %vm2431, 0.0
    %2440 = vst.msk [vmem:[#allocation3 + $0x50] sm:$0x1] %vm2431, 0.0
    %2441 = vst.msk [vmem:[#allocation3 + $0x60] sm:$0x1] %vm2431, 0.0
    %2442 = vst.msk [vmem:[#allocation3 + $0x70] sm:$0x1] %vm2431, 0.0
    %2443 = vst.msk [vmem:[#allocation3 + $0x80] sm:$0x1] %vm2431, 0.0
    %2444 = vst.msk [vmem:[#allocation3 + $0x90] sm:$0x1] %vm2431, 0.0
    %2445 = vst.msk [vmem:[#allocation3 + $0xa0] sm:$0x1] %vm2431, 0.0
    %2446 = vst.msk [vmem:[#allocation3 + $0xb0] sm:$0x1] %vm2431, 0.0
    %2447 = vst.msk [vmem:[#allocation3 + $0xc0] sm:$0x1] %vm2431, 0.0
    %2448 = vst.msk [vmem:[#allocation3 + $0xd0] sm:$0x1] %vm2431, 0.0
    %2449 = vst.msk [vmem:[#allocation3 + $0xe0] sm:$0x1] %vm2431, 0.0
    %2450 = vst.msk [vmem:[#allocation3 + $0xf0] sm:$0x1] %vm2431, 0.0
    %2451 = vst.msk [vmem:[#allocation3 + $0x100] sm:$0x1] %vm2431, 0.0
    %2452 = vst.msk [vmem:[#allocation3 + $0x110] sm:$0x1] %vm2431, 0.0
    %s2453 = scalar_lea.vmem [#allocation3], 16
    %2454 = vst.msk [vmem:[%s2453 + $0x1] sm:$0xff] %vm2429, %v2413
    %2455 = vst.msk [vmem:[%s2453 + $0x11] sm:$0xff] %vm2429, %v2414
    %2456 = vst.msk [vmem:[%s2453 + $0x21] sm:$0xff] %vm2429, %v2415
    %2457 = vst.msk [vmem:[%s2453 + $0x31] sm:$0xff] %vm2429, %v2416
    %2458 = vst.msk [vmem:[%s2453 + $0x41] sm:$0xff] %vm2429, %v2417
    %2459 = vst.msk [vmem:[%s2453 + $0x51] sm:$0xff] %vm2429, %v2418
    %2460 = vst.msk [vmem:[%s2453 + $0x61] sm:$0xff] %vm2429, %v2419
    %2461 = vst.msk [vmem:[%s2453 + $0x71] sm:$0xff] %vm2429, %v2420
    %2462 = vst.msk [vmem:[%s2453 + $0x91] sm:$0xff] %vm2429, %v2421
    %2463 = vst.msk [vmem:[%s2453 + $0xa1] sm:$0xff] %vm2429, %v2422
    %2464 = vst.msk [vmem:[%s2453 + $0xb1] sm:$0xff] %vm2429, %v2423
    %2465 = vst.msk [vmem:[%s2453 + $0xc1] sm:$0xff] %vm2429, %v2424
    %2466 = vst.msk [vmem:[%s2453 + $0xd1] sm:$0xff] %vm2429, %v2425
    %2467 = vst.msk [vmem:[%s2453 + $0xe1] sm:$0xff] %vm2429, %v2426
    %2468 = vst.msk [vmem:[%s2453 + $0xf1] sm:$0xff] %vm2429, %v2427
    %2469 = vst.msk [vmem:[%s2453 + $0x101] sm:$0xff] %vm2429, %v2428
    %v2470 = vld [vmem:[%s2453 + $0x1] sm:$0xff]
    %v2471 = vld [vmem:[%s2453 + $0x11] sm:$0xff]
    %v2472 = vld [vmem:[%s2453 + $0x21] sm:$0xff]
    %v2473 = vld [vmem:[%s2453 + $0x31] sm:$0xff]
    %v2474 = vld [vmem:[%s2453 + $0x41] sm:$0xff]
    %v2475 = vld [vmem:[%s2453 + $0x51] sm:$0xff]
    %v2476 = vld [vmem:[%s2453 + $0x61] sm:$0xff]
    %v2477 = vld [vmem:[%s2453 + $0x71] sm:$0xff]
    %v2478 = vld [vmem:[%s2453 + $0x91] sm:$0xff]
    %v2479 = vld [vmem:[%s2453 + $0xa1] sm:$0xff]
    %v2480 = vld [vmem:[%s2453 + $0xb1] sm:$0xff]
    %v2481 = vld [vmem:[%s2453 + $0xc1] sm:$0xff]
    %v2482 = vld [vmem:[%s2453 + $0xd1] sm:$0xff]
    %v2483 = vld [vmem:[%s2453 + $0xe1] sm:$0xff]
    %v2484 = vld [vmem:[%s2453 + $0xf1] sm:$0xff]
    %v2485 = vld [vmem:[%s2453 + $0x101] sm:$0xff]
    %2486 = vst.msk [vmem:[#allocation6] sm:$0xff] %vm2429, %v2470
    %2487 = vst.msk [vmem:[#allocation6 + $0x8] sm:$0xff] %vm2429, %v2471
    %2488 = vst.msk [vmem:[#allocation6 + $0x10] sm:$0xff] %vm2429, %v2472
    %2489 = vst.msk [vmem:[#allocation6 + $0x18] sm:$0xff] %vm2429, %v2473
    %2490 = vst.msk [vmem:[#allocation6 + $0x20] sm:$0xff] %vm2429, %v2474
    %2491 = vst.msk [vmem:[#allocation6 + $0x28] sm:$0xff] %vm2429, %v2475
    %2492 = vst.msk [vmem:[#allocation6 + $0x30] sm:$0xff] %vm2429, %v2476
    %2493 = vst.msk [vmem:[#allocation6 + $0x38] sm:$0xff] %vm2429, %v2477
    %2494 = vst.msk [vmem:[#allocation6 + $0x40] sm:$0xff] %vm2429, %v2478
    %2495 = vst.msk [vmem:[#allocation6 + $0x48] sm:$0xff] %vm2429, %v2479
    %2496 = vst.msk [vmem:[#allocation6 + $0x50] sm:$0xff] %vm2429, %v2480
    %2497 = vst.msk [vmem:[#allocation6 + $0x58] sm:$0xff] %vm2429, %v2481
    %2498 = vst.msk [vmem:[#allocation6 + $0x60] sm:$0xff] %vm2429, %v2482
    %2499 = vst.msk [vmem:[#allocation6 + $0x68] sm:$0xff] %vm2429, %v2483
    %2500 = vst.msk [vmem:[#allocation6 + $0x70] sm:$0xff] %vm2429, %v2484
    %2501 = vst.msk [vmem:[#allocation6 + $0x78] sm:$0xff] %vm2429, %v2485
    %v2502 = vld [vmem:[#allocation3] ss:$2 sm:$0xf]
    %s2503 = scalar_lea.vmem [#allocation3], 32
    %v2504 = vld [vmem:[%s2503] ss:$2 sm:$0xf]
    %s2505 = scalar_lea.vmem [#allocation3], 64
    %v2506 = vld [vmem:[%s2505] ss:$2 sm:$0xf]
    %s2507 = scalar_lea.vmem [#allocation3], 96
    %v2508 = vld [vmem:[%s2507] ss:$2 sm:$0xf]
    %s2509 = scalar_lea.vmem [#allocation3], 144
    %v2510 = vld [vmem:[%s2509] ss:$2 sm:$0xf]
    %s2511 = scalar_lea.vmem [#allocation3], 176
    %v2512 = vld [vmem:[%s2511] ss:$2 sm:$0xf]
    %s2513 = scalar_lea.vmem [#allocation3], 208
    %v2514 = vld [vmem:[%s2513] ss:$2 sm:$0xf]
    %s2515 = scalar_lea.vmem [#allocation3], 240
    %v2516 = vld [vmem:[%s2515] ss:$2 sm:$0xf]
    %v2517 = vld [vmem:[%s4] sm:$0xff]
    %v2518 = vld [vmem:[%s4 + $0x8] sm:$0xff]
    %s2519 = scalar_lea.vmem [#allocation3], 1
    %v2520 = vld [vmem:[%s2519] ss:$2 sm:$0xf]
    %s2521 = scalar_lea.vmem [#allocation3], 33
    %v2522 = vld [vmem:[%s2521] ss:$2 sm:$0xf]
    %s2523 = scalar_lea.vmem [#allocation3], 65
    %v2524 = vld [vmem:[%s2523] ss:$2 sm:$0xf]
    %s2525 = scalar_lea.vmem [#allocation3], 97
    %v2526 = vld [vmem:[%s2525] ss:$2 sm:$0xf]
    %s2527 = scalar_lea.vmem [#allocation3], 145
    %v2528 = vld [vmem:[%s2527] ss:$2 sm:$0xf]
    %s2529 = scalar_lea.vmem [#allocation3], 177
    %v2530 = vld [vmem:[%s2529] ss:$2 sm:$0xf]
    %s2531 = scalar_lea.vmem [#allocation3], 209
    %v2532 = vld [vmem:[%s2531] ss:$2 sm:$0xf]
    %s2533 = scalar_lea.vmem [#allocation3], 241
    %v2534 = vld [vmem:[%s2533] ss:$2 sm:$0xf]
    %v2535 = vld [vmem:[%s4 + $0x10] sm:$0xff]
    %v2536 = vld [vmem:[%s4 + $0x18] sm:$0xff]
    %v2545 = vcombine.low %v2520, %v2522
    %v2546 = vcombine.low %v2524, %v2526
    %v2547 = vcombine.low %v2528, %v2530
    %v2548 = vcombine.low %v2532, %v2534
    %v2549 = vsel %vm2429, %v2545, 0
    %v2551 = vsel %vm2429, %v2546, 0
    %v2553 = vsel %vm2429, %v2547, 0
    %v2555 = vsel %vm2429, %v2548, 0
    %2557 = vmatprep.subr.mxu0 0.0
    %2558 = vmatpush1.msra.mxu0 %v2535
    %2559 = vmatprep.subr.mxu0 0.0
    %2560 = vmatpush1.msra.mxu0 %v2536
    %2561 = vmatprep.subr.mxu0 0.0
    %2562 = vmatpush1.msra.mxu0 0.0
    %2563 = vmatprep.subr.mxu0 0.0
    %2564 = vmatpush1.msra.mxu0 0.0
    %2565 = vmatprep.subr.mxu0 0.0
    %2566 = vmatpush1.msra.mxu0 0.0
    %2567 = vmatprep.subr.mxu0 0.0
    %2568 = vmatpush1.msra.mxu0 0.0
    %2569 = vmatprep.subr.mxu0 0.0
    %2570 = vmatpush1.msra.mxu0 0.0
    %2571 = vmatprep.subr.mxu0 0.0
    %2572 = vmatpush1.msra.mxu0 0.0
    %2573 = vmatprep.subr.mxu0 0.0
    %2574 = vmatpush1.msra.mxu0 0.0
    %2575 = vmatprep.subr.mxu0 0.0
    %2576 = vmatpush1.msra.mxu0 0.0
    %2577 = vmatprep.subr.mxu0 0.0
    %2578 = vmatpush1.msra.mxu0 0.0
    %2579 = vmatprep.subr.mxu0 0.0
    %2580 = vmatpush1.msra.mxu0 0.0
    %2581 = vmatprep.subr.mxu0 0.0
    %2582 = vmatpush1.msra.mxu0 0.0
    %2583 = vmatprep.subr.mxu0 0.0
    %2584 = vmatpush1.msra.mxu0 0.0
    %2585 = vmatprep.subr.mxu0 0.0
    %2586 = vmatpush1.msra.mxu0 0.0
    %2587 = vmatprep.subr.mxu0 0.0
    %2588 = vmatpush1.msra.mxu0 0.0
    %2589 = vmatprep.subr.mxu0 0.0
    %2590 = vmatpush1.msra.mxu0 0.0
    %2591 = vmatprep.subr.mxu0 0.0
    %2592 = vmatpush1.msra.mxu0 0.0
    %2593 = vmatprep.subr.mxu0 0.0
    %2594 = vmatpush1.msra.mxu0 0.0
    %2595 = vmatprep.subr.mxu0 0.0
    %2596 = vmatpush1.msra.mxu0 0.0
    %2597 = vmatprep.subr.mxu0 0.0
    %2598 = vmatpush1.msra.mxu0 0.0
    %2599 = vmatprep.subr.mxu0 0.0
    %2600 = vmatpush1.msra.mxu0 0.0
    %2601 = vmatprep.subr.mxu0 0.0
    %2602 = vmatpush1.msra.mxu0 0.0
    %2603 = vmatprep.subr.mxu0 0.0
    %2604 = vmatpush1.msra.mxu0 0.0
    %2605 = vmatprep.subr.mxu0 0.0
    %2606 = vmatpush1.msra.mxu0 0.0
    %2607 = vmatprep.subr.mxu0 0.0
    %2608 = vmatpush1.msra.mxu0 0.0
    %2609 = vmatprep.subr.mxu0 0.0
    %2610 = vmatpush1.msra.mxu0 0.0
    %2611 = vmatprep.subr.mxu0 0.0
    %2612 = vmatpush1.msra.mxu0 0.0
    %2613 = vmatprep.subr.mxu0 0.0
    %2614 = vmatpush1.msra.mxu0 0.0
    %2615 = vmatprep.subr.mxu0 0.0
    %2616 = vmatpush1.msra.mxu0 0.0
    %2617 = vmatprep.subr.mxu0 0.0
    %2618 = vmatpush1.msra.mxu0 0.0
    %2619 = vmatprep.subr.mxu0 0.0
    %2620 = vmatpush1.msra.mxu0 0.0
    %2621 = vmatprep.mubr.f32.mxu0 0.0
    %2622 = vmatmul.mubr.f32.gmra.mrb[0].mxu0 %v2549
    %v2623 = vpop.f32.mrb[0].mxu0
    %v2624 = vadd.f32 0.0, %v2623
    %v2625 = vpop.f32.mrb[0].mxu0
    %2626 = vmatprep.mubr.f32.mxu0 0.0
    %2627 = vmatmul.mubr.f32.gmra.mrb[0].mxu0 %v2551
    %v2628 = vpop.f32.mrb[0].mxu0
    %v2629 = vadd.f32 0.0, %v2628
    %v2630 = vpop.f32.mrb[0].mxu0
    %2631 = vmatprep.mubr.f32.mxu0 0.0
    %2632 = vmatmul.mubr.f32.gmra.mrb[0].mxu0 %v2553
    %v2633 = vpop.f32.mrb[0].mxu0
    %v2634 = vadd.f32 0.0, %v2633
    %v2635 = vpop.f32.mrb[0].mxu0
    %2636 = vmatprep.mubr.f32.mxu0 0.0
    %2637 = vmatmul.mubr.f32.gmra.mrb[0].mxu0 %v2555
    %v2638 = vpop.f32.mrb[0].mxu0
    %v2639 = vadd.f32 0.0, %v2638
    %v2640 = vpop.f32.mrb[0].mxu0
    %2641 = vdwg.mxu0
    %v2650 = vcombine.low %v2502, %v2504
    %v2651 = vcombine.low %v2506, %v2508
    %v2652 = vcombine.low %v2510, %v2512
    %v2653 = vcombine.low %v2514, %v2516
    %v2654 = vsel %vm2429, %v2650, 0
    %v2656 = vsel %vm2429, %v2651, 0
    %v2658 = vsel %vm2429, %v2652, 0
    %v2660 = vsel %vm2429, %v2653, 0
    %2662 = vmatprep.subr.mxu0 0.0
    %2663 = vmatpush1.msra.mxu0 %v2517
    %2664 = vmatprep.subr.mxu0 0.0
    %2665 = vmatpush1.msra.mxu0 %v2518
    %2666 = vmatprep.subr.mxu0 0.0
    %2667 = vmatpush1.msra.mxu0 0.0
    %2668 = vmatprep.subr.mxu0 0.0
    %2669 = vmatpush1.msra.mxu0 0.0
    %2670 = vmatprep.subr.mxu0 0.0
    %2671 = vmatpush1.msra.mxu0 0.0
    %2672 = vmatprep.subr.mxu0 0.0
    %2673 = vmatpush1.msra.mxu0 0.0
    %2674 = vmatprep.subr.mxu0 0.0
    %2675 = vmatpush1.msra.mxu0 0.0
    %2676 = vmatprep.subr.mxu0 0.0
    %2677 = vmatpush1.msra.mxu0 0.0
    %2678 = vmatprep.subr.mxu0 0.0
    %2679 = vmatpush1.msra.mxu0 0.0
    %2680 = vmatprep.subr.mxu0 0.0
    %2681 = vmatpush1.msra.mxu0 0.0
    %2682 = vmatprep.subr.mxu0 0.0
    %2683 = vmatpush1.msra.mxu0 0.0
    %2684 = vmatprep.subr.mxu0 0.0
    %2685 = vmatpush1.msra.mxu0 0.0
    %2686 = vmatprep.subr.mxu0 0.0
    %2687 = vmatpush1.msra.mxu0 0.0
    %2688 = vmatprep.subr.mxu0 0.0
    %2689 = vmatpush1.msra.mxu0 0.0
    %2690 = vmatprep.subr.mxu0 0.0
    %2691 = vmatpush1.msra.mxu0 0.0
    %2692 = vmatprep.subr.mxu0 0.0
    %2693 = vmatpush1.msra.mxu0 0.0
    %2694 = vmatprep.subr.mxu0 0.0
    %2695 = vmatpush1.msra.mxu0 0.0
    %2696 = vmatprep.subr.mxu0 0.0
    %2697 = vmatpush1.msra.mxu0 0.0
    %2698 = vmatprep.subr.mxu0 0.0
    %2699 = vmatpush1.msra.mxu0 0.0
    %2700 = vmatprep.subr.mxu0 0.0
    %2701 = vmatpush1.msra.mxu0 0.0
    %2702 = vmatprep.subr.mxu0 0.0
    %2703 = vmatpush1.msra.mxu0 0.0
    %2704 = vmatprep.subr.mxu0 0.0
    %2705 = vmatpush1.msra.mxu0 0.0
    %2706 = vmatprep.subr.mxu0 0.0
    %2707 = vmatpush1.msra.mxu0 0.0
    %2708 = vmatprep.subr.mxu0 0.0
    %2709 = vmatpush1.msra.mxu0 0.0
    %2710 = vmatprep.subr.mxu0 0.0
    %2711 = vmatpush1.msra.mxu0 0.0
    %2712 = vmatprep.subr.mxu0 0.0
    %2713 = vmatpush1.msra.mxu0 0.0
    %2714 = vmatprep.subr.mxu0 0.0
    %2715 = vmatpush1.msra.mxu0 0.0
    %2716 = vmatprep.subr.mxu0 0.0
    %2717 = vmatpush1.msra.mxu0 0.0
    %2718 = vmatprep.subr.mxu0 0.0
    %2719 = vmatpush1.msra.mxu0 0.0
    %2720 = vmatprep.subr.mxu0 0.0
    %2721 = vmatpush1.msra.mxu0 0.0
    %2722 = vmatprep.subr.mxu0 0.0
    %2723 = vmatpush1.msra.mxu0 0.0
    %2724 = vmatprep.subr.mxu0 0.0
    %2725 = vmatpush1.msra.mxu0 0.0
    %2726 = vmatprep.mubr.f32.mxu0 0.0
    %2727 = vmatmul.mubr.f32.gmra.mrb[0].mxu0 %v2654
    %v2728 = vpop.f32.mrb[0].mxu0
    %v2729 = vadd.f32 %v2624, %v2728
    %v2730 = vpop.f32.mrb[0].mxu0
    %2731 = vmatprep.mubr.f32.mxu0 0.0
    %2732 = vmatmul.mubr.f32.gmra.mrb[0].mxu0 %v2656
    %v2733 = vpop.f32.mrb[0].mxu0
    %v2734 = vadd.f32 %v2629, %v2733
    %v2735 = vpop.f32.mrb[0].mxu0
    %2736 = vmatprep.mubr.f32.mxu0 0.0
    %2737 = vmatmul.mubr.f32.gmra.mrb[0].mxu0 %v2658
    %v2738 = vpop.f32.mrb[0].mxu0
    %v2739 = vadd.f32 %v2634, %v2738
    %v2740 = vpop.f32.mrb[0].mxu0
    %2741 = vmatprep.mubr.f32.mxu0 0.0
    %2742 = vmatmul.mubr.f32.gmra.mrb[0].mxu0 %v2660
    %v2743 = vpop.f32.mrb[0].mxu0
    %v2744 = vadd.f32 %v2639, %v2743
    %v2745 = vpop.f32.mrb[0].mxu0
    %2746 = vdwg.mxu0
    %s2747 = scalar_lea.vmem [#allocation3], 2
    %v2748 = vld [vmem:[%s2747] ss:$2 sm:$0xf]
    %s2749 = scalar_lea.vmem [#allocation3], 34
    %v2750 = vld [vmem:[%s2749] ss:$2 sm:$0xf]
    %s2751 = scalar_lea.vmem [#allocation3], 66
    %v2752 = vld [vmem:[%s2751] ss:$2 sm:$0xf]
    %s2753 = scalar_lea.vmem [#allocation3], 98
    %v2754 = vld [vmem:[%s2753] ss:$2 sm:$0xf]
    %s2755 = scalar_lea.vmem [#allocation3], 146
    %v2756 = vld [vmem:[%s2755] ss:$2 sm:$0xf]
    %s2757 = scalar_lea.vmem [#allocation3], 178
    %v2758 = vld [vmem:[%s2757] ss:$2 sm:$0xf]
    %s2759 = scalar_lea.vmem [#allocation3], 210
    %v2760 = vld [vmem:[%s2759] ss:$2 sm:$0xf]
    %s2761 = scalar_lea.vmem [#allocation3], 242
    %v2762 = vld [vmem:[%s2761] ss:$2 sm:$0xf]
    %v2763 = vld [vmem:[%s4 + $0x20] sm:$0xff]
    %v2764 = vld [vmem:[%s4 + $0x28] sm:$0xff]
    %v2773 = vcombine.low %v2748, %v2750
    %v2774 = vcombine.low %v2752, %v2754
    %v2775 = vcombine.low %v2756, %v2758
    %v2776 = vcombine.low %v2760, %v2762
    %v2777 = vsel %vm2429, %v2773, 0
    %v2779 = vsel %vm2429, %v2774, 0
    %v2781 = vsel %vm2429, %v2775, 0
    %v2783 = vsel %vm2429, %v2776, 0
    %2785 = vmatprep.subr.mxu0 0.0
    %2786 = vmatpush1.msra.mxu0 %v2763
    %2787 = vmatprep.subr.mxu0 0.0
    %2788 = vmatpush1.msra.mxu0 %v2764
    %2789 = vmatprep.subr.mxu0 0.0
    %2790 = vmatpush1.msra.mxu0 0.0
    %2791 = vmatprep.subr.mxu0 0.0
    %2792 = vmatpush1.msra.mxu0 0.0
    %2793 = vmatprep.subr.mxu0 0.0
    %2794 = vmatpush1.msra.mxu0 0.0
    %2795 = vmatprep.subr.mxu0 0.0
    %2796 = vmatpush1.msra.mxu0 0.0
    %2797 = vmatprep.subr.mxu0 0.0
    %2798 = vmatpush1.msra.mxu0 0.0
    %2799 = vmatprep.subr.mxu0 0.0
    %2800 = vmatpush1.msra.mxu0 0.0
    %2801 = vmatprep.subr.mxu0 0.0
    %2802 = vmatpush1.msra.mxu0 0.0
    %2803 = vmatprep.subr.mxu0 0.0
    %2804 = vmatpush1.msra.mxu0 0.0
    %2805 = vmatprep.subr.mxu0 0.0
    %2806 = vmatpush1.msra.mxu0 0.0
    %2807 = vmatprep.subr.mxu0 0.0
    %2808 = vmatpush1.msra.mxu0 0.0
    %2809 = vmatprep.subr.mxu0 0.0
    %2810 = vmatpush1.msra.mxu0 0.0
    %2811 = vmatprep.subr.mxu0 0.0
    %2812 = vmatpush1.msra.mxu0 0.0
    %2813 = vmatprep.subr.mxu0 0.0
    %2814 = vmatpush1.msra.mxu0 0.0
    %2815 = vmatprep.subr.mxu0 0.0
    %2816 = vmatpush1.msra.mxu0 0.0
    %2817 = vmatprep.subr.mxu0 0.0
    %2818 = vmatpush1.msra.mxu0 0.0
    %2819 = vmatprep.subr.mxu0 0.0
    %2820 = vmatpush1.msra.mxu0 0.0
    %2821 = vmatprep.subr.mxu0 0.0
    %2822 = vmatpush1.msra.mxu0 0.0
    %2823 = vmatprep.subr.mxu0 0.0
    %2824 = vmatpush1.msra.mxu0 0.0
    %2825 = vmatprep.subr.mxu0 0.0
    %2826 = vmatpush1.msra.mxu0 0.0
    %2827 = vmatprep.subr.mxu0 0.0
    %2828 = vmatpush1.msra.mxu0 0.0
    %2829 = vmatprep.subr.mxu0 0.0
    %2830 = vmatpush1.msra.mxu0 0.0
    %2831 = vmatprep.subr.mxu0 0.0
    %2832 = vmatpush1.msra.mxu0 0.0
    %2833 = vmatprep.subr.mxu0 0.0
    %2834 = vmatpush1.msra.mxu0 0.0
    %2835 = vmatprep.subr.mxu0 0.0
    %2836 = vmatpush1.msra.mxu0 0.0
    %2837 = vmatprep.subr.mxu0 0.0
    %2838 = vmatpush1.msra.mxu0 0.0
    %2839 = vmatprep.subr.mxu0 0.0
    %2840 = vmatpush1.msra.mxu0 0.0
    %2841 = vmatprep.subr.mxu0 0.0
    %2842 = vmatpush1.msra.mxu0 0.0
    %2843 = vmatprep.subr.mxu0 0.0
    %2844 = vmatpush1.msra.mxu0 0.0
    %2845 = vmatprep.subr.mxu0 0.0
    %2846 = vmatpush1.msra.mxu0 0.0
    %2847 = vmatprep.subr.mxu0 0.0
    %2848 = vmatpush1.msra.mxu0 0.0
    %2849 = vmatprep.mubr.f32.mxu0 0.0
    %2850 = vmatmul.mubr.f32.gmra.mrb[0].mxu0 %v2777
    %v2851 = vpop.f32.mrb[0].mxu0
    %v2852 = vadd.f32 0.0, %v2851
    %v2853 = vpop.f32.mrb[0].mxu0
    %2854 = vmatprep.mubr.f32.mxu0 0.0
    %2855 = vmatmul.mubr.f32.gmra.mrb[0].mxu0 %v2779
    %v2856 = vpop.f32.mrb[0].mxu0
    %v2857 = vadd.f32 0.0, %v2856
    %v2858 = vpop.f32.mrb[0].mxu0
    %2859 = vmatprep.mubr.f32.mxu0 0.0
    %2860 = vmatmul.mubr.f32.gmra.mrb[0].mxu0 %v2781
    %v2861 = vpop.f32.mrb[0].mxu0
    %v2862 = vadd.f32 0.0, %v2861
    %v2863 = vpop.f32.mrb[0].mxu0
    %2864 = vmatprep.mubr.f32.mxu0 0.0
    %2865 = vmatmul.mubr.f32.gmra.mrb[0].mxu0 %v2783
    %v2866 = vpop.f32.mrb[0].mxu0
    %v2867 = vadd.f32 0.0, %v2866
    %v2868 = vpop.f32.mrb[0].mxu0
    %2869 = vdwg.mxu0
    %v2870 = vadd.f32 %v2729, %v2852
    %v2871 = vadd.f32 %v2734, %v2857
    %v2872 = vadd.f32 %v2739, %v2862
    %v2873 = vadd.f32 %v2744, %v2867
    %v2874 = vld [vmem:[%s2453] ss:$2 sm:$0xf]
    %s2875 = scalar_lea.vmem %s2453, 32 [#allocation3]
    %v2876 = vld [vmem:[%s2875] ss:$2 sm:$0xf]
    %s2877 = scalar_lea.vmem %s2453, 64 [#allocation3]
    %v2878 = vld [vmem:[%s2877] ss:$2 sm:$0xf]
    %s2879 = scalar_lea.vmem %s2453, 96 [#allocation3]
    %v2880 = vld [vmem:[%s2879] ss:$2 sm:$0xf]
    %s2881 = scalar_lea.vmem %s2453, 144 [#allocation3]
    %v2882 = vld [vmem:[%s2881] ss:$2 sm:$0xf]
    %s2883 = scalar_lea.vmem %s2453, 176 [#allocation3]
    %v2884 = vld [vmem:[%s2883] ss:$2 sm:$0xf]
    %s2885 = scalar_lea.vmem %s2453, 208 [#allocation3]
    %v2886 = vld [vmem:[%s2885] ss:$2 sm:$0xf]
    %s2887 = scalar_lea.vmem %s2453, 240 [#allocation3]
    %v2888 = vld [vmem:[%s2887] ss:$2 sm:$0xf]
    %v2889 = vld [vmem:[%s4 + $0x30] sm:$0xff]
    %v2890 = vld [vmem:[%s4 + $0x38] sm:$0xff]
    %v2899 = vcombine.low %v2874, %v2876
    %v2900 = vcombine.low %v2878, %v2880
    %v2901 = vcombine.low %v2882, %v2884
    %v2902 = vcombine.low %v2886, %v2888
    %v2903 = vsel %vm2429, %v2899, 0
    %v2905 = vsel %vm2429, %v2900, 0
    %v2907 = vsel %vm2429, %v2901, 0
    %v2909 = vsel %vm2429, %v2902, 0
    %2911 = vmatprep.subr.mxu0 0.0
    %2912 = vmatpush1.msra.mxu0 %v2889
    %2913 = vmatprep.subr.mxu0 0.0
    %2914 = vmatpush1.msra.mxu0 %v2890
    %2915 = vmatprep.subr.mxu0 0.0
    %2916 = vmatpush1.msra.mxu0 0.0
    %2917 = vmatprep.subr.mxu0 0.0
    %2918 = vmatpush1.msra.mxu0 0.0
    %2919 = vmatprep.subr.mxu0 0.0
    %2920 = vmatpush1.msra.mxu0 0.0
    %2921 = vmatprep.subr.mxu0 0.0
    %2922 = vmatpush1.msra.mxu0 0.0
    %2923 = vmatprep.subr.mxu0 0.0
    %2924 = vmatpush1.msra.mxu0 0.0
    %2925 = vmatprep.subr.mxu0 0.0
    %2926 = vmatpush1.msra.mxu0 0.0
    %2927 = vmatprep.subr.mxu0 0.0
    %2928 = vmatpush1.msra.mxu0 0.0
    %2929 = vmatprep.subr.mxu0 0.0
    %2930 = vmatpush1.msra.mxu0 0.0
    %2931 = vmatprep.subr.mxu0 0.0
    %2932 = vmatpush1.msra.mxu0 0.0
    %2933 = vmatprep.subr.mxu0 0.0
    %2934 = vmatpush1.msra.mxu0 0.0
    %2935 = vmatprep.subr.mxu0 0.0
    %2936 = vmatpush1.msra.mxu0 0.0
    %2937 = vmatprep.subr.mxu0 0.0
    %2938 = vmatpush1.msra.mxu0 0.0
    %2939 = vmatprep.subr.mxu0 0.0
    %2940 = vmatpush1.msra.mxu0 0.0
    %2941 = vmatprep.subr.mxu0 0.0
    %2942 = vmatpush1.msra.mxu0 0.0
    %2943 = vmatprep.subr.mxu0 0.0
    %2944 = vmatpush1.msra.mxu0 0.0
    %2945 = vmatprep.subr.mxu0 0.0
    %2946 = vmatpush1.msra.mxu0 0.0
    %2947 = vmatprep.subr.mxu0 0.0
    %2948 = vmatpush1.msra.mxu0 0.0
    %2949 = vmatprep.subr.mxu0 0.0
    %2950 = vmatpush1.msra.mxu0 0.0
    %2951 = vmatprep.subr.mxu0 0.0
    %2952 = vmatpush1.msra.mxu0 0.0
    %2953 = vmatprep.subr.mxu0 0.0
    %2954 = vmatpush1.msra.mxu0 0.0
    %2955 = vmatprep.subr.mxu0 0.0
    %2956 = vmatpush1.msra.mxu0 0.0
    %2957 = vmatprep.subr.mxu0 0.0
    %2958 = vmatpush1.msra.mxu0 0.0
    %2959 = vmatprep.subr.mxu0 0.0
    %2960 = vmatpush1.msra.mxu0 0.0
    %2961 = vmatprep.subr.mxu0 0.0
    %2962 = vmatpush1.msra.mxu0 0.0
    %2963 = vmatprep.subr.mxu0 0.0
    %2964 = vmatpush1.msra.mxu0 0.0
    %2965 = vmatprep.subr.mxu0 0.0
    %2966 = vmatpush1.msra.mxu0 0.0
    %2967 = vmatprep.subr.mxu0 0.0
    %2968 = vmatpush1.msra.mxu0 0.0
    %2969 = vmatprep.subr.mxu0 0.0
    %2970 = vmatpush1.msra.mxu0 0.0
    %2971 = vmatprep.subr.mxu0 0.0
    %2972 = vmatpush1.msra.mxu0 0.0
    %2973 = vmatprep.subr.mxu0 0.0
    %2974 = vmatpush1.msra.mxu0 0.0
    %2975 = vmatprep.mubr.f32.mxu0 0.0
    %2976 = vmatmul.mubr.f32.gmra.mrb[0].mxu0 %v2903
    %v2977 = vpop.f32.mrb[0].mxu0
    %v2978 = vadd.f32 0.0, %v2977
    %v2979 = vpop.f32.mrb[0].mxu0
    %2980 = vmatprep.mubr.f32.mxu0 0.0
    %2981 = vmatmul.mubr.f32.gmra.mrb[0].mxu0 %v2905
    %v2982 = vpop.f32.mrb[0].mxu0
    %v2983 = vadd.f32 0.0, %v2982
    %v2984 = vpop.f32.mrb[0].mxu0
    %2985 = vmatprep.mubr.f32.mxu0 0.0
    %2986 = vmatmul.mubr.f32.gmra.mrb[0].mxu0 %v2907
    %v2987 = vpop.f32.mrb[0].mxu0
    %v2988 = vadd.f32 0.0, %v2987
    %v2989 = vpop.f32.mrb[0].mxu0
    %2990 = vmatprep.mubr.f32.mxu0 0.0
    %2991 = vmatmul.mubr.f32.gmra.mrb[0].mxu0 %v2909
    %v2992 = vpop.f32.mrb[0].mxu0
    %v2993 = vadd.f32 0.0, %v2992
    %v2994 = vpop.f32.mrb[0].mxu0
    %2995 = vdwg.mxu0
    %v2996 = vadd.f32 %v2870, %v2978
    %v2997 = vadd.f32 %v2871, %v2983
    %v2998 = vadd.f32 %v2872, %v2988
    %v2999 = vadd.f32 %v2873, %v2993
    %s3000 = scalar_lea.vmem %s2453, 1 [#allocation3]
    %v3001 = vld [vmem:[%s3000] ss:$2 sm:$0xf]
    %s3002 = scalar_lea.vmem %s2453, 33 [#allocation3]
    %v3003 = vld [vmem:[%s3002] ss:$2 sm:$0xf]
    %s3004 = scalar_lea.vmem %s2453, 65 [#allocation3]
    %v3005 = vld [vmem:[%s3004] ss:$2 sm:$0xf]
    %s3006 = scalar_lea.vmem %s2453, 97 [#allocation3]
    %v3007 = vld [vmem:[%s3006] ss:$2 sm:$0xf]
    %s3008 = scalar_lea.vmem %s2453, 145 [#allocation3]
    %v3009 = vld [vmem:[%s3008] ss:$2 sm:$0xf]
    %s3010 = scalar_lea.vmem %s2453, 177 [#allocation3]
    %v3011 = vld [vmem:[%s3010] ss:$2 sm:$0xf]
    %s3012 = scalar_lea.vmem %s2453, 209 [#allocation3]
    %v3013 = vld [vmem:[%s3012] ss:$2 sm:$0xf]
    %s3014 = scalar_lea.vmem %s2453, 241 [#allocation3]
    %v3015 = vld [vmem:[%s3014] ss:$2 sm:$0xf]
    %v3016 = vld [vmem:[%s4 + $0x40] sm:$0xff]
    %v3017 = vld [vmem:[%s4 + $0x48] sm:$0xff]
    %v3026 = vcombine.low %v3001, %v3003
    %v3027 = vcombine.low %v3005, %v3007
    %v3028 = vcombine.low %v3009, %v3011
    %v3029 = vcombine.low %v3013, %v3015
    %v3030 = vsel %vm2429, %v3026, 0
    %v3032 = vsel %vm2429, %v3027, 0
    %v3034 = vsel %vm2429, %v3028, 0
    %v3036 = vsel %vm2429, %v3029, 0
    %3038 = vmatprep.subr.mxu0 0.0
    %3039 = vmatpush1.msra.mxu0 %v3016
    %3040 = vmatprep.subr.mxu0 0.0
    %3041 = vmatpush1.msra.mxu0 %v3017
    %3042 = vmatprep.subr.mxu0 0.0
    %3043 = vmatpush1.msra.mxu0 0.0
    %3044 = vmatprep.subr.mxu0 0.0
    %3045 = vmatpush1.msra.mxu0 0.0
    %3046 = vmatprep.subr.mxu0 0.0
    %3047 = vmatpush1.msra.mxu0 0.0
    %3048 = vmatprep.subr.mxu0 0.0
    %3049 = vmatpush1.msra.mxu0 0.0
    %3050 = vmatprep.subr.mxu0 0.0
    %3051 = vmatpush1.msra.mxu0 0.0
    %3052 = vmatprep.subr.mxu0 0.0
    %3053 = vmatpush1.msra.mxu0 0.0
    %3054 = vmatprep.subr.mxu0 0.0
    %3055 = vmatpush1.msra.mxu0 0.0
    %3056 = vmatprep.subr.mxu0 0.0
    %3057 = vmatpush1.msra.mxu0 0.0
    %3058 = vmatprep.subr.mxu0 0.0
    %3059 = vmatpush1.msra.mxu0 0.0
    %3060 = vmatprep.subr.mxu0 0.0
    %3061 = vmatpush1.msra.mxu0 0.0
    %3062 = vmatprep.subr.mxu0 0.0
    %3063 = vmatpush1.msra.mxu0 0.0
    %3064 = vmatprep.subr.mxu0 0.0
    %3065 = vmatpush1.msra.mxu0 0.0
    %3066 = vmatprep.subr.mxu0 0.0
    %3067 = vmatpush1.msra.mxu0 0.0
    %3068 = vmatprep.subr.mxu0 0.0
    %3069 = vmatpush1.msra.mxu0 0.0
    %3070 = vmatprep.subr.mxu0 0.0
    %3071 = vmatpush1.msra.mxu0 0.0
    %3072 = vmatprep.subr.mxu0 0.0
    %3073 = vmatpush1.msra.mxu0 0.0
    %3074 = vmatprep.subr.mxu0 0.0
    %3075 = vmatpush1.msra.mxu0 0.0
    %3076 = vmatprep.subr.mxu0 0.0
    %3077 = vmatpush1.msra.mxu0 0.0
    %3078 = vmatprep.subr.mxu0 0.0
    %3079 = vmatpush1.msra.mxu0 0.0
    %3080 = vmatprep.subr.mxu0 0.0
    %3081 = vmatpush1.msra.mxu0 0.0
    %3082 = vmatprep.subr.mxu0 0.0
    %3083 = vmatpush1.msra.mxu0 0.0
    %3084 = vmatprep.subr.mxu0 0.0
    %3085 = vmatpush1.msra.mxu0 0.0
    %3086 = vmatprep.subr.mxu0 0.0
    %3087 = vmatpush1.msra.mxu0 0.0
    %3088 = vmatprep.subr.mxu0 0.0
    %3089 = vmatpush1.msra.mxu0 0.0
    %3090 = vmatprep.subr.mxu0 0.0
    %3091 = vmatpush1.msra.mxu0 0.0
    %3092 = vmatprep.subr.mxu0 0.0
    %3093 = vmatpush1.msra.mxu0 0.0
    %3094 = vmatprep.subr.mxu0 0.0
    %3095 = vmatpush1.msra.mxu0 0.0
    %3096 = vmatprep.subr.mxu0 0.0
    %3097 = vmatpush1.msra.mxu0 0.0
    %3098 = vmatprep.subr.mxu0 0.0
    %3099 = vmatpush1.msra.mxu0 0.0
    %3100 = vmatprep.subr.mxu0 0.0
    %3101 = vmatpush1.msra.mxu0 0.0
    %3102 = vmatprep.mubr.f32.mxu0 0.0
    %3103 = vmatmul.mubr.f32.gmra.mrb[0].mxu0 %v3030
    %v3104 = vpop.f32.mrb[0].mxu0
    %v3105 = vadd.f32 0.0, %v3104
    %v3106 = vpop.f32.mrb[0].mxu0
    %3107 = vmatprep.mubr.f32.mxu0 0.0
    %3108 = vmatmul.mubr.f32.gmra.mrb[0].mxu0 %v3032
    %v3109 = vpop.f32.mrb[0].mxu0
    %v3110 = vadd.f32 0.0, %v3109
    %v3111 = vpop.f32.mrb[0].mxu0
    %3112 = vmatprep.mubr.f32.mxu0 0.0
    %3113 = vmatmul.mubr.f32.gmra.mrb[0].mxu0 %v3034
    %v3114 = vpop.f32.mrb[0].mxu0
    %v3115 = vadd.f32 0.0, %v3114
    %v3116 = vpop.f32.mrb[0].mxu0
    %3117 = vmatprep.mubr.f32.mxu0 0.0
    %3118 = vmatmul.mubr.f32.gmra.mrb[0].mxu0 %v3036
    %v3119 = vpop.f32.mrb[0].mxu0
    %v3120 = vadd.f32 0.0, %v3119
    %v3121 = vpop.f32.mrb[0].mxu0
    %3122 = vdwg.mxu0
    %v3123 = vadd.f32 %v2996, %v3105
    %v3124 = vadd.f32 %v2997, %v3110
    %v3125 = vadd.f32 %v2998, %v3115
    %v3126 = vadd.f32 %v2999, %v3120
    %s3127 = scalar_lea.vmem %s2453, 2 [#allocation3]
    %v3128 = vld [vmem:[%s3127] ss:$2 sm:$0xf]
    %s3129 = scalar_lea.vmem %s2453, 34 [#allocation3]
    %v3130 = vld [vmem:[%s3129] ss:$2 sm:$0xf]
    %s3131 = scalar_lea.vmem %s2453, 66 [#allocation3]
    %v3132 = vld [vmem:[%s3131] ss:$2 sm:$0xf]
    %s3133 = scalar_lea.vmem %s2453, 98 [#allocation3]
    %v3134 = vld [vmem:[%s3133] ss:$2 sm:$0xf]
    %s3135 = scalar_lea.vmem %s2453, 146 [#allocation3]
    %v3136 = vld [vmem:[%s3135] ss:$2 sm:$0xf]
    %s3137 = scalar_lea.vmem %s2453, 178 [#allocation3]
    %v3138 = vld [vmem:[%s3137] ss:$2 sm:$0xf]
    %s3139 = scalar_lea.vmem %s2453, 210 [#allocation3]
    %v3140 = vld [vmem:[%s3139] ss:$2 sm:$0xf]
    %s3141 = scalar_lea.vmem %s2453, 242 [#allocation3]
    %v3142 = vld [vmem:[%s3141] ss:$2 sm:$0xf]
    %v3143 = vld [vmem:[%s4 + $0x50] sm:$0xff]
    %v3144 = vld [vmem:[%s4 + $0x58] sm:$0xff]
    %v3153 = vcombine.low %v3128, %v3130
    %v3154 = vcombine.low %v3132, %v3134
    %v3155 = vcombine.low %v3136, %v3138
    %v3156 = vcombine.low %v3140, %v3142
    %v3157 = vsel %vm2429, %v3153, 0
    %v3159 = vsel %vm2429, %v3154, 0
    %v3161 = vsel %vm2429, %v3155, 0
    %v3163 = vsel %vm2429, %v3156, 0
    %3165 = vmatprep.subr.mxu0 0.0
    %3166 = vmatpush1.msra.mxu0 %v3143
    %3167 = vmatprep.subr.mxu0 0.0
    %3168 = vmatpush1.msra.mxu0 %v3144
    %3169 = vmatprep.subr.mxu0 0.0
    %3170 = vmatpush1.msra.mxu0 0.0
    %3171 = vmatprep.subr.mxu0 0.0
    %3172 = vmatpush1.msra.mxu0 0.0
    %3173 = vmatprep.subr.mxu0 0.0
    %3174 = vmatpush1.msra.mxu0 0.0
    %3175 = vmatprep.subr.mxu0 0.0
    %3176 = vmatpush1.msra.mxu0 0.0
    %3177 = vmatprep.subr.mxu0 0.0
    %3178 = vmatpush1.msra.mxu0 0.0
    %3179 = vmatprep.subr.mxu0 0.0
    %3180 = vmatpush1.msra.mxu0 0.0
    %3181 = vmatprep.subr.mxu0 0.0
    %3182 = vmatpush1.msra.mxu0 0.0
    %3183 = vmatprep.subr.mxu0 0.0
    %3184 = vmatpush1.msra.mxu0 0.0
    %3185 = vmatprep.subr.mxu0 0.0
    %3186 = vmatpush1.msra.mxu0 0.0
    %3187 = vmatprep.subr.mxu0 0.0
    %3188 = vmatpush1.msra.mxu0 0.0
    %3189 = vmatprep.subr.mxu0 0.0
    %3190 = vmatpush1.msra.mxu0 0.0
    %3191 = vmatprep.subr.mxu0 0.0
    %3192 = vmatpush1.msra.mxu0 0.0
    %3193 = vmatprep.subr.mxu0 0.0
    %3194 = vmatpush1.msra.mxu0 0.0
    %3195 = vmatprep.subr.mxu0 0.0
    %3196 = vmatpush1.msra.mxu0 0.0
    %3197 = vmatprep.subr.mxu0 0.0
    %3198 = vmatpush1.msra.mxu0 0.0
    %3199 = vmatprep.subr.mxu0 0.0
    %3200 = vmatpush1.msra.mxu0 0.0
    %3201 = vmatprep.subr.mxu0 0.0
    %3202 = vmatpush1.msra.mxu0 0.0
    %3203 = vmatprep.subr.mxu0 0.0
    %3204 = vmatpush1.msra.mxu0 0.0
    %3205 = vmatprep.subr.mxu0 0.0
    %3206 = vmatpush1.msra.mxu0 0.0
    %3207 = vmatprep.subr.mxu0 0.0
    %3208 = vmatpush1.msra.mxu0 0.0
    %3209 = vmatprep.subr.mxu0 0.0
    %3210 = vmatpush1.msra.mxu0 0.0
    %3211 = vmatprep.subr.mxu0 0.0
    %3212 = vmatpush1.msra.mxu0 0.0
    %3213 = vmatprep.subr.mxu0 0.0
    %3214 = vmatpush1.msra.mxu0 0.0
    %3215 = vmatprep.subr.mxu0 0.0
    %3216 = vmatpush1.msra.mxu0 0.0
    %3217 = vmatprep.subr.mxu0 0.0
    %3218 = vmatpush1.msra.mxu0 0.0
    %3219 = vmatprep.subr.mxu0 0.0
    %3220 = vmatpush1.msra.mxu0 0.0
    %3221 = vmatprep.subr.mxu0 0.0
    %3222 = vmatpush1.msra.mxu0 0.0
    %3223 = vmatprep.subr.mxu0 0.0
    %3224 = vmatpush1.msra.mxu0 0.0
    %3225 = vmatprep.subr.mxu0 0.0
    %3226 = vmatpush1.msra.mxu0 0.0
    %3227 = vmatprep.subr.mxu0 0.0
    %3228 = vmatpush1.msra.mxu0 0.0
    %3229 = vmatprep.mubr.f32.mxu0 0.0
    %3230 = vmatmul.mubr.f32.gmra.mrb[0].mxu0 %v3157
    %v3231 = vpop.f32.mrb[0].mxu0
    %v3232 = vadd.f32 0.0, %v3231
    %v3233 = vpop.f32.mrb[0].mxu0
    %3234 = vmatprep.mubr.f32.mxu0 0.0
    %3235 = vmatmul.mubr.f32.gmra.mrb[0].mxu0 %v3159
    %v3236 = vpop.f32.mrb[0].mxu0
    %v3237 = vadd.f32 0.0, %v3236
    %v3238 = vpop.f32.mrb[0].mxu0
    %3239 = vmatprep.mubr.f32.mxu0 0.0
    %3240 = vmatmul.mubr.f32.gmra.mrb[0].mxu0 %v3161
    %v3241 = vpop.f32.mrb[0].mxu0
    %v3242 = vadd.f32 0.0, %v3241
    %v3243 = vpop.f32.mrb[0].mxu0
    %3244 = vmatprep.mubr.f32.mxu0 0.0
    %3245 = vmatmul.mubr.f32.gmra.mrb[0].mxu0 %v3163
    %v3246 = vpop.f32.mrb[0].mxu0
    %v3247 = vadd.f32 0.0, %v3246
    %v3248 = vpop.f32.mrb[0].mxu0
    %3249 = vdwg.mxu0
    %v3250 = vadd.f32 %v3123, %v3232
    %v3251 = vadd.f32 %v3124, %v3237
    %v3252 = vadd.f32 %v3125, %v3242
    %v3253 = vadd.f32 %v3126, %v3247
    %s3254 = scalar_lea.vmem [#allocation3], 32
    %v3255 = vld [vmem:[%s3254] ss:$2 sm:$0xf]
    %s3256 = scalar_lea.vmem %s3254, 32 [#allocation3]
    %v3257 = vld [vmem:[%s3256] ss:$2 sm:$0xf]
    %s3258 = scalar_lea.vmem %s3254, 64 [#allocation3]
    %v3259 = vld [vmem:[%s3258] ss:$2 sm:$0xf]
    %s3260 = scalar_lea.vmem %s3254, 96 [#allocation3]
    %v3261 = vld [vmem:[%s3260] ss:$2 sm:$0xf]
    %s3262 = scalar_lea.vmem %s3254, 144 [#allocation3]
    %v3263 = vld [vmem:[%s3262] ss:$2 sm:$0xf]
    %s3264 = scalar_lea.vmem %s3254, 176 [#allocation3]
    %v3265 = vld [vmem:[%s3264] ss:$2 sm:$0xf]
    %s3266 = scalar_lea.vmem %s3254, 208 [#allocation3]
    %v3267 = vld [vmem:[%s3266] ss:$2 sm:$0xf]
    %s3268 = scalar_lea.vmem %s3254, 240 [#allocation3]
    %v3269 = vld [vmem:[%s3268] ss:$2 sm:$0xf]
    %v3270 = vld [vmem:[%s4 + $0x60] sm:$0xff]
    %v3271 = vld [vmem:[%s4 + $0x68] sm:$0xff]
    %v3280 = vcombine.low %v3255, %v3257
    %v3281 = vcombine.low %v3259, %v3261
    %v3282 = vcombine.low %v3263, %v3265
    %v3283 = vcombine.low %v3267, %v3269
    %v3284 = vsel %vm2429, %v3280, 0
    %v3286 = vsel %vm2429, %v3281, 0
    %v3288 = vsel %vm2429, %v3282, 0
    %v3290 = vsel %vm2429, %v3283, 0
    %3292 = vmatprep.subr.mxu0 0.0
    %3293 = vmatpush1.msra.mxu0 %v3270
    %3294 = vmatprep.subr.mxu0 0.0
    %3295 = vmatpush1.msra.mxu0 %v3271
    %3296 = vmatprep.subr.mxu0 0.0
    %3297 = vmatpush1.msra.mxu0 0.0
    %3298 = vmatprep.subr.mxu0 0.0
    %3299 = vmatpush1.msra.mxu0 0.0
    %3300 = vmatprep.subr.mxu0 0.0
    %3301 = vmatpush1.msra.mxu0 0.0
    %3302 = vmatprep.subr.mxu0 0.0
    %3303 = vmatpush1.msra.mxu0 0.0
    %3304 = vmatprep.subr.mxu0 0.0
    %3305 = vmatpush1.msra.mxu0 0.0
    %3306 = vmatprep.subr.mxu0 0.0
    %3307 = vmatpush1.msra.mxu0 0.0
    %3308 = vmatprep.subr.mxu0 0.0
    %3309 = vmatpush1.msra.mxu0 0.0
    %3310 = vmatprep.subr.mxu0 0.0
    %3311 = vmatpush1.msra.mxu0 0.0
    %3312 = vmatprep.subr.mxu0 0.0
    %3313 = vmatpush1.msra.mxu0 0.0
    %3314 = vmatprep.subr.mxu0 0.0
    %3315 = vmatpush1.msra.mxu0 0.0
    %3316 = vmatprep.subr.mxu0 0.0
    %3317 = vmatpush1.msra.mxu0 0.0
    %3318 = vmatprep.subr.mxu0 0.0
    %3319 = vmatpush1.msra.mxu0 0.0
    %3320 = vmatprep.subr.mxu0 0.0
    %3321 = vmatpush1.msra.mxu0 0.0
    %3322 = vmatprep.subr.mxu0 0.0
    %3323 = vmatpush1.msra.mxu0 0.0
    %3324 = vmatprep.subr.mxu0 0.0
    %3325 = vmatpush1.msra.mxu0 0.0
    %3326 = vmatprep.subr.mxu0 0.0
    %3327 = vmatpush1.msra.mxu0 0.0
    %3328 = vmatprep.subr.mxu0 0.0
    %3329 = vmatpush1.msra.mxu0 0.0
    %3330 = vmatprep.subr.mxu0 0.0
    %3331 = vmatpush1.msra.mxu0 0.0
    %3332 = vmatprep.subr.mxu0 0.0
    %3333 = vmatpush1.msra.mxu0 0.0
    %3334 = vmatprep.subr.mxu0 0.0
    %3335 = vmatpush1.msra.mxu0 0.0
    %3336 = vmatprep.subr.mxu0 0.0
    %3337 = vmatpush1.msra.mxu0 0.0
    %3338 = vmatprep.subr.mxu0 0.0
    %3339 = vmatpush1.msra.mxu0 0.0
    %3340 = vmatprep.subr.mxu0 0.0
    %3341 = vmatpush1.msra.mxu0 0.0
    %3342 = vmatprep.subr.mxu0 0.0
    %3343 = vmatpush1.msra.mxu0 0.0
    %3344 = vmatprep.subr.mxu0 0.0
    %3345 = vmatpush1.msra.mxu0 0.0
    %3346 = vmatprep.subr.mxu0 0.0
    %3347 = vmatpush1.msra.mxu0 0.0
    %3348 = vmatprep.subr.mxu0 0.0
    %3349 = vmatpush1.msra.mxu0 0.0
    %3350 = vmatprep.subr.mxu0 0.0
    %3351 = vmatpush1.msra.mxu0 0.0
    %3352 = vmatprep.subr.mxu0 0.0
    %3353 = vmatpush1.msra.mxu0 0.0
    %3354 = vmatprep.subr.mxu0 0.0
    %3355 = vmatpush1.msra.mxu0 0.0
    %3356 = vmatprep.mubr.f32.mxu0 0.0
    %3357 = vmatmul.mubr.f32.gmra.mrb[0].mxu0 %v3284
    %v3358 = vpop.f32.mrb[0].mxu0
    %v3359 = vadd.f32 0.0, %v3358
    %v3360 = vpop.f32.mrb[0].mxu0
    %3361 = vmatprep.mubr.f32.mxu0 0.0
    %3362 = vmatmul.mubr.f32.gmra.mrb[0].mxu0 %v3286
    %v3363 = vpop.f32.mrb[0].mxu0
    %v3364 = vadd.f32 0.0, %v3363
    %v3365 = vpop.f32.mrb[0].mxu0
    %3366 = vmatprep.mubr.f32.mxu0 0.0
    %3367 = vmatmul.mubr.f32.gmra.mrb[0].mxu0 %v3288
    %v3368 = vpop.f32.mrb[0].mxu0
    %v3369 = vadd.f32 0.0, %v3368
    %v3370 = vpop.f32.mrb[0].mxu0
    %3371 = vmatprep.mubr.f32.mxu0 0.0
    %3372 = vmatmul.mubr.f32.gmra.mrb[0].mxu0 %v3290
    %v3373 = vpop.f32.mrb[0].mxu0
    %v3374 = vadd.f32 0.0, %v3373
    %v3375 = vpop.f32.mrb[0].mxu0
    %3376 = vdwg.mxu0
    %v3377 = vadd.f32 %v3250, %v3359
    %v3378 = vadd.f32 %v3251, %v3364
    %v3379 = vadd.f32 %v3252, %v3369
    %v3380 = vadd.f32 %v3253, %v3374
    %s3381 = scalar_lea.vmem %s3254, 1 [#allocation3]
    %v3382 = vld [vmem:[%s3381] ss:$2 sm:$0xf]
    %s3383 = scalar_lea.vmem %s3254, 33 [#allocation3]
    %v3384 = vld [vmem:[%s3383] ss:$2 sm:$0xf]
    %s3385 = scalar_lea.vmem %s3254, 65 [#allocation3]
    %v3386 = vld [vmem:[%s3385] ss:$2 sm:$0xf]
    %s3387 = scalar_lea.vmem %s3254, 97 [#allocation3]
    %v3388 = vld [vmem:[%s3387] ss:$2 sm:$0xf]
    %s3389 = scalar_lea.vmem %s3254, 145 [#allocation3]
    %v3390 = vld [vmem:[%s3389] ss:$2 sm:$0xf]
    %s3391 = scalar_lea.vmem %s3254, 177 [#allocation3]
    %v3392 = vld [vmem:[%s3391] ss:$2 sm:$0xf]
    %s3393 = scalar_lea.vmem %s3254, 209 [#allocation3]
    %v3394 = vld [vmem:[%s3393] ss:$2 sm:$0xf]
    %s3395 = scalar_lea.vmem %s3254, 241 [#allocation3]
    %v3396 = vld [vmem:[%s3395] ss:$2 sm:$0xf]
    %v3397 = vld [vmem:[%s4 + $0x70] sm:$0xff]
    %v3398 = vld [vmem:[%s4 + $0x78] sm:$0xff]
    %v3407 = vcombine.low %v3382, %v3384
    %v3408 = vcombine.low %v3386, %v3388
    %v3409 = vcombine.low %v3390, %v3392
    %v3410 = vcombine.low %v3394, %v3396
    %v3411 = vsel %vm2429, %v3407, 0
    %v3413 = vsel %vm2429, %v3408, 0
    %v3415 = vsel %vm2429, %v3409, 0
    %v3417 = vsel %vm2429, %v3410, 0
    %3419 = vmatprep.subr.mxu0 0.0
    %3420 = vmatpush1.msra.mxu0 %v3397
    %3421 = vmatprep.subr.mxu0 0.0
    %3422 = vmatpush1.msra.mxu0 %v3398
    %3423 = vmatprep.subr.mxu0 0.0
    %3424 = vmatpush1.msra.mxu0 0.0
    %3425 = vmatprep.subr.mxu0 0.0
    %3426 = vmatpush1.msra.mxu0 0.0
    %3427 = vmatprep.subr.mxu0 0.0
    %3428 = vmatpush1.msra.mxu0 0.0
    %3429 = vmatprep.subr.mxu0 0.0
    %3430 = vmatpush1.msra.mxu0 0.0
    %3431 = vmatprep.subr.mxu0 0.0
    %3432 = vmatpush1.msra.mxu0 0.0
    %3433 = vmatprep.subr.mxu0 0.0
    %3434 = vmatpush1.msra.mxu0 0.0
    %3435 = vmatprep.subr.mxu0 0.0
    %3436 = vmatpush1.msra.mxu0 0.0
    %3437 = vmatprep.subr.mxu0 0.0
    %3438 = vmatpush1.msra.mxu0 0.0
    %3439 = vmatprep.subr.mxu0 0.0
    %3440 = vmatpush1.msra.mxu0 0.0
    %3441 = vmatprep.subr.mxu0 0.0
    %3442 = vmatpush1.msra.mxu0 0.0
    %3443 = vmatprep.subr.mxu0 0.0
    %3444 = vmatpush1.msra.mxu0 0.0
    %3445 = vmatprep.subr.mxu0 0.0
    %3446 = vmatpush1.msra.mxu0 0.0
    %3447 = vmatprep.subr.mxu0 0.0
    %3448 = vmatpush1.msra.mxu0 0.0
    %3449 = vmatprep.subr.mxu0 0.0
    %3450 = vmatpush1.msra.mxu0 0.0
    %3451 = vmatprep.subr.mxu0 0.0
    %3452 = vmatpush1.msra.mxu0 0.0
    %3453 = vmatprep.subr.mxu0 0.0
    %3454 = vmatpush1.msra.mxu0 0.0
    %3455 = vmatprep.subr.mxu0 0.0
    %3456 = vmatpush1.msra.mxu0 0.0
    %3457 = vmatprep.subr.mxu0 0.0
    %3458 = vmatpush1.msra.mxu0 0.0
    %3459 = vmatprep.subr.mxu0 0.0
    %3460 = vmatpush1.msra.mxu0 0.0
    %3461 = vmatprep.subr.mxu0 0.0
    %3462 = vmatpush1.msra.mxu0 0.0
    %3463 = vmatprep.subr.mxu0 0.0
    %3464 = vmatpush1.msra.mxu0 0.0
    %3465 = vmatprep.subr.mxu0 0.0
    %3466 = vmatpush1.msra.mxu0 0.0
    %3467 = vmatprep.subr.mxu0 0.0
    %3468 = vmatpush1.msra.mxu0 0.0
    %3469 = vmatprep.subr.mxu0 0.0
    %3470 = vmatpush1.msra.mxu0 0.0
    %3471 = vmatprep.subr.mxu0 0.0
    %3472 = vmatpush1.msra.mxu0 0.0
    %3473 = vmatprep.subr.mxu0 0.0
    %3474 = vmatpush1.msra.mxu0 0.0
    %3475 = vmatprep.subr.mxu0 0.0
    %3476 = vmatpush1.msra.mxu0 0.0
    %3477 = vmatprep.subr.mxu0 0.0
    %3478 = vmatpush1.msra.mxu0 0.0
    %3479 = vmatprep.subr.mxu0 0.0
    %3480 = vmatpush1.msra.mxu0 0.0
    %3481 = vmatprep.subr.mxu0 0.0
    %3482 = vmatpush1.msra.mxu0 0.0
    %3483 = vmatprep.mubr.f32.mxu0 0.0
    %3484 = vmatmul.mubr.f32.gmra.mrb[0].mxu0 %v3411
    %v3485 = vpop.f32.mrb[0].mxu0
    %v3486 = vadd.f32 0.0, %v3485
    %v3487 = vpop.f32.mrb[0].mxu0
    %3488 = vmatprep.mubr.f32.mxu0 0.0
    %3489 = vmatmul.mubr.f32.gmra.mrb[0].mxu0 %v3413
    %v3490 = vpop.f32.mrb[0].mxu0
    %v3491 = vadd.f32 0.0, %v3490
    %v3492 = vpop.f32.mrb[0].mxu0
    %3493 = vmatprep.mubr.f32.mxu0 0.0
    %3494 = vmatmul.mubr.f32.gmra.mrb[0].mxu0 %v3415
    %v3495 = vpop.f32.mrb[0].mxu0
    %v3496 = vadd.f32 0.0, %v3495
    %v3497 = vpop.f32.mrb[0].mxu0
    %3498 = vmatprep.mubr.f32.mxu0 0.0
    %3499 = vmatmul.mubr.f32.gmra.mrb[0].mxu0 %v3417
    %v3500 = vpop.f32.mrb[0].mxu0
    %v3501 = vadd.f32 0.0, %v3500
    %v3502 = vpop.f32.mrb[0].mxu0
    %3503 = vdwg.mxu0
    %v3504 = vadd.f32 %v3377, %v3486
    %v3505 = vadd.f32 %v3378, %v3491
    %v3506 = vadd.f32 %v3379, %v3496
    %v3507 = vadd.f32 %v3380, %v3501
    %s3508 = scalar_lea.vmem %s3254, 2 [#allocation3]
    %v3509 = vld [vmem:[%s3508] ss:$2 sm:$0xf]
    %s3510 = scalar_lea.vmem %s3254, 34 [#allocation3]
    %v3511 = vld [vmem:[%s3510] ss:$2 sm:$0xf]
    %s3512 = scalar_lea.vmem %s3254, 66 [#allocation3]
    %v3513 = vld [vmem:[%s3512] ss:$2 sm:$0xf]
    %s3514 = scalar_lea.vmem %s3254, 98 [#allocation3]
    %v3515 = vld [vmem:[%s3514] ss:$2 sm:$0xf]
    %s3516 = scalar_lea.vmem %s3254, 146 [#allocation3]
    %v3517 = vld [vmem:[%s3516] ss:$2 sm:$0xf]
    %s3518 = scalar_lea.vmem %s3254, 178 [#allocation3]
    %v3519 = vld [vmem:[%s3518] ss:$2 sm:$0xf]
    %s3520 = scalar_lea.vmem %s3254, 210 [#allocation3]
    %v3521 = vld [vmem:[%s3520] ss:$2 sm:$0xf]
    %s3522 = scalar_lea.vmem %s3254, 242 [#allocation3]
    %v3523 = vld [vmem:[%s3522] ss:$2 sm:$0xf]
    %v3524 = vld [vmem:[%s4 + $0x80] sm:$0xff]
    %v3525 = vld [vmem:[%s4 + $0x88] sm:$0xff]
    %v3534 = vcombine.low %v3509, %v3511
    %v3535 = vcombine.low %v3513, %v3515
    %v3536 = vcombine.low %v3517, %v3519
    %v3537 = vcombine.low %v3521, %v3523
    %v3538 = vsel %vm2429, %v3534, 0
    %v3540 = vsel %vm2429, %v3535, 0
    %v3542 = vsel %vm2429, %v3536, 0
    %v3544 = vsel %vm2429, %v3537, 0
    %3546 = vmatprep.subr.mxu0 0.0
    %3547 = vmatpush1.msra.mxu0 %v3524
    %3548 = vmatprep.subr.mxu0 0.0
    %3549 = vmatpush1.msra.mxu0 %v3525
    %3550 = vmatprep.subr.mxu0 0.0
    %3551 = vmatpush1.msra.mxu0 0.0
    %3552 = vmatprep.subr.mxu0 0.0
    %3553 = vmatpush1.msra.mxu0 0.0
    %3554 = vmatprep.subr.mxu0 0.0
    %3555 = vmatpush1.msra.mxu0 0.0
    %3556 = vmatprep.subr.mxu0 0.0
    %3557 = vmatpush1.msra.mxu0 0.0
    %3558 = vmatprep.subr.mxu0 0.0
    %3559 = vmatpush1.msra.mxu0 0.0
    %3560 = vmatprep.subr.mxu0 0.0
    %3561 = vmatpush1.msra.mxu0 0.0
    %3562 = vmatprep.subr.mxu0 0.0
    %3563 = vmatpush1.msra.mxu0 0.0
    %3564 = vmatprep.subr.mxu0 0.0
    %3565 = vmatpush1.msra.mxu0 0.0
    %3566 = vmatprep.subr.mxu0 0.0
    %3567 = vmatpush1.msra.mxu0 0.0
    %3568 = vmatprep.subr.mxu0 0.0
    %3569 = vmatpush1.msra.mxu0 0.0
    %3570 = vmatprep.subr.mxu0 0.0
    %3571 = vmatpush1.msra.mxu0 0.0
    %3572 = vmatprep.subr.mxu0 0.0
    %3573 = vmatpush1.msra.mxu0 0.0
    %3574 = vmatprep.subr.mxu0 0.0
    %3575 = vmatpush1.msra.mxu0 0.0
    %3576 = vmatprep.subr.mxu0 0.0
    %3577 = vmatpush1.msra.mxu0 0.0
    %3578 = vmatprep.subr.mxu0 0.0
    %3579 = vmatpush1.msra.mxu0 0.0
    %3580 = vmatprep.subr.mxu0 0.0
    %3581 = vmatpush1.msra.mxu0 0.0
    %3582 = vmatprep.subr.mxu0 0.0
    %3583 = vmatpush1.msra.mxu0 0.0
    %3584 = vmatprep.subr.mxu0 0.0
    %3585 = vmatpush1.msra.mxu0 0.0
    %3586 = vmatprep.subr.mxu0 0.0
    %3587 = vmatpush1.msra.mxu0 0.0
    %3588 = vmatprep.subr.mxu0 0.0
    %3589 = vmatpush1.msra.mxu0 0.0
    %3590 = vmatprep.subr.mxu0 0.0
    %3591 = vmatpush1.msra.mxu0 0.0
    %3592 = vmatprep.subr.mxu0 0.0
    %3593 = vmatpush1.msra.mxu0 0.0
    %3594 = vmatprep.subr.mxu0 0.0
    %3595 = vmatpush1.msra.mxu0 0.0
    %3596 = vmatprep.subr.mxu0 0.0
    %3597 = vmatpush1.msra.mxu0 0.0
    %3598 = vmatprep.subr.mxu0 0.0
    %3599 = vmatpush1.msra.mxu0 0.0
    %3600 = vmatprep.subr.mxu0 0.0
    %3601 = vmatpush1.msra.mxu0 0.0
    %3602 = vmatprep.subr.mxu0 0.0
    %3603 = vmatpush1.msra.mxu0 0.0
    %3604 = vmatprep.subr.mxu0 0.0
    %3605 = vmatpush1.msra.mxu0 0.0
    %3606 = vmatprep.subr.mxu0 0.0
    %3607 = vmatpush1.msra.mxu0 0.0
    %3608 = vmatprep.subr.mxu0 0.0
    %3609 = vmatpush1.msra.mxu0 0.0
    %3610 = vmatprep.mubr.f32.mxu0 0.0
    %3611 = vmatmul.mubr.f32.gmra.mrb[0].mxu0 %v3538
    %v3612 = vpop.f32.mrb[0].mxu0
    %v3613 = vadd.f32 0.0, %v3612
    %v3614 = vpop.f32.mrb[0].mxu0
    %3615 = vmatprep.mubr.f32.mxu0 0.0
    %3616 = vmatmul.mubr.f32.gmra.mrb[0].mxu0 %v3540
    %v3617 = vpop.f32.mrb[0].mxu0
    %v3618 = vadd.f32 0.0, %v3617
    %v3619 = vpop.f32.mrb[0].mxu0
    %3620 = vmatprep.mubr.f32.mxu0 0.0
    %3621 = vmatmul.mubr.f32.gmra.mrb[0].mxu0 %v3542
    %v3622 = vpop.f32.mrb[0].mxu0
    %v3623 = vadd.f32 0.0, %v3622
    %v3624 = vpop.f32.mrb[0].mxu0
    %3625 = vmatprep.mubr.f32.mxu0 0.0
    %3626 = vmatmul.mubr.f32.gmra.mrb[0].mxu0 %v3544
    %v3627 = vpop.f32.mrb[0].mxu0
    %v3628 = vadd.f32 0.0, %v3627
    %v3629 = vpop.f32.mrb[0].mxu0
    %3630 = vdwg.mxu0
    %v3631 = vadd.f32 %v3504, %v3613
    %v3632 = vadd.f32 %v3505, %v3618
    %v3633 = vadd.f32 %v3506, %v3623
    %v3634 = vadd.f32 %v3507, %v3628
    %v3639 = vcombine.high %v3631, %v3631
    %v3640 = vcombine.high %v3632, %v3632
    %v3641 = vcombine.high %v3633, %v3633
    %v3642 = vcombine.high %v3634, %v3634
    %vm3647 = vcmask 257024
    %3648 = vst.msk [vmem:[#allocation4] sm:$0xf] %vm3647, %v3631
    %3649 = vst.msk [vmem:[#allocation4 + $0x4] sm:$0xf] %vm3647, %v3639
    %3650 = vst.msk [vmem:[#allocation4 + $0x8] sm:$0xf] %vm3647, %v3632
    %3651 = vst.msk [vmem:[#allocation4 + $0xc] sm:$0xf] %vm3647, %v3640
    %3652 = vst.msk [vmem:[#allocation4 + $0x10] sm:$0xf] %vm3647, %v3633
    %3653 = vst.msk [vmem:[#allocation4 + $0x14] sm:$0xf] %vm3647, %v3641
    %3654 = vst.msk [vmem:[#allocation4 + $0x18] sm:$0xf] %vm3647, %v3634
    %3655 = vst.msk [vmem:[#allocation4 + $0x1c] sm:$0xf] %vm3647, %v3642
    // Predicated region
    $region22: #{densenet_initial_layers.3} parent=1 // pred_check
      _
    $region23: #{densenet_initial_layers.3} parent=1 // pred_check_branch
      %3657 = sbr.rel (0) target = $region25
    $region24: #{densenet_initial_layers.3} parent=1 // pred_region
      %s3659 = ssub.s32 512, 512
      %3660 = vsyncadd [#allocation5], %s3659
      %s3661 = sshll.u32 [#allocation4], 4
      %s3662 = int_to_ptr.vmem [resolvable:$true] %s3661
      %3667 = dma.vmem_to_hbm [thread:$0]  %s3662, 512, %s5, [#allocation5], 64, 64, 4
    $region25: #{densenet_initial_layers.3} parent=1 // pred_fallthru
      _
    // Predicated region
    $region26: #{densenet_initial_layers.3} parent=1 // pred_check
      _
    $region27: #{densenet_initial_layers.3} parent=1 // pred_check_branch
      %3669 = sbr.rel (0) target = $region29
    $region28: #{densenet_initial_layers.3} parent=1 // pred_region
      %s3671 = ssub.s32 2048, 2048
      %3672 = vsyncadd [#allocation7], %s3671
      %s3673 = sshll.u32 [#allocation6], 4
      %s3674 = int_to_ptr.vmem [resolvable:$true] %s3673
      %3679 = dma.vmem_to_hbm [thread:$0]  %s3674, 2048, %s6, [#allocation7], 128, 128, 8
    $region29: #{densenet_initial_layers.3} parent=1 // pred_fallthru
      _
    // Predicated region
    $region30: #{densenet_initial_layers.3} parent=1 // pred_check
      _
    $region31: #{densenet_initial_layers.3} parent=1 // pred_check_branch
      %3681 = sbr.rel (0) target = $region33
    $region32: #{densenet_initial_layers.3} parent=1 // pred_region
      %3682 = dma.done [#allocation5], 512
    $region33: #{densenet_initial_layers.3} parent=1 // pred_fallthru
      _
    // Predicated region
    $region34: #{densenet_initial_layers.3} parent=1 // pred_check
      _
    $region35: #{densenet_initial_layers.3} parent=1 // pred_check_branch
      %3684 = sbr.rel (0) target = $region37
    $region36: #{densenet_initial_layers.3} parent=1 // pred_region
      %3685 = dma.done [#allocation7], 2048
    $region37: #{densenet_initial_layers.3} parent=1 // pred_fallthru
      _
    %3686 = vsyncpa [#allocation5], 1
    %3687 = vsyncpa [#allocation7], 1

</llo_original>
